<compile_context>
chip_gen: v7x
topology: tpu7x:2x2x1
jax: 0.10.0
libtpu: 0.0.40
codegen_flags: <defaults>
</compile_context>

<pallas_src>
import math
import numpy as np

import jax
import jax.numpy as jnp
from jax import lax
from jax.experimental import pallas as pl
from jax.experimental.pallas import tpu as pltpu

# ------------------------- configuration -------------------------
GAUSS_START = 0.5
GAUSS_END = 5.0
NUM_GAUSS = 8                       # c
LMAX = 3                            # l
L2 = (LMAX + 1) ** 2                # number of (l, m) components = 16
D = L2 * NUM_GAUSS                  # output feature dim = 128 (lane axis)
TN = 2048                           # rows per grid step (sweep 1024-4096; at
                                    # >=8192 set vmem_limit_bytes, esp. on v7x)
CHUNK = 256                         # rows per in-kernel epilogue chunk
K_STACK = 24                        # 16 SH polys + r^2 + log r + 6 zero pad
                                    # rows (sublane multiple of 8)

SQRT_4PI = math.sqrt(4.0 * math.pi)
assert LMAX == 3, "spherical-harmonic table below is written for lmax == 3"
assert D % 128 == 0, "feature dim must stay lane-dense (pad tables otherwise)"
assert TN % CHUNK == 0 and CHUNK % 128 == 0

# ---------------- real SH (e3nn 'integral'), split into -----------------
# ---------------- raw polynomials x outer constants ---------------------
_C0 = 1.0 / SQRT_4PI
_C1 = math.sqrt(3.0) / SQRT_4PI
_C2 = math.sqrt(5.0) / SQRT_4PI
_C3 = math.sqrt(7.0) / SQRT_4PI

SH_PREFACTOR = np.array([
    _C0,                                                          # l = 0
    _C1, _C1, _C1,                                                # l = 1
    _C2 * math.sqrt(3.0), _C2 * math.sqrt(3.0), _C2,              # l = 2
    _C2 * math.sqrt(3.0), _C2 * math.sqrt(3.0) / 2.0,
    _C3 * math.sqrt(5.0 / 8.0), _C3 * math.sqrt(15.0),            # l = 3
    _C3 * math.sqrt(3.0 / 8.0), _C3 * 0.5,
    _C3 * math.sqrt(3.0 / 8.0), _C3 * math.sqrt(15.0) / 2.0,
    _C3 * math.sqrt(5.0 / 8.0),
], dtype=np.float64)


def _sh_raw_polys(ux, uy, uz):
    """Raw polynomials of the real SH (e3nn order, outer constants removed)."""
    x2, y2, z2 = ux * ux, uy * uy, uz * uz
    x2z2 = x2 + z2
    return [
        jnp.ones_like(ux),                                        # l = 0
        ux, uy, uz,                                               # l = 1
        ux * uz, ux * uy, y2 - 0.5 * x2z2, uy * uz, z2 - x2,      # l = 2
        ux * (3.0 * z2 - x2), ux * uy * uz,                       # l = 3
        ux * (4.0 * y2 - x2z2), uy * (2.0 * y2 - 3.0 * x2z2),
        uz * (4.0 * y2 - x2z2), uy * (z2 - x2), uz * (z2 - 3.0 * x2),
    ]


# --------------------------- constant tables ---------------------------
def _lcm_tables():
    """Per-output-column tables in lcm order (float64 numpy)."""
    gauss = np.linspace(GAUSS_START, GAUSS_END, NUM_GAUSS).astype(np.float64)
    power = np.arange(LMAX + 1, dtype=np.float64) + 1.5
    numerator = power[:, None] * np.log(2.0 * gauss)[None, :] + math.log(2.0)
    denominator = np.array([math.lgamma(p) for p in power])[:, None]
    lognorm = (numerator - denominator) / 2.0                     # (L+1, C)

    gauss_lcm = np.zeros(D)
    l_lcm = np.zeros(D)
    lognorm_lcm = np.zeros(D)
    lm_index = np.zeros(D, dtype=np.int64)
    d = 0
    for l in range(LMAX + 1):
        for c in range(NUM_GAUSS):
            for m in range(2 * l + 1):
                gauss_lcm[d] = gauss[c]
                l_lcm[d] = float(l)
                lognorm_lcm[d] = lognorm[l, c]
                lm_index[d] = l * l + m
                d += 1
    assert d == D
    return gauss_lcm, l_lcm, lognorm_lcm, lm_index


def build_constants():
    """Fused (K_STACK, 2*D) block-diagonal constant [[sel_scaled, 0], [0, radc]].

    Column d < D  : one nonzero at row lm(d) = SH prefactor(l,m) * exp(lognorm_{l,c}).
    Column D + d  : row 16 = -gauss_c(d), row 17 = l(d); rest zero.
    """
    gauss_lcm, l_lcm, lognorm_lcm, lm_index = _lcm_tables()
    fused = np.zeros((K_STACK, 2 * D), dtype=np.float64)
    fused[lm_index, np.arange(D)] = SH_PREFACTOR[lm_index] * np.exp(lognorm_lcm)
    fused[L2, D:] = -gauss_lcm          # row 16 pairs with r^2
    fused[L2 + 1, D:] = l_lcm           # row 17 pairs with log r
    return jnp.asarray(fused, dtype=jnp.float32)


# ------------------------------ kernel ------------------------------
def gaussian_orbital_kernel(vec_ref, const_ref, out_ref):
    # vec_ref  : (3, TN)          rows x, y, z (batch is lane-dense)
    # const_ref: (K_STACK, 2*D)   fused block-diagonal constant
    # out_ref  : (TN, D)
    tn = out_ref.shape[0]
    n_chunks = tn // CHUNK
    dn = (((0,), (0,)), ((), ()))

    # Static-slice chunk loop: keeps per-chunk vreg working set small while
    # the grid-level DMA tile stays large.
    for j in range(n_chunks):
        s = j * CHUNK
        x = vec_ref[0:1, s:s + CHUNK]
        y = vec_ref[1:2, s:s + CHUNK]
        z = vec_ref[2:3, s:s + CHUNK]

        r = jnp.sqrt(x * x + y * y + z * z) + 1e-8   # matches torch: norm + 1e-8
        inv_r = 1.0 / r
        ux, uy, uz = x * inv_r, y * inv_r, z * inv_r

        polys = _sh_raw_polys(ux, uy, uz)            # 16 x (1, CHUNK)
        r2 = r * r
        logr = jnp.log(r)
        pad = jnp.zeros((K_STACK - L2 - 2, CHUNK), jnp.float32)
        lhs = jnp.concatenate(polys + [r2, logr, pad], axis=0)   # (24, CHUNK)

        # Single fused MXU matmul, contracting the small sublane axis:
        #   res[n, d]     = sum_lm sh[lm, n] * sel[lm, d]              (d <  D)
        #   res[n, D + d] = -gauss_c(d) * r2[n] + l(d) * log r[n]      (d >= D)
        res = lax.dot_general(lhs, const_ref[...], dn,
                              precision=lax.Precision.HIGHEST,
                              preferred_element_type=jnp.float32)   # (CHUNK, 2D)

        out_ref[s:s + CHUNK, :] = (
            jnp.exp(res[:, D:]) * res[:, :D]).astype(out_ref.dtype)


# --------------------------- host-side glue ---------------------------
def gaussian_orbital(vec, fused_const, *, row_tile=TN, out_dtype=jnp.float32):
    """vec: (..., 3) float -> (..., (lmax+1)^2 * num_gauss) out_dtype."""
    lead_shape = vec.shape[:-1]
    n = int(np.prod(lead_shape)) if lead_shape else 1

    # Clamp the tile for small inputs so we don't pad/compute thousands of
    # dead rows; always a multiple of CHUNK.
    row_tile = max(CHUNK, min(row_tile, CHUNK * pl.cdiv(n, CHUNK)))
    assert row_tile % CHUNK == 0

    vec_t = vec.reshape(n, 3).astype(jnp.float32).T            # (3, n)
    n_pad = row_tile * pl.cdiv(n, row_tile)
    if n_pad != n:
        vec_t = jnp.pad(vec_t, ((0, 0), (0, n_pad - n)))       # zero rows benign

    out = pl.pallas_call(
        gaussian_orbital_kernel,
        out_shape=jax.ShapeDtypeStruct((n_pad, D), out_dtype),
        grid_spec=pltpu.PrefetchScalarGridSpec(
            num_scalar_prefetch=0,
            grid=(n_pad // row_tile,),
            in_specs=[
                pl.BlockSpec((3, row_tile), lambda i: (0, i)),
                pl.BlockSpec((K_STACK, 2 * D), lambda i: (0, 0)),
            ],
            out_specs=pl.BlockSpec((row_tile, D), lambda i: (i, 0)),
        ),
        compiler_params=pltpu.CompilerParams(
            dimension_semantics=("parallel",)),
    )(vec_t, fused_const)

    if n_pad != n:
        out = out[:n]
    return out.reshape(*lead_shape, D)


def gaussian_orbital_ref(vec):
    """Plain-JAX reference implementing the canonical (un-folded) formula."""
    lead_shape = vec.shape[:-1]
    v = vec.reshape(-1, 3).astype(jnp.float32)
    x, y, z = v[:, 0:1], v[:, 1:2], v[:, 2:3]
    r = jnp.sqrt(x * x + y * y + z * z) + 1e-8
    inv_r = 1.0 / r
    ux, uy, uz = x * inv_r, y * inv_r, z * inv_r

    polys = _sh_raw_polys(ux, uy, uz)
    sh = [jnp.float32(SH_PREFACTOR[i]) * polys[i] for i in range(L2)]  # e3nn SH

    gauss_lcm, l_lcm, lognorm_lcm, lm_index = _lcm_tables()
    gauss_row = jnp.asarray(gauss_lcm, jnp.float32)[None, :]
    l_row = jnp.asarray(l_lcm, jnp.float32)[None, :]
    lognorm_row = jnp.asarray(lognorm_lcm, jnp.float32)[None, :]
    sel01 = jnp.asarray(lm_index[None, :] == np.arange(L2)[:, None], jnp.float32)

    radial = jnp.exp(-(r * r) * gauss_row + jnp.log(r) * l_row + lognorm_row)
    ang = sum(sh[i] * sel01[i:i + 1, :] for i in range(L2))
    return (radial * ang).reshape(*lead_shape, D)


if __name__ == "__main__":
    key = jax.random.PRNGKey(0)
    # "..." batch dims = (2, 300) -> 600 rows: exercises host padding to the
    # (clamped) row tile of 768 rows. Last dim = 3 (un-normalized vectors).
    vec = jax.random.normal(key, (2, 300, 3), dtype=jnp.float32)

    fused_const = build_constants()

    out = gaussian_orbital(vec, fused_const)
    out = jax.block_until_ready(out)
    assert out.shape == (2, 300, D)

    ref = gaussian_orbital_ref(vec)
    np.testing.assert_allclose(np.asarray(out), np.asarray(ref),
                               rtol=1e-5, atol=1e-5)
    print("KERNEL_OK")
</pallas_src>

<mosaic_0001>
module attributes {stable_mosaic.version = 11 : i64} {
  func.func @gaussian_orbital_kernel(%arg0: i32, %arg1: memref<3x768xf32, #tpu.memory_space<vmem>>, %arg2: memref<24x256xf32, #tpu.memory_space<vmem>>, %arg3: memref<768x128xf32, #tpu.memory_space<vmem>>) attributes {dimension_semantics = [#tpu.dimension_semantics<parallel>], iteration_bounds = array<i64: 1>, scalar_prefetch = 0 : i64, scratch_operands = 0 : i64, tpu.core_type = #tpu.core_type<tc>, window_params = [{transform_indices = @transform_0, window_bounds = array<i64: 3, 768>}, {pipeline_mode = #tpu.pipeline_mode<synchronous>, transform_indices = @transform_1, window_bounds = array<i64: 24, 256>}, {transform_indices = @transform_2, window_bounds = array<i64: 768, 128>}]} {
    %c0 = arith.constant 0 : index
    %c0_0 = arith.constant 0 : index
    %0 = vector.load %arg1[%c0, %c0_0] : memref<3x768xf32, #tpu.memory_space<vmem>>, vector<1x256xf32>
    %c1 = arith.constant 1 : index
    %c0_1 = arith.constant 0 : index
    %1 = vector.load %arg1[%c1, %c0_1] : memref<3x768xf32, #tpu.memory_space<vmem>>, vector<1x256xf32>
    %c2 = arith.constant 2 : index
    %c0_2 = arith.constant 0 : index
    %2 = vector.load %arg1[%c2, %c0_2] : memref<3x768xf32, #tpu.memory_space<vmem>>, vector<1x256xf32>
    %3 = arith.mulf %0, %0 : vector<1x256xf32>
    %4 = arith.mulf %1, %1 : vector<1x256xf32>
    %5 = arith.addf %3, %4 : vector<1x256xf32>
    %6 = arith.mulf %2, %2 : vector<1x256xf32>
    %7 = arith.addf %5, %6 : vector<1x256xf32>
    %8 = math.sqrt %7 : vector<1x256xf32>
    %cst = arith.constant 9.99999993E-9 : f32
    %9 = vector.broadcast %cst : f32 to vector<1x256xf32>
    %10 = arith.addf %8, %9 : vector<1x256xf32>
    %cst_3 = arith.constant 1.000000e+00 : f32
    %11 = vector.broadcast %cst_3 : f32 to vector<1x256xf32>
    %12 = arith.divf %11, %10 : vector<1x256xf32>
    %13 = arith.mulf %0, %12 : vector<1x256xf32>
    %14 = arith.mulf %1, %12 : vector<1x256xf32>
    %15 = arith.mulf %2, %12 : vector<1x256xf32>
    %16 = arith.mulf %13, %13 : vector<1x256xf32>
    %17 = arith.mulf %14, %14 : vector<1x256xf32>
    %18 = arith.mulf %15, %15 : vector<1x256xf32>
    %19 = arith.addf %16, %18 : vector<1x256xf32>
    %cst_4 = arith.constant 1.000000e+00 : f32
    %20 = vector.broadcast %cst_4 : f32 to vector<1x256xf32>
    %21 = arith.mulf %13, %15 : vector<1x256xf32>
    %22 = arith.mulf %13, %14 : vector<1x256xf32>
    %cst_5 = arith.constant 5.000000e-01 : f32
    %23 = vector.broadcast %cst_5 : f32 to vector<1x256xf32>
    %24 = arith.mulf %23, %19 : vector<1x256xf32>
    %25 = arith.subf %17, %24 : vector<1x256xf32>
    %26 = arith.mulf %14, %15 : vector<1x256xf32>
    %27 = arith.subf %18, %16 : vector<1x256xf32>
    %cst_6 = arith.constant 3.000000e+00 : f32
    %28 = vector.broadcast %cst_6 : f32 to vector<1x256xf32>
    %29 = arith.mulf %28, %18 : vector<1x256xf32>
    %30 = arith.subf %29, %16 : vector<1x256xf32>
    %31 = arith.mulf %13, %30 : vector<1x256xf32>
    %32 = arith.mulf %13, %14 : vector<1x256xf32>
    %33 = arith.mulf %32, %15 : vector<1x256xf32>
    %cst_7 = arith.constant 4.000000e+00 : f32
    %34 = vector.broadcast %cst_7 : f32 to vector<1x256xf32>
    %35 = arith.mulf %34, %17 : vector<1x256xf32>
    %36 = arith.subf %35, %19 : vector<1x256xf32>
    %37 = arith.mulf %13, %36 : vector<1x256xf32>
    %cst_8 = arith.constant 2.000000e+00 : f32
    %38 = vector.broadcast %cst_8 : f32 to vector<1x256xf32>
    %39 = arith.mulf %38, %17 : vector<1x256xf32>
    %cst_9 = arith.constant 3.000000e+00 : f32
    %40 = vector.broadcast %cst_9 : f32 to vector<1x256xf32>
    %41 = arith.mulf %40, %19 : vector<1x256xf32>
    %42 = arith.subf %39, %41 : vector<1x256xf32>
    %43 = arith.mulf %14, %42 : vector<1x256xf32>
    %cst_10 = arith.constant 4.000000e+00 : f32
    %44 = vector.broadcast %cst_10 : f32 to vector<1x256xf32>
    %45 = arith.mulf %44, %17 : vector<1x256xf32>
    %46 = arith.subf %45, %19 : vector<1x256xf32>
    %47 = arith.mulf %15, %46 : vector<1x256xf32>
    %48 = arith.subf %18, %16 : vector<1x256xf32>
    %49 = arith.mulf %14, %48 : vector<1x256xf32>
    %cst_11 = arith.constant 3.000000e+00 : f32
    %50 = vector.broadcast %cst_11 : f32 to vector<1x256xf32>
    %51 = arith.mulf %50, %16 : vector<1x256xf32>
    %52 = arith.subf %18, %51 : vector<1x256xf32>
    %53 = arith.mulf %15, %52 : vector<1x256xf32>
    %54 = arith.mulf %10, %10 : vector<1x256xf32>
    %55 = math.log %10 : vector<1x256xf32>
    %cst_12 = arith.constant 0.000000e+00 : f32
    %56 = vector.broadcast %cst_12 : f32 to vector<6x256xf32>
    %57 = tpu.concatenate %20, %13, %14, %15, %21, %22, %25, %26, %27, %31, %33, %37, %43, %47, %49, %53 in 0 : vector<1x256xf32>, vector<1x256xf32>, vector<1x256xf32>, vector<1x256xf32>, vector<1x256xf32>, vector<1x256xf32>, vector<1x256xf32>, vector<1x256xf32>, vector<1x256xf32>, vector<1x256xf32>, vector<1x256xf32>, vector<1x256xf32>, vector<1x256xf32>, vector<1x256xf32>, vector<1x256xf32>, vector<1x256xf32> -> vector<16x256xf32>
    %58 = tpu.concatenate %54, %55, %56 in 0 : vector<1x256xf32>, vector<1x256xf32>, vector<6x256xf32> -> vector<8x256xf32>
    %59 = tpu.concatenate %57, %58 in 0 : vector<16x256xf32>, vector<8x256xf32> -> vector<24x256xf32>
    %c0_13 = arith.constant 0 : index
    %c0_14 = arith.constant 0 : index
    %60 = vector.load %arg2[%c0_13, %c0_14] : memref<24x256xf32, #tpu.memory_space<vmem>>, vector<24x256xf32>
    %cst_15 = arith.constant dense<0.000000e+00> : vector<256x256xf32>
    %61 = tpu.matmul %59, %60, %cst_15 {dimension_numbers = #tpu.dot_dimension_numbers<[0], [0], [1], [1], [0, 1, 1, 1], [], []>, precision = #tpu.contract_precision<fp32>} : vector<24x256xf32>, vector<24x256xf32>, vector<256x256xf32> -> vector<256x256xf32>
    %62 = vector.extract_strided_slice %61 {offsets = [0, 128], sizes = [256, 128], strides = [1, 1]} : vector<256x256xf32> to vector<256x128xf32>
    %63 = math.exp %62 : vector<256x128xf32>
    %64 = vector.extract_strided_slice %61 {offsets = [0, 0], sizes = [256, 128], strides = [1, 1]} : vector<256x256xf32> to vector<256x128xf32>
    %65 = arith.mulf %63, %64 : vector<256x128xf32>
    %c0_16 = arith.constant 0 : index
    %c0_17 = arith.constant 0 : index
    %66 = vector.load %arg3[%c0_16, %c0_17] : memref<768x128xf32, #tpu.memory_space<vmem>>, vector<256x128xf32>
    tpu.vector_store %arg3[%c0_16, %c0_17], %65 {strides = array<i32>} : memref<768x128xf32, #tpu.memory_space<vmem>>, vector<256x128xf32>,
    %c0_18 = arith.constant 0 : index
    %c256 = arith.constant 256 : index
    %67 = vector.load %arg1[%c0_18, %c256] : memref<3x768xf32, #tpu.memory_space<vmem>>, vector<1x256xf32>
    %c1_19 = arith.constant 1 : index
    %c256_20 = arith.constant 256 : index
    %68 = vector.load %arg1[%c1_19, %c256_20] : memref<3x768xf32, #tpu.memory_space<vmem>>, vector<1x256xf32>
    %c2_21 = arith.constant 2 : index
    %c256_22 = arith.constant 256 : index
    %69 = vector.load %arg1[%c2_21, %c256_22] : memref<3x768xf32, #tpu.memory_space<vmem>>, vector<1x256xf32>
    %70 = arith.mulf %67, %67 : vector<1x256xf32>
    %71 = arith.mulf %68, %68 : vector<1x256xf32>
    %72 = arith.addf %70, %71 : vector<1x256xf32>
    %73 = arith.mulf %69, %69 : vector<1x256xf32>
    %74 = arith.addf %72, %73 : vector<1x256xf32>
    %75 = math.sqrt %74 : vector<1x256xf32>
    %cst_23 = arith.constant 9.99999993E-9 : f32
    %76 = vector.broadcast %cst_23 : f32 to vector<1x256xf32>
    %77 = arith.addf %75, %76 : vector<1x256xf32>
    %cst_24 = arith.constant 1.000000e+00 : f32
    %78 = vector.broadcast %cst_24 : f32 to vector<1x256xf32>
    %79 = arith.divf %78, %77 : vector<1x256xf32>
    %80 = arith.mulf %67, %79 : vector<1x256xf32>
    %81 = arith.mulf %68, %79 : vector<1x256xf32>
    %82 = arith.mulf %69, %79 : vector<1x256xf32>
    %83 = arith.mulf %80, %80 : vector<1x256xf32>
    %84 = arith.mulf %81, %81 : vector<1x256xf32>
    %85 = arith.mulf %82, %82 : vector<1x256xf32>
    %86 = arith.addf %83, %85 : vector<1x256xf32>
    %cst_25 = arith.constant 1.000000e+00 : f32
    %87 = vector.broadcast %cst_25 : f32 to vector<1x256xf32>
    %88 = arith.mulf %80, %82 : vector<1x256xf32>
    %89 = arith.mulf %80, %81 : vector<1x256xf32>
    %cst_26 = arith.constant 5.000000e-01 : f32
    %90 = vector.broadcast %cst_26 : f32 to vector<1x256xf32>
    %91 = arith.mulf %90, %86 : vector<1x256xf32>
    %92 = arith.subf %84, %91 : vector<1x256xf32>
    %93 = arith.mulf %81, %82 : vector<1x256xf32>
    %94 = arith.subf %85, %83 : vector<1x256xf32>
    %cst_27 = arith.constant 3.000000e+00 : f32
    %95 = vector.broadcast %cst_27 : f32 to vector<1x256xf32>
    %96 = arith.mulf %95, %85 : vector<1x256xf32>
    %97 = arith.subf %96, %83 : vector<1x256xf32>
    %98 = arith.mulf %80, %97 : vector<1x256xf32>
    %99 = arith.mulf %80, %81 : vector<1x256xf32>
    %100 = arith.mulf %99, %82 : vector<1x256xf32>
    %cst_28 = arith.constant 4.000000e+00 : f32
    %101 = vector.broadcast %cst_28 : f32 to vector<1x256xf32>
    %102 = arith.mulf %101, %84 : vector<1x256xf32>
    %103 = arith.subf %102, %86 : vector<1x256xf32>
    %104 = arith.mulf %80, %103 : vector<1x256xf32>
    %cst_29 = arith.constant 2.000000e+00 : f32
    %105 = vector.broadcast %cst_29 : f32 to vector<1x256xf32>
    %106 = arith.mulf %105, %84 : vector<1x256xf32>
    %cst_30 = arith.constant 3.000000e+00 : f32
    %107 = vector.broadcast %cst_30 : f32 to vector<1x256xf32>
    %108 = arith.mulf %107, %86 : vector<1x256xf32>
    %109 = arith.subf %106, %108 : vector<1x256xf32>
    %110 = arith.mulf %81, %109 : vector<1x256xf32>
    %cst_31 = arith.constant 4.000000e+00 : f32
    %111 = vector.broadcast %cst_31 : f32 to vector<1x256xf32>
    %112 = arith.mulf %111, %84 : vector<1x256xf32>
    %113 = arith.subf %112, %86 : vector<1x256xf32>
    %114 = arith.mulf %82, %113 : vector<1x256xf32>
    %115 = arith.subf %85, %83 : vector<1x256xf32>
    %116 = arith.mulf %81, %115 : vector<1x256xf32>
    %cst_32 = arith.constant 3.000000e+00 : f32
    %117 = vector.broadcast %cst_32 : f32 to vector<1x256xf32>
    %118 = arith.mulf %117, %83 : vector<1x256xf32>
    %119 = arith.subf %85, %118 : vector<1x256xf32>
    %120 = arith.mulf %82, %119 : vector<1x256xf32>
    %121 = arith.mulf %77, %77 : vector<1x256xf32>
    %122 = math.log %77 : vector<1x256xf32>
    %cst_33 = arith.constant 0.000000e+00 : f32
    %123 = vector.broadcast %cst_33 : f32 to vector<6x256xf32>
    %124 = tpu.concatenate %87, %80, %81, %82, %88, %89, %92, %93, %94, %98, %100, %104, %110, %114, %116, %120 in 0 : vector<1x256xf32>, vector<1x256xf32>, vector<1x256xf32>, vector<1x256xf32>, vector<1x256xf32>, vector<1x256xf32>, vector<1x256xf32>, vector<1x256xf32>, vector<1x256xf32>, vector<1x256xf32>, vector<1x256xf32>, vector<1x256xf32>, vector<1x256xf32>, vector<1x256xf32>, vector<1x256xf32>, vector<1x256xf32> -> vector<16x256xf32>
    %125 = tpu.concatenate %121, %122, %123 in 0 : vector<1x256xf32>, vector<1x256xf32>, vector<6x256xf32> -> vector<8x256xf32>
    %126 = tpu.concatenate %124, %125 in 0 : vector<16x256xf32>, vector<8x256xf32> -> vector<24x256xf32>
    %c0_34 = arith.constant 0 : index
    %c0_35 = arith.constant 0 : index
    %127 = vector.load %arg2[%c0_34, %c0_35] : memref<24x256xf32, #tpu.memory_space<vmem>>, vector<24x256xf32>
    %cst_36 = arith.constant dense<0.000000e+00> : vector<256x256xf32>
    %128 = tpu.matmul %126, %127, %cst_36 {dimension_numbers = #tpu.dot_dimension_numbers<[0], [0], [1], [1], [0, 1, 1, 1], [], []>, precision = #tpu.contract_precision<fp32>} : vector<24x256xf32>, vector<24x256xf32>, vector<256x256xf32> -> vector<256x256xf32>
    %129 = vector.extract_strided_slice %128 {offsets = [0, 128], sizes = [256, 128], strides = [1, 1]} : vector<256x256xf32> to vector<256x128xf32>
    %130 = math.exp %129 : vector<256x128xf32>
    %131 = vector.extract_strided_slice %128 {offsets = [0, 0], sizes = [256, 128], strides = [1, 1]} : vector<256x256xf32> to vector<256x128xf32>
    %132 = arith.mulf %130, %131 : vector<256x128xf32>
    %c256_37 = arith.constant 256 : index
    %c0_38 = arith.constant 0 : index
    %133 = vector.load %arg3[%c256_37, %c0_38] : memref<768x128xf32, #tpu.memory_space<vmem>>, vector<256x128xf32>
    tpu.vector_store %arg3[%c256_37, %c0_38], %132 {strides = array<i32>} : memref<768x128xf32, #tpu.memory_space<vmem>>, vector<256x128xf32>,
    %c0_39 = arith.constant 0 : index
    %c512 = arith.constant 512 : index
    %134 = vector.load %arg1[%c0_39, %c512] : memref<3x768xf32, #tpu.memory_space<vmem>>, vector<1x256xf32>
    %c1_40 = arith.constant 1 : index
    %c512_41 = arith.constant 512 : index
    %135 = vector.load %arg1[%c1_40, %c512_41] : memref<3x768xf32, #tpu.memory_space<vmem>>, vector<1x256xf32>
    %c2_42 = arith.constant 2 : index
    %c512_43 = arith.constant 512 : index
    %136 = vector.load %arg1[%c2_42, %c512_43] : memref<3x768xf32, #tpu.memory_space<vmem>>, vector<1x256xf32>
    %137 = arith.mulf %134, %134 : vector<1x256xf32>
    %138 = arith.mulf %135, %135 : vector<1x256xf32>
    %139 = arith.addf %137, %138 : vector<1x256xf32>
    %140 = arith.mulf %136, %136 : vector<1x256xf32>
    %141 = arith.addf %139, %140 : vector<1x256xf32>
    %142 = math.sqrt %141 : vector<1x256xf32>
    %cst_44 = arith.constant 9.99999993E-9 : f32
    %143 = vector.broadcast %cst_44 : f32 to vector<1x256xf32>
    %144 = arith.addf %142, %143 : vector<1x256xf32>
    %cst_45 = arith.constant 1.000000e+00 : f32
    %145 = vector.broadcast %cst_45 : f32 to vector<1x256xf32>
    %146 = arith.divf %145, %144 : vector<1x256xf32>
    %147 = arith.mulf %134, %146 : vector<1x256xf32>
    %148 = arith.mulf %135, %146 : vector<1x256xf32>
    %149 = arith.mulf %136, %146 : vector<1x256xf32>
    %150 = arith.mulf %147, %147 : vector<1x256xf32>
    %151 = arith.mulf %148, %148 : vector<1x256xf32>
    %152 = arith.mulf %149, %149 : vector<1x256xf32>
    %153 = arith.addf %150, %152 : vector<1x256xf32>
    %cst_46 = arith.constant 1.000000e+00 : f32
    %154 = vector.broadcast %cst_46 : f32 to vector<1x256xf32>
    %155 = arith.mulf %147, %149 : vector<1x256xf32>
    %156 = arith.mulf %147, %148 : vector<1x256xf32>
    %cst_47 = arith.constant 5.000000e-01 : f32
    %157 = vector.broadcast %cst_47 : f32 to vector<1x256xf32>
    %158 = arith.mulf %157, %153 : vector<1x256xf32>
    %159 = arith.subf %151, %158 : vector<1x256xf32>
    %160 = arith.mulf %148, %149 : vector<1x256xf32>
    %161 = arith.subf %152, %150 : vector<1x256xf32>
    %cst_48 = arith.constant 3.000000e+00 : f32
    %162 = vector.broadcast %cst_48 : f32 to vector<1x256xf32>
    %163 = arith.mulf %162, %152 : vector<1x256xf32>
    %164 = arith.subf %163, %150 : vector<1x256xf32>
    %165 = arith.mulf %147, %164 : vector<1x256xf32>
    %166 = arith.mulf %147, %148 : vector<1x256xf32>
    %167 = arith.mulf %166, %149 : vector<1x256xf32>
    %cst_49 = arith.constant 4.000000e+00 : f32
    %168 = vector.broadcast %cst_49 : f32 to vector<1x256xf32>
    %169 = arith.mulf %168, %151 : vector<1x256xf32>
    %170 = arith.subf %169, %153 : vector<1x256xf32>
    %171 = arith.mulf %147, %170 : vector<1x256xf32>
    %cst_50 = arith.constant 2.000000e+00 : f32
    %172 = vector.broadcast %cst_50 : f32 to vector<1x256xf32>
    %173 = arith.mulf %172, %151 : vector<1x256xf32>
    %cst_51 = arith.constant 3.000000e+00 : f32
    %174 = vector.broadcast %cst_51 : f32 to vector<1x256xf32>
    %175 = arith.mulf %174, %153 : vector<1x256xf32>
    %176 = arith.subf %173, %175 : vector<1x256xf32>
    %177 = arith.mulf %148, %176 : vector<1x256xf32>
    %cst_52 = arith.constant 4.000000e+00 : f32
    %178 = vector.broadcast %cst_52 : f32 to vector<1x256xf32>
    %179 = arith.mulf %178, %151 : vector<1x256xf32>
    %180 = arith.subf %179, %153 : vector<1x256xf32>
    %181 = arith.mulf %149, %180 : vector<1x256xf32>
    %182 = arith.subf %152, %150 : vector<1x256xf32>
    %183 = arith.mulf %148, %182 : vector<1x256xf32>
    %cst_53 = arith.constant 3.000000e+00 : f32
    %184 = vector.broadcast %cst_53 : f32 to vector<1x256xf32>
    %185 = arith.mulf %184, %150 : vector<1x256xf32>
    %186 = arith.subf %152, %185 : vector<1x256xf32>
    %187 = arith.mulf %149, %186 : vector<1x256xf32>
    %188 = arith.mulf %144, %144 : vector<1x256xf32>
    %189 = math.log %144 : vector<1x256xf32>
    %cst_54 = arith.constant 0.000000e+00 : f32
    %190 = vector.broadcast %cst_54 : f32 to vector<6x256xf32>
    %191 = tpu.concatenate %154, %147, %148, %149, %155, %156, %159, %160, %161, %165, %167, %171, %177, %181, %183, %187 in 0 : vector<1x256xf32>, vector<1x256xf32>, vector<1x256xf32>, vector<1x256xf32>, vector<1x256xf32>, vector<1x256xf32>, vector<1x256xf32>, vector<1x256xf32>, vector<1x256xf32>, vector<1x256xf32>, vector<1x256xf32>, vector<1x256xf32>, vector<1x256xf32>, vector<1x256xf32>, vector<1x256xf32>, vector<1x256xf32> -> vector<16x256xf32>
    %192 = tpu.concatenate %188, %189, %190 in 0 : vector<1x256xf32>, vector<1x256xf32>, vector<6x256xf32> -> vector<8x256xf32>
    %193 = tpu.concatenate %191, %192 in 0 : vector<16x256xf32>, vector<8x256xf32> -> vector<24x256xf32>
    %c0_55 = arith.constant 0 : index
    %c0_56 = arith.constant 0 : index
    %194 = vector.load %arg2[%c0_55, %c0_56] : memref<24x256xf32, #tpu.memory_space<vmem>>, vector<24x256xf32>
    %cst_57 = arith.constant dense<0.000000e+00> : vector<256x256xf32>
    %195 = tpu.matmul %193, %194, %cst_57 {dimension_numbers = #tpu.dot_dimension_numbers<[0], [0], [1], [1], [0, 1, 1, 1], [], []>, precision = #tpu.contract_precision<fp32>} : vector<24x256xf32>, vector<24x256xf32>, vector<256x256xf32> -> vector<256x256xf32>
    %196 = vector.extract_strided_slice %195 {offsets = [0, 128], sizes = [256, 128], strides = [1, 1]} : vector<256x256xf32> to vector<256x128xf32>
    %197 = math.exp %196 : vector<256x128xf32>
    %198 = vector.extract_strided_slice %195 {offsets = [0, 0], sizes = [256, 128], strides = [1, 1]} : vector<256x256xf32> to vector<256x128xf32>
    %199 = arith.mulf %197, %198 : vector<256x128xf32>
    %c512_58 = arith.constant 512 : index
    %c0_59 = arith.constant 0 : index
    %200 = vector.load %arg3[%c512_58, %c0_59] : memref<768x128xf32, #tpu.memory_space<vmem>>, vector<256x128xf32>
    tpu.vector_store %arg3[%c512_58, %c0_59], %199 {strides = array<i32>} : memref<768x128xf32, #tpu.memory_space<vmem>>, vector<256x128xf32>,
    return
  }
  func.func @transform_0(%arg0: i32) -> (i32, i32) {
    %c0_i32 = arith.constant 0 : i32
    %c0_i32_0 = arith.constant 0 : i32
    return %c0_i32, %arg0 : i32, i32
  }
  func.func @transform_1(%arg0: i32) -> (i32, i32) {
    %c0_i32 = arith.constant 0 : i32
    %c0_i32_0 = arith.constant 0 : i32
    %c0_i32_1 = arith.constant 0 : i32
    return %c0_i32, %c0_i32_0 : i32, i32
  }
  func.func @transform_2(%arg0: i32) -> (i32, i32) {
    %c0_i32 = arith.constant 0 : i32
    %c0_i32_0 = arith.constant 0 : i32
    return %arg0, %c0_i32 : i32, i32
  }
}

</mosaic_0001>

<llo_original>
// kernel: tpu_custom_call.1
$region0: #{tpu_custom_call.1}
  #allocation0 [shape = 'u32[]', space=smem, size = 0x4, offset = 0x4, fixed_abs, tag = 'smem constant byte address 0x4 - core index']
  #allocation1 [shape = 'u32[144,128]{1,0:T(1,128)}', space=vmem, size = 0x12000, scoped, tag = 'internal scratch']
  %s0 = inlined_call_operand.hbm [shape: f32[3,768], index: 0, kind: input, shape index: {}]
  %s1 = inlined_call_operand.hbm [shape: f32[24,256], index: 1, kind: input, shape index: {}]
  %s2 = inlined_call_operand.hbm [shape: f32[768,128], index: 2, kind: output, shape index: {}]
  %s3 = sld [smem:[#allocation0]]
  $region26: #{tpu_custom_call.1} parent=0
    _
  %s5 = ssub.s32 1, %s3
  %s6 = scalar_select 0, %s5, %s3
  $region1: #{tpu_custom_call.1} parent=0
    #allocation2 [shape = 'u8[12288]{0}', space=vmem, size = 0x3000, scoped, tag = 'input window, operand 0, single buffered']
    #allocation3 [shape = 's32[1]{0}', space=sflag, size = 0x4, scoped, tag = 'scoped memory for tpu_custom_call.1']
    #allocation4 [shape = 's32[1]{0}', space=sflag, size = 0x4, scoped, tag = 'scoped memory for tpu_custom_call.1']
    #allocation5 [shape = 'u8[24576]{0}', space=vmem, size = 0x6000, scoped, tag = 'input window, operand 1, single buffered']
    #allocation6 [shape = 's32[1]{0}', space=sflag, size = 0x4, scoped, tag = 'scoped memory for tpu_custom_call.1']
    #allocation7 [shape = 'u8[393216]{0}', space=vmem, size = 0x60000, scoped, tag = 'output window, operand 0, single buffered']
    %7 = vsyncpa [#allocation3], 0
    %8 = vsyncpa [#allocation6], 0
    %9 = vsyncpa [#allocation4], 0
    // Predicated region
    $region2: #{tpu_custom_call.1} parent=1 // pred_check
      _
    $region3: #{tpu_custom_call.1} parent=1 // pred_check_branch
      %11 = sbr.rel (0) target = $region5
    $region4: #{tpu_custom_call.1} parent=1 // pred_region
      %s13 = ssub.s32 384, 384
      %14 = vsyncadd [#allocation3], %s13
      %s16 = sshll.u32 [#allocation2], 4
      %s17 = int_to_ptr.vmem [resolvable:$true] %s16
      %19 = dma.hbm_to_vmem [thread:$0]  %s0, 384, %s17, [#allocation3]
    $region5: #{tpu_custom_call.1} parent=1 // pred_fallthru
      _
    // Predicated region
    $region6: #{tpu_custom_call.1} parent=1 // pred_check
      _
    $region7: #{tpu_custom_call.1} parent=1 // pred_check_branch
      %21 = sbr.rel (0) target = $region9
    $region8: #{tpu_custom_call.1} parent=1 // pred_region
      %s23 = ssub.s32 768, 768
      %24 = vsyncadd [#allocation6], %s23
      %s25 = sshll.u32 [#allocation5], 4
      %s26 = int_to_ptr.vmem [resolvable:$true] %s25
      %31 = dma.hbm_to_vmem [thread:$0]  %s1, 768, %s26, [#allocation6], 256, 256, 16
    $region9: #{tpu_custom_call.1} parent=1 // pred_fallthru
      _
    // Predicated region
    $region10: #{tpu_custom_call.1} parent=1 // pred_check
      _
    $region11: #{tpu_custom_call.1} parent=1 // pred_check_branch
      %33 = sbr.rel (0) target = $region13
    $region12: #{tpu_custom_call.1} parent=1 // pred_region
      %34 = dma.done [#allocation3], 384
    $region13: #{tpu_custom_call.1} parent=1 // pred_fallthru
      _
    // Predicated region
    $region14: #{tpu_custom_call.1} parent=1 // pred_check
      _
    $region15: #{tpu_custom_call.1} parent=1 // pred_check_branch
      %36 = sbr.rel (0) target = $region17
    $region16: #{tpu_custom_call.1} parent=1 // pred_region
      %37 = dma.done [#allocation6], 768
    $region17: #{tpu_custom_call.1} parent=1 // pred_fallthru
      _
    %v38 = vld [vmem:[#allocation2] ss:$4 sm:$0x3]
    %s39 = scalar_lea.vmem [#allocation2], 1
    %v40 = vld [vmem:[%s39] ss:$4 sm:$0x3]
    %s41 = scalar_lea.vmem [#allocation2], 2
    %v42 = vld [vmem:[%s41] ss:$4 sm:$0x3]
    %v43 = vmul.f32 %v38, %v38
    %v44 = vmul.f32 %v40, %v40
    %v45 = vadd.f32 %v43, %v44
    %v46 = vmul.f32 %v42, %v42
    %v47 = vadd.f32 %v45, %v46
    %v48 = vrsqrt.pop %v47
    %v49 = vmul.f32 %v47, %v48
    %vm50 = vcmp.eq.f32.partialorder %v47, inf
    %v51 = vsel %vm50, %v47, %v49
    %vm52 = vcmp.eq.f32.partialorder %v47, 0.0
    %v53 = vand.u32 %v47, 2147483648
    %v54 = vsel %vm52, %v53, %v51
    %v55 = vadd.f32 %v54, 1e-08
    %v56 = vrcp.pop %v55
    %v57 = vmul.f32 1.0, %v56
    %v58 = vmul.f32 %v38, %v57
    %v59 = vmul.f32 %v40, %v57
    %v60 = vmul.f32 %v42, %v57
    %v61 = vmul.f32 %v58, %v58
    %v62 = vmul.f32 %v59, %v59
    %v63 = vmul.f32 %v60, %v60
    %v64 = vadd.f32 %v61, %v63
    %v65 = vmul.f32 %v58, %v60
    %v66 = vmul.f32 %v58, %v59
    %v67 = vmul.f32 %v64, 0.5
    %v68 = vsub.f32 %v62, %v67
    %v69 = vmul.f32 %v59, %v60
    %v70 = vsub.f32 %v63, %v61
    %v71 = vmul.f32 %v63, 3.0
    %v72 = vsub.f32 %v71, %v61
    %v73 = vmul.f32 %v58, %v72
    %v74 = vmul.f32 %v66, %v60
    %v75 = vmul.f32 %v62, 4.0
    %v76 = vsub.f32 %v75, %v64
    %v77 = vmul.f32 %v58, %v76
    %v78 = vmul.f32 %v62, 2.0
    %v79 = vmul.f32 %v64, 3.0
    %v80 = vsub.f32 %v78, %v79
    %v81 = vmul.f32 %v59, %v80
    %v82 = vmul.f32 %v60, %v76
    %v83 = vmul.f32 %v59, %v70
    %v84 = vmul.f32 %v61, 3.0
    %v85 = vsub.f32 %v63, %v84
    %v86 = vmul.f32 %v60, %v85
    %v87 = vmul.f32 %v55, %v55
    %v88 = vlog2.pop %v55
    %v89 = vmul.f32 %v88, 0.6931472
    %v91 = vlaneseq
    %v92 = vshrl.u32 %v91, 7
    %v93 = vsub.s32 0, %v92
    %v94 = vrot.slane %v58, %v93
    %v95 = vlaneseq
    %v96 = vshrl.u32 %v95, 7
    %v97 = vsub.s32 1, %v96
    %v98 = vrot.slane %v58, %v97
    %v102 = vlaneseq
    %v103 = vshrl.u32 %v102, 7
    %v104 = vsub.s32 0, %v103
    %v105 = vrot.slane %v59, %v104
    %v106 = vlaneseq
    %v107 = vshrl.u32 %v106, 7
    %v108 = vsub.s32 1, %v107
    %v109 = vrot.slane %v59, %v108
    %v113 = vlaneseq
    %v114 = vshrl.u32 %v113, 7
    %v115 = vsub.s32 0, %v114
    %v116 = vrot.slane %v60, %v115
    %v117 = vlaneseq
    %v118 = vshrl.u32 %v117, 7
    %v119 = vsub.s32 1, %v118
    %v120 = vrot.slane %v60, %v119
    %v124 = vlaneseq
    %v125 = vshrl.u32 %v124, 7
    %v126 = vsub.s32 0, %v125
    %v127 = vrot.slane %v65, %v126
    %v128 = vlaneseq
    %v129 = vshrl.u32 %v128, 7
    %v130 = vsub.s32 1, %v129
    %v131 = vrot.slane %v65, %v130
    %v135 = vlaneseq
    %v136 = vshrl.u32 %v135, 7
    %v137 = vsub.s32 0, %v136
    %v138 = vrot.slane %v66, %v137
    %v139 = vlaneseq
    %v140 = vshrl.u32 %v139, 7
    %v141 = vsub.s32 1, %v140
    %v142 = vrot.slane %v66, %v141
    %v146 = vlaneseq
    %v147 = vshrl.u32 %v146, 7
    %v148 = vsub.s32 0, %v147
    %v149 = vrot.slane %v68, %v148
    %v150 = vlaneseq
    %v151 = vshrl.u32 %v150, 7
    %v152 = vsub.s32 1, %v151
    %v153 = vrot.slane %v68, %v152
    %v157 = vlaneseq
    %v158 = vshrl.u32 %v157, 7
    %v159 = vsub.s32 0, %v158
    %v160 = vrot.slane %v69, %v159
    %v161 = vlaneseq
    %v162 = vshrl.u32 %v161, 7
    %v163 = vsub.s32 1, %v162
    %v164 = vrot.slane %v69, %v163
    %v168 = vlaneseq
    %v169 = vshrl.u32 %v168, 7
    %v170 = vsub.s32 0, %v169
    %v171 = vrot.slane %v70, %v170
    %v172 = vlaneseq
    %v173 = vshrl.u32 %v172, 7
    %v174 = vsub.s32 1, %v173
    %v175 = vrot.slane %v70, %v174
    %v179 = vlaneseq
    %v180 = vshrl.u32 %v179, 7
    %v181 = vsub.s32 0, %v180
    %v182 = vrot.slane %v73, %v181
    %v183 = vlaneseq
    %v184 = vshrl.u32 %v183, 7
    %v185 = vsub.s32 1, %v184
    %v186 = vrot.slane %v73, %v185
    %v190 = vlaneseq
    %v191 = vshrl.u32 %v190, 7
    %v192 = vsub.s32 0, %v191
    %v193 = vrot.slane %v74, %v192
    %v194 = vlaneseq
    %v195 = vshrl.u32 %v194, 7
    %v196 = vsub.s32 1, %v195
    %v197 = vrot.slane %v74, %v196
    %v201 = vlaneseq
    %v202 = vshrl.u32 %v201, 7
    %v203 = vsub.s32 0, %v202
    %v204 = vrot.slane %v77, %v203
    %v205 = vlaneseq
    %v206 = vshrl.u32 %v205, 7
    %v207 = vsub.s32 1, %v206
    %v208 = vrot.slane %v77, %v207
    %v212 = vlaneseq
    %v213 = vshrl.u32 %v212, 7
    %v214 = vsub.s32 0, %v213
    %v215 = vrot.slane %v81, %v214
    %v216 = vlaneseq
    %v217 = vshrl.u32 %v216, 7
    %v218 = vsub.s32 1, %v217
    %v219 = vrot.slane %v81, %v218
    %v223 = vlaneseq
    %v224 = vshrl.u32 %v223, 7
    %v225 = vsub.s32 0, %v224
    %v226 = vrot.slane %v82, %v225
    %v227 = vlaneseq
    %v228 = vshrl.u32 %v227, 7
    %v229 = vsub.s32 1, %v228
    %v230 = vrot.slane %v82, %v229
    %v234 = vlaneseq
    %v235 = vshrl.u32 %v234, 7
    %v236 = vsub.s32 0, %v235
    %v237 = vrot.slane %v83, %v236
    %v238 = vlaneseq
    %v239 = vshrl.u32 %v238, 7
    %v240 = vsub.s32 1, %v239
    %v241 = vrot.slane %v83, %v240
    %v245 = vlaneseq
    %v246 = vshrl.u32 %v245, 7
    %v247 = vsub.s32 0, %v246
    %v248 = vrot.slane %v86, %v247
    %v249 = vlaneseq
    %v250 = vshrl.u32 %v249, 7
    %v251 = vsub.s32 1, %v250
    %v252 = vrot.slane %v86, %v251
    %vm255 = vcmask 1040384
    %v256 = vsel %vm255, 1.0, %v94
    %v257 = vsel %vm255, 1.0, %v98
    %vm258 = vcmask 1041408
    %v259 = vsel %vm258, %v256, %v105
    %v260 = vsel %vm258, %v257, %v109
    %vm261 = vcmask 1042432
    %v262 = vsel %vm261, %v259, %v116
    %v263 = vsel %vm261, %v260, %v120
    %vm264 = vcmask 1043456
    %v265 = vsel %vm264, %v262, %v127
    %v266 = vsel %vm264, %v263, %v131
    %vm267 = vcmask 1044480
    %v268 = vsel %vm267, %v265, %v138
    %v269 = vsel %vm267, %v266, %v142
    %vm270 = vcmask 1045504
    %v271 = vsel %vm270, %v268, %v149
    %v272 = vsel %vm270, %v269, %v153
    %vm273 = vcmask 1046528
    %v274 = vsel %vm273, %v271, %v160
    %v275 = vsel %vm273, %v272, %v164
    %v276 = vsel %vm255, %v171, %v182
    %v277 = vsel %vm255, %v175, %v186
    %v278 = vsel %vm258, %v276, %v193
    %v279 = vsel %vm258, %v277, %v197
    %v280 = vsel %vm261, %v278, %v204
    %v281 = vsel %vm261, %v279, %v208
    %v282 = vsel %vm264, %v280, %v215
    %v283 = vsel %vm264, %v281, %v219
    %v284 = vsel %vm267, %v282, %v226
    %v285 = vsel %vm267, %v283, %v230
    %v286 = vsel %vm270, %v284, %v237
    %v287 = vsel %vm270, %v285, %v241
    %v288 = vsel %vm273, %v286, %v248
    %v289 = vsel %vm273, %v287, %v252
    %v291 = vlaneseq
    %v292 = vshrl.u32 %v291, 7
    %v293 = vsub.s32 0, %v292
    %v294 = vrot.slane %v87, %v293
    %v295 = vlaneseq
    %v296 = vshrl.u32 %v295, 7
    %v297 = vsub.s32 1, %v296
    %v298 = vrot.slane %v87, %v297
    %v302 = vlaneseq
    %v303 = vshrl.u32 %v302, 7
    %v304 = vsub.s32 0, %v303
    %v305 = vrot.slane %v89, %v304
    %v306 = vlaneseq
    %v307 = vshrl.u32 %v306, 7
    %v308 = vsub.s32 1, %v307
    %v309 = vrot.slane %v89, %v308
    %v312 = vsel %vm255, %v294, %v305
    %v313 = vsel %vm255, %v298, %v309
    %v314 = vsel %vm258, %v312, 0.0
    %v315 = vsel %vm258, %v313, 0.0
    %v316 = vld [vmem:[#allocation5] sm:$0xff]
    %v317 = vld [vmem:[#allocation5 + $0x8] sm:$0xff]
    %v318 = vld [vmem:[#allocation5 + $0x10] sm:$0xff]
    %v319 = vld [vmem:[#allocation5 + $0x18] sm:$0xff]
    %v320 = vld [vmem:[#allocation5 + $0x20] sm:$0xff]
    %v321 = vld [vmem:[#allocation5 + $0x28] sm:$0xff]
    %322 = vxpose.xlu0.b32.start [1/16] %v274, 128
    %323 = vxpose.xlu0.b32.cont [2/16] %v288, 128
    %324 = vxpose.xlu0.b32.cont [3/16] %v314, 128
    %325 = vxpose.xlu0.b32.cont [4/16] 0.0, 128
    %326 = vxpose.xlu0.b32.cont [5/16] 0.0, 128
    %327 = vxpose.xlu0.b32.cont [6/16] 0.0, 128
    %328 = vxpose.xlu0.b32.cont [7/16] 0.0, 128
    %329 = vxpose.xlu0.b32.cont [8/16] 0.0, 128
    %330 = vxpose.xlu0.b32.cont [9/16] 0.0, 128
    %331 = vxpose.xlu0.b32.cont [10/16] 0.0, 128
    %332 = vxpose.xlu0.b32.cont [11/16] 0.0, 128
    %333 = vxpose.xlu0.b32.cont [12/16] 0.0, 128
    %334 = vxpose.xlu0.b32.cont [13/16] 0.0, 128
    %335 = vxpose.xlu0.b32.cont [14/16] 0.0, 128
    %336 = vxpose.xlu0.b32.cont [15/16] 0.0, 128
    %337 = vxpose.xlu0.b32.end [16/16] 0.0, 128
    %v338 = vpop.trf.xlu0
    %v339 = vpop.trf.xlu0
    %v340 = vpop.trf.xlu0
    %v341 = vpop.trf.xlu0
    %v342 = vpop.trf.xlu0
    %v343 = vpop.trf.xlu0
    %v344 = vpop.trf.xlu0
    %v345 = vpop.trf.xlu0
    %v346 = vpop.trf.xlu0
    %v347 = vpop.trf.xlu0
    %v348 = vpop.trf.xlu0
    %v349 = vpop.trf.xlu0
    %v350 = vpop.trf.xlu0
    %v351 = vpop.trf.xlu0
    %v352 = vpop.trf.xlu0
    %v353 = vpop.trf.xlu0
    %354 = vxpose.xlu0.b32.start [1/16] %v275, 128
    %355 = vxpose.xlu0.b32.cont [2/16] %v289, 128
    %356 = vxpose.xlu0.b32.cont [3/16] %v315, 128
    %357 = vxpose.xlu0.b32.cont [4/16] 0.0, 128
    %358 = vxpose.xlu0.b32.cont [5/16] 0.0, 128
    %359 = vxpose.xlu0.b32.cont [6/16] 0.0, 128
    %360 = vxpose.xlu0.b32.cont [7/16] 0.0, 128
    %361 = vxpose.xlu0.b32.cont [8/16] 0.0, 128
    %362 = vxpose.xlu0.b32.cont [9/16] 0.0, 128
    %363 = vxpose.xlu0.b32.cont [10/16] 0.0, 128
    %364 = vxpose.xlu0.b32.cont [11/16] 0.0, 128
    %365 = vxpose.xlu0.b32.cont [12/16] 0.0, 128
    %366 = vxpose.xlu0.b32.cont [13/16] 0.0, 128
    %367 = vxpose.xlu0.b32.cont [14/16] 0.0, 128
    %368 = vxpose.xlu0.b32.cont [15/16] 0.0, 128
    %369 = vxpose.xlu0.b32.end [16/16] 0.0, 128
    %v370 = vpop.trf.xlu0
    %v371 = vpop.trf.xlu0
    %v372 = vpop.trf.xlu0
    %v373 = vpop.trf.xlu0
    %v374 = vpop.trf.xlu0
    %v375 = vpop.trf.xlu0
    %v376 = vpop.trf.xlu0
    %v377 = vpop.trf.xlu0
    %v378 = vpop.trf.xlu0
    %v379 = vpop.trf.xlu0
    %v380 = vpop.trf.xlu0
    %v381 = vpop.trf.xlu0
    %v382 = vpop.trf.xlu0
    %v383 = vpop.trf.xlu0
    %v384 = vpop.trf.xlu0
    %v385 = vpop.trf.xlu0
    %vm386 = vcmask 195584
    %v388 = vsel %vm386, %v338, 0
    %v391 = vsel %vm386, %v339, 0
    %v394 = vsel %vm386, %v340, 0
    %v397 = vsel %vm386, %v341, 0
    %v400 = vsel %vm386, %v342, 0
    %v403 = vsel %vm386, %v343, 0
    %v406 = vsel %vm386, %v344, 0
    %v409 = vsel %vm386, %v345, 0
    %v412 = vsel %vm386, %v346, 0
    %v415 = vsel %vm386, %v347, 0
    %v418 = vsel %vm386, %v348, 0
    %v421 = vsel %vm386, %v349, 0
    %v424 = vsel %vm386, %v350, 0
    %v427 = vsel %vm386, %v351, 0
    %v430 = vsel %vm386, %v352, 0
    %v433 = vsel %vm386, %v353, 0
    %v436 = vsel %vm386, %v370, 0
    %v439 = vsel %vm386, %v371, 0
    %v442 = vsel %vm386, %v372, 0
    %v445 = vsel %vm386, %v373, 0
    %v448 = vsel %vm386, %v374, 0
    %v451 = vsel %vm386, %v375, 0
    %v454 = vsel %vm386, %v376, 0
    %v457 = vsel %vm386, %v377, 0
    %v460 = vsel %vm386, %v378, 0
    %v463 = vsel %vm386, %v379, 0
    %v466 = vsel %vm386, %v380, 0
    %v469 = vsel %vm386, %v381, 0
    %v472 = vsel %vm386, %v382, 0
    %v475 = vsel %vm386, %v383, 0
    %v478 = vsel %vm386, %v384, 0
    %v481 = vsel %vm386, %v385, 0
    %v483 = vand.u32 %v317, 4294901760
    %484 = vmatprep.subr.mxu0 %v483
    %v485 = vand.u32 %v316, 4294901760
    %486 = vmatpush1.msra.mxu0 %v485
    %v487 = vand.u32 %v319, 4294901760
    %488 = vmatprep.subr.mxu0 %v487
    %v489 = vand.u32 %v318, 4294901760
    %490 = vmatpush1.msra.mxu0 %v489
    %v491 = vand.u32 %v321, 4294901760
    %492 = vmatprep.subr.mxu0 %v491
    %v493 = vand.u32 %v320, 4294901760
    %494 = vmatpush1.msra.mxu0 %v493
    %495 = vmatprep.subr.mxu0 0.0
    %496 = vmatpush1.msra.mxu0 0.0
    %497 = vmatprep.subr.mxu0 0.0
    %498 = vmatpush1.msra.mxu0 0.0
    %499 = vmatprep.subr.mxu0 0.0
    %500 = vmatpush1.msra.mxu0 0.0
    %501 = vmatprep.subr.mxu0 0.0
    %502 = vmatpush1.msra.mxu0 0.0
    %503 = vmatprep.subr.mxu0 0.0
    %504 = vmatpush1.msra.mxu0 0.0
    %505 = vmatprep.subr.mxu0 0.0
    %506 = vmatpush1.msra.mxu0 0.0
    %507 = vmatprep.subr.mxu0 0.0
    %508 = vmatpush1.msra.mxu0 0.0
    %509 = vmatprep.subr.mxu0 0.0
    %510 = vmatpush1.msra.mxu0 0.0
    %511 = vmatprep.subr.mxu0 0.0
    %512 = vmatpush1.msra.mxu0 0.0
    %513 = vmatprep.subr.mxu0 0.0
    %514 = vmatpush1.msra.mxu0 0.0
    %515 = vmatprep.subr.mxu0 0.0
    %516 = vmatpush1.msra.mxu0 0.0
    %517 = vmatprep.subr.mxu0 0.0
    %518 = vmatpush1.msra.mxu0 0.0
    %519 = vmatprep.subr.mxu0 0.0
    %520 = vmatpush1.msra.mxu0 0.0
    %521 = vmatprep.subr.mxu0 0.0
    %522 = vmatpush1.msra.mxu0 0.0
    %523 = vmatprep.subr.mxu0 0.0
    %524 = vmatpush1.msra.mxu0 0.0
    %525 = vmatprep.subr.mxu0 0.0
    %526 = vmatpush1.msra.mxu0 0.0
    %527 = vmatprep.subr.mxu0 0.0
    %528 = vmatpush1.msra.mxu0 0.0
    %529 = vmatprep.subr.mxu0 0.0
    %530 = vmatpush1.msra.mxu0 0.0
    %531 = vmatprep.subr.mxu0 0.0
    %532 = vmatpush1.msra.mxu0 0.0
    %533 = vmatprep.subr.mxu0 0.0
    %534 = vmatpush1.msra.mxu0 0.0
    %535 = vmatprep.subr.mxu0 0.0
    %536 = vmatpush1.msra.mxu0 0.0
    %537 = vmatprep.subr.mxu0 0.0
    %538 = vmatpush1.msra.mxu0 0.0
    %539 = vmatprep.subr.mxu0 0.0
    %540 = vmatpush1.msra.mxu0 0.0
    %541 = vmatprep.subr.mxu0 0.0
    %542 = vmatpush1.msra.mxu0 0.0
    %543 = vmatprep.subr.mxu0 0.0
    %544 = vmatpush1.msra.mxu0 0.0
    %545 = vmatprep.subr.mxu0 0.0
    %546 = vmatpush1.msra.mxu0 0.0
    %547 = vmatprep.subr.mxu0 0.0
    %548 = vmatpush1.msra.mxu0 0.0
    %549 = vmatprep.subr.mxu0 0.0
    %550 = vmatpush1.msra.mxu0 0.0
    %551 = vmatprep.subr.mxu0 0.0
    %552 = vmatpush1.msra.mxu0 0.0
    %553 = vmatprep.mubr.f32.mxu0 0.0
    %v554 = vand.u32 %v388, 4294901760
    %v555 = vsub.f32 %v388, %v554
    %v556 = vand.u32 %v555, 4294901760
    %v557 = vsub.f32 %v555, %v556
    %v558 = vand.u32 %v557, 4294901760
    %559 = vmatmul.mubr.f32.gmra.mrb[0].mxu0 %v558
    %v560 = vpop.f32.mrb[0].mxu0
    %v561 = vadd.f32 0.0, %v560
    %v562 = vpop.f32.mrb[0].mxu0
    %v563 = vadd.f32 0.0, %v562
    %564 = vmatprep.mubr.f32.mxu0 0.0
    %v565 = vand.u32 %v391, 4294901760
    %v566 = vsub.f32 %v391, %v565
    %v567 = vand.u32 %v566, 4294901760
    %v568 = vsub.f32 %v566, %v567
    %v569 = vand.u32 %v568, 4294901760
    %570 = vmatmul.mubr.f32.gmra.mrb[0].mxu0 %v569
    %v571 = vpop.f32.mrb[0].mxu0
    %v572 = vadd.f32 0.0, %v571
    %v573 = vpop.f32.mrb[0].mxu0
    %v574 = vadd.f32 0.0, %v573
    %575 = vmatprep.mubr.f32.mxu0 0.0
    %v576 = vand.u32 %v394, 4294901760
    %v577 = vsub.f32 %v394, %v576
    %v578 = vand.u32 %v577, 4294901760
    %v579 = vsub.f32 %v577, %v578
    %v580 = vand.u32 %v579, 4294901760
    %581 = vmatmul.mubr.f32.gmra.mrb[0].mxu0 %v580
    %v582 = vpop.f32.mrb[0].mxu0
    %v583 = vadd.f32 0.0, %v582
    %v584 = vpop.f32.mrb[0].mxu0
    %v585 = vadd.f32 0.0, %v584
    %586 = vmatprep.mubr.f32.mxu0 0.0
    %v587 = vand.u32 %v397, 4294901760
    %v588 = vsub.f32 %v397, %v587
    %v589 = vand.u32 %v588, 4294901760
    %v590 = vsub.f32 %v588, %v589
    %v591 = vand.u32 %v590, 4294901760
    %592 = vmatmul.mubr.f32.gmra.mrb[0].mxu0 %v591
    %v593 = vpop.f32.mrb[0].mxu0
    %v594 = vadd.f32 0.0, %v593
    %v595 = vpop.f32.mrb[0].mxu0
    %v596 = vadd.f32 0.0, %v595
    %597 = vmatprep.mubr.f32.mxu0 0.0
    %v598 = vand.u32 %v400, 4294901760
    %v599 = vsub.f32 %v400, %v598
    %v600 = vand.u32 %v599, 4294901760
    %v601 = vsub.f32 %v599, %v600
    %v602 = vand.u32 %v601, 4294901760
    %603 = vmatmul.mubr.f32.gmra.mrb[0].mxu0 %v602
    %v604 = vpop.f32.mrb[0].mxu0
    %v605 = vadd.f32 0.0, %v604
    %v606 = vpop.f32.mrb[0].mxu0
    %v607 = vadd.f32 0.0, %v606
    %608 = vmatprep.mubr.f32.mxu0 0.0
    %v609 = vand.u32 %v403, 4294901760
    %v610 = vsub.f32 %v403, %v609
    %v611 = vand.u32 %v610, 4294901760
    %v612 = vsub.f32 %v610, %v611
    %v613 = vand.u32 %v612, 4294901760
    %614 = vmatmul.mubr.f32.gmra.mrb[0].mxu0 %v613
    %v615 = vpop.f32.mrb[0].mxu0
    %v616 = vadd.f32 0.0, %v615
    %v617 = vpop.f32.mrb[0].mxu0
    %v618 = vadd.f32 0.0, %v617
    %619 = vmatprep.mubr.f32.mxu0 0.0
    %v620 = vand.u32 %v406, 4294901760
    %v621 = vsub.f32 %v406, %v620
    %v622 = vand.u32 %v621, 4294901760
    %v623 = vsub.f32 %v621, %v622
    %v624 = vand.u32 %v623, 4294901760
    %625 = vmatmul.mubr.f32.gmra.mrb[0].mxu0 %v624
    %v626 = vpop.f32.mrb[0].mxu0
    %v627 = vadd.f32 0.0, %v626
    %v628 = vpop.f32.mrb[0].mxu0
    %v629 = vadd.f32 0.0, %v628
    %630 = vmatprep.mubr.f32.mxu0 0.0
    %v631 = vand.u32 %v409, 4294901760
    %v632 = vsub.f32 %v409, %v631
    %v633 = vand.u32 %v632, 4294901760
    %v634 = vsub.f32 %v632, %v633
    %v635 = vand.u32 %v634, 4294901760
    %636 = vmatmul.mubr.f32.gmra.mrb[0].mxu0 %v635
    %v637 = vpop.f32.mrb[0].mxu0
    %v638 = vadd.f32 0.0, %v637
    %v639 = vpop.f32.mrb[0].mxu0
    %v640 = vadd.f32 0.0, %v639
    %641 = vmatprep.mubr.f32.mxu0 0.0
    %v642 = vand.u32 %v412, 4294901760
    %v643 = vsub.f32 %v412, %v642
    %v644 = vand.u32 %v643, 4294901760
    %v645 = vsub.f32 %v643, %v644
    %v646 = vand.u32 %v645, 4294901760
    %647 = vmatmul.mubr.f32.gmra.mrb[0].mxu0 %v646
    %v648 = vpop.f32.mrb[0].mxu0
    %v649 = vadd.f32 0.0, %v648
    %v650 = vpop.f32.mrb[0].mxu0
    %v651 = vadd.f32 0.0, %v650
    %652 = vmatprep.mubr.f32.mxu0 0.0
    %v653 = vand.u32 %v415, 4294901760
    %v654 = vsub.f32 %v415, %v653
    %v655 = vand.u32 %v654, 4294901760
    %v656 = vsub.f32 %v654, %v655
    %v657 = vand.u32 %v656, 4294901760
    %658 = vmatmul.mubr.f32.gmra.mrb[0].mxu0 %v657
    %v659 = vpop.f32.mrb[0].mxu0
    %v660 = vadd.f32 0.0, %v659
    %v661 = vpop.f32.mrb[0].mxu0
    %v662 = vadd.f32 0.0, %v661
    %663 = vmatprep.mubr.f32.mxu0 0.0
    %v664 = vand.u32 %v418, 4294901760
    %v665 = vsub.f32 %v418, %v664
    %v666 = vand.u32 %v665, 4294901760
    %v667 = vsub.f32 %v665, %v666
    %v668 = vand.u32 %v667, 4294901760
    %669 = vmatmul.mubr.f32.gmra.mrb[0].mxu0 %v668
    %v670 = vpop.f32.mrb[0].mxu0
    %v671 = vadd.f32 0.0, %v670
    %v672 = vpop.f32.mrb[0].mxu0
    %v673 = vadd.f32 0.0, %v672
    %674 = vmatprep.mubr.f32.mxu0 0.0
    %v675 = vand.u32 %v421, 4294901760
    %v676 = vsub.f32 %v421, %v675
    %v677 = vand.u32 %v676, 4294901760
    %v678 = vsub.f32 %v676, %v677
    %v679 = vand.u32 %v678, 4294901760
    %680 = vmatmul.mubr.f32.gmra.mrb[0].mxu0 %v679
    %v681 = vpop.f32.mrb[0].mxu0
    %v682 = vadd.f32 0.0, %v681
    %v683 = vpop.f32.mrb[0].mxu0
    %v684 = vadd.f32 0.0, %v683
    %685 = vmatprep.mubr.f32.mxu0 0.0
    %v686 = vand.u32 %v424, 4294901760
    %v687 = vsub.f32 %v424, %v686
    %v688 = vand.u32 %v687, 4294901760
    %v689 = vsub.f32 %v687, %v688
    %v690 = vand.u32 %v689, 4294901760
    %691 = vmatmul.mubr.f32.gmra.mrb[0].mxu0 %v690
    %v692 = vpop.f32.mrb[0].mxu0
    %v693 = vadd.f32 0.0, %v692
    %v694 = vpop.f32.mrb[0].mxu0
    %v695 = vadd.f32 0.0, %v694
    %696 = vmatprep.mubr.f32.mxu0 0.0
    %v697 = vand.u32 %v427, 4294901760
    %v698 = vsub.f32 %v427, %v697
    %v699 = vand.u32 %v698, 4294901760
    %v700 = vsub.f32 %v698, %v699
    %v701 = vand.u32 %v700, 4294901760
    %702 = vmatmul.mubr.f32.gmra.mrb[0].mxu0 %v701
    %v703 = vpop.f32.mrb[0].mxu0
    %v704 = vadd.f32 0.0, %v703
    %v705 = vpop.f32.mrb[0].mxu0
    %v706 = vadd.f32 0.0, %v705
    %707 = vmatprep.mubr.f32.mxu0 0.0
    %v708 = vand.u32 %v430, 4294901760
    %v709 = vsub.f32 %v430, %v708
    %v710 = vand.u32 %v709, 4294901760
    %v711 = vsub.f32 %v709, %v710
    %v712 = vand.u32 %v711, 4294901760
    %713 = vmatmul.mubr.f32.gmra.mrb[0].mxu0 %v712
    %v714 = vpop.f32.mrb[0].mxu0
    %v715 = vadd.f32 0.0, %v714
    %v716 = vpop.f32.mrb[0].mxu0
    %v717 = vadd.f32 0.0, %v716
    %718 = vmatprep.mubr.f32.mxu0 0.0
    %v719 = vand.u32 %v433, 4294901760
    %v720 = vsub.f32 %v433, %v719
    %v721 = vand.u32 %v720, 4294901760
    %v722 = vsub.f32 %v720, %v721
    %v723 = vand.u32 %v722, 4294901760
    %724 = vmatmul.mubr.f32.gmra.mrb[0].mxu0 %v723
    %v725 = vpop.f32.mrb[0].mxu0
    %v726 = vadd.f32 0.0, %v725
    %v727 = vpop.f32.mrb[0].mxu0
    %v728 = vadd.f32 0.0, %v727
    %729 = vmatprep.mubr.f32.mxu0 0.0
    %v730 = vand.u32 %v436, 4294901760
    %v731 = vsub.f32 %v436, %v730
    %v732 = vand.u32 %v731, 4294901760
    %v733 = vsub.f32 %v731, %v732
    %v734 = vand.u32 %v733, 4294901760
    %735 = vmatmul.mubr.f32.gmra.mrb[0].mxu0 %v734
    %v736 = vpop.f32.mrb[0].mxu0
    %v737 = vadd.f32 0.0, %v736
    %v738 = vpop.f32.mrb[0].mxu0
    %v739 = vadd.f32 0.0, %v738
    %740 = vmatprep.mubr.f32.mxu0 0.0
    %v741 = vand.u32 %v439, 4294901760
    %v742 = vsub.f32 %v439, %v741
    %v743 = vand.u32 %v742, 4294901760
    %v744 = vsub.f32 %v742, %v743
    %v745 = vand.u32 %v744, 4294901760
    %746 = vmatmul.mubr.f32.gmra.mrb[0].mxu0 %v745
    %v747 = vpop.f32.mrb[0].mxu0
    %v748 = vadd.f32 0.0, %v747
    %v749 = vpop.f32.mrb[0].mxu0
    %v750 = vadd.f32 0.0, %v749
    %751 = vmatprep.mubr.f32.mxu0 0.0
    %v752 = vand.u32 %v442, 4294901760
    %v753 = vsub.f32 %v442, %v752
    %v754 = vand.u32 %v753, 4294901760
    %v755 = vsub.f32 %v753, %v754
    %v756 = vand.u32 %v755, 4294901760
    %757 = vmatmul.mubr.f32.gmra.mrb[0].mxu0 %v756
    %v758 = vpop.f32.mrb[0].mxu0
    %v759 = vadd.f32 0.0, %v758
    %v760 = vpop.f32.mrb[0].mxu0
    %v761 = vadd.f32 0.0, %v760
    %762 = vmatprep.mubr.f32.mxu0 0.0
    %v763 = vand.u32 %v445, 4294901760
    %v764 = vsub.f32 %v445, %v763
    %v765 = vand.u32 %v764, 4294901760
    %v766 = vsub.f32 %v764, %v765
    %v767 = vand.u32 %v766, 4294901760
    %768 = vmatmul.mubr.f32.gmra.mrb[0].mxu0 %v767
    %v769 = vpop.f32.mrb[0].mxu0
    %v770 = vadd.f32 0.0, %v769
    %v771 = vpop.f32.mrb[0].mxu0
    %v772 = vadd.f32 0.0, %v771
    %773 = vmatprep.mubr.f32.mxu0 0.0
    %v774 = vand.u32 %v448, 4294901760
    %v775 = vsub.f32 %v448, %v774
    %v776 = vand.u32 %v775, 4294901760
    %v777 = vsub.f32 %v775, %v776
    %v778 = vand.u32 %v777, 4294901760
    %779 = vmatmul.mubr.f32.gmra.mrb[0].mxu0 %v778
    %v780 = vpop.f32.mrb[0].mxu0
    %v781 = vadd.f32 0.0, %v780
    %v782 = vpop.f32.mrb[0].mxu0
    %v783 = vadd.f32 0.0, %v782
    %784 = vmatprep.mubr.f32.mxu0 0.0
    %v785 = vand.u32 %v451, 4294901760
    %v786 = vsub.f32 %v451, %v785
    %v787 = vand.u32 %v786, 4294901760
    %v788 = vsub.f32 %v786, %v787
    %v789 = vand.u32 %v788, 4294901760
    %790 = vmatmul.mubr.f32.gmra.mrb[0].mxu0 %v789
    %v791 = vpop.f32.mrb[0].mxu0
    %v792 = vadd.f32 0.0, %v791
    %v793 = vpop.f32.mrb[0].mxu0
    %v794 = vadd.f32 0.0, %v793
    %795 = vmatprep.mubr.f32.mxu0 0.0
    %v796 = vand.u32 %v454, 4294901760
    %v797 = vsub.f32 %v454, %v796
    %v798 = vand.u32 %v797, 4294901760
    %v799 = vsub.f32 %v797, %v798
    %v800 = vand.u32 %v799, 4294901760
    %801 = vmatmul.mubr.f32.gmra.mrb[0].mxu0 %v800
    %v802 = vpop.f32.mrb[0].mxu0
    %v803 = vadd.f32 0.0, %v802
    %v804 = vpop.f32.mrb[0].mxu0
    %v805 = vadd.f32 0.0, %v804
    %806 = vmatprep.mubr.f32.mxu0 0.0
    %v807 = vand.u32 %v457, 4294901760
    %v808 = vsub.f32 %v457, %v807
    %v809 = vand.u32 %v808, 4294901760
    %v810 = vsub.f32 %v808, %v809
    %v811 = vand.u32 %v810, 4294901760
    %812 = vmatmul.mubr.f32.gmra.mrb[0].mxu0 %v811
    %v813 = vpop.f32.mrb[0].mxu0
    %v814 = vadd.f32 0.0, %v813
    %v815 = vpop.f32.mrb[0].mxu0
    %v816 = vadd.f32 0.0, %v815
    %817 = vmatprep.mubr.f32.mxu0 0.0
    %v818 = vand.u32 %v460, 4294901760
    %v819 = vsub.f32 %v460, %v818
    %v820 = vand.u32 %v819, 4294901760
    %v821 = vsub.f32 %v819, %v820
    %v822 = vand.u32 %v821, 4294901760
    %823 = vmatmul.mubr.f32.gmra.mrb[0].mxu0 %v822
    %v824 = vpop.f32.mrb[0].mxu0
    %v825 = vadd.f32 0.0, %v824
    %v826 = vpop.f32.mrb[0].mxu0
    %v827 = vadd.f32 0.0, %v826
    %828 = vmatprep.mubr.f32.mxu0 0.0
    %v829 = vand.u32 %v463, 4294901760
    %v830 = vsub.f32 %v463, %v829
    %v831 = vand.u32 %v830, 4294901760
    %v832 = vsub.f32 %v830, %v831
    %v833 = vand.u32 %v832, 4294901760
    %834 = vmatmul.mubr.f32.gmra.mrb[0].mxu0 %v833
    %v835 = vpop.f32.mrb[0].mxu0
    %v836 = vadd.f32 0.0, %v835
    %v837 = vpop.f32.mrb[0].mxu0
    %v838 = vadd.f32 0.0, %v837
    %839 = vmatprep.mubr.f32.mxu0 0.0
    %v840 = vand.u32 %v466, 4294901760
    %v841 = vsub.f32 %v466, %v840
    %v842 = vand.u32 %v841, 4294901760
    %v843 = vsub.f32 %v841, %v842
    %v844 = vand.u32 %v843, 4294901760
    %845 = vmatmul.mubr.f32.gmra.mrb[0].mxu0 %v844
    %v846 = vpop.f32.mrb[0].mxu0
    %v847 = vadd.f32 0.0, %v846
    %v848 = vpop.f32.mrb[0].mxu0
    %v849 = vadd.f32 0.0, %v848
    %850 = vmatprep.mubr.f32.mxu0 0.0
    %v851 = vand.u32 %v469, 4294901760
    %v852 = vsub.f32 %v469, %v851
    %v853 = vand.u32 %v852, 4294901760
    %v854 = vsub.f32 %v852, %v853
    %v855 = vand.u32 %v854, 4294901760
    %856 = vmatmul.mubr.f32.gmra.mrb[0].mxu0 %v855
    %v857 = vpop.f32.mrb[0].mxu0
    %v858 = vadd.f32 0.0, %v857
    %v859 = vpop.f32.mrb[0].mxu0
    %v860 = vadd.f32 0.0, %v859
    %861 = vmatprep.mubr.f32.mxu0 0.0
    %v862 = vand.u32 %v472, 4294901760
    %v863 = vsub.f32 %v472, %v862
    %v864 = vand.u32 %v863, 4294901760
    %v865 = vsub.f32 %v863, %v864
    %v866 = vand.u32 %v865, 4294901760
    %867 = vmatmul.mubr.f32.gmra.mrb[0].mxu0 %v866
    %v868 = vpop.f32.mrb[0].mxu0
    %v869 = vadd.f32 0.0, %v868
    %v870 = vpop.f32.mrb[0].mxu0
    %v871 = vadd.f32 0.0, %v870
    %872 = vmatprep.mubr.f32.mxu0 0.0
    %v873 = vand.u32 %v475, 4294901760
    %v874 = vsub.f32 %v475, %v873
    %v875 = vand.u32 %v874, 4294901760
    %v876 = vsub.f32 %v874, %v875
    %v877 = vand.u32 %v876, 4294901760
    %878 = vmatmul.mubr.f32.gmra.mrb[0].mxu0 %v877
    %v879 = vpop.f32.mrb[0].mxu0
    %v880 = vadd.f32 0.0, %v879
    %v881 = vpop.f32.mrb[0].mxu0
    %v882 = vadd.f32 0.0, %v881
    %883 = vmatprep.mubr.f32.mxu0 0.0
    %v884 = vand.u32 %v478, 4294901760
    %v885 = vsub.f32 %v478, %v884
    %v886 = vand.u32 %v885, 4294901760
    %v887 = vsub.f32 %v885, %v886
    %v888 = vand.u32 %v887, 4294901760
    %889 = vmatmul.mubr.f32.gmra.mrb[0].mxu0 %v888
    %v890 = vpop.f32.mrb[0].mxu0
    %v891 = vadd.f32 0.0, %v890
    %v892 = vpop.f32.mrb[0].mxu0
    %v893 = vadd.f32 0.0, %v892
    %894 = vmatprep.mubr.f32.mxu0 0.0
    %v895 = vand.u32 %v481, 4294901760
    %v896 = vsub.f32 %v481, %v895
    %v897 = vand.u32 %v896, 4294901760
    %v898 = vsub.f32 %v896, %v897
    %v899 = vand.u32 %v898, 4294901760
    %900 = vmatmul.mubr.f32.gmra.mrb[0].mxu0 %v899
    %v901 = vpop.f32.mrb[0].mxu0
    %v902 = vadd.f32 0.0, %v901
    %v903 = vpop.f32.mrb[0].mxu0
    %v904 = vadd.f32 0.0, %v903
    %905 = vdwg.mxu0
    %v906 = vand.u32 %v317, 4294901760
    %v907 = vsub.f32 %v317, %v906
    %v908 = vand.u32 %v907, 4294901760
    %v909 = vsub.f32 %v907, %v908
    %v910 = vand.u32 %v909, 4294901760
    %911 = vmatprep.subr.mxu0 %v910
    %v912 = vand.u32 %v316, 4294901760
    %v913 = vsub.f32 %v316, %v912
    %v914 = vand.u32 %v913, 4294901760
    %v915 = vsub.f32 %v913, %v914
    %v916 = vand.u32 %v915, 4294901760
    %917 = vmatpush1.msra.mxu0 %v916
    %v918 = vand.u32 %v319, 4294901760
    %v919 = vsub.f32 %v319, %v918
    %v920 = vand.u32 %v919, 4294901760
    %v921 = vsub.f32 %v919, %v920
    %v922 = vand.u32 %v921, 4294901760
    %923 = vmatprep.subr.mxu0 %v922
    %v924 = vand.u32 %v318, 4294901760
    %v925 = vsub.f32 %v318, %v924
    %v926 = vand.u32 %v925, 4294901760
    %v927 = vsub.f32 %v925, %v926
    %v928 = vand.u32 %v927, 4294901760
    %929 = vmatpush1.msra.mxu0 %v928
    %v930 = vand.u32 %v321, 4294901760
    %v931 = vsub.f32 %v321, %v930
    %v932 = vand.u32 %v931, 4294901760
    %v933 = vsub.f32 %v931, %v932
    %v934 = vand.u32 %v933, 4294901760
    %935 = vmatprep.subr.mxu0 %v934
    %v936 = vand.u32 %v320, 4294901760
    %v937 = vsub.f32 %v320, %v936
    %v938 = vand.u32 %v937, 4294901760
    %v939 = vsub.f32 %v937, %v938
    %v940 = vand.u32 %v939, 4294901760
    %941 = vmatpush1.msra.mxu0 %v940
    %942 = vmatprep.subr.mxu0 0.0
    %943 = vmatpush1.msra.mxu0 0.0
    %944 = vmatprep.subr.mxu0 0.0
    %945 = vmatpush1.msra.mxu0 0.0
    %946 = vmatprep.subr.mxu0 0.0
    %947 = vmatpush1.msra.mxu0 0.0
    %948 = vmatprep.subr.mxu0 0.0
    %949 = vmatpush1.msra.mxu0 0.0
    %950 = vmatprep.subr.mxu0 0.0
    %951 = vmatpush1.msra.mxu0 0.0
    %952 = vmatprep.subr.mxu0 0.0
    %953 = vmatpush1.msra.mxu0 0.0
    %954 = vmatprep.subr.mxu0 0.0
    %955 = vmatpush1.msra.mxu0 0.0
    %956 = vmatprep.subr.mxu0 0.0
    %957 = vmatpush1.msra.mxu0 0.0
    %958 = vmatprep.subr.mxu0 0.0
    %959 = vmatpush1.msra.mxu0 0.0
    %960 = vmatprep.subr.mxu0 0.0
    %961 = vmatpush1.msra.mxu0 0.0
    %962 = vmatprep.subr.mxu0 0.0
    %963 = vmatpush1.msra.mxu0 0.0
    %964 = vmatprep.subr.mxu0 0.0
    %965 = vmatpush1.msra.mxu0 0.0
    %966 = vmatprep.subr.mxu0 0.0
    %967 = vmatpush1.msra.mxu0 0.0
    %968 = vmatprep.subr.mxu0 0.0
    %969 = vmatpush1.msra.mxu0 0.0
    %970 = vmatprep.subr.mxu0 0.0
    %971 = vmatpush1.msra.mxu0 0.0
    %972 = vmatprep.subr.mxu0 0.0
    %973 = vmatpush1.msra.mxu0 0.0
    %974 = vmatprep.subr.mxu0 0.0
    %975 = vmatpush1.msra.mxu0 0.0
    %976 = vmatprep.subr.mxu0 0.0
    %977 = vmatpush1.msra.mxu0 0.0
    %978 = vmatprep.subr.mxu0 0.0
    %979 = vmatpush1.msra.mxu0 0.0
    %980 = vmatprep.subr.mxu0 0.0
    %981 = vmatpush1.msra.mxu0 0.0
    %982 = vmatprep.subr.mxu0 0.0
    %983 = vmatpush1.msra.mxu0 0.0
    %984 = vmatprep.subr.mxu0 0.0
    %985 = vmatpush1.msra.mxu0 0.0
    %986 = vmatprep.subr.mxu0 0.0
    %987 = vmatpush1.msra.mxu0 0.0
    %988 = vmatprep.subr.mxu0 0.0
    %989 = vmatpush1.msra.mxu0 0.0
    %990 = vmatprep.subr.mxu0 0.0
    %991 = vmatpush1.msra.mxu0 0.0
    %992 = vmatprep.subr.mxu0 0.0
    %993 = vmatpush1.msra.mxu0 0.0
    %994 = vmatprep.subr.mxu0 0.0
    %995 = vmatpush1.msra.mxu0 0.0
    %996 = vmatprep.subr.mxu0 0.0
    %997 = vmatpush1.msra.mxu0 0.0
    %998 = vmatprep.subr.mxu0 0.0
    %999 = vmatpush1.msra.mxu0 0.0
    %1000 = vmatprep.mubr.f32.mxu0 0.0
    %v1001 = vand.u32 %v388, 4294901760
    %1002 = vmatmul.mubr.f32.gmra.mrb[0].mxu0 %v1001
    %v1003 = vpop.f32.mrb[0].mxu0
    %v1004 = vadd.f32 %v561, %v1003
    %v1005 = vpop.f32.mrb[0].mxu0
    %v1006 = vadd.f32 %v563, %v1005
    %1007 = vmatprep.mubr.f32.mxu0 0.0
    %v1008 = vand.u32 %v391, 4294901760
    %1009 = vmatmul.mubr.f32.gmra.mrb[0].mxu0 %v1008
    %v1010 = vpop.f32.mrb[0].mxu0
    %v1011 = vadd.f32 %v572, %v1010
    %v1012 = vpop.f32.mrb[0].mxu0
    %v1013 = vadd.f32 %v574, %v1012
    %1014 = vmatprep.mubr.f32.mxu0 0.0
    %v1015 = vand.u32 %v394, 4294901760
    %1016 = vmatmul.mubr.f32.gmra.mrb[0].mxu0 %v1015
    %v1017 = vpop.f32.mrb[0].mxu0
    %v1018 = vadd.f32 %v583, %v1017
    %v1019 = vpop.f32.mrb[0].mxu0
    %v1020 = vadd.f32 %v585, %v1019
    %1021 = vmatprep.mubr.f32.mxu0 0.0
    %v1022 = vand.u32 %v397, 4294901760
    %1023 = vmatmul.mubr.f32.gmra.mrb[0].mxu0 %v1022
    %v1024 = vpop.f32.mrb[0].mxu0
    %v1025 = vadd.f32 %v594, %v1024
    %v1026 = vpop.f32.mrb[0].mxu0
    %v1027 = vadd.f32 %v596, %v1026
    %1028 = vmatprep.mubr.f32.mxu0 0.0
    %v1029 = vand.u32 %v400, 4294901760
    %1030 = vmatmul.mubr.f32.gmra.mrb[0].mxu0 %v1029
    %v1031 = vpop.f32.mrb[0].mxu0
    %v1032 = vadd.f32 %v605, %v1031
    %v1033 = vpop.f32.mrb[0].mxu0
    %v1034 = vadd.f32 %v607, %v1033
    %1035 = vmatprep.mubr.f32.mxu0 0.0
    %v1036 = vand.u32 %v403, 4294901760
    %1037 = vmatmul.mubr.f32.gmra.mrb[0].mxu0 %v1036
    %v1038 = vpop.f32.mrb[0].mxu0
    %v1039 = vadd.f32 %v616, %v1038
    %v1040 = vpop.f32.mrb[0].mxu0
    %v1041 = vadd.f32 %v618, %v1040
    %1042 = vmatprep.mubr.f32.mxu0 0.0
    %v1043 = vand.u32 %v406, 4294901760
    %1044 = vmatmul.mubr.f32.gmra.mrb[0].mxu0 %v1043
    %v1045 = vpop.f32.mrb[0].mxu0
    %v1046 = vadd.f32 %v627, %v1045
    %v1047 = vpop.f32.mrb[0].mxu0
    %v1048 = vadd.f32 %v629, %v1047
    %1049 = vmatprep.mubr.f32.mxu0 0.0
    %v1050 = vand.u32 %v409, 4294901760
    %1051 = vmatmul.mubr.f32.gmra.mrb[0].mxu0 %v1050
    %v1052 = vpop.f32.mrb[0].mxu0
    %v1053 = vadd.f32 %v638, %v1052
    %v1054 = vpop.f32.mrb[0].mxu0
    %v1055 = vadd.f32 %v640, %v1054
    %1056 = vmatprep.mubr.f32.mxu0 0.0
    %v1057 = vand.u32 %v412, 4294901760
    %1058 = vmatmul.mubr.f32.gmra.mrb[0].mxu0 %v1057
    %v1059 = vpop.f32.mrb[0].mxu0
    %v1060 = vadd.f32 %v649, %v1059
    %v1061 = vpop.f32.mrb[0].mxu0
    %v1062 = vadd.f32 %v651, %v1061
    %1063 = vmatprep.mubr.f32.mxu0 0.0
    %v1064 = vand.u32 %v415, 4294901760
    %1065 = vmatmul.mubr.f32.gmra.mrb[0].mxu0 %v1064
    %v1066 = vpop.f32.mrb[0].mxu0
    %v1067 = vadd.f32 %v660, %v1066
    %v1068 = vpop.f32.mrb[0].mxu0
    %v1069 = vadd.f32 %v662, %v1068
    %1070 = vmatprep.mubr.f32.mxu0 0.0
    %v1071 = vand.u32 %v418, 4294901760
    %1072 = vmatmul.mubr.f32.gmra.mrb[0].mxu0 %v1071
    %v1073 = vpop.f32.mrb[0].mxu0
    %v1074 = vadd.f32 %v671, %v1073
    %v1075 = vpop.f32.mrb[0].mxu0
    %v1076 = vadd.f32 %v673, %v1075
    %1077 = vmatprep.mubr.f32.mxu0 0.0
    %v1078 = vand.u32 %v421, 4294901760
    %1079 = vmatmul.mubr.f32.gmra.mrb[0].mxu0 %v1078
    %v1080 = vpop.f32.mrb[0].mxu0
    %v1081 = vadd.f32 %v682, %v1080
    %v1082 = vpop.f32.mrb[0].mxu0
    %v1083 = vadd.f32 %v684, %v1082
    %1084 = vmatprep.mubr.f32.mxu0 0.0
    %v1085 = vand.u32 %v424, 4294901760
    %1086 = vmatmul.mubr.f32.gmra.mrb[0].mxu0 %v1085
    %v1087 = vpop.f32.mrb[0].mxu0
    %v1088 = vadd.f32 %v693, %v1087
    %v1089 = vpop.f32.mrb[0].mxu0
    %v1090 = vadd.f32 %v695, %v1089
    %1091 = vmatprep.mubr.f32.mxu0 0.0
    %v1092 = vand.u32 %v427, 4294901760
    %1093 = vmatmul.mubr.f32.gmra.mrb[0].mxu0 %v1092
    %v1094 = vpop.f32.mrb[0].mxu0
    %v1095 = vadd.f32 %v704, %v1094
    %v1096 = vpop.f32.mrb[0].mxu0
    %v1097 = vadd.f32 %v706, %v1096
    %1098 = vmatprep.mubr.f32.mxu0 0.0
    %v1099 = vand.u32 %v430, 4294901760
    %1100 = vmatmul.mubr.f32.gmra.mrb[0].mxu0 %v1099
    %v1101 = vpop.f32.mrb[0].mxu0
    %v1102 = vadd.f32 %v715, %v1101
    %v1103 = vpop.f32.mrb[0].mxu0
    %v1104 = vadd.f32 %v717, %v1103
    %1105 = vmatprep.mubr.f32.mxu0 0.0
    %v1106 = vand.u32 %v433, 4294901760
    %1107 = vmatmul.mubr.f32.gmra.mrb[0].mxu0 %v1106
    %v1108 = vpop.f32.mrb[0].mxu0
    %v1109 = vadd.f32 %v726, %v1108
    %v1110 = vpop.f32.mrb[0].mxu0
    %v1111 = vadd.f32 %v728, %v1110
    %1112 = vmatprep.mubr.f32.mxu0 0.0
    %v1113 = vand.u32 %v436, 4294901760
    %1114 = vmatmul.mubr.f32.gmra.mrb[0].mxu0 %v1113
    %v1115 = vpop.f32.mrb[0].mxu0
    %v1116 = vadd.f32 %v737, %v1115
    %v1117 = vpop.f32.mrb[0].mxu0
    %v1118 = vadd.f32 %v739, %v1117
    %1119 = vmatprep.mubr.f32.mxu0 0.0
    %v1120 = vand.u32 %v439, 4294901760
    %1121 = vmatmul.mubr.f32.gmra.mrb[0].mxu0 %v1120
    %v1122 = vpop.f32.mrb[0].mxu0
    %v1123 = vadd.f32 %v748, %v1122
    %v1124 = vpop.f32.mrb[0].mxu0
    %v1125 = vadd.f32 %v750, %v1124
    %1126 = vmatprep.mubr.f32.mxu0 0.0
    %v1127 = vand.u32 %v442, 4294901760
    %1128 = vmatmul.mubr.f32.gmra.mrb[0].mxu0 %v1127
    %v1129 = vpop.f32.mrb[0].mxu0
    %v1130 = vadd.f32 %v759, %v1129
    %v1131 = vpop.f32.mrb[0].mxu0
    %v1132 = vadd.f32 %v761, %v1131
    %1133 = vmatprep.mubr.f32.mxu0 0.0
    %v1134 = vand.u32 %v445, 4294901760
    %1135 = vmatmul.mubr.f32.gmra.mrb[0].mxu0 %v1134
    %v1136 = vpop.f32.mrb[0].mxu0
    %v1137 = vadd.f32 %v770, %v1136
    %v1138 = vpop.f32.mrb[0].mxu0
    %v1139 = vadd.f32 %v772, %v1138
    %1140 = vmatprep.mubr.f32.mxu0 0.0
    %v1141 = vand.u32 %v448, 4294901760
    %1142 = vmatmul.mubr.f32.gmra.mrb[0].mxu0 %v1141
    %v1143 = vpop.f32.mrb[0].mxu0
    %v1144 = vadd.f32 %v781, %v1143
    %v1145 = vpop.f32.mrb[0].mxu0
    %v1146 = vadd.f32 %v783, %v1145
    %1147 = vmatprep.mubr.f32.mxu0 0.0
    %v1148 = vand.u32 %v451, 4294901760
    %1149 = vmatmul.mubr.f32.gmra.mrb[0].mxu0 %v1148
    %v1150 = vpop.f32.mrb[0].mxu0
    %v1151 = vadd.f32 %v792, %v1150
    %v1152 = vpop.f32.mrb[0].mxu0
    %v1153 = vadd.f32 %v794, %v1152
    %1154 = vmatprep.mubr.f32.mxu0 0.0
    %v1155 = vand.u32 %v454, 4294901760
    %1156 = vmatmul.mubr.f32.gmra.mrb[0].mxu0 %v1155
    %v1157 = vpop.f32.mrb[0].mxu0
    %v1158 = vadd.f32 %v803, %v1157
    %v1159 = vpop.f32.mrb[0].mxu0
    %v1160 = vadd.f32 %v805, %v1159
    %1161 = vmatprep.mubr.f32.mxu0 0.0
    %v1162 = vand.u32 %v457, 4294901760
    %1163 = vmatmul.mubr.f32.gmra.mrb[0].mxu0 %v1162
    %v1164 = vpop.f32.mrb[0].mxu0
    %v1165 = vadd.f32 %v814, %v1164
    %v1166 = vpop.f32.mrb[0].mxu0
    %v1167 = vadd.f32 %v816, %v1166
    %1168 = vmatprep.mubr.f32.mxu0 0.0
    %v1169 = vand.u32 %v460, 4294901760
    %1170 = vmatmul.mubr.f32.gmra.mrb[0].mxu0 %v1169
    %v1171 = vpop.f32.mrb[0].mxu0
    %v1172 = vadd.f32 %v825, %v1171
    %v1173 = vpop.f32.mrb[0].mxu0
    %v1174 = vadd.f32 %v827, %v1173
    %1175 = vmatprep.mubr.f32.mxu0 0.0
    %v1176 = vand.u32 %v463, 4294901760
    %1177 = vmatmul.mubr.f32.gmra.mrb[0].mxu0 %v1176
    %v1178 = vpop.f32.mrb[0].mxu0
    %v1179 = vadd.f32 %v836, %v1178
    %v1180 = vpop.f32.mrb[0].mxu0
    %v1181 = vadd.f32 %v838, %v1180
    %1182 = vmatprep.mubr.f32.mxu0 0.0
    %v1183 = vand.u32 %v466, 4294901760
    %1184 = vmatmul.mubr.f32.gmra.mrb[0].mxu0 %v1183
    %v1185 = vpop.f32.mrb[0].mxu0
    %v1186 = vadd.f32 %v847, %v1185
    %v1187 = vpop.f32.mrb[0].mxu0
    %v1188 = vadd.f32 %v849, %v1187
    %1189 = vmatprep.mubr.f32.mxu0 0.0
    %v1190 = vand.u32 %v469, 4294901760
    %1191 = vmatmul.mubr.f32.gmra.mrb[0].mxu0 %v1190
    %v1192 = vpop.f32.mrb[0].mxu0
    %v1193 = vadd.f32 %v858, %v1192
    %v1194 = vpop.f32.mrb[0].mxu0
    %v1195 = vadd.f32 %v860, %v1194
    %1196 = vmatprep.mubr.f32.mxu0 0.0
    %v1197 = vand.u32 %v472, 4294901760
    %1198 = vmatmul.mubr.f32.gmra.mrb[0].mxu0 %v1197
    %v1199 = vpop.f32.mrb[0].mxu0
    %v1200 = vadd.f32 %v869, %v1199
    %v1201 = vpop.f32.mrb[0].mxu0
    %v1202 = vadd.f32 %v871, %v1201
    %1203 = vmatprep.mubr.f32.mxu0 0.0
    %v1204 = vand.u32 %v475, 4294901760
    %1205 = vmatmul.mubr.f32.gmra.mrb[0].mxu0 %v1204
    %v1206 = vpop.f32.mrb[0].mxu0
    %v1207 = vadd.f32 %v880, %v1206
    %v1208 = vpop.f32.mrb[0].mxu0
    %v1209 = vadd.f32 %v882, %v1208
    %1210 = vmatprep.mubr.f32.mxu0 0.0
    %v1211 = vand.u32 %v478, 4294901760
    %1212 = vmatmul.mubr.f32.gmra.mrb[0].mxu0 %v1211
    %v1213 = vpop.f32.mrb[0].mxu0
    %v1214 = vadd.f32 %v891, %v1213
    %v1215 = vpop.f32.mrb[0].mxu0
    %v1216 = vadd.f32 %v893, %v1215
    %1217 = vmatprep.mubr.f32.mxu0 0.0
    %v1218 = vand.u32 %v481, 4294901760
    %1219 = vmatmul.mubr.f32.gmra.mrb[0].mxu0 %v1218
    %v1220 = vpop.f32.mrb[0].mxu0
    %v1221 = vadd.f32 %v902, %v1220
    %v1222 = vpop.f32.mrb[0].mxu0
    %v1223 = vadd.f32 %v904, %v1222
    %1224 = vdwg.mxu0
    %v1225 = vand.u32 %v317, 4294901760
    %v1226 = vsub.f32 %v317, %v1225
    %1227 = vmatprep.subr.mxu0 %v1226
    %v1228 = vand.u32 %v316, 4294901760
    %v1229 = vsub.f32 %v316, %v1228
    %1230 = vmatpush1.msra.mxu0 %v1229
    %v1231 = vand.u32 %v319, 4294901760
    %v1232 = vsub.f32 %v319, %v1231
    %1233 = vmatprep.subr.mxu0 %v1232
    %v1234 = vand.u32 %v318, 4294901760
    %v1235 = vsub.f32 %v318, %v1234
    %1236 = vmatpush1.msra.mxu0 %v1235
    %v1237 = vand.u32 %v321, 4294901760
    %v1238 = vsub.f32 %v321, %v1237
    %1239 = vmatprep.subr.mxu0 %v1238
    %v1240 = vand.u32 %v320, 4294901760
    %v1241 = vsub.f32 %v320, %v1240
    %1242 = vmatpush1.msra.mxu0 %v1241
    %1243 = vmatprep.subr.mxu0 0.0
    %1244 = vmatpush1.msra.mxu0 0.0
    %1245 = vmatprep.subr.mxu0 0.0
    %1246 = vmatpush1.msra.mxu0 0.0
    %1247 = vmatprep.subr.mxu0 0.0
    %1248 = vmatpush1.msra.mxu0 0.0
    %1249 = vmatprep.subr.mxu0 0.0
    %1250 = vmatpush1.msra.mxu0 0.0
    %1251 = vmatprep.subr.mxu0 0.0
    %1252 = vmatpush1.msra.mxu0 0.0
    %1253 = vmatprep.subr.mxu0 0.0
    %1254 = vmatpush1.msra.mxu0 0.0
    %1255 = vmatprep.subr.mxu0 0.0
    %1256 = vmatpush1.msra.mxu0 0.0
    %1257 = vmatprep.subr.mxu0 0.0
    %1258 = vmatpush1.msra.mxu0 0.0
    %1259 = vmatprep.subr.mxu0 0.0
    %1260 = vmatpush1.msra.mxu0 0.0
    %1261 = vmatprep.subr.mxu0 0.0
    %1262 = vmatpush1.msra.mxu0 0.0
    %1263 = vmatprep.subr.mxu0 0.0
    %1264 = vmatpush1.msra.mxu0 0.0
    %1265 = vmatprep.subr.mxu0 0.0
    %1266 = vmatpush1.msra.mxu0 0.0
    %1267 = vmatprep.subr.mxu0 0.0
    %1268 = vmatpush1.msra.mxu0 0.0
    %1269 = vmatprep.subr.mxu0 0.0
    %1270 = vmatpush1.msra.mxu0 0.0
    %1271 = vmatprep.subr.mxu0 0.0
    %1272 = vmatpush1.msra.mxu0 0.0
    %1273 = vmatprep.subr.mxu0 0.0
    %1274 = vmatpush1.msra.mxu0 0.0
    %1275 = vmatprep.subr.mxu0 0.0
    %1276 = vmatpush1.msra.mxu0 0.0
    %1277 = vmatprep.subr.mxu0 0.0
    %1278 = vmatpush1.msra.mxu0 0.0
    %1279 = vmatprep.subr.mxu0 0.0
    %1280 = vmatpush1.msra.mxu0 0.0
    %1281 = vmatprep.subr.mxu0 0.0
    %1282 = vmatpush1.msra.mxu0 0.0
    %1283 = vmatprep.subr.mxu0 0.0
    %1284 = vmatpush1.msra.mxu0 0.0
    %1285 = vmatprep.subr.mxu0 0.0
    %1286 = vmatpush1.msra.mxu0 0.0
    %1287 = vmatprep.subr.mxu0 0.0
    %1288 = vmatpush1.msra.mxu0 0.0
    %1289 = vmatprep.subr.mxu0 0.0
    %1290 = vmatpush1.msra.mxu0 0.0
    %1291 = vmatprep.subr.mxu0 0.0
    %1292 = vmatpush1.msra.mxu0 0.0
    %1293 = vmatprep.subr.mxu0 0.0
    %1294 = vmatpush1.msra.mxu0 0.0
    %1295 = vmatprep.subr.mxu0 0.0
    %1296 = vmatpush1.msra.mxu0 0.0
    %1297 = vmatprep.subr.mxu0 0.0
    %1298 = vmatpush1.msra.mxu0 0.0
    %1299 = vmatprep.subr.mxu0 0.0
    %1300 = vmatpush1.msra.mxu0 0.0
    %1301 = vmatprep.mubr.f32.mxu0 0.0
    %v1302 = vand.u32 %v388, 4294901760
    %v1303 = vsub.f32 %v388, %v1302
    %1304 = vmatmul.mubr.f32.gmra.mrb[0].mxu0 %v1303
    %v1305 = vpop.f32.mrb[0].mxu0
    %v1306 = vadd.f32 %v1004, %v1305
    %v1307 = vpop.f32.mrb[0].mxu0
    %v1308 = vadd.f32 %v1006, %v1307
    %1309 = vmatprep.mubr.f32.mxu0 0.0
    %v1310 = vand.u32 %v391, 4294901760
    %v1311 = vsub.f32 %v391, %v1310
    %1312 = vmatmul.mubr.f32.gmra.mrb[0].mxu0 %v1311
    %v1313 = vpop.f32.mrb[0].mxu0
    %v1314 = vadd.f32 %v1011, %v1313
    %v1315 = vpop.f32.mrb[0].mxu0
    %v1316 = vadd.f32 %v1013, %v1315
    %1317 = vmatprep.mubr.f32.mxu0 0.0
    %v1318 = vand.u32 %v394, 4294901760
    %v1319 = vsub.f32 %v394, %v1318
    %1320 = vmatmul.mubr.f32.gmra.mrb[0].mxu0 %v1319
    %v1321 = vpop.f32.mrb[0].mxu0
    %v1322 = vadd.f32 %v1018, %v1321
    %v1323 = vpop.f32.mrb[0].mxu0
    %v1324 = vadd.f32 %v1020, %v1323
    %1325 = vmatprep.mubr.f32.mxu0 0.0
    %v1326 = vand.u32 %v397, 4294901760
    %v1327 = vsub.f32 %v397, %v1326
    %1328 = vmatmul.mubr.f32.gmra.mrb[0].mxu0 %v1327
    %v1329 = vpop.f32.mrb[0].mxu0
    %v1330 = vadd.f32 %v1025, %v1329
    %v1331 = vpop.f32.mrb[0].mxu0
    %v1332 = vadd.f32 %v1027, %v1331
    %1333 = vmatprep.mubr.f32.mxu0 0.0
    %v1334 = vand.u32 %v400, 4294901760
    %v1335 = vsub.f32 %v400, %v1334
    %1336 = vmatmul.mubr.f32.gmra.mrb[0].mxu0 %v1335
    %v1337 = vpop.f32.mrb[0].mxu0
    %v1338 = vadd.f32 %v1032, %v1337
    %v1339 = vpop.f32.mrb[0].mxu0
    %v1340 = vadd.f32 %v1034, %v1339
    %1341 = vmatprep.mubr.f32.mxu0 0.0
    %v1342 = vand.u32 %v403, 4294901760
    %v1343 = vsub.f32 %v403, %v1342
    %1344 = vmatmul.mubr.f32.gmra.mrb[0].mxu0 %v1343
    %v1345 = vpop.f32.mrb[0].mxu0
    %v1346 = vadd.f32 %v1039, %v1345
    %v1347 = vpop.f32.mrb[0].mxu0
    %v1348 = vadd.f32 %v1041, %v1347
    %1349 = vmatprep.mubr.f32.mxu0 0.0
    %v1350 = vand.u32 %v406, 4294901760
    %v1351 = vsub.f32 %v406, %v1350
    %1352 = vmatmul.mubr.f32.gmra.mrb[0].mxu0 %v1351
    %v1353 = vpop.f32.mrb[0].mxu0
    %v1354 = vadd.f32 %v1046, %v1353
    %v1355 = vpop.f32.mrb[0].mxu0
    %v1356 = vadd.f32 %v1048, %v1355
    %1357 = vmatprep.mubr.f32.mxu0 0.0
    %v1358 = vand.u32 %v409, 4294901760
    %v1359 = vsub.f32 %v409, %v1358
    %1360 = vmatmul.mubr.f32.gmra.mrb[0].mxu0 %v1359
    %v1361 = vpop.f32.mrb[0].mxu0
    %v1362 = vadd.f32 %v1053, %v1361
    %v1363 = vpop.f32.mrb[0].mxu0
    %v1364 = vadd.f32 %v1055, %v1363
    %1365 = vmatprep.mubr.f32.mxu0 0.0
    %v1366 = vand.u32 %v412, 4294901760
    %v1367 = vsub.f32 %v412, %v1366
    %1368 = vmatmul.mubr.f32.gmra.mrb[0].mxu0 %v1367
    %v1369 = vpop.f32.mrb[0].mxu0
    %v1370 = vadd.f32 %v1060, %v1369
    %v1371 = vpop.f32.mrb[0].mxu0
    %v1372 = vadd.f32 %v1062, %v1371
    %1373 = vmatprep.mubr.f32.mxu0 0.0
    %v1374 = vand.u32 %v415, 4294901760
    %v1375 = vsub.f32 %v415, %v1374
    %1376 = vmatmul.mubr.f32.gmra.mrb[0].mxu0 %v1375
    %v1377 = vpop.f32.mrb[0].mxu0
    %v1378 = vadd.f32 %v1067, %v1377
    %v1379 = vpop.f32.mrb[0].mxu0
    %v1380 = vadd.f32 %v1069, %v1379
    %1381 = vmatprep.mubr.f32.mxu0 0.0
    %v1382 = vand.u32 %v418, 4294901760
    %v1383 = vsub.f32 %v418, %v1382
    %1384 = vmatmul.mubr.f32.gmra.mrb[0].mxu0 %v1383
    %v1385 = vpop.f32.mrb[0].mxu0
    %v1386 = vadd.f32 %v1074, %v1385
    %v1387 = vpop.f32.mrb[0].mxu0
    %v1388 = vadd.f32 %v1076, %v1387
    %1389 = vmatprep.mubr.f32.mxu0 0.0
    %v1390 = vand.u32 %v421, 4294901760
    %v1391 = vsub.f32 %v421, %v1390
    %1392 = vmatmul.mubr.f32.gmra.mrb[0].mxu0 %v1391
    %v1393 = vpop.f32.mrb[0].mxu0
    %v1394 = vadd.f32 %v1081, %v1393
    %v1395 = vpop.f32.mrb[0].mxu0
    %v1396 = vadd.f32 %v1083, %v1395
    %1397 = vmatprep.mubr.f32.mxu0 0.0
    %v1398 = vand.u32 %v424, 4294901760
    %v1399 = vsub.f32 %v424, %v1398
    %1400 = vmatmul.mubr.f32.gmra.mrb[0].mxu0 %v1399
    %v1401 = vpop.f32.mrb[0].mxu0
    %v1402 = vadd.f32 %v1088, %v1401
    %v1403 = vpop.f32.mrb[0].mxu0
    %v1404 = vadd.f32 %v1090, %v1403
    %1405 = vmatprep.mubr.f32.mxu0 0.0
    %v1406 = vand.u32 %v427, 4294901760
    %v1407 = vsub.f32 %v427, %v1406
    %1408 = vmatmul.mubr.f32.gmra.mrb[0].mxu0 %v1407
    %v1409 = vpop.f32.mrb[0].mxu0
    %v1410 = vadd.f32 %v1095, %v1409
    %v1411 = vpop.f32.mrb[0].mxu0
    %v1412 = vadd.f32 %v1097, %v1411
    %1413 = vmatprep.mubr.f32.mxu0 0.0
    %v1414 = vand.u32 %v430, 4294901760
    %v1415 = vsub.f32 %v430, %v1414
    %1416 = vmatmul.mubr.f32.gmra.mrb[0].mxu0 %v1415
    %v1417 = vpop.f32.mrb[0].mxu0
    %v1418 = vadd.f32 %v1102, %v1417
    %v1419 = vpop.f32.mrb[0].mxu0
    %v1420 = vadd.f32 %v1104, %v1419
    %1421 = vmatprep.mubr.f32.mxu0 0.0
    %v1422 = vand.u32 %v433, 4294901760
    %v1423 = vsub.f32 %v433, %v1422
    %1424 = vmatmul.mubr.f32.gmra.mrb[0].mxu0 %v1423
    %v1425 = vpop.f32.mrb[0].mxu0
    %v1426 = vadd.f32 %v1109, %v1425
    %v1427 = vpop.f32.mrb[0].mxu0
    %v1428 = vadd.f32 %v1111, %v1427
    %1429 = vmatprep.mubr.f32.mxu0 0.0
    %v1430 = vand.u32 %v436, 4294901760
    %v1431 = vsub.f32 %v436, %v1430
    %1432 = vmatmul.mubr.f32.gmra.mrb[0].mxu0 %v1431
    %v1433 = vpop.f32.mrb[0].mxu0
    %v1434 = vadd.f32 %v1116, %v1433
    %v1435 = vpop.f32.mrb[0].mxu0
    %v1436 = vadd.f32 %v1118, %v1435
    %1437 = vmatprep.mubr.f32.mxu0 0.0
    %v1438 = vand.u32 %v439, 4294901760
    %v1439 = vsub.f32 %v439, %v1438
    %1440 = vmatmul.mubr.f32.gmra.mrb[0].mxu0 %v1439
    %v1441 = vpop.f32.mrb[0].mxu0
    %v1442 = vadd.f32 %v1123, %v1441
    %v1443 = vpop.f32.mrb[0].mxu0
    %v1444 = vadd.f32 %v1125, %v1443
    %1445 = vmatprep.mubr.f32.mxu0 0.0
    %v1446 = vand.u32 %v442, 4294901760
    %v1447 = vsub.f32 %v442, %v1446
    %1448 = vmatmul.mubr.f32.gmra.mrb[0].mxu0 %v1447
    %v1449 = vpop.f32.mrb[0].mxu0
    %v1450 = vadd.f32 %v1130, %v1449
    %v1451 = vpop.f32.mrb[0].mxu0
    %v1452 = vadd.f32 %v1132, %v1451
    %1453 = vmatprep.mubr.f32.mxu0 0.0
    %v1454 = vand.u32 %v445, 4294901760
    %v1455 = vsub.f32 %v445, %v1454
    %1456 = vmatmul.mubr.f32.gmra.mrb[0].mxu0 %v1455
    %v1457 = vpop.f32.mrb[0].mxu0
    %v1458 = vadd.f32 %v1137, %v1457
    %v1459 = vpop.f32.mrb[0].mxu0
    %v1460 = vadd.f32 %v1139, %v1459
    %1461 = vmatprep.mubr.f32.mxu0 0.0
    %v1462 = vand.u32 %v448, 4294901760
    %v1463 = vsub.f32 %v448, %v1462
    %1464 = vmatmul.mubr.f32.gmra.mrb[0].mxu0 %v1463
    %v1465 = vpop.f32.mrb[0].mxu0
    %v1466 = vadd.f32 %v1144, %v1465
    %v1467 = vpop.f32.mrb[0].mxu0
    %v1468 = vadd.f32 %v1146, %v1467
    %1469 = vmatprep.mubr.f32.mxu0 0.0
    %v1470 = vand.u32 %v451, 4294901760
    %v1471 = vsub.f32 %v451, %v1470
    %1472 = vmatmul.mubr.f32.gmra.mrb[0].mxu0 %v1471
    %v1473 = vpop.f32.mrb[0].mxu0
    %v1474 = vadd.f32 %v1151, %v1473
    %v1475 = vpop.f32.mrb[0].mxu0
    %v1476 = vadd.f32 %v1153, %v1475
    %1477 = vmatprep.mubr.f32.mxu0 0.0
    %v1478 = vand.u32 %v454, 4294901760
    %v1479 = vsub.f32 %v454, %v1478
    %1480 = vmatmul.mubr.f32.gmra.mrb[0].mxu0 %v1479
    %v1481 = vpop.f32.mrb[0].mxu0
    %v1482 = vadd.f32 %v1158, %v1481
    %v1483 = vpop.f32.mrb[0].mxu0
    %v1484 = vadd.f32 %v1160, %v1483
    %1485 = vmatprep.mubr.f32.mxu0 0.0
    %v1486 = vand.u32 %v457, 4294901760
    %v1487 = vsub.f32 %v457, %v1486
    %1488 = vmatmul.mubr.f32.gmra.mrb[0].mxu0 %v1487
    %v1489 = vpop.f32.mrb[0].mxu0
    %v1490 = vadd.f32 %v1165, %v1489
    %v1491 = vpop.f32.mrb[0].mxu0
    %v1492 = vadd.f32 %v1167, %v1491
    %1493 = vmatprep.mubr.f32.mxu0 0.0
    %v1494 = vand.u32 %v460, 4294901760
    %v1495 = vsub.f32 %v460, %v1494
    %1496 = vmatmul.mubr.f32.gmra.mrb[0].mxu0 %v1495
    %v1497 = vpop.f32.mrb[0].mxu0
    %v1498 = vadd.f32 %v1172, %v1497
    %v1499 = vpop.f32.mrb[0].mxu0
    %v1500 = vadd.f32 %v1174, %v1499
    %1501 = vmatprep.mubr.f32.mxu0 0.0
    %v1502 = vand.u32 %v463, 4294901760
    %v1503 = vsub.f32 %v463, %v1502
    %1504 = vmatmul.mubr.f32.gmra.mrb[0].mxu0 %v1503
    %v1505 = vpop.f32.mrb[0].mxu0
    %v1506 = vadd.f32 %v1179, %v1505
    %v1507 = vpop.f32.mrb[0].mxu0
    %v1508 = vadd.f32 %v1181, %v1507
    %1509 = vmatprep.mubr.f32.mxu0 0.0
    %v1510 = vand.u32 %v466, 4294901760
    %v1511 = vsub.f32 %v466, %v1510
    %1512 = vmatmul.mubr.f32.gmra.mrb[0].mxu0 %v1511
    %v1513 = vpop.f32.mrb[0].mxu0
    %v1514 = vadd.f32 %v1186, %v1513
    %v1515 = vpop.f32.mrb[0].mxu0
    %v1516 = vadd.f32 %v1188, %v1515
    %1517 = vmatprep.mubr.f32.mxu0 0.0
    %v1518 = vand.u32 %v469, 4294901760
    %v1519 = vsub.f32 %v469, %v1518
    %1520 = vmatmul.mubr.f32.gmra.mrb[0].mxu0 %v1519
    %v1521 = vpop.f32.mrb[0].mxu0
    %v1522 = vadd.f32 %v1193, %v1521
    %v1523 = vpop.f32.mrb[0].mxu0
    %v1524 = vadd.f32 %v1195, %v1523
    %1525 = vmatprep.mubr.f32.mxu0 0.0
    %v1526 = vand.u32 %v472, 4294901760
    %v1527 = vsub.f32 %v472, %v1526
    %1528 = vmatmul.mubr.f32.gmra.mrb[0].mxu0 %v1527
    %v1529 = vpop.f32.mrb[0].mxu0
    %v1530 = vadd.f32 %v1200, %v1529
    %v1531 = vpop.f32.mrb[0].mxu0
    %v1532 = vadd.f32 %v1202, %v1531
    %1533 = vmatprep.mubr.f32.mxu0 0.0
    %v1534 = vand.u32 %v475, 4294901760
    %v1535 = vsub.f32 %v475, %v1534
    %1536 = vmatmul.mubr.f32.gmra.mrb[0].mxu0 %v1535
    %v1537 = vpop.f32.mrb[0].mxu0
    %v1538 = vadd.f32 %v1207, %v1537
    %v1539 = vpop.f32.mrb[0].mxu0
    %v1540 = vadd.f32 %v1209, %v1539
    %1541 = vmatprep.mubr.f32.mxu0 0.0
    %v1542 = vand.u32 %v478, 4294901760
    %v1543 = vsub.f32 %v478, %v1542
    %1544 = vmatmul.mubr.f32.gmra.mrb[0].mxu0 %v1543
    %v1545 = vpop.f32.mrb[0].mxu0
    %v1546 = vadd.f32 %v1214, %v1545
    %v1547 = vpop.f32.mrb[0].mxu0
    %v1548 = vadd.f32 %v1216, %v1547
    %1549 = vmatprep.mubr.f32.mxu0 0.0
    %v1550 = vand.u32 %v481, 4294901760
    %v1551 = vsub.f32 %v481, %v1550
    %1552 = vmatmul.mubr.f32.gmra.mrb[0].mxu0 %v1551
    %v1553 = vpop.f32.mrb[0].mxu0
    %v1554 = vadd.f32 %v1221, %v1553
    %v1555 = vpop.f32.mrb[0].mxu0
    %v1556 = vadd.f32 %v1223, %v1555
    %1557 = vdwg.mxu0
    %v1558 = vand.u32 %v317, 4294901760
    %1559 = vmatprep.subr.mxu0 %v1558
    %v1560 = vand.u32 %v316, 4294901760
    %1561 = vmatpush1.msra.mxu0 %v1560
    %v1562 = vand.u32 %v319, 4294901760
    %1563 = vmatprep.subr.mxu0 %v1562
    %v1564 = vand.u32 %v318, 4294901760
    %1565 = vmatpush1.msra.mxu0 %v1564
    %v1566 = vand.u32 %v321, 4294901760
    %1567 = vmatprep.subr.mxu0 %v1566
    %v1568 = vand.u32 %v320, 4294901760
    %1569 = vmatpush1.msra.mxu0 %v1568
    %1570 = vmatprep.subr.mxu0 0.0
    %1571 = vmatpush1.msra.mxu0 0.0
    %1572 = vmatprep.subr.mxu0 0.0
    %1573 = vmatpush1.msra.mxu0 0.0
    %1574 = vmatprep.subr.mxu0 0.0
    %1575 = vmatpush1.msra.mxu0 0.0
    %1576 = vmatprep.subr.mxu0 0.0
    %1577 = vmatpush1.msra.mxu0 0.0
    %1578 = vmatprep.subr.mxu0 0.0
    %1579 = vmatpush1.msra.mxu0 0.0
    %1580 = vmatprep.subr.mxu0 0.0
    %1581 = vmatpush1.msra.mxu0 0.0
    %1582 = vmatprep.subr.mxu0 0.0
    %1583 = vmatpush1.msra.mxu0 0.0
    %1584 = vmatprep.subr.mxu0 0.0
    %1585 = vmatpush1.msra.mxu0 0.0
    %1586 = vmatprep.subr.mxu0 0.0
    %1587 = vmatpush1.msra.mxu0 0.0
    %1588 = vmatprep.subr.mxu0 0.0
    %1589 = vmatpush1.msra.mxu0 0.0
    %1590 = vmatprep.subr.mxu0 0.0
    %1591 = vmatpush1.msra.mxu0 0.0
    %1592 = vmatprep.subr.mxu0 0.0
    %1593 = vmatpush1.msra.mxu0 0.0
    %1594 = vmatprep.subr.mxu0 0.0
    %1595 = vmatpush1.msra.mxu0 0.0
    %1596 = vmatprep.subr.mxu0 0.0
    %1597 = vmatpush1.msra.mxu0 0.0
    %1598 = vmatprep.subr.mxu0 0.0
    %1599 = vmatpush1.msra.mxu0 0.0
    %1600 = vmatprep.subr.mxu0 0.0
    %1601 = vmatpush1.msra.mxu0 0.0
    %1602 = vmatprep.subr.mxu0 0.0
    %1603 = vmatpush1.msra.mxu0 0.0
    %1604 = vmatprep.subr.mxu0 0.0
    %1605 = vmatpush1.msra.mxu0 0.0
    %1606 = vmatprep.subr.mxu0 0.0
    %1607 = vmatpush1.msra.mxu0 0.0
    %1608 = vmatprep.subr.mxu0 0.0
    %1609 = vmatpush1.msra.mxu0 0.0
    %1610 = vmatprep.subr.mxu0 0.0
    %1611 = vmatpush1.msra.mxu0 0.0
    %1612 = vmatprep.subr.mxu0 0.0
    %1613 = vmatpush1.msra.mxu0 0.0
    %1614 = vmatprep.subr.mxu0 0.0
    %1615 = vmatpush1.msra.mxu0 0.0
    %1616 = vmatprep.subr.mxu0 0.0
    %1617 = vmatpush1.msra.mxu0 0.0
    %1618 = vmatprep.subr.mxu0 0.0
    %1619 = vmatpush1.msra.mxu0 0.0
    %1620 = vmatprep.subr.mxu0 0.0
    %1621 = vmatpush1.msra.mxu0 0.0
    %1622 = vmatprep.subr.mxu0 0.0
    %1623 = vmatpush1.msra.mxu0 0.0
    %1624 = vmatprep.subr.mxu0 0.0
    %1625 = vmatpush1.msra.mxu0 0.0
    %1626 = vmatprep.subr.mxu0 0.0
    %1627 = vmatpush1.msra.mxu0 0.0
    %1628 = vmatprep.mubr.f32.mxu0 0.0
    %v1629 = vand.u32 %v388, 4294901760
    %v1630 = vsub.f32 %v388, %v1629
    %v1631 = vand.u32 %v1630, 4294901760
    %1632 = vmatmul.mubr.f32.gmra.mrb[0].mxu0 %v1631
    %v1633 = vpop.f32.mrb[0].mxu0
    %v1634 = vadd.f32 %v1306, %v1633
    %v1635 = vpop.f32.mrb[0].mxu0
    %v1636 = vadd.f32 %v1308, %v1635
    %1637 = vmatprep.mubr.f32.mxu0 0.0
    %v1638 = vand.u32 %v391, 4294901760
    %v1639 = vsub.f32 %v391, %v1638
    %v1640 = vand.u32 %v1639, 4294901760
    %1641 = vmatmul.mubr.f32.gmra.mrb[0].mxu0 %v1640
    %v1642 = vpop.f32.mrb[0].mxu0
    %v1643 = vadd.f32 %v1314, %v1642
    %v1644 = vpop.f32.mrb[0].mxu0
    %v1645 = vadd.f32 %v1316, %v1644
    %1646 = vmatprep.mubr.f32.mxu0 0.0
    %v1647 = vand.u32 %v394, 4294901760
    %v1648 = vsub.f32 %v394, %v1647
    %v1649 = vand.u32 %v1648, 4294901760
    %1650 = vmatmul.mubr.f32.gmra.mrb[0].mxu0 %v1649
    %v1651 = vpop.f32.mrb[0].mxu0
    %v1652 = vadd.f32 %v1322, %v1651
    %v1653 = vpop.f32.mrb[0].mxu0
    %v1654 = vadd.f32 %v1324, %v1653
    %1655 = vmatprep.mubr.f32.mxu0 0.0
    %v1656 = vand.u32 %v397, 4294901760
    %v1657 = vsub.f32 %v397, %v1656
    %v1658 = vand.u32 %v1657, 4294901760
    %1659 = vmatmul.mubr.f32.gmra.mrb[0].mxu0 %v1658
    %v1660 = vpop.f32.mrb[0].mxu0
    %v1661 = vadd.f32 %v1330, %v1660
    %v1662 = vpop.f32.mrb[0].mxu0
    %v1663 = vadd.f32 %v1332, %v1662
    %1664 = vmatprep.mubr.f32.mxu0 0.0
    %v1665 = vand.u32 %v400, 4294901760
    %v1666 = vsub.f32 %v400, %v1665
    %v1667 = vand.u32 %v1666, 4294901760
    %1668 = vmatmul.mubr.f32.gmra.mrb[0].mxu0 %v1667
    %v1669 = vpop.f32.mrb[0].mxu0
    %v1670 = vadd.f32 %v1338, %v1669
    %v1671 = vpop.f32.mrb[0].mxu0
    %v1672 = vadd.f32 %v1340, %v1671
    %1673 = vmatprep.mubr.f32.mxu0 0.0
    %v1674 = vand.u32 %v403, 4294901760
    %v1675 = vsub.f32 %v403, %v1674
    %v1676 = vand.u32 %v1675, 4294901760
    %1677 = vmatmul.mubr.f32.gmra.mrb[0].mxu0 %v1676
    %v1678 = vpop.f32.mrb[0].mxu0
    %v1679 = vadd.f32 %v1346, %v1678
    %v1680 = vpop.f32.mrb[0].mxu0
    %v1681 = vadd.f32 %v1348, %v1680
    %1682 = vmatprep.mubr.f32.mxu0 0.0
    %v1683 = vand.u32 %v406, 4294901760
    %v1684 = vsub.f32 %v406, %v1683
    %v1685 = vand.u32 %v1684, 4294901760
    %1686 = vmatmul.mubr.f32.gmra.mrb[0].mxu0 %v1685
    %v1687 = vpop.f32.mrb[0].mxu0
    %v1688 = vadd.f32 %v1354, %v1687
    %v1689 = vpop.f32.mrb[0].mxu0
    %v1690 = vadd.f32 %v1356, %v1689
    %1691 = vmatprep.mubr.f32.mxu0 0.0
    %v1692 = vand.u32 %v409, 4294901760
    %v1693 = vsub.f32 %v409, %v1692
    %v1694 = vand.u32 %v1693, 4294901760
    %1695 = vmatmul.mubr.f32.gmra.mrb[0].mxu0 %v1694
    %v1696 = vpop.f32.mrb[0].mxu0
    %v1697 = vadd.f32 %v1362, %v1696
    %v1698 = vpop.f32.mrb[0].mxu0
    %v1699 = vadd.f32 %v1364, %v1698
    %1700 = vmatprep.mubr.f32.mxu0 0.0
    %v1701 = vand.u32 %v412, 4294901760
    %v1702 = vsub.f32 %v412, %v1701
    %v1703 = vand.u32 %v1702, 4294901760
    %1704 = vmatmul.mubr.f32.gmra.mrb[0].mxu0 %v1703
    %v1705 = vpop.f32.mrb[0].mxu0
    %v1706 = vadd.f32 %v1370, %v1705
    %v1707 = vpop.f32.mrb[0].mxu0
    %v1708 = vadd.f32 %v1372, %v1707
    %1709 = vmatprep.mubr.f32.mxu0 0.0
    %v1710 = vand.u32 %v415, 4294901760
    %v1711 = vsub.f32 %v415, %v1710
    %v1712 = vand.u32 %v1711, 4294901760
    %1713 = vmatmul.mubr.f32.gmra.mrb[0].mxu0 %v1712
    %v1714 = vpop.f32.mrb[0].mxu0
    %v1715 = vadd.f32 %v1378, %v1714
    %v1716 = vpop.f32.mrb[0].mxu0
    %v1717 = vadd.f32 %v1380, %v1716
    %1718 = vmatprep.mubr.f32.mxu0 0.0
    %v1719 = vand.u32 %v418, 4294901760
    %v1720 = vsub.f32 %v418, %v1719
    %v1721 = vand.u32 %v1720, 4294901760
    %1722 = vmatmul.mubr.f32.gmra.mrb[0].mxu0 %v1721
    %v1723 = vpop.f32.mrb[0].mxu0
    %v1724 = vadd.f32 %v1386, %v1723
    %v1725 = vpop.f32.mrb[0].mxu0
    %v1726 = vadd.f32 %v1388, %v1725
    %1727 = vmatprep.mubr.f32.mxu0 0.0
    %v1728 = vand.u32 %v421, 4294901760
    %v1729 = vsub.f32 %v421, %v1728
    %v1730 = vand.u32 %v1729, 4294901760
    %1731 = vmatmul.mubr.f32.gmra.mrb[0].mxu0 %v1730
    %v1732 = vpop.f32.mrb[0].mxu0
    %v1733 = vadd.f32 %v1394, %v1732
    %v1734 = vpop.f32.mrb[0].mxu0
    %v1735 = vadd.f32 %v1396, %v1734
    %1736 = vmatprep.mubr.f32.mxu0 0.0
    %v1737 = vand.u32 %v424, 4294901760
    %v1738 = vsub.f32 %v424, %v1737
    %v1739 = vand.u32 %v1738, 4294901760
    %1740 = vmatmul.mubr.f32.gmra.mrb[0].mxu0 %v1739
    %v1741 = vpop.f32.mrb[0].mxu0
    %v1742 = vadd.f32 %v1402, %v1741
    %v1743 = vpop.f32.mrb[0].mxu0
    %v1744 = vadd.f32 %v1404, %v1743
    %1745 = vmatprep.mubr.f32.mxu0 0.0
    %v1746 = vand.u32 %v427, 4294901760
    %v1747 = vsub.f32 %v427, %v1746
    %v1748 = vand.u32 %v1747, 4294901760
    %1749 = vmatmul.mubr.f32.gmra.mrb[0].mxu0 %v1748
    %v1750 = vpop.f32.mrb[0].mxu0
    %v1751 = vadd.f32 %v1410, %v1750
    %v1752 = vpop.f32.mrb[0].mxu0
    %v1753 = vadd.f32 %v1412, %v1752
    %1754 = vmatprep.mubr.f32.mxu0 0.0
    %v1755 = vand.u32 %v430, 4294901760
    %v1756 = vsub.f32 %v430, %v1755
    %v1757 = vand.u32 %v1756, 4294901760
    %1758 = vmatmul.mubr.f32.gmra.mrb[0].mxu0 %v1757
    %v1759 = vpop.f32.mrb[0].mxu0
    %v1760 = vadd.f32 %v1418, %v1759
    %v1761 = vpop.f32.mrb[0].mxu0
    %v1762 = vadd.f32 %v1420, %v1761
    %1763 = vmatprep.mubr.f32.mxu0 0.0
    %v1764 = vand.u32 %v433, 4294901760
    %v1765 = vsub.f32 %v433, %v1764
    %v1766 = vand.u32 %v1765, 4294901760
    %1767 = vmatmul.mubr.f32.gmra.mrb[0].mxu0 %v1766
    %v1768 = vpop.f32.mrb[0].mxu0
    %v1769 = vadd.f32 %v1426, %v1768
    %v1770 = vpop.f32.mrb[0].mxu0
    %v1771 = vadd.f32 %v1428, %v1770
    %1772 = vmatprep.mubr.f32.mxu0 0.0
    %v1773 = vand.u32 %v436, 4294901760
    %v1774 = vsub.f32 %v436, %v1773
    %v1775 = vand.u32 %v1774, 4294901760
    %1776 = vmatmul.mubr.f32.gmra.mrb[0].mxu0 %v1775
    %v1777 = vpop.f32.mrb[0].mxu0
    %v1778 = vadd.f32 %v1434, %v1777
    %v1779 = vpop.f32.mrb[0].mxu0
    %v1780 = vadd.f32 %v1436, %v1779
    %1781 = vmatprep.mubr.f32.mxu0 0.0
    %v1782 = vand.u32 %v439, 4294901760
    %v1783 = vsub.f32 %v439, %v1782
    %v1784 = vand.u32 %v1783, 4294901760
    %1785 = vmatmul.mubr.f32.gmra.mrb[0].mxu0 %v1784
    %v1786 = vpop.f32.mrb[0].mxu0
    %v1787 = vadd.f32 %v1442, %v1786
    %v1788 = vpop.f32.mrb[0].mxu0
    %v1789 = vadd.f32 %v1444, %v1788
    %1790 = vmatprep.mubr.f32.mxu0 0.0
    %v1791 = vand.u32 %v442, 4294901760
    %v1792 = vsub.f32 %v442, %v1791
    %v1793 = vand.u32 %v1792, 4294901760
    %1794 = vmatmul.mubr.f32.gmra.mrb[0].mxu0 %v1793
    %v1795 = vpop.f32.mrb[0].mxu0
    %v1796 = vadd.f32 %v1450, %v1795
    %v1797 = vpop.f32.mrb[0].mxu0
    %v1798 = vadd.f32 %v1452, %v1797
    %1799 = vmatprep.mubr.f32.mxu0 0.0
    %v1800 = vand.u32 %v445, 4294901760
    %v1801 = vsub.f32 %v445, %v1800
    %v1802 = vand.u32 %v1801, 4294901760
    %1803 = vmatmul.mubr.f32.gmra.mrb[0].mxu0 %v1802
    %v1804 = vpop.f32.mrb[0].mxu0
    %v1805 = vadd.f32 %v1458, %v1804
    %v1806 = vpop.f32.mrb[0].mxu0
    %v1807 = vadd.f32 %v1460, %v1806
    %1808 = vmatprep.mubr.f32.mxu0 0.0
    %v1809 = vand.u32 %v448, 4294901760
    %v1810 = vsub.f32 %v448, %v1809
    %v1811 = vand.u32 %v1810, 4294901760
    %1812 = vmatmul.mubr.f32.gmra.mrb[0].mxu0 %v1811
    %v1813 = vpop.f32.mrb[0].mxu0
    %v1814 = vadd.f32 %v1466, %v1813
    %v1815 = vpop.f32.mrb[0].mxu0
    %v1816 = vadd.f32 %v1468, %v1815
    %1817 = vmatprep.mubr.f32.mxu0 0.0
    %v1818 = vand.u32 %v451, 4294901760
    %v1819 = vsub.f32 %v451, %v1818
    %v1820 = vand.u32 %v1819, 4294901760
    %1821 = vmatmul.mubr.f32.gmra.mrb[0].mxu0 %v1820
    %v1822 = vpop.f32.mrb[0].mxu0
    %v1823 = vadd.f32 %v1474, %v1822
    %v1824 = vpop.f32.mrb[0].mxu0
    %v1825 = vadd.f32 %v1476, %v1824
    %1826 = vmatprep.mubr.f32.mxu0 0.0
    %v1827 = vand.u32 %v454, 4294901760
    %v1828 = vsub.f32 %v454, %v1827
    %v1829 = vand.u32 %v1828, 4294901760
    %1830 = vmatmul.mubr.f32.gmra.mrb[0].mxu0 %v1829
    %v1831 = vpop.f32.mrb[0].mxu0
    %v1832 = vadd.f32 %v1482, %v1831
    %v1833 = vpop.f32.mrb[0].mxu0
    %v1834 = vadd.f32 %v1484, %v1833
    %1835 = vmatprep.mubr.f32.mxu0 0.0
    %v1836 = vand.u32 %v457, 4294901760
    %v1837 = vsub.f32 %v457, %v1836
    %v1838 = vand.u32 %v1837, 4294901760
    %1839 = vmatmul.mubr.f32.gmra.mrb[0].mxu0 %v1838
    %v1840 = vpop.f32.mrb[0].mxu0
    %v1841 = vadd.f32 %v1490, %v1840
    %v1842 = vpop.f32.mrb[0].mxu0
    %v1843 = vadd.f32 %v1492, %v1842
    %1844 = vmatprep.mubr.f32.mxu0 0.0
    %v1845 = vand.u32 %v460, 4294901760
    %v1846 = vsub.f32 %v460, %v1845
    %v1847 = vand.u32 %v1846, 4294901760
    %1848 = vmatmul.mubr.f32.gmra.mrb[0].mxu0 %v1847
    %v1849 = vpop.f32.mrb[0].mxu0
    %v1850 = vadd.f32 %v1498, %v1849
    %v1851 = vpop.f32.mrb[0].mxu0
    %v1852 = vadd.f32 %v1500, %v1851
    %1853 = vmatprep.mubr.f32.mxu0 0.0
    %v1854 = vand.u32 %v463, 4294901760
    %v1855 = vsub.f32 %v463, %v1854
    %v1856 = vand.u32 %v1855, 4294901760
    %1857 = vmatmul.mubr.f32.gmra.mrb[0].mxu0 %v1856
    %v1858 = vpop.f32.mrb[0].mxu0
    %v1859 = vadd.f32 %v1506, %v1858
    %v1860 = vpop.f32.mrb[0].mxu0
    %v1861 = vadd.f32 %v1508, %v1860
    %1862 = vmatprep.mubr.f32.mxu0 0.0
    %v1863 = vand.u32 %v466, 4294901760
    %v1864 = vsub.f32 %v466, %v1863
    %v1865 = vand.u32 %v1864, 4294901760
    %1866 = vmatmul.mubr.f32.gmra.mrb[0].mxu0 %v1865
    %v1867 = vpop.f32.mrb[0].mxu0
    %v1868 = vadd.f32 %v1514, %v1867
    %v1869 = vpop.f32.mrb[0].mxu0
    %v1870 = vadd.f32 %v1516, %v1869
    %1871 = vmatprep.mubr.f32.mxu0 0.0
    %v1872 = vand.u32 %v469, 4294901760
    %v1873 = vsub.f32 %v469, %v1872
    %v1874 = vand.u32 %v1873, 4294901760
    %1875 = vmatmul.mubr.f32.gmra.mrb[0].mxu0 %v1874
    %v1876 = vpop.f32.mrb[0].mxu0
    %v1877 = vadd.f32 %v1522, %v1876
    %v1878 = vpop.f32.mrb[0].mxu0
    %v1879 = vadd.f32 %v1524, %v1878
    %1880 = vmatprep.mubr.f32.mxu0 0.0
    %v1881 = vand.u32 %v472, 4294901760
    %v1882 = vsub.f32 %v472, %v1881
    %v1883 = vand.u32 %v1882, 4294901760
    %1884 = vmatmul.mubr.f32.gmra.mrb[0].mxu0 %v1883
    %v1885 = vpop.f32.mrb[0].mxu0
    %v1886 = vadd.f32 %v1530, %v1885
    %v1887 = vpop.f32.mrb[0].mxu0
    %v1888 = vadd.f32 %v1532, %v1887
    %1889 = vmatprep.mubr.f32.mxu0 0.0
    %v1890 = vand.u32 %v475, 4294901760
    %v1891 = vsub.f32 %v475, %v1890
    %v1892 = vand.u32 %v1891, 4294901760
    %1893 = vmatmul.mubr.f32.gmra.mrb[0].mxu0 %v1892
    %v1894 = vpop.f32.mrb[0].mxu0
    %v1895 = vadd.f32 %v1538, %v1894
    %v1896 = vpop.f32.mrb[0].mxu0
    %v1897 = vadd.f32 %v1540, %v1896
    %1898 = vmatprep.mubr.f32.mxu0 0.0
    %v1899 = vand.u32 %v478, 4294901760
    %v1900 = vsub.f32 %v478, %v1899
    %v1901 = vand.u32 %v1900, 4294901760
    %1902 = vmatmul.mubr.f32.gmra.mrb[0].mxu0 %v1901
    %v1903 = vpop.f32.mrb[0].mxu0
    %v1904 = vadd.f32 %v1546, %v1903
    %v1905 = vpop.f32.mrb[0].mxu0
    %v1906 = vadd.f32 %v1548, %v1905
    %1907 = vmatprep.mubr.f32.mxu0 0.0
    %v1908 = vand.u32 %v481, 4294901760
    %v1909 = vsub.f32 %v481, %v1908
    %v1910 = vand.u32 %v1909, 4294901760
    %1911 = vmatmul.mubr.f32.gmra.mrb[0].mxu0 %v1910
    %v1912 = vpop.f32.mrb[0].mxu0
    %v1913 = vadd.f32 %v1554, %v1912
    %v1914 = vpop.f32.mrb[0].mxu0
    %v1915 = vadd.f32 %v1556, %v1914
    %1916 = vdwg.mxu0
    %v1917 = vand.u32 %v317, 4294901760
    %v1918 = vsub.f32 %v317, %v1917
    %v1919 = vand.u32 %v1918, 4294901760
    %1920 = vmatprep.subr.mxu0 %v1919
    %v1921 = vand.u32 %v316, 4294901760
    %v1922 = vsub.f32 %v316, %v1921
    %v1923 = vand.u32 %v1922, 4294901760
    %1924 = vmatpush1.msra.mxu0 %v1923
    %v1925 = vand.u32 %v319, 4294901760
    %v1926 = vsub.f32 %v319, %v1925
    %v1927 = vand.u32 %v1926, 4294901760
    %1928 = vmatprep.subr.mxu0 %v1927
    %v1929 = vand.u32 %v318, 4294901760
    %v1930 = vsub.f32 %v318, %v1929
    %v1931 = vand.u32 %v1930, 4294901760
    %1932 = vmatpush1.msra.mxu0 %v1931
    %v1933 = vand.u32 %v321, 4294901760
    %v1934 = vsub.f32 %v321, %v1933
    %v1935 = vand.u32 %v1934, 4294901760
    %1936 = vmatprep.subr.mxu0 %v1935
    %v1937 = vand.u32 %v320, 4294901760
    %v1938 = vsub.f32 %v320, %v1937
    %v1939 = vand.u32 %v1938, 4294901760
    %1940 = vmatpush1.msra.mxu0 %v1939
    %1941 = vmatprep.subr.mxu0 0.0
    %1942 = vmatpush1.msra.mxu0 0.0
    %1943 = vmatprep.subr.mxu0 0.0
    %1944 = vmatpush1.msra.mxu0 0.0
    %1945 = vmatprep.subr.mxu0 0.0
    %1946 = vmatpush1.msra.mxu0 0.0
    %1947 = vmatprep.subr.mxu0 0.0
    %1948 = vmatpush1.msra.mxu0 0.0
    %1949 = vmatprep.subr.mxu0 0.0
    %1950 = vmatpush1.msra.mxu0 0.0
    %1951 = vmatprep.subr.mxu0 0.0
    %1952 = vmatpush1.msra.mxu0 0.0
    %1953 = vmatprep.subr.mxu0 0.0
    %1954 = vmatpush1.msra.mxu0 0.0
    %1955 = vmatprep.subr.mxu0 0.0
    %1956 = vmatpush1.msra.mxu0 0.0
    %1957 = vmatprep.subr.mxu0 0.0
    %1958 = vmatpush1.msra.mxu0 0.0
    %1959 = vmatprep.subr.mxu0 0.0
    %1960 = vmatpush1.msra.mxu0 0.0
    %1961 = vmatprep.subr.mxu0 0.0
    %1962 = vmatpush1.msra.mxu0 0.0
    %1963 = vmatprep.subr.mxu0 0.0
    %1964 = vmatpush1.msra.mxu0 0.0
    %1965 = vmatprep.subr.mxu0 0.0
    %1966 = vmatpush1.msra.mxu0 0.0
    %1967 = vmatprep.subr.mxu0 0.0
    %1968 = vmatpush1.msra.mxu0 0.0
    %1969 = vmatprep.subr.mxu0 0.0
    %1970 = vmatpush1.msra.mxu0 0.0
    %1971 = vmatprep.subr.mxu0 0.0
    %1972 = vmatpush1.msra.mxu0 0.0
    %1973 = vmatprep.subr.mxu0 0.0
    %1974 = vmatpush1.msra.mxu0 0.0
    %1975 = vmatprep.subr.mxu0 0.0
    %1976 = vmatpush1.msra.mxu0 0.0
    %1977 = vmatprep.subr.mxu0 0.0
    %1978 = vmatpush1.msra.mxu0 0.0
    %1979 = vmatprep.subr.mxu0 0.0
    %1980 = vmatpush1.msra.mxu0 0.0
    %1981 = vmatprep.subr.mxu0 0.0
    %1982 = vmatpush1.msra.mxu0 0.0
    %1983 = vmatprep.subr.mxu0 0.0
    %1984 = vmatpush1.msra.mxu0 0.0
    %1985 = vmatprep.subr.mxu0 0.0
    %1986 = vmatpush1.msra.mxu0 0.0
    %1987 = vmatprep.subr.mxu0 0.0
    %1988 = vmatpush1.msra.mxu0 0.0
    %1989 = vmatprep.subr.mxu0 0.0
    %1990 = vmatpush1.msra.mxu0 0.0
    %1991 = vmatprep.subr.mxu0 0.0
    %1992 = vmatpush1.msra.mxu0 0.0
    %1993 = vmatprep.subr.mxu0 0.0
    %1994 = vmatpush1.msra.mxu0 0.0
    %1995 = vmatprep.subr.mxu0 0.0
    %1996 = vmatpush1.msra.mxu0 0.0
    %1997 = vmatprep.subr.mxu0 0.0
    %1998 = vmatpush1.msra.mxu0 0.0
    %1999 = vmatprep.mubr.f32.mxu0 0.0
    %v2000 = vand.u32 %v388, 4294901760
    %2001 = vmatmul.mubr.f32.gmra.mrb[0].mxu0 %v2000
    %v2002 = vpop.f32.mrb[0].mxu0
    %v2003 = vadd.f32 %v1634, %v2002
    %v2004 = vpop.f32.mrb[0].mxu0
    %v2005 = vadd.f32 %v1636, %v2004
    %2006 = vmatprep.mubr.f32.mxu0 0.0
    %v2007 = vand.u32 %v391, 4294901760
    %2008 = vmatmul.mubr.f32.gmra.mrb[0].mxu0 %v2007
    %v2009 = vpop.f32.mrb[0].mxu0
    %v2010 = vadd.f32 %v1643, %v2009
    %v2011 = vpop.f32.mrb[0].mxu0
    %v2012 = vadd.f32 %v1645, %v2011
    %2013 = vmatprep.mubr.f32.mxu0 0.0
    %v2014 = vand.u32 %v394, 4294901760
    %2015 = vmatmul.mubr.f32.gmra.mrb[0].mxu0 %v2014
    %v2016 = vpop.f32.mrb[0].mxu0
    %v2017 = vadd.f32 %v1652, %v2016
    %v2018 = vpop.f32.mrb[0].mxu0
    %v2019 = vadd.f32 %v1654, %v2018
    %2020 = vmatprep.mubr.f32.mxu0 0.0
    %v2021 = vand.u32 %v397, 4294901760
    %2022 = vmatmul.mubr.f32.gmra.mrb[0].mxu0 %v2021
    %v2023 = vpop.f32.mrb[0].mxu0
    %v2024 = vadd.f32 %v1661, %v2023
    %v2025 = vpop.f32.mrb[0].mxu0
    %v2026 = vadd.f32 %v1663, %v2025
    %2027 = vmatprep.mubr.f32.mxu0 0.0
    %v2028 = vand.u32 %v400, 4294901760
    %2029 = vmatmul.mubr.f32.gmra.mrb[0].mxu0 %v2028
    %v2030 = vpop.f32.mrb[0].mxu0
    %v2031 = vadd.f32 %v1670, %v2030
    %v2032 = vpop.f32.mrb[0].mxu0
    %v2033 = vadd.f32 %v1672, %v2032
    %2034 = vmatprep.mubr.f32.mxu0 0.0
    %v2035 = vand.u32 %v403, 4294901760
    %2036 = vmatmul.mubr.f32.gmra.mrb[0].mxu0 %v2035
    %v2037 = vpop.f32.mrb[0].mxu0
    %v2038 = vadd.f32 %v1679, %v2037
    %v2039 = vpop.f32.mrb[0].mxu0
    %v2040 = vadd.f32 %v1681, %v2039
    %2041 = vmatprep.mubr.f32.mxu0 0.0
    %v2042 = vand.u32 %v406, 4294901760
    %2043 = vmatmul.mubr.f32.gmra.mrb[0].mxu0 %v2042
    %v2044 = vpop.f32.mrb[0].mxu0
    %v2045 = vadd.f32 %v1688, %v2044
    %v2046 = vpop.f32.mrb[0].mxu0
    %v2047 = vadd.f32 %v1690, %v2046
    %2048 = vmatprep.mubr.f32.mxu0 0.0
    %v2049 = vand.u32 %v409, 4294901760
    %2050 = vmatmul.mubr.f32.gmra.mrb[0].mxu0 %v2049
    %v2051 = vpop.f32.mrb[0].mxu0
    %v2052 = vadd.f32 %v1697, %v2051
    %v2053 = vpop.f32.mrb[0].mxu0
    %v2054 = vadd.f32 %v1699, %v2053
    %2055 = vmatprep.mubr.f32.mxu0 0.0
    %v2056 = vand.u32 %v412, 4294901760
    %2057 = vmatmul.mubr.f32.gmra.mrb[0].mxu0 %v2056
    %v2058 = vpop.f32.mrb[0].mxu0
    %v2059 = vadd.f32 %v1706, %v2058
    %v2060 = vpop.f32.mrb[0].mxu0
    %v2061 = vadd.f32 %v1708, %v2060
    %2062 = vmatprep.mubr.f32.mxu0 0.0
    %v2063 = vand.u32 %v415, 4294901760
    %2064 = vmatmul.mubr.f32.gmra.mrb[0].mxu0 %v2063
    %v2065 = vpop.f32.mrb[0].mxu0
    %v2066 = vadd.f32 %v1715, %v2065
    %v2067 = vpop.f32.mrb[0].mxu0
    %v2068 = vadd.f32 %v1717, %v2067
    %2069 = vmatprep.mubr.f32.mxu0 0.0
    %v2070 = vand.u32 %v418, 4294901760
    %2071 = vmatmul.mubr.f32.gmra.mrb[0].mxu0 %v2070
    %v2072 = vpop.f32.mrb[0].mxu0
    %v2073 = vadd.f32 %v1724, %v2072
    %v2074 = vpop.f32.mrb[0].mxu0
    %v2075 = vadd.f32 %v1726, %v2074
    %2076 = vmatprep.mubr.f32.mxu0 0.0
    %v2077 = vand.u32 %v421, 4294901760
    %2078 = vmatmul.mubr.f32.gmra.mrb[0].mxu0 %v2077
    %v2079 = vpop.f32.mrb[0].mxu0
    %v2080 = vadd.f32 %v1733, %v2079
    %v2081 = vpop.f32.mrb[0].mxu0
    %v2082 = vadd.f32 %v1735, %v2081
    %2083 = vmatprep.mubr.f32.mxu0 0.0
    %v2084 = vand.u32 %v424, 4294901760
    %2085 = vmatmul.mubr.f32.gmra.mrb[0].mxu0 %v2084
    %v2086 = vpop.f32.mrb[0].mxu0
    %v2087 = vadd.f32 %v1742, %v2086
    %v2088 = vpop.f32.mrb[0].mxu0
    %v2089 = vadd.f32 %v1744, %v2088
    %2090 = vmatprep.mubr.f32.mxu0 0.0
    %v2091 = vand.u32 %v427, 4294901760
    %2092 = vmatmul.mubr.f32.gmra.mrb[0].mxu0 %v2091
    %v2093 = vpop.f32.mrb[0].mxu0
    %v2094 = vadd.f32 %v1751, %v2093
    %v2095 = vpop.f32.mrb[0].mxu0
    %v2096 = vadd.f32 %v1753, %v2095
    %2097 = vmatprep.mubr.f32.mxu0 0.0
    %v2098 = vand.u32 %v430, 4294901760
    %2099 = vmatmul.mubr.f32.gmra.mrb[0].mxu0 %v2098
    %v2100 = vpop.f32.mrb[0].mxu0
    %v2101 = vadd.f32 %v1760, %v2100
    %v2102 = vpop.f32.mrb[0].mxu0
    %v2103 = vadd.f32 %v1762, %v2102
    %2104 = vmatprep.mubr.f32.mxu0 0.0
    %v2105 = vand.u32 %v433, 4294901760
    %2106 = vmatmul.mubr.f32.gmra.mrb[0].mxu0 %v2105
    %v2107 = vpop.f32.mrb[0].mxu0
    %v2108 = vadd.f32 %v1769, %v2107
    %v2109 = vpop.f32.mrb[0].mxu0
    %v2110 = vadd.f32 %v1771, %v2109
    %2111 = vmatprep.mubr.f32.mxu0 0.0
    %v2112 = vand.u32 %v436, 4294901760
    %2113 = vmatmul.mubr.f32.gmra.mrb[0].mxu0 %v2112
    %v2114 = vpop.f32.mrb[0].mxu0
    %v2115 = vadd.f32 %v1778, %v2114
    %v2116 = vpop.f32.mrb[0].mxu0
    %v2117 = vadd.f32 %v1780, %v2116
    %2118 = vmatprep.mubr.f32.mxu0 0.0
    %v2119 = vand.u32 %v439, 4294901760
    %2120 = vmatmul.mubr.f32.gmra.mrb[0].mxu0 %v2119
    %v2121 = vpop.f32.mrb[0].mxu0
    %v2122 = vadd.f32 %v1787, %v2121
    %v2123 = vpop.f32.mrb[0].mxu0
    %v2124 = vadd.f32 %v1789, %v2123
    %2125 = vmatprep.mubr.f32.mxu0 0.0
    %v2126 = vand.u32 %v442, 4294901760
    %2127 = vmatmul.mubr.f32.gmra.mrb[0].mxu0 %v2126
    %v2128 = vpop.f32.mrb[0].mxu0
    %v2129 = vadd.f32 %v1796, %v2128
    %v2130 = vpop.f32.mrb[0].mxu0
    %v2131 = vadd.f32 %v1798, %v2130
    %2132 = vmatprep.mubr.f32.mxu0 0.0
    %v2133 = vand.u32 %v445, 4294901760
    %2134 = vmatmul.mubr.f32.gmra.mrb[0].mxu0 %v2133
    %v2135 = vpop.f32.mrb[0].mxu0
    %v2136 = vadd.f32 %v1805, %v2135
    %v2137 = vpop.f32.mrb[0].mxu0
    %v2138 = vadd.f32 %v1807, %v2137
    %2139 = vmatprep.mubr.f32.mxu0 0.0
    %v2140 = vand.u32 %v448, 4294901760
    %2141 = vmatmul.mubr.f32.gmra.mrb[0].mxu0 %v2140
    %v2142 = vpop.f32.mrb[0].mxu0
    %v2143 = vadd.f32 %v1814, %v2142
    %v2144 = vpop.f32.mrb[0].mxu0
    %v2145 = vadd.f32 %v1816, %v2144
    %2146 = vmatprep.mubr.f32.mxu0 0.0
    %v2147 = vand.u32 %v451, 4294901760
    %2148 = vmatmul.mubr.f32.gmra.mrb[0].mxu0 %v2147
    %v2149 = vpop.f32.mrb[0].mxu0
    %v2150 = vadd.f32 %v1823, %v2149
    %v2151 = vpop.f32.mrb[0].mxu0
    %v2152 = vadd.f32 %v1825, %v2151
    %2153 = vmatprep.mubr.f32.mxu0 0.0
    %v2154 = vand.u32 %v454, 4294901760
    %2155 = vmatmul.mubr.f32.gmra.mrb[0].mxu0 %v2154
    %v2156 = vpop.f32.mrb[0].mxu0
    %v2157 = vadd.f32 %v1832, %v2156
    %v2158 = vpop.f32.mrb[0].mxu0
    %v2159 = vadd.f32 %v1834, %v2158
    %2160 = vmatprep.mubr.f32.mxu0 0.0
    %v2161 = vand.u32 %v457, 4294901760
    %2162 = vmatmul.mubr.f32.gmra.mrb[0].mxu0 %v2161
    %v2163 = vpop.f32.mrb[0].mxu0
    %v2164 = vadd.f32 %v1841, %v2163
    %v2165 = vpop.f32.mrb[0].mxu0
    %v2166 = vadd.f32 %v1843, %v2165
    %2167 = vmatprep.mubr.f32.mxu0 0.0
    %v2168 = vand.u32 %v460, 4294901760
    %2169 = vmatmul.mubr.f32.gmra.mrb[0].mxu0 %v2168
    %v2170 = vpop.f32.mrb[0].mxu0
    %v2171 = vadd.f32 %v1850, %v2170
    %v2172 = vpop.f32.mrb[0].mxu0
    %v2173 = vadd.f32 %v1852, %v2172
    %2174 = vmatprep.mubr.f32.mxu0 0.0
    %v2175 = vand.u32 %v463, 4294901760
    %2176 = vmatmul.mubr.f32.gmra.mrb[0].mxu0 %v2175
    %v2177 = vpop.f32.mrb[0].mxu0
    %v2178 = vadd.f32 %v1859, %v2177
    %v2179 = vpop.f32.mrb[0].mxu0
    %v2180 = vadd.f32 %v1861, %v2179
    %2181 = vmatprep.mubr.f32.mxu0 0.0
    %v2182 = vand.u32 %v466, 4294901760
    %2183 = vmatmul.mubr.f32.gmra.mrb[0].mxu0 %v2182
    %v2184 = vpop.f32.mrb[0].mxu0
    %v2185 = vadd.f32 %v1868, %v2184
    %v2186 = vpop.f32.mrb[0].mxu0
    %v2187 = vadd.f32 %v1870, %v2186
    %2188 = vmatprep.mubr.f32.mxu0 0.0
    %v2189 = vand.u32 %v469, 4294901760
    %2190 = vmatmul.mubr.f32.gmra.mrb[0].mxu0 %v2189
    %v2191 = vpop.f32.mrb[0].mxu0
    %v2192 = vadd.f32 %v1877, %v2191
    %v2193 = vpop.f32.mrb[0].mxu0
    %v2194 = vadd.f32 %v1879, %v2193
    %2195 = vmatprep.mubr.f32.mxu0 0.0
    %v2196 = vand.u32 %v472, 4294901760
    %2197 = vmatmul.mubr.f32.gmra.mrb[0].mxu0 %v2196
    %v2198 = vpop.f32.mrb[0].mxu0
    %v2199 = vadd.f32 %v1886, %v2198
    %v2200 = vpop.f32.mrb[0].mxu0
    %v2201 = vadd.f32 %v1888, %v2200
    %2202 = vmatprep.mubr.f32.mxu0 0.0
    %v2203 = vand.u32 %v475, 4294901760
    %2204 = vmatmul.mubr.f32.gmra.mrb[0].mxu0 %v2203
    %v2205 = vpop.f32.mrb[0].mxu0
    %v2206 = vadd.f32 %v1895, %v2205
    %v2207 = vpop.f32.mrb[0].mxu0
    %v2208 = vadd.f32 %v1897, %v2207
    %2209 = vmatprep.mubr.f32.mxu0 0.0
    %v2210 = vand.u32 %v478, 4294901760
    %2211 = vmatmul.mubr.f32.gmra.mrb[0].mxu0 %v2210
    %v2212 = vpop.f32.mrb[0].mxu0
    %v2213 = vadd.f32 %v1904, %v2212
    %v2214 = vpop.f32.mrb[0].mxu0
    %v2215 = vadd.f32 %v1906, %v2214
    %2216 = vmatprep.mubr.f32.mxu0 0.0
    %v2217 = vand.u32 %v481, 4294901760
    %2218 = vmatmul.mubr.f32.gmra.mrb[0].mxu0 %v2217
    %v2219 = vpop.f32.mrb[0].mxu0
    %v2220 = vadd.f32 %v1913, %v2219
    %v2221 = vpop.f32.mrb[0].mxu0
    %v2222 = vadd.f32 %v1915, %v2221
    %2223 = vdwg.mxu0
    %v2224 = vand.u32 %v317, 4294901760
    %2225 = vmatprep.subr.mxu0 %v2224
    %v2226 = vand.u32 %v316, 4294901760
    %2227 = vmatpush1.msra.mxu0 %v2226
    %v2228 = vand.u32 %v319, 4294901760
    %2229 = vmatprep.subr.mxu0 %v2228
    %v2230 = vand.u32 %v318, 4294901760
    %2231 = vmatpush1.msra.mxu0 %v2230
    %v2232 = vand.u32 %v321, 4294901760
    %2233 = vmatprep.subr.mxu0 %v2232
    %v2234 = vand.u32 %v320, 4294901760
    %2235 = vmatpush1.msra.mxu0 %v2234
    %2236 = vmatprep.subr.mxu0 0.0
    %2237 = vmatpush1.msra.mxu0 0.0
    %2238 = vmatprep.subr.mxu0 0.0
    %2239 = vmatpush1.msra.mxu0 0.0
    %2240 = vmatprep.subr.mxu0 0.0
    %2241 = vmatpush1.msra.mxu0 0.0
    %2242 = vmatprep.subr.mxu0 0.0
    %2243 = vmatpush1.msra.mxu0 0.0
    %2244 = vmatprep.subr.mxu0 0.0
    %2245 = vmatpush1.msra.mxu0 0.0
    %2246 = vmatprep.subr.mxu0 0.0
    %2247 = vmatpush1.msra.mxu0 0.0
    %2248 = vmatprep.subr.mxu0 0.0
    %2249 = vmatpush1.msra.mxu0 0.0
    %2250 = vmatprep.subr.mxu0 0.0
    %2251 = vmatpush1.msra.mxu0 0.0
    %2252 = vmatprep.subr.mxu0 0.0
    %2253 = vmatpush1.msra.mxu0 0.0
    %2254 = vmatprep.subr.mxu0 0.0
    %2255 = vmatpush1.msra.mxu0 0.0
    %2256 = vmatprep.subr.mxu0 0.0
    %2257 = vmatpush1.msra.mxu0 0.0
    %2258 = vmatprep.subr.mxu0 0.0
    %2259 = vmatpush1.msra.mxu0 0.0
    %2260 = vmatprep.subr.mxu0 0.0
    %2261 = vmatpush1.msra.mxu0 0.0
    %2262 = vmatprep.subr.mxu0 0.0
    %2263 = vmatpush1.msra.mxu0 0.0
    %2264 = vmatprep.subr.mxu0 0.0
    %2265 = vmatpush1.msra.mxu0 0.0
    %2266 = vmatprep.subr.mxu0 0.0
    %2267 = vmatpush1.msra.mxu0 0.0
    %2268 = vmatprep.subr.mxu0 0.0
    %2269 = vmatpush1.msra.mxu0 0.0
    %2270 = vmatprep.subr.mxu0 0.0
    %2271 = vmatpush1.msra.mxu0 0.0
    %2272 = vmatprep.subr.mxu0 0.0
    %2273 = vmatpush1.msra.mxu0 0.0
    %2274 = vmatprep.subr.mxu0 0.0
    %2275 = vmatpush1.msra.mxu0 0.0
    %2276 = vmatprep.subr.mxu0 0.0
    %2277 = vmatpush1.msra.mxu0 0.0
    %2278 = vmatprep.subr.mxu0 0.0
    %2279 = vmatpush1.msra.mxu0 0.0
    %2280 = vmatprep.subr.mxu0 0.0
    %2281 = vmatpush1.msra.mxu0 0.0
    %2282 = vmatprep.subr.mxu0 0.0
    %2283 = vmatpush1.msra.mxu0 0.0
    %2284 = vmatprep.subr.mxu0 0.0
    %2285 = vmatpush1.msra.mxu0 0.0
    %2286 = vmatprep.subr.mxu0 0.0
    %2287 = vmatpush1.msra.mxu0 0.0
    %2288 = vmatprep.subr.mxu0 0.0
    %2289 = vmatpush1.msra.mxu0 0.0
    %2290 = vmatprep.subr.mxu0 0.0
    %2291 = vmatpush1.msra.mxu0 0.0
    %2292 = vmatprep.subr.mxu0 0.0
    %2293 = vmatpush1.msra.mxu0 0.0
    %2294 = vmatprep.mubr.f32.mxu0 0.0
    %v2295 = vand.u32 %v388, 4294901760
    %2296 = vmatmul.mubr.f32.gmra.mrb[0].mxu0 %v2295
    %v2297 = vpop.f32.mrb[0].mxu0
    %v2298 = vadd.f32 %v2003, %v2297
    %v2299 = vpop.f32.mrb[0].mxu0
    %v2300 = vadd.f32 %v2005, %v2299
    %2301 = vmatprep.mubr.f32.mxu0 0.0
    %v2302 = vand.u32 %v391, 4294901760
    %2303 = vmatmul.mubr.f32.gmra.mrb[0].mxu0 %v2302
    %v2304 = vpop.f32.mrb[0].mxu0
    %v2305 = vadd.f32 %v2010, %v2304
    %v2306 = vpop.f32.mrb[0].mxu0
    %v2307 = vadd.f32 %v2012, %v2306
    %2308 = vmatprep.mubr.f32.mxu0 0.0
    %v2309 = vand.u32 %v394, 4294901760
    %2310 = vmatmul.mubr.f32.gmra.mrb[0].mxu0 %v2309
    %v2311 = vpop.f32.mrb[0].mxu0
    %v2312 = vadd.f32 %v2017, %v2311
    %v2313 = vpop.f32.mrb[0].mxu0
    %v2314 = vadd.f32 %v2019, %v2313
    %2315 = vmatprep.mubr.f32.mxu0 0.0
    %v2316 = vand.u32 %v397, 4294901760
    %2317 = vmatmul.mubr.f32.gmra.mrb[0].mxu0 %v2316
    %v2318 = vpop.f32.mrb[0].mxu0
    %v2319 = vadd.f32 %v2024, %v2318
    %v2320 = vpop.f32.mrb[0].mxu0
    %v2321 = vadd.f32 %v2026, %v2320
    %2322 = vmatprep.mubr.f32.mxu0 0.0
    %v2323 = vand.u32 %v400, 4294901760
    %2324 = vmatmul.mubr.f32.gmra.mrb[0].mxu0 %v2323
    %v2325 = vpop.f32.mrb[0].mxu0
    %v2326 = vadd.f32 %v2031, %v2325
    %v2327 = vpop.f32.mrb[0].mxu0
    %v2328 = vadd.f32 %v2033, %v2327
    %2329 = vmatprep.mubr.f32.mxu0 0.0
    %v2330 = vand.u32 %v403, 4294901760
    %2331 = vmatmul.mubr.f32.gmra.mrb[0].mxu0 %v2330
    %v2332 = vpop.f32.mrb[0].mxu0
    %v2333 = vadd.f32 %v2038, %v2332
    %v2334 = vpop.f32.mrb[0].mxu0
    %v2335 = vadd.f32 %v2040, %v2334
    %2336 = vmatprep.mubr.f32.mxu0 0.0
    %v2337 = vand.u32 %v406, 4294901760
    %2338 = vmatmul.mubr.f32.gmra.mrb[0].mxu0 %v2337
    %v2339 = vpop.f32.mrb[0].mxu0
    %v2340 = vadd.f32 %v2045, %v2339
    %v2341 = vpop.f32.mrb[0].mxu0
    %v2342 = vadd.f32 %v2047, %v2341
    %2343 = vmatprep.mubr.f32.mxu0 0.0
    %v2344 = vand.u32 %v409, 4294901760
    %2345 = vmatmul.mubr.f32.gmra.mrb[0].mxu0 %v2344
    %v2346 = vpop.f32.mrb[0].mxu0
    %v2347 = vadd.f32 %v2052, %v2346
    %v2348 = vpop.f32.mrb[0].mxu0
    %v2349 = vadd.f32 %v2054, %v2348
    %2350 = vmatprep.mubr.f32.mxu0 0.0
    %v2351 = vand.u32 %v412, 4294901760
    %2352 = vmatmul.mubr.f32.gmra.mrb[0].mxu0 %v2351
    %v2353 = vpop.f32.mrb[0].mxu0
    %v2354 = vadd.f32 %v2059, %v2353
    %v2355 = vpop.f32.mrb[0].mxu0
    %v2356 = vadd.f32 %v2061, %v2355
    %2357 = vmatprep.mubr.f32.mxu0 0.0
    %v2358 = vand.u32 %v415, 4294901760
    %2359 = vmatmul.mubr.f32.gmra.mrb[0].mxu0 %v2358
    %v2360 = vpop.f32.mrb[0].mxu0
    %v2361 = vadd.f32 %v2066, %v2360
    %v2362 = vpop.f32.mrb[0].mxu0
    %v2363 = vadd.f32 %v2068, %v2362
    %2364 = vmatprep.mubr.f32.mxu0 0.0
    %v2365 = vand.u32 %v418, 4294901760
    %2366 = vmatmul.mubr.f32.gmra.mrb[0].mxu0 %v2365
    %v2367 = vpop.f32.mrb[0].mxu0
    %v2368 = vadd.f32 %v2073, %v2367
    %v2369 = vpop.f32.mrb[0].mxu0
    %v2370 = vadd.f32 %v2075, %v2369
    %2371 = vmatprep.mubr.f32.mxu0 0.0
    %v2372 = vand.u32 %v421, 4294901760
    %2373 = vmatmul.mubr.f32.gmra.mrb[0].mxu0 %v2372
    %v2374 = vpop.f32.mrb[0].mxu0
    %v2375 = vadd.f32 %v2080, %v2374
    %v2376 = vpop.f32.mrb[0].mxu0
    %v2377 = vadd.f32 %v2082, %v2376
    %2378 = vmatprep.mubr.f32.mxu0 0.0
    %v2379 = vand.u32 %v424, 4294901760
    %2380 = vmatmul.mubr.f32.gmra.mrb[0].mxu0 %v2379
    %v2381 = vpop.f32.mrb[0].mxu0
    %v2382 = vadd.f32 %v2087, %v2381
    %v2383 = vpop.f32.mrb[0].mxu0
    %v2384 = vadd.f32 %v2089, %v2383
    %2385 = vmatprep.mubr.f32.mxu0 0.0
    %v2386 = vand.u32 %v427, 4294901760
    %2387 = vmatmul.mubr.f32.gmra.mrb[0].mxu0 %v2386
    %v2388 = vpop.f32.mrb[0].mxu0
    %v2389 = vadd.f32 %v2094, %v2388
    %v2390 = vpop.f32.mrb[0].mxu0
    %v2391 = vadd.f32 %v2096, %v2390
    %2392 = vmatprep.mubr.f32.mxu0 0.0
    %v2393 = vand.u32 %v430, 4294901760
    %2394 = vmatmul.mubr.f32.gmra.mrb[0].mxu0 %v2393
    %v2395 = vpop.f32.mrb[0].mxu0
    %v2396 = vadd.f32 %v2101, %v2395
    %v2397 = vpop.f32.mrb[0].mxu0
    %v2398 = vadd.f32 %v2103, %v2397
    %2399 = vmatprep.mubr.f32.mxu0 0.0
    %v2400 = vand.u32 %v433, 4294901760
    %2401 = vmatmul.mubr.f32.gmra.mrb[0].mxu0 %v2400
    %v2402 = vpop.f32.mrb[0].mxu0
    %v2403 = vadd.f32 %v2108, %v2402
    %v2404 = vpop.f32.mrb[0].mxu0
    %v2405 = vadd.f32 %v2110, %v2404
    %2406 = vmatprep.mubr.f32.mxu0 0.0
    %v2407 = vand.u32 %v436, 4294901760
    %2408 = vmatmul.mubr.f32.gmra.mrb[0].mxu0 %v2407
    %v2409 = vpop.f32.mrb[0].mxu0
    %v2410 = vadd.f32 %v2115, %v2409
    %v2411 = vpop.f32.mrb[0].mxu0
    %v2412 = vadd.f32 %v2117, %v2411
    %2413 = vmatprep.mubr.f32.mxu0 0.0
    %v2414 = vand.u32 %v439, 4294901760
    %2415 = vmatmul.mubr.f32.gmra.mrb[0].mxu0 %v2414
    %v2416 = vpop.f32.mrb[0].mxu0
    %v2417 = vadd.f32 %v2122, %v2416
    %v2418 = vpop.f32.mrb[0].mxu0
    %v2419 = vadd.f32 %v2124, %v2418
    %2420 = vmatprep.mubr.f32.mxu0 0.0
    %v2421 = vand.u32 %v442, 4294901760
    %2422 = vmatmul.mubr.f32.gmra.mrb[0].mxu0 %v2421
    %v2423 = vpop.f32.mrb[0].mxu0
    %v2424 = vadd.f32 %v2129, %v2423
    %v2425 = vpop.f32.mrb[0].mxu0
    %v2426 = vadd.f32 %v2131, %v2425
    %2427 = vmatprep.mubr.f32.mxu0 0.0
    %v2428 = vand.u32 %v445, 4294901760
    %2429 = vmatmul.mubr.f32.gmra.mrb[0].mxu0 %v2428
    %v2430 = vpop.f32.mrb[0].mxu0
    %v2431 = vadd.f32 %v2136, %v2430
    %v2432 = vpop.f32.mrb[0].mxu0
    %v2433 = vadd.f32 %v2138, %v2432
    %2434 = vmatprep.mubr.f32.mxu0 0.0
    %v2435 = vand.u32 %v448, 4294901760
    %2436 = vmatmul.mubr.f32.gmra.mrb[0].mxu0 %v2435
    %v2437 = vpop.f32.mrb[0].mxu0
    %v2438 = vadd.f32 %v2143, %v2437
    %v2439 = vpop.f32.mrb[0].mxu0
    %v2440 = vadd.f32 %v2145, %v2439
    %2441 = vmatprep.mubr.f32.mxu0 0.0
    %v2442 = vand.u32 %v451, 4294901760
    %2443 = vmatmul.mubr.f32.gmra.mrb[0].mxu0 %v2442
    %v2444 = vpop.f32.mrb[0].mxu0
    %v2445 = vadd.f32 %v2150, %v2444
    %v2446 = vpop.f32.mrb[0].mxu0
    %v2447 = vadd.f32 %v2152, %v2446
    %2448 = vmatprep.mubr.f32.mxu0 0.0
    %v2449 = vand.u32 %v454, 4294901760
    %2450 = vmatmul.mubr.f32.gmra.mrb[0].mxu0 %v2449
    %v2451 = vpop.f32.mrb[0].mxu0
    %v2452 = vadd.f32 %v2157, %v2451
    %v2453 = vpop.f32.mrb[0].mxu0
    %v2454 = vadd.f32 %v2159, %v2453
    %2455 = vmatprep.mubr.f32.mxu0 0.0
    %v2456 = vand.u32 %v457, 4294901760
    %2457 = vmatmul.mubr.f32.gmra.mrb[0].mxu0 %v2456
    %v2458 = vpop.f32.mrb[0].mxu0
    %v2459 = vadd.f32 %v2164, %v2458
    %v2460 = vpop.f32.mrb[0].mxu0
    %v2461 = vadd.f32 %v2166, %v2460
    %2462 = vmatprep.mubr.f32.mxu0 0.0
    %v2463 = vand.u32 %v460, 4294901760
    %2464 = vmatmul.mubr.f32.gmra.mrb[0].mxu0 %v2463
    %v2465 = vpop.f32.mrb[0].mxu0
    %v2466 = vadd.f32 %v2171, %v2465
    %v2467 = vpop.f32.mrb[0].mxu0
    %v2468 = vadd.f32 %v2173, %v2467
    %2469 = vmatprep.mubr.f32.mxu0 0.0
    %v2470 = vand.u32 %v463, 4294901760
    %2471 = vmatmul.mubr.f32.gmra.mrb[0].mxu0 %v2470
    %v2472 = vpop.f32.mrb[0].mxu0
    %v2473 = vadd.f32 %v2178, %v2472
    %v2474 = vpop.f32.mrb[0].mxu0
    %v2475 = vadd.f32 %v2180, %v2474
    %2476 = vmatprep.mubr.f32.mxu0 0.0
    %v2477 = vand.u32 %v466, 4294901760
    %2478 = vmatmul.mubr.f32.gmra.mrb[0].mxu0 %v2477
    %v2479 = vpop.f32.mrb[0].mxu0
    %v2480 = vadd.f32 %v2185, %v2479
    %v2481 = vpop.f32.mrb[0].mxu0
    %v2482 = vadd.f32 %v2187, %v2481
    %2483 = vmatprep.mubr.f32.mxu0 0.0
    %v2484 = vand.u32 %v469, 4294901760
    %2485 = vmatmul.mubr.f32.gmra.mrb[0].mxu0 %v2484
    %v2486 = vpop.f32.mrb[0].mxu0
    %v2487 = vadd.f32 %v2192, %v2486
    %v2488 = vpop.f32.mrb[0].mxu0
    %v2489 = vadd.f32 %v2194, %v2488
    %2490 = vmatprep.mubr.f32.mxu0 0.0
    %v2491 = vand.u32 %v472, 4294901760
    %2492 = vmatmul.mubr.f32.gmra.mrb[0].mxu0 %v2491
    %v2493 = vpop.f32.mrb[0].mxu0
    %v2494 = vadd.f32 %v2199, %v2493
    %v2495 = vpop.f32.mrb[0].mxu0
    %v2496 = vadd.f32 %v2201, %v2495
    %2497 = vmatprep.mubr.f32.mxu0 0.0
    %v2498 = vand.u32 %v475, 4294901760
    %2499 = vmatmul.mubr.f32.gmra.mrb[0].mxu0 %v2498
    %v2500 = vpop.f32.mrb[0].mxu0
    %v2501 = vadd.f32 %v2206, %v2500
    %v2502 = vpop.f32.mrb[0].mxu0
    %v2503 = vadd.f32 %v2208, %v2502
    %2504 = vmatprep.mubr.f32.mxu0 0.0
    %v2505 = vand.u32 %v478, 4294901760
    %2506 = vmatmul.mubr.f32.gmra.mrb[0].mxu0 %v2505
    %v2507 = vpop.f32.mrb[0].mxu0
    %v2508 = vadd.f32 %v2213, %v2507
    %v2509 = vpop.f32.mrb[0].mxu0
    %v2510 = vadd.f32 %v2215, %v2509
    %2511 = vmatprep.mubr.f32.mxu0 0.0
    %v2512 = vand.u32 %v481, 4294901760
    %2513 = vmatmul.mubr.f32.gmra.mrb[0].mxu0 %v2512
    %v2514 = vpop.f32.mrb[0].mxu0
    %v2515 = vadd.f32 %v2220, %v2514
    %v2516 = vpop.f32.mrb[0].mxu0
    %v2517 = vadd.f32 %v2222, %v2516
    %2518 = vdwg.mxu0
    %v2519 = vmul.f32 %v2300, 1.442695
    %v2520 = vpow.pop %v2519
    %v2521 = vmul.f32 %v2307, 1.442695
    %v2522 = vpow.pop %v2521
    %v2523 = vmul.f32 %v2314, 1.442695
    %v2524 = vpow.pop %v2523
    %v2525 = vmul.f32 %v2321, 1.442695
    %v2526 = vpow.pop %v2525
    %v2527 = vmul.f32 %v2328, 1.442695
    %v2528 = vpow.pop %v2527
    %v2529 = vmul.f32 %v2335, 1.442695
    %v2530 = vpow.pop %v2529
    %v2531 = vmul.f32 %v2342, 1.442695
    %v2532 = vpow.pop %v2531
    %v2533 = vmul.f32 %v2349, 1.442695
    %v2534 = vpow.pop %v2533
    %v2535 = vmul.f32 %v2356, 1.442695
    %v2536 = vpow.pop %v2535
    %v2537 = vmul.f32 %v2363, 1.442695
    %v2538 = vpow.pop %v2537
    %v2539 = vmul.f32 %v2370, 1.442695
    %v2540 = vpow.pop %v2539
    %v2541 = vmul.f32 %v2377, 1.442695
    %v2542 = vpow.pop %v2541
    %v2543 = vmul.f32 %v2384, 1.442695
    %v2544 = vpow.pop %v2543
    %v2545 = vmul.f32 %v2391, 1.442695
    %v2546 = vpow.pop %v2545
    %v2547 = vmul.f32 %v2398, 1.442695
    %v2548 = vpow.pop %v2547
    %v2549 = vmul.f32 %v2405, 1.442695
    %v2550 = vpow.pop %v2549
    %v2551 = vmul.f32 %v2412, 1.442695
    %v2552 = vpow.pop %v2551
    %v2553 = vmul.f32 %v2419, 1.442695
    %v2554 = vpow.pop %v2553
    %v2555 = vmul.f32 %v2426, 1.442695
    %v2556 = vpow.pop %v2555
    %v2557 = vmul.f32 %v2433, 1.442695
    %v2558 = vpow.pop %v2557
    %v2559 = vmul.f32 %v2440, 1.442695
    %v2560 = vpow.pop %v2559
    %v2561 = vmul.f32 %v2447, 1.442695
    %v2562 = vpow.pop %v2561
    %v2563 = vmul.f32 %v2454, 1.442695
    %v2564 = vpow.pop %v2563
    %v2565 = vmul.f32 %v2461, 1.442695
    %v2566 = vpow.pop %v2565
    %v2567 = vmul.f32 %v2468, 1.442695
    %v2568 = vpow.pop %v2567
    %v2569 = vmul.f32 %v2475, 1.442695
    %v2570 = vpow.pop %v2569
    %v2571 = vmul.f32 %v2482, 1.442695
    %v2572 = vpow.pop %v2571
    %v2573 = vmul.f32 %v2489, 1.442695
    %v2574 = vpow.pop %v2573
    %v2575 = vmul.f32 %v2496, 1.442695
    %v2576 = vpow.pop %v2575
    %v2577 = vmul.f32 %v2503, 1.442695
    %v2578 = vpow.pop %v2577
    %v2579 = vmul.f32 %v2510, 1.442695
    %v2580 = vpow.pop %v2579
    %v2581 = vmul.f32 %v2517, 1.442695
    %v2582 = vpow.pop %v2581
    %v2583 = vmul.f32 %v2520, %v2298
    %v2584 = vmul.f32 %v2522, %v2305
    %v2585 = vmul.f32 %v2524, %v2312
    %v2586 = vmul.f32 %v2526, %v2319
    %v2587 = vmul.f32 %v2528, %v2326
    %v2588 = vmul.f32 %v2530, %v2333
    %v2589 = vmul.f32 %v2532, %v2340
    %v2590 = vmul.f32 %v2534, %v2347
    %v2591 = vmul.f32 %v2536, %v2354
    %v2592 = vmul.f32 %v2538, %v2361
    %v2593 = vmul.f32 %v2540, %v2368
    %v2594 = vmul.f32 %v2542, %v2375
    %v2595 = vmul.f32 %v2544, %v2382
    %v2596 = vmul.f32 %v2546, %v2389
    %v2597 = vmul.f32 %v2548, %v2396
    %v2598 = vmul.f32 %v2550, %v2403
    %v2599 = vmul.f32 %v2552, %v2410
    %v2600 = vmul.f32 %v2554, %v2417
    %v2601 = vmul.f32 %v2556, %v2424
    %v2602 = vmul.f32 %v2558, %v2431
    %v2603 = vmul.f32 %v2560, %v2438
    %v2604 = vmul.f32 %v2562, %v2445
    %v2605 = vmul.f32 %v2564, %v2452
    %v2606 = vmul.f32 %v2566, %v2459
    %v2607 = vmul.f32 %v2568, %v2466
    %v2608 = vmul.f32 %v2570, %v2473
    %v2609 = vmul.f32 %v2572, %v2480
    %v2610 = vmul.f32 %v2574, %v2487
    %v2611 = vmul.f32 %v2576, %v2494
    %v2612 = vmul.f32 %v2578, %v2501
    %v2613 = vmul.f32 %v2580, %v2508
    %v2614 = vmul.f32 %v2582, %v2515
    %2615 = vst [vmem:[#allocation7] sm:$0xff] %v2583
    %2616 = vst [vmem:[#allocation7 + $0x8] sm:$0xff] %v2584
    %2617 = vst [vmem:[#allocation7 + $0x10] sm:$0xff] %v2585
    %2618 = vst [vmem:[#allocation7 + $0x18] sm:$0xff] %v2586
    %2619 = vst [vmem:[#allocation7 + $0x20] sm:$0xff] %v2587
    %2620 = vst [vmem:[#allocation7 + $0x28] sm:$0xff] %v2588
    %2621 = vst [vmem:[#allocation7 + $0x30] sm:$0xff] %v2589
    %2622 = vst [vmem:[#allocation7 + $0x38] sm:$0xff] %v2590
    %2623 = vst [vmem:[#allocation7 + $0x40] sm:$0xff] %v2591
    %2624 = vst [vmem:[#allocation7 + $0x48] sm:$0xff] %v2592
    %2625 = vst [vmem:[#allocation7 + $0x50] sm:$0xff] %v2593
    %2626 = vst [vmem:[#allocation7 + $0x58] sm:$0xff] %v2594
    %2627 = vst [vmem:[#allocation7 + $0x60] sm:$0xff] %v2595
    %2628 = vst [vmem:[#allocation7 + $0x68] sm:$0xff] %v2596
    %2629 = vst [vmem:[#allocation7 + $0x70] sm:$0xff] %v2597
    %2630 = vst [vmem:[#allocation7 + $0x78] sm:$0xff] %v2598
    %2631 = vst [vmem:[#allocation7 + $0x80] sm:$0xff] %v2599
    %2632 = vst [vmem:[#allocation7 + $0x88] sm:$0xff] %v2600
    %2633 = vst [vmem:[#allocation7 + $0x90] sm:$0xff] %v2601
    %2634 = vst [vmem:[#allocation7 + $0x98] sm:$0xff] %v2602
    %2635 = vst [vmem:[#allocation7 + $0xa0] sm:$0xff] %v2603
    %2636 = vst [vmem:[#allocation7 + $0xa8] sm:$0xff] %v2604
    %2637 = vst [vmem:[#allocation7 + $0xb0] sm:$0xff] %v2605
    %2638 = vst [vmem:[#allocation7 + $0xb8] sm:$0xff] %v2606
    %2639 = vst [vmem:[#allocation7 + $0xc0] sm:$0xff] %v2607
    %2640 = vst [vmem:[#allocation7 + $0xc8] sm:$0xff] %v2608
    %2641 = vst [vmem:[#allocation7 + $0xd0] sm:$0xff] %v2609
    %2642 = vst [vmem:[#allocation7 + $0xd8] sm:$0xff] %v2610
    %2643 = vst [vmem:[#allocation7 + $0xe0] sm:$0xff] %v2611
    %2644 = vst [vmem:[#allocation7 + $0xe8] sm:$0xff] %v2612
    %2645 = vst [vmem:[#allocation7 + $0xf0] sm:$0xff] %v2613
    %2646 = vst [vmem:[#allocation7 + $0xf8] sm:$0xff] %v2614
    %s2647 = scalar_lea.vmem [#allocation2], 8
    %v2648 = vld [vmem:[%s2647] ss:$4 sm:$0x3]
    %s2649 = scalar_lea.vmem [#allocation2], 9
    %v2650 = vld [vmem:[%s2649] ss:$4 sm:$0x3]
    %s2651 = scalar_lea.vmem [#allocation2], 10
    %v2652 = vld [vmem:[%s2651] ss:$4 sm:$0x3]
    %v2653 = vmul.f32 %v2648, %v2648
    %v2654 = vmul.f32 %v2650, %v2650
    %v2655 = vadd.f32 %v2653, %v2654
    %v2656 = vmul.f32 %v2652, %v2652
    %v2657 = vadd.f32 %v2655, %v2656
    %v2658 = vrsqrt.pop %v2657
    %v2659 = vmul.f32 %v2657, %v2658
    %vm2660 = vcmp.eq.f32.partialorder %v2657, inf
    %v2661 = vsel %vm2660, %v2657, %v2659
    %vm2662 = vcmp.eq.f32.partialorder %v2657, 0.0
    %v2663 = vand.u32 %v2657, 2147483648
    %v2664 = vsel %vm2662, %v2663, %v2661
    %v2665 = vadd.f32 %v2664, 1e-08
    %v2666 = vrcp.pop %v2665
    %v2667 = vmul.f32 1.0, %v2666
    %v2668 = vmul.f32 %v2648, %v2667
    %v2669 = vmul.f32 %v2650, %v2667
    %v2670 = vmul.f32 %v2652, %v2667
    %v2671 = vmul.f32 %v2668, %v2668
    %v2672 = vmul.f32 %v2669, %v2669
    %v2673 = vmul.f32 %v2670, %v2670
    %v2674 = vadd.f32 %v2671, %v2673
    %v2675 = vmul.f32 %v2668, %v2670
    %v2676 = vmul.f32 %v2668, %v2669
    %v2677 = vmul.f32 %v2674, 0.5
    %v2678 = vsub.f32 %v2672, %v2677
    %v2679 = vmul.f32 %v2669, %v2670
    %v2680 = vsub.f32 %v2673, %v2671
    %v2681 = vmul.f32 %v2673, 3.0
    %v2682 = vsub.f32 %v2681, %v2671
    %v2683 = vmul.f32 %v2668, %v2682
    %v2684 = vmul.f32 %v2676, %v2670
    %v2685 = vmul.f32 %v2672, 4.0
    %v2686 = vsub.f32 %v2685, %v2674
    %v2687 = vmul.f32 %v2668, %v2686
    %v2688 = vmul.f32 %v2672, 2.0
    %v2689 = vmul.f32 %v2674, 3.0
    %v2690 = vsub.f32 %v2688, %v2689
    %v2691 = vmul.f32 %v2669, %v2690
    %v2692 = vmul.f32 %v2670, %v2686
    %v2693 = vmul.f32 %v2669, %v2680
    %v2694 = vmul.f32 %v2671, 3.0
    %v2695 = vsub.f32 %v2673, %v2694
    %v2696 = vmul.f32 %v2670, %v2695
    %v2697 = vmul.f32 %v2665, %v2665
    %v2698 = vlog2.pop %v2665
    %v2699 = vmul.f32 %v2698, 0.6931472
    %v2701 = vlaneseq
    %v2702 = vshrl.u32 %v2701, 7
    %v2703 = vsub.s32 0, %v2702
    %v2704 = vrot.slane %v2668, %v2703
    %v2705 = vlaneseq
    %v2706 = vshrl.u32 %v2705, 7
    %v2707 = vsub.s32 1, %v2706
    %v2708 = vrot.slane %v2668, %v2707
    %v2712 = vlaneseq
    %v2713 = vshrl.u32 %v2712, 7
    %v2714 = vsub.s32 0, %v2713
    %v2715 = vrot.slane %v2669, %v2714
    %v2716 = vlaneseq
    %v2717 = vshrl.u32 %v2716, 7
    %v2718 = vsub.s32 1, %v2717
    %v2719 = vrot.slane %v2669, %v2718
    %v2723 = vlaneseq
    %v2724 = vshrl.u32 %v2723, 7
    %v2725 = vsub.s32 0, %v2724
    %v2726 = vrot.slane %v2670, %v2725
    %v2727 = vlaneseq
    %v2728 = vshrl.u32 %v2727, 7
    %v2729 = vsub.s32 1, %v2728
    %v2730 = vrot.slane %v2670, %v2729
    %v2734 = vlaneseq
    %v2735 = vshrl.u32 %v2734, 7
    %v2736 = vsub.s32 0, %v2735
    %v2737 = vrot.slane %v2675, %v2736
    %v2738 = vlaneseq
    %v2739 = vshrl.u32 %v2738, 7
    %v2740 = vsub.s32 1, %v2739
    %v2741 = vrot.slane %v2675, %v2740
    %v2745 = vlaneseq
    %v2746 = vshrl.u32 %v2745, 7
    %v2747 = vsub.s32 0, %v2746
    %v2748 = vrot.slane %v2676, %v2747
    %v2749 = vlaneseq
    %v2750 = vshrl.u32 %v2749, 7
    %v2751 = vsub.s32 1, %v2750
    %v2752 = vrot.slane %v2676, %v2751
    %v2756 = vlaneseq
    %v2757 = vshrl.u32 %v2756, 7
    %v2758 = vsub.s32 0, %v2757
    %v2759 = vrot.slane %v2678, %v2758
    %v2760 = vlaneseq
    %v2761 = vshrl.u32 %v2760, 7
    %v2762 = vsub.s32 1, %v2761
    %v2763 = vrot.slane %v2678, %v2762
    %v2767 = vlaneseq
    %v2768 = vshrl.u32 %v2767, 7
    %v2769 = vsub.s32 0, %v2768
    %v2770 = vrot.slane %v2679, %v2769
    %v2771 = vlaneseq
    %v2772 = vshrl.u32 %v2771, 7
    %v2773 = vsub.s32 1, %v2772
    %v2774 = vrot.slane %v2679, %v2773
    %v2778 = vlaneseq
    %v2779 = vshrl.u32 %v2778, 7
    %v2780 = vsub.s32 0, %v2779
    %v2781 = vrot.slane %v2680, %v2780
    %v2782 = vlaneseq
    %v2783 = vshrl.u32 %v2782, 7
    %v2784 = vsub.s32 1, %v2783
    %v2785 = vrot.slane %v2680, %v2784
    %v2789 = vlaneseq
    %v2790 = vshrl.u32 %v2789, 7
    %v2791 = vsub.s32 0, %v2790
    %v2792 = vrot.slane %v2683, %v2791
    %v2793 = vlaneseq
    %v2794 = vshrl.u32 %v2793, 7
    %v2795 = vsub.s32 1, %v2794
    %v2796 = vrot.slane %v2683, %v2795
    %v2800 = vlaneseq
    %v2801 = vshrl.u32 %v2800, 7
    %v2802 = vsub.s32 0, %v2801
    %v2803 = vrot.slane %v2684, %v2802
    %v2804 = vlaneseq
    %v2805 = vshrl.u32 %v2804, 7
    %v2806 = vsub.s32 1, %v2805
    %v2807 = vrot.slane %v2684, %v2806
    %v2811 = vlaneseq
    %v2812 = vshrl.u32 %v2811, 7
    %v2813 = vsub.s32 0, %v2812
    %v2814 = vrot.slane %v2687, %v2813
    %v2815 = vlaneseq
    %v2816 = vshrl.u32 %v2815, 7
    %v2817 = vsub.s32 1, %v2816
    %v2818 = vrot.slane %v2687, %v2817
    %v2822 = vlaneseq
    %v2823 = vshrl.u32 %v2822, 7
    %v2824 = vsub.s32 0, %v2823
    %v2825 = vrot.slane %v2691, %v2824
    %v2826 = vlaneseq
    %v2827 = vshrl.u32 %v2826, 7
    %v2828 = vsub.s32 1, %v2827
    %v2829 = vrot.slane %v2691, %v2828
    %v2833 = vlaneseq
    %v2834 = vshrl.u32 %v2833, 7
    %v2835 = vsub.s32 0, %v2834
    %v2836 = vrot.slane %v2692, %v2835
    %v2837 = vlaneseq
    %v2838 = vshrl.u32 %v2837, 7
    %v2839 = vsub.s32 1, %v2838
    %v2840 = vrot.slane %v2692, %v2839
    %v2844 = vlaneseq
    %v2845 = vshrl.u32 %v2844, 7
    %v2846 = vsub.s32 0, %v2845
    %v2847 = vrot.slane %v2693, %v2846
    %v2848 = vlaneseq
    %v2849 = vshrl.u32 %v2848, 7
    %v2850 = vsub.s32 1, %v2849
    %v2851 = vrot.slane %v2693, %v2850
    %v2855 = vlaneseq
    %v2856 = vshrl.u32 %v2855, 7
    %v2857 = vsub.s32 0, %v2856
    %v2858 = vrot.slane %v2696, %v2857
    %v2859 = vlaneseq
    %v2860 = vshrl.u32 %v2859, 7
    %v2861 = vsub.s32 1, %v2860
    %v2862 = vrot.slane %v2696, %v2861
    %v2865 = vsel %vm255, 1.0, %v2704
    %v2866 = vsel %vm255, 1.0, %v2708
    %v2867 = vsel %vm258, %v2865, %v2715
    %v2868 = vsel %vm258, %v2866, %v2719
    %v2869 = vsel %vm261, %v2867, %v2726
    %v2870 = vsel %vm261, %v2868, %v2730
    %v2871 = vsel %vm264, %v2869, %v2737
    %v2872 = vsel %vm264, %v2870, %v2741
    %v2873 = vsel %vm267, %v2871, %v2748
    %v2874 = vsel %vm267, %v2872, %v2752
    %v2875 = vsel %vm270, %v2873, %v2759
    %v2876 = vsel %vm270, %v2874, %v2763
    %v2877 = vsel %vm273, %v2875, %v2770
    %v2878 = vsel %vm273, %v2876, %v2774
    %v2879 = vsel %vm255, %v2781, %v2792
    %v2880 = vsel %vm255, %v2785, %v2796
    %v2881 = vsel %vm258, %v2879, %v2803
    %v2882 = vsel %vm258, %v2880, %v2807
    %v2883 = vsel %vm261, %v2881, %v2814
    %v2884 = vsel %vm261, %v2882, %v2818
    %v2885 = vsel %vm264, %v2883, %v2825
    %v2886 = vsel %vm264, %v2884, %v2829
    %v2887 = vsel %vm267, %v2885, %v2836
    %v2888 = vsel %vm267, %v2886, %v2840
    %v2889 = vsel %vm270, %v2887, %v2847
    %v2890 = vsel %vm270, %v2888, %v2851
    %v2891 = vsel %vm273, %v2889, %v2858
    %v2892 = vsel %vm273, %v2890, %v2862
    %v2894 = vlaneseq
    %v2895 = vshrl.u32 %v2894, 7
    %v2896 = vsub.s32 0, %v2895
    %v2897 = vrot.slane %v2697, %v2896
    %v2898 = vlaneseq
    %v2899 = vshrl.u32 %v2898, 7
    %v2900 = vsub.s32 1, %v2899
    %v2901 = vrot.slane %v2697, %v2900
    %v2905 = vlaneseq
    %v2906 = vshrl.u32 %v2905, 7
    %v2907 = vsub.s32 0, %v2906
    %v2908 = vrot.slane %v2699, %v2907
    %v2909 = vlaneseq
    %v2910 = vshrl.u32 %v2909, 7
    %v2911 = vsub.s32 1, %v2910
    %v2912 = vrot.slane %v2699, %v2911
    %v2915 = vsel %vm255, %v2897, %v2908
    %v2916 = vsel %vm255, %v2901, %v2912
    %v2917 = vsel %vm258, %v2915, 0.0
    %v2918 = vsel %vm258, %v2916, 0.0
    %v2919 = vld [vmem:[#allocation5] sm:$0xff]
    %v2920 = vld [vmem:[#allocation5 + $0x8] sm:$0xff]
    %v2921 = vld [vmem:[#allocation5 + $0x10] sm:$0xff]
    %v2922 = vld [vmem:[#allocation5 + $0x18] sm:$0xff]
    %v2923 = vld [vmem:[#allocation5 + $0x20] sm:$0xff]
    %v2924 = vld [vmem:[#allocation5 + $0x28] sm:$0xff]
    %2925 = vxpose.xlu0.b32.start [1/16] %v2877, 128
    %2926 = vxpose.xlu0.b32.cont [2/16] %v2891, 128
    %2927 = vxpose.xlu0.b32.cont [3/16] %v2917, 128
    %2928 = vxpose.xlu0.b32.cont [4/16] 0.0, 128
    %2929 = vxpose.xlu0.b32.cont [5/16] 0.0, 128
    %2930 = vxpose.xlu0.b32.cont [6/16] 0.0, 128
    %2931 = vxpose.xlu0.b32.cont [7/16] 0.0, 128
    %2932 = vxpose.xlu0.b32.cont [8/16] 0.0, 128
    %2933 = vxpose.xlu0.b32.cont [9/16] 0.0, 128
    %2934 = vxpose.xlu0.b32.cont [10/16] 0.0, 128
    %2935 = vxpose.xlu0.b32.cont [11/16] 0.0, 128
    %2936 = vxpose.xlu0.b32.cont [12/16] 0.0, 128
    %2937 = vxpose.xlu0.b32.cont [13/16] 0.0, 128
    %2938 = vxpose.xlu0.b32.cont [14/16] 0.0, 128
    %2939 = vxpose.xlu0.b32.cont [15/16] 0.0, 128
    %2940 = vxpose.xlu0.b32.end [16/16] 0.0, 128
    %v2941 = vpop.trf.xlu0
    %v2942 = vpop.trf.xlu0
    %v2943 = vpop.trf.xlu0
    %v2944 = vpop.trf.xlu0
    %v2945 = vpop.trf.xlu0
    %v2946 = vpop.trf.xlu0
    %v2947 = vpop.trf.xlu0
    %v2948 = vpop.trf.xlu0
    %v2949 = vpop.trf.xlu0
    %v2950 = vpop.trf.xlu0
    %v2951 = vpop.trf.xlu0
    %v2952 = vpop.trf.xlu0
    %v2953 = vpop.trf.xlu0
    %v2954 = vpop.trf.xlu0
    %v2955 = vpop.trf.xlu0
    %v2956 = vpop.trf.xlu0
    %2957 = vxpose.xlu0.b32.start [1/16] %v2878, 128
    %2958 = vxpose.xlu0.b32.cont [2/16] %v2892, 128
    %2959 = vxpose.xlu0.b32.cont [3/16] %v2918, 128
    %2960 = vxpose.xlu0.b32.cont [4/16] 0.0, 128
    %2961 = vxpose.xlu0.b32.cont [5/16] 0.0, 128
    %2962 = vxpose.xlu0.b32.cont [6/16] 0.0, 128
    %2963 = vxpose.xlu0.b32.cont [7/16] 0.0, 128
    %2964 = vxpose.xlu0.b32.cont [8/16] 0.0, 128
    %2965 = vxpose.xlu0.b32.cont [9/16] 0.0, 128
    %2966 = vxpose.xlu0.b32.cont [10/16] 0.0, 128
    %2967 = vxpose.xlu0.b32.cont [11/16] 0.0, 128
    %2968 = vxpose.xlu0.b32.cont [12/16] 0.0, 128
    %2969 = vxpose.xlu0.b32.cont [13/16] 0.0, 128
    %2970 = vxpose.xlu0.b32.cont [14/16] 0.0, 128
    %2971 = vxpose.xlu0.b32.cont [15/16] 0.0, 128
    %2972 = vxpose.xlu0.b32.end [16/16] 0.0, 128
    %v2973 = vpop.trf.xlu0
    %v2974 = vpop.trf.xlu0
    %v2975 = vpop.trf.xlu0
    %v2976 = vpop.trf.xlu0
    %v2977 = vpop.trf.xlu0
    %v2978 = vpop.trf.xlu0
    %v2979 = vpop.trf.xlu0
    %v2980 = vpop.trf.xlu0
    %v2981 = vpop.trf.xlu0
    %v2982 = vpop.trf.xlu0
    %v2983 = vpop.trf.xlu0
    %v2984 = vpop.trf.xlu0
    %v2985 = vpop.trf.xlu0
    %v2986 = vpop.trf.xlu0
    %v2987 = vpop.trf.xlu0
    %v2988 = vpop.trf.xlu0
    %v2990 = vsel %vm386, %v2941, 0
    %v2993 = vsel %vm386, %v2942, 0
    %v2996 = vsel %vm386, %v2943, 0
    %v2999 = vsel %vm386, %v2944, 0
    %v3002 = vsel %vm386, %v2945, 0
    %v3005 = vsel %vm386, %v2946, 0
    %v3008 = vsel %vm386, %v2947, 0
    %v3011 = vsel %vm386, %v2948, 0
    %v3014 = vsel %vm386, %v2949, 0
    %v3017 = vsel %vm386, %v2950, 0
    %v3020 = vsel %vm386, %v2951, 0
    %v3023 = vsel %vm386, %v2952, 0
    %v3026 = vsel %vm386, %v2953, 0
    %v3029 = vsel %vm386, %v2954, 0
    %v3032 = vsel %vm386, %v2955, 0
    %v3035 = vsel %vm386, %v2956, 0
    %v3038 = vsel %vm386, %v2973, 0
    %v3041 = vsel %vm386, %v2974, 0
    %v3044 = vsel %vm386, %v2975, 0
    %v3047 = vsel %vm386, %v2976, 0
    %v3050 = vsel %vm386, %v2977, 0
    %v3053 = vsel %vm386, %v2978, 0
    %v3056 = vsel %vm386, %v2979, 0
    %v3059 = vsel %vm386, %v2980, 0
    %v3062 = vsel %vm386, %v2981, 0
    %v3065 = vsel %vm386, %v2982, 0
    %v3068 = vsel %vm386, %v2983, 0
    %v3071 = vsel %vm386, %v2984, 0
    %v3074 = vsel %vm386, %v2985, 0
    %v3077 = vsel %vm386, %v2986, 0
    %v3080 = vsel %vm386, %v2987, 0
    %v3083 = vsel %vm386, %v2988, 0
    %v3085 = vand.u32 %v2920, 4294901760
    %3086 = vmatprep.subr.mxu0 %v3085
    %v3087 = vand.u32 %v2919, 4294901760
    %3088 = vmatpush1.msra.mxu0 %v3087
    %v3089 = vand.u32 %v2922, 4294901760
    %3090 = vmatprep.subr.mxu0 %v3089
    %v3091 = vand.u32 %v2921, 4294901760
    %3092 = vmatpush1.msra.mxu0 %v3091
    %v3093 = vand.u32 %v2924, 4294901760
    %3094 = vmatprep.subr.mxu0 %v3093
    %v3095 = vand.u32 %v2923, 4294901760
    %3096 = vmatpush1.msra.mxu0 %v3095
    %3097 = vmatprep.subr.mxu0 0.0
    %3098 = vmatpush1.msra.mxu0 0.0
    %3099 = vmatprep.subr.mxu0 0.0
    %3100 = vmatpush1.msra.mxu0 0.0
    %3101 = vmatprep.subr.mxu0 0.0
    %3102 = vmatpush1.msra.mxu0 0.0
    %3103 = vmatprep.subr.mxu0 0.0
    %3104 = vmatpush1.msra.mxu0 0.0
    %3105 = vmatprep.subr.mxu0 0.0
    %3106 = vmatpush1.msra.mxu0 0.0
    %3107 = vmatprep.subr.mxu0 0.0
    %3108 = vmatpush1.msra.mxu0 0.0
    %3109 = vmatprep.subr.mxu0 0.0
    %3110 = vmatpush1.msra.mxu0 0.0
    %3111 = vmatprep.subr.mxu0 0.0
    %3112 = vmatpush1.msra.mxu0 0.0
    %3113 = vmatprep.subr.mxu0 0.0
    %3114 = vmatpush1.msra.mxu0 0.0
    %3115 = vmatprep.subr.mxu0 0.0
    %3116 = vmatpush1.msra.mxu0 0.0
    %3117 = vmatprep.subr.mxu0 0.0
    %3118 = vmatpush1.msra.mxu0 0.0
    %3119 = vmatprep.subr.mxu0 0.0
    %3120 = vmatpush1.msra.mxu0 0.0
    %3121 = vmatprep.subr.mxu0 0.0
    %3122 = vmatpush1.msra.mxu0 0.0
    %3123 = vmatprep.subr.mxu0 0.0
    %3124 = vmatpush1.msra.mxu0 0.0
    %3125 = vmatprep.subr.mxu0 0.0
    %3126 = vmatpush1.msra.mxu0 0.0
    %3127 = vmatprep.subr.mxu0 0.0
    %3128 = vmatpush1.msra.mxu0 0.0
    %3129 = vmatprep.subr.mxu0 0.0
    %3130 = vmatpush1.msra.mxu0 0.0
    %3131 = vmatprep.subr.mxu0 0.0
    %3132 = vmatpush1.msra.mxu0 0.0
    %3133 = vmatprep.subr.mxu0 0.0
    %3134 = vmatpush1.msra.mxu0 0.0
    %3135 = vmatprep.subr.mxu0 0.0
    %3136 = vmatpush1.msra.mxu0 0.0
    %3137 = vmatprep.subr.mxu0 0.0
    %3138 = vmatpush1.msra.mxu0 0.0
    %3139 = vmatprep.subr.mxu0 0.0
    %3140 = vmatpush1.msra.mxu0 0.0
    %3141 = vmatprep.subr.mxu0 0.0
    %3142 = vmatpush1.msra.mxu0 0.0
    %3143 = vmatprep.subr.mxu0 0.0
    %3144 = vmatpush1.msra.mxu0 0.0
    %3145 = vmatprep.subr.mxu0 0.0
    %3146 = vmatpush1.msra.mxu0 0.0
    %3147 = vmatprep.subr.mxu0 0.0
    %3148 = vmatpush1.msra.mxu0 0.0
    %3149 = vmatprep.subr.mxu0 0.0
    %3150 = vmatpush1.msra.mxu0 0.0
    %3151 = vmatprep.subr.mxu0 0.0
    %3152 = vmatpush1.msra.mxu0 0.0
    %3153 = vmatprep.subr.mxu0 0.0
    %3154 = vmatpush1.msra.mxu0 0.0
    %3155 = vmatprep.mubr.f32.mxu0 0.0
    %v3156 = vand.u32 %v2990, 4294901760
    %v3157 = vsub.f32 %v2990, %v3156
    %v3158 = vand.u32 %v3157, 4294901760
    %v3159 = vsub.f32 %v3157, %v3158
    %v3160 = vand.u32 %v3159, 4294901760
    %3161 = vmatmul.mubr.f32.gmra.mrb[0].mxu0 %v3160
    %v3162 = vpop.f32.mrb[0].mxu0
    %v3163 = vadd.f32 0.0, %v3162
    %v3164 = vpop.f32.mrb[0].mxu0
    %v3165 = vadd.f32 0.0, %v3164
    %3166 = vmatprep.mubr.f32.mxu0 0.0
    %v3167 = vand.u32 %v2993, 4294901760
    %v3168 = vsub.f32 %v2993, %v3167
    %v3169 = vand.u32 %v3168, 4294901760
    %v3170 = vsub.f32 %v3168, %v3169
    %v3171 = vand.u32 %v3170, 4294901760
    %3172 = vmatmul.mubr.f32.gmra.mrb[0].mxu0 %v3171
    %v3173 = vpop.f32.mrb[0].mxu0
    %v3174 = vadd.f32 0.0, %v3173
    %v3175 = vpop.f32.mrb[0].mxu0
    %v3176 = vadd.f32 0.0, %v3175
    %3177 = vmatprep.mubr.f32.mxu0 0.0
    %v3178 = vand.u32 %v2996, 4294901760
    %v3179 = vsub.f32 %v2996, %v3178
    %v3180 = vand.u32 %v3179, 4294901760
    %v3181 = vsub.f32 %v3179, %v3180
    %v3182 = vand.u32 %v3181, 4294901760
    %3183 = vmatmul.mubr.f32.gmra.mrb[0].mxu0 %v3182
    %v3184 = vpop.f32.mrb[0].mxu0
    %v3185 = vadd.f32 0.0, %v3184
    %v3186 = vpop.f32.mrb[0].mxu0
    %v3187 = vadd.f32 0.0, %v3186
    %3188 = vmatprep.mubr.f32.mxu0 0.0
    %v3189 = vand.u32 %v2999, 4294901760
    %v3190 = vsub.f32 %v2999, %v3189
    %v3191 = vand.u32 %v3190, 4294901760
    %v3192 = vsub.f32 %v3190, %v3191
    %v3193 = vand.u32 %v3192, 4294901760
    %3194 = vmatmul.mubr.f32.gmra.mrb[0].mxu0 %v3193
    %v3195 = vpop.f32.mrb[0].mxu0
    %v3196 = vadd.f32 0.0, %v3195
    %v3197 = vpop.f32.mrb[0].mxu0
    %v3198 = vadd.f32 0.0, %v3197
    %3199 = vmatprep.mubr.f32.mxu0 0.0
    %v3200 = vand.u32 %v3002, 4294901760
    %v3201 = vsub.f32 %v3002, %v3200
    %v3202 = vand.u32 %v3201, 4294901760
    %v3203 = vsub.f32 %v3201, %v3202
    %v3204 = vand.u32 %v3203, 4294901760
    %3205 = vmatmul.mubr.f32.gmra.mrb[0].mxu0 %v3204
    %v3206 = vpop.f32.mrb[0].mxu0
    %v3207 = vadd.f32 0.0, %v3206
    %v3208 = vpop.f32.mrb[0].mxu0
    %v3209 = vadd.f32 0.0, %v3208
    %3210 = vmatprep.mubr.f32.mxu0 0.0
    %v3211 = vand.u32 %v3005, 4294901760
    %v3212 = vsub.f32 %v3005, %v3211
    %v3213 = vand.u32 %v3212, 4294901760
    %v3214 = vsub.f32 %v3212, %v3213
    %v3215 = vand.u32 %v3214, 4294901760
    %3216 = vmatmul.mubr.f32.gmra.mrb[0].mxu0 %v3215
    %v3217 = vpop.f32.mrb[0].mxu0
    %v3218 = vadd.f32 0.0, %v3217
    %v3219 = vpop.f32.mrb[0].mxu0
    %v3220 = vadd.f32 0.0, %v3219
    %3221 = vmatprep.mubr.f32.mxu0 0.0
    %v3222 = vand.u32 %v3008, 4294901760
    %v3223 = vsub.f32 %v3008, %v3222
    %v3224 = vand.u32 %v3223, 4294901760
    %v3225 = vsub.f32 %v3223, %v3224
    %v3226 = vand.u32 %v3225, 4294901760
    %3227 = vmatmul.mubr.f32.gmra.mrb[0].mxu0 %v3226
    %v3228 = vpop.f32.mrb[0].mxu0
    %v3229 = vadd.f32 0.0, %v3228
    %v3230 = vpop.f32.mrb[0].mxu0
    %v3231 = vadd.f32 0.0, %v3230
    %3232 = vmatprep.mubr.f32.mxu0 0.0
    %v3233 = vand.u32 %v3011, 4294901760
    %v3234 = vsub.f32 %v3011, %v3233
    %v3235 = vand.u32 %v3234, 4294901760
    %v3236 = vsub.f32 %v3234, %v3235
    %v3237 = vand.u32 %v3236, 4294901760
    %3238 = vmatmul.mubr.f32.gmra.mrb[0].mxu0 %v3237
    %v3239 = vpop.f32.mrb[0].mxu0
    %v3240 = vadd.f32 0.0, %v3239
    %v3241 = vpop.f32.mrb[0].mxu0
    %v3242 = vadd.f32 0.0, %v3241
    %3243 = vmatprep.mubr.f32.mxu0 0.0
    %v3244 = vand.u32 %v3014, 4294901760
    %v3245 = vsub.f32 %v3014, %v3244
    %v3246 = vand.u32 %v3245, 4294901760
    %v3247 = vsub.f32 %v3245, %v3246
    %v3248 = vand.u32 %v3247, 4294901760
    %3249 = vmatmul.mubr.f32.gmra.mrb[0].mxu0 %v3248
    %v3250 = vpop.f32.mrb[0].mxu0
    %v3251 = vadd.f32 0.0, %v3250
    %v3252 = vpop.f32.mrb[0].mxu0
    %v3253 = vadd.f32 0.0, %v3252
    %3254 = vmatprep.mubr.f32.mxu0 0.0
    %v3255 = vand.u32 %v3017, 4294901760
    %v3256 = vsub.f32 %v3017, %v3255
    %v3257 = vand.u32 %v3256, 4294901760
    %v3258 = vsub.f32 %v3256, %v3257
    %v3259 = vand.u32 %v3258, 4294901760
    %3260 = vmatmul.mubr.f32.gmra.mrb[0].mxu0 %v3259
    %v3261 = vpop.f32.mrb[0].mxu0
    %v3262 = vadd.f32 0.0, %v3261
    %v3263 = vpop.f32.mrb[0].mxu0
    %v3264 = vadd.f32 0.0, %v3263
    %3265 = vmatprep.mubr.f32.mxu0 0.0
    %v3266 = vand.u32 %v3020, 4294901760
    %v3267 = vsub.f32 %v3020, %v3266
    %v3268 = vand.u32 %v3267, 4294901760
    %v3269 = vsub.f32 %v3267, %v3268
    %v3270 = vand.u32 %v3269, 4294901760
    %3271 = vmatmul.mubr.f32.gmra.mrb[0].mxu0 %v3270
    %v3272 = vpop.f32.mrb[0].mxu0
    %v3273 = vadd.f32 0.0, %v3272
    %v3274 = vpop.f32.mrb[0].mxu0
    %v3275 = vadd.f32 0.0, %v3274
    %3276 = vmatprep.mubr.f32.mxu0 0.0
    %v3277 = vand.u32 %v3023, 4294901760
    %v3278 = vsub.f32 %v3023, %v3277
    %v3279 = vand.u32 %v3278, 4294901760
    %v3280 = vsub.f32 %v3278, %v3279
    %v3281 = vand.u32 %v3280, 4294901760
    %3282 = vmatmul.mubr.f32.gmra.mrb[0].mxu0 %v3281
    %v3283 = vpop.f32.mrb[0].mxu0
    %v3284 = vadd.f32 0.0, %v3283
    %v3285 = vpop.f32.mrb[0].mxu0
    %v3286 = vadd.f32 0.0, %v3285
    %3287 = vmatprep.mubr.f32.mxu0 0.0
    %v3288 = vand.u32 %v3026, 4294901760
    %v3289 = vsub.f32 %v3026, %v3288
    %v3290 = vand.u32 %v3289, 4294901760
    %v3291 = vsub.f32 %v3289, %v3290
    %v3292 = vand.u32 %v3291, 4294901760
    %3293 = vmatmul.mubr.f32.gmra.mrb[0].mxu0 %v3292
    %v3294 = vpop.f32.mrb[0].mxu0
    %v3295 = vadd.f32 0.0, %v3294
    %v3296 = vpop.f32.mrb[0].mxu0
    %v3297 = vadd.f32 0.0, %v3296
    %3298 = vmatprep.mubr.f32.mxu0 0.0
    %v3299 = vand.u32 %v3029, 4294901760
    %v3300 = vsub.f32 %v3029, %v3299
    %v3301 = vand.u32 %v3300, 4294901760
    %v3302 = vsub.f32 %v3300, %v3301
    %v3303 = vand.u32 %v3302, 4294901760
    %3304 = vmatmul.mubr.f32.gmra.mrb[0].mxu0 %v3303
    %v3305 = vpop.f32.mrb[0].mxu0
    %v3306 = vadd.f32 0.0, %v3305
    %v3307 = vpop.f32.mrb[0].mxu0
    %v3308 = vadd.f32 0.0, %v3307
    %3309 = vmatprep.mubr.f32.mxu0 0.0
    %v3310 = vand.u32 %v3032, 4294901760
    %v3311 = vsub.f32 %v3032, %v3310
    %v3312 = vand.u32 %v3311, 4294901760
    %v3313 = vsub.f32 %v3311, %v3312
    %v3314 = vand.u32 %v3313, 4294901760
    %3315 = vmatmul.mubr.f32.gmra.mrb[0].mxu0 %v3314
    %v3316 = vpop.f32.mrb[0].mxu0
    %v3317 = vadd.f32 0.0, %v3316
    %v3318 = vpop.f32.mrb[0].mxu0
    %v3319 = vadd.f32 0.0, %v3318
    %3320 = vmatprep.mubr.f32.mxu0 0.0
    %v3321 = vand.u32 %v3035, 4294901760
    %v3322 = vsub.f32 %v3035, %v3321
    %v3323 = vand.u32 %v3322, 4294901760
    %v3324 = vsub.f32 %v3322, %v3323
    %v3325 = vand.u32 %v3324, 4294901760
    %3326 = vmatmul.mubr.f32.gmra.mrb[0].mxu0 %v3325
    %v3327 = vpop.f32.mrb[0].mxu0
    %v3328 = vadd.f32 0.0, %v3327
    %v3329 = vpop.f32.mrb[0].mxu0
    %v3330 = vadd.f32 0.0, %v3329
    %3331 = vmatprep.mubr.f32.mxu0 0.0
    %v3332 = vand.u32 %v3038, 4294901760
    %v3333 = vsub.f32 %v3038, %v3332
    %v3334 = vand.u32 %v3333, 4294901760
    %v3335 = vsub.f32 %v3333, %v3334
    %v3336 = vand.u32 %v3335, 4294901760
    %3337 = vmatmul.mubr.f32.gmra.mrb[0].mxu0 %v3336
    %v3338 = vpop.f32.mrb[0].mxu0
    %v3339 = vadd.f32 0.0, %v3338
    %v3340 = vpop.f32.mrb[0].mxu0
    %v3341 = vadd.f32 0.0, %v3340
    %3342 = vmatprep.mubr.f32.mxu0 0.0
    %v3343 = vand.u32 %v3041, 4294901760
    %v3344 = vsub.f32 %v3041, %v3343
    %v3345 = vand.u32 %v3344, 4294901760
    %v3346 = vsub.f32 %v3344, %v3345
    %v3347 = vand.u32 %v3346, 4294901760
    %3348 = vmatmul.mubr.f32.gmra.mrb[0].mxu0 %v3347
    %v3349 = vpop.f32.mrb[0].mxu0
    %v3350 = vadd.f32 0.0, %v3349
    %v3351 = vpop.f32.mrb[0].mxu0
    %v3352 = vadd.f32 0.0, %v3351
    %3353 = vmatprep.mubr.f32.mxu0 0.0
    %v3354 = vand.u32 %v3044, 4294901760
    %v3355 = vsub.f32 %v3044, %v3354
    %v3356 = vand.u32 %v3355, 4294901760
    %v3357 = vsub.f32 %v3355, %v3356
    %v3358 = vand.u32 %v3357, 4294901760
    %3359 = vmatmul.mubr.f32.gmra.mrb[0].mxu0 %v3358
    %v3360 = vpop.f32.mrb[0].mxu0
    %v3361 = vadd.f32 0.0, %v3360
    %v3362 = vpop.f32.mrb[0].mxu0
    %v3363 = vadd.f32 0.0, %v3362
    %3364 = vmatprep.mubr.f32.mxu0 0.0
    %v3365 = vand.u32 %v3047, 4294901760
    %v3366 = vsub.f32 %v3047, %v3365
    %v3367 = vand.u32 %v3366, 4294901760
    %v3368 = vsub.f32 %v3366, %v3367
    %v3369 = vand.u32 %v3368, 4294901760
    %3370 = vmatmul.mubr.f32.gmra.mrb[0].mxu0 %v3369
    %v3371 = vpop.f32.mrb[0].mxu0
    %v3372 = vadd.f32 0.0, %v3371
    %v3373 = vpop.f32.mrb[0].mxu0
    %v3374 = vadd.f32 0.0, %v3373
    %3375 = vmatprep.mubr.f32.mxu0 0.0
    %v3376 = vand.u32 %v3050, 4294901760
    %v3377 = vsub.f32 %v3050, %v3376
    %v3378 = vand.u32 %v3377, 4294901760
    %v3379 = vsub.f32 %v3377, %v3378
    %v3380 = vand.u32 %v3379, 4294901760
    %3381 = vmatmul.mubr.f32.gmra.mrb[0].mxu0 %v3380
    %v3382 = vpop.f32.mrb[0].mxu0
    %v3383 = vadd.f32 0.0, %v3382
    %v3384 = vpop.f32.mrb[0].mxu0
    %v3385 = vadd.f32 0.0, %v3384
    %3386 = vmatprep.mubr.f32.mxu0 0.0
    %v3387 = vand.u32 %v3053, 4294901760
    %v3388 = vsub.f32 %v3053, %v3387
    %v3389 = vand.u32 %v3388, 4294901760
    %v3390 = vsub.f32 %v3388, %v3389
    %v3391 = vand.u32 %v3390, 4294901760
    %3392 = vmatmul.mubr.f32.gmra.mrb[0].mxu0 %v3391
    %v3393 = vpop.f32.mrb[0].mxu0
    %v3394 = vadd.f32 0.0, %v3393
    %v3395 = vpop.f32.mrb[0].mxu0
    %v3396 = vadd.f32 0.0, %v3395
    %3397 = vmatprep.mubr.f32.mxu0 0.0
    %v3398 = vand.u32 %v3056, 4294901760
    %v3399 = vsub.f32 %v3056, %v3398
    %v3400 = vand.u32 %v3399, 4294901760
    %v3401 = vsub.f32 %v3399, %v3400
    %v3402 = vand.u32 %v3401, 4294901760
    %3403 = vmatmul.mubr.f32.gmra.mrb[0].mxu0 %v3402
    %v3404 = vpop.f32.mrb[0].mxu0
    %v3405 = vadd.f32 0.0, %v3404
    %v3406 = vpop.f32.mrb[0].mxu0
    %v3407 = vadd.f32 0.0, %v3406
    %3408 = vmatprep.mubr.f32.mxu0 0.0
    %v3409 = vand.u32 %v3059, 4294901760
    %v3410 = vsub.f32 %v3059, %v3409
    %v3411 = vand.u32 %v3410, 4294901760
    %v3412 = vsub.f32 %v3410, %v3411
    %v3413 = vand.u32 %v3412, 4294901760
    %3414 = vmatmul.mubr.f32.gmra.mrb[0].mxu0 %v3413
    %v3415 = vpop.f32.mrb[0].mxu0
    %v3416 = vadd.f32 0.0, %v3415
    %v3417 = vpop.f32.mrb[0].mxu0
    %v3418 = vadd.f32 0.0, %v3417
    %3419 = vmatprep.mubr.f32.mxu0 0.0
    %v3420 = vand.u32 %v3062, 4294901760
    %v3421 = vsub.f32 %v3062, %v3420
    %v3422 = vand.u32 %v3421, 4294901760
    %v3423 = vsub.f32 %v3421, %v3422
    %v3424 = vand.u32 %v3423, 4294901760
    %3425 = vmatmul.mubr.f32.gmra.mrb[0].mxu0 %v3424
    %v3426 = vpop.f32.mrb[0].mxu0
    %v3427 = vadd.f32 0.0, %v3426
    %v3428 = vpop.f32.mrb[0].mxu0
    %v3429 = vadd.f32 0.0, %v3428
    %3430 = vmatprep.mubr.f32.mxu0 0.0
    %v3431 = vand.u32 %v3065, 4294901760
    %v3432 = vsub.f32 %v3065, %v3431
    %v3433 = vand.u32 %v3432, 4294901760
    %v3434 = vsub.f32 %v3432, %v3433
    %v3435 = vand.u32 %v3434, 4294901760
    %3436 = vmatmul.mubr.f32.gmra.mrb[0].mxu0 %v3435
    %v3437 = vpop.f32.mrb[0].mxu0
    %v3438 = vadd.f32 0.0, %v3437
    %v3439 = vpop.f32.mrb[0].mxu0
    %v3440 = vadd.f32 0.0, %v3439
    %3441 = vmatprep.mubr.f32.mxu0 0.0
    %v3442 = vand.u32 %v3068, 4294901760
    %v3443 = vsub.f32 %v3068, %v3442
    %v3444 = vand.u32 %v3443, 4294901760
    %v3445 = vsub.f32 %v3443, %v3444
    %v3446 = vand.u32 %v3445, 4294901760
    %3447 = vmatmul.mubr.f32.gmra.mrb[0].mxu0 %v3446
    %v3448 = vpop.f32.mrb[0].mxu0
    %v3449 = vadd.f32 0.0, %v3448
    %v3450 = vpop.f32.mrb[0].mxu0
    %v3451 = vadd.f32 0.0, %v3450
    %3452 = vmatprep.mubr.f32.mxu0 0.0
    %v3453 = vand.u32 %v3071, 4294901760
    %v3454 = vsub.f32 %v3071, %v3453
    %v3455 = vand.u32 %v3454, 4294901760
    %v3456 = vsub.f32 %v3454, %v3455
    %v3457 = vand.u32 %v3456, 4294901760
    %3458 = vmatmul.mubr.f32.gmra.mrb[0].mxu0 %v3457
    %v3459 = vpop.f32.mrb[0].mxu0
    %v3460 = vadd.f32 0.0, %v3459
    %v3461 = vpop.f32.mrb[0].mxu0
    %v3462 = vadd.f32 0.0, %v3461
    %3463 = vmatprep.mubr.f32.mxu0 0.0
    %v3464 = vand.u32 %v3074, 4294901760
    %v3465 = vsub.f32 %v3074, %v3464
    %v3466 = vand.u32 %v3465, 4294901760
    %v3467 = vsub.f32 %v3465, %v3466
    %v3468 = vand.u32 %v3467, 4294901760
    %3469 = vmatmul.mubr.f32.gmra.mrb[0].mxu0 %v3468
    %v3470 = vpop.f32.mrb[0].mxu0
    %v3471 = vadd.f32 0.0, %v3470
    %v3472 = vpop.f32.mrb[0].mxu0
    %v3473 = vadd.f32 0.0, %v3472
    %3474 = vmatprep.mubr.f32.mxu0 0.0
    %v3475 = vand.u32 %v3077, 4294901760
    %v3476 = vsub.f32 %v3077, %v3475
    %v3477 = vand.u32 %v3476, 4294901760
    %v3478 = vsub.f32 %v3476, %v3477
    %v3479 = vand.u32 %v3478, 4294901760
    %3480 = vmatmul.mubr.f32.gmra.mrb[0].mxu0 %v3479
    %v3481 = vpop.f32.mrb[0].mxu0
    %v3482 = vadd.f32 0.0, %v3481
    %v3483 = vpop.f32.mrb[0].mxu0
    %v3484 = vadd.f32 0.0, %v3483
    %3485 = vmatprep.mubr.f32.mxu0 0.0
    %v3486 = vand.u32 %v3080, 4294901760
    %v3487 = vsub.f32 %v3080, %v3486
    %v3488 = vand.u32 %v3487, 4294901760
    %v3489 = vsub.f32 %v3487, %v3488
    %v3490 = vand.u32 %v3489, 4294901760
    %3491 = vmatmul.mubr.f32.gmra.mrb[0].mxu0 %v3490
    %v3492 = vpop.f32.mrb[0].mxu0
    %v3493 = vadd.f32 0.0, %v3492
    %v3494 = vpop.f32.mrb[0].mxu0
    %v3495 = vadd.f32 0.0, %v3494
    %3496 = vmatprep.mubr.f32.mxu0 0.0
    %v3497 = vand.u32 %v3083, 4294901760
    %v3498 = vsub.f32 %v3083, %v3497
    %v3499 = vand.u32 %v3498, 4294901760
    %v3500 = vsub.f32 %v3498, %v3499
    %v3501 = vand.u32 %v3500, 4294901760
    %3502 = vmatmul.mubr.f32.gmra.mrb[0].mxu0 %v3501
    %v3503 = vpop.f32.mrb[0].mxu0
    %v3504 = vadd.f32 0.0, %v3503
    %v3505 = vpop.f32.mrb[0].mxu0
    %v3506 = vadd.f32 0.0, %v3505
    %3507 = vdwg.mxu0
    %v3508 = vand.u32 %v2920, 4294901760
    %v3509 = vsub.f32 %v2920, %v3508
    %v3510 = vand.u32 %v3509, 4294901760
    %v3511 = vsub.f32 %v3509, %v3510
    %v3512 = vand.u32 %v3511, 4294901760
    %3513 = vmatprep.subr.mxu0 %v3512
    %v3514 = vand.u32 %v2919, 4294901760
    %v3515 = vsub.f32 %v2919, %v3514
    %v3516 = vand.u32 %v3515, 4294901760
    %v3517 = vsub.f32 %v3515, %v3516
    %v3518 = vand.u32 %v3517, 4294901760
    %3519 = vmatpush1.msra.mxu0 %v3518
    %v3520 = vand.u32 %v2922, 4294901760
    %v3521 = vsub.f32 %v2922, %v3520
    %v3522 = vand.u32 %v3521, 4294901760
    %v3523 = vsub.f32 %v3521, %v3522
    %v3524 = vand.u32 %v3523, 4294901760
    %3525 = vmatprep.subr.mxu0 %v3524
    %v3526 = vand.u32 %v2921, 4294901760
    %v3527 = vsub.f32 %v2921, %v3526
    %v3528 = vand.u32 %v3527, 4294901760
    %v3529 = vsub.f32 %v3527, %v3528
    %v3530 = vand.u32 %v3529, 4294901760
    %3531 = vmatpush1.msra.mxu0 %v3530
    %v3532 = vand.u32 %v2924, 4294901760
    %v3533 = vsub.f32 %v2924, %v3532
    %v3534 = vand.u32 %v3533, 4294901760
    %v3535 = vsub.f32 %v3533, %v3534
    %v3536 = vand.u32 %v3535, 4294901760
    %3537 = vmatprep.subr.mxu0 %v3536
    %v3538 = vand.u32 %v2923, 4294901760
    %v3539 = vsub.f32 %v2923, %v3538
    %v3540 = vand.u32 %v3539, 4294901760
    %v3541 = vsub.f32 %v3539, %v3540
    %v3542 = vand.u32 %v3541, 4294901760
    %3543 = vmatpush1.msra.mxu0 %v3542
    %3544 = vmatprep.subr.mxu0 0.0
    %3545 = vmatpush1.msra.mxu0 0.0
    %3546 = vmatprep.subr.mxu0 0.0
    %3547 = vmatpush1.msra.mxu0 0.0
    %3548 = vmatprep.subr.mxu0 0.0
    %3549 = vmatpush1.msra.mxu0 0.0
    %3550 = vmatprep.subr.mxu0 0.0
    %3551 = vmatpush1.msra.mxu0 0.0
    %3552 = vmatprep.subr.mxu0 0.0
    %3553 = vmatpush1.msra.mxu0 0.0
    %3554 = vmatprep.subr.mxu0 0.0
    %3555 = vmatpush1.msra.mxu0 0.0
    %3556 = vmatprep.subr.mxu0 0.0
    %3557 = vmatpush1.msra.mxu0 0.0
    %3558 = vmatprep.subr.mxu0 0.0
    %3559 = vmatpush1.msra.mxu0 0.0
    %3560 = vmatprep.subr.mxu0 0.0
    %3561 = vmatpush1.msra.mxu0 0.0
    %3562 = vmatprep.subr.mxu0 0.0
    %3563 = vmatpush1.msra.mxu0 0.0
    %3564 = vmatprep.subr.mxu0 0.0
    %3565 = vmatpush1.msra.mxu0 0.0
    %3566 = vmatprep.subr.mxu0 0.0
    %3567 = vmatpush1.msra.mxu0 0.0
    %3568 = vmatprep.subr.mxu0 0.0
    %3569 = vmatpush1.msra.mxu0 0.0
    %3570 = vmatprep.subr.mxu0 0.0
    %3571 = vmatpush1.msra.mxu0 0.0
    %3572 = vmatprep.subr.mxu0 0.0
    %3573 = vmatpush1.msra.mxu0 0.0
    %3574 = vmatprep.subr.mxu0 0.0
    %3575 = vmatpush1.msra.mxu0 0.0
    %3576 = vmatprep.subr.mxu0 0.0
    %3577 = vmatpush1.msra.mxu0 0.0
    %3578 = vmatprep.subr.mxu0 0.0
    %3579 = vmatpush1.msra.mxu0 0.0
    %3580 = vmatprep.subr.mxu0 0.0
    %3581 = vmatpush1.msra.mxu0 0.0
    %3582 = vmatprep.subr.mxu0 0.0
    %3583 = vmatpush1.msra.mxu0 0.0
    %3584 = vmatprep.subr.mxu0 0.0
    %3585 = vmatpush1.msra.mxu0 0.0
    %3586 = vmatprep.subr.mxu0 0.0
    %3587 = vmatpush1.msra.mxu0 0.0
    %3588 = vmatprep.subr.mxu0 0.0
    %3589 = vmatpush1.msra.mxu0 0.0
    %3590 = vmatprep.subr.mxu0 0.0
    %3591 = vmatpush1.msra.mxu0 0.0
    %3592 = vmatprep.subr.mxu0 0.0
    %3593 = vmatpush1.msra.mxu0 0.0
    %3594 = vmatprep.subr.mxu0 0.0
    %3595 = vmatpush1.msra.mxu0 0.0
    %3596 = vmatprep.subr.mxu0 0.0
    %3597 = vmatpush1.msra.mxu0 0.0
    %3598 = vmatprep.subr.mxu0 0.0
    %3599 = vmatpush1.msra.mxu0 0.0
    %3600 = vmatprep.subr.mxu0 0.0
    %3601 = vmatpush1.msra.mxu0 0.0
    %3602 = vmatprep.mubr.f32.mxu0 0.0
    %v3603 = vand.u32 %v2990, 4294901760
    %3604 = vmatmul.mubr.f32.gmra.mrb[0].mxu0 %v3603
    %v3605 = vpop.f32.mrb[0].mxu0
    %v3606 = vadd.f32 %v3163, %v3605
    %v3607 = vpop.f32.mrb[0].mxu0
    %v3608 = vadd.f32 %v3165, %v3607
    %3609 = vmatprep.mubr.f32.mxu0 0.0
    %v3610 = vand.u32 %v2993, 4294901760
    %3611 = vmatmul.mubr.f32.gmra.mrb[0].mxu0 %v3610
    %v3612 = vpop.f32.mrb[0].mxu0
    %v3613 = vadd.f32 %v3174, %v3612
    %v3614 = vpop.f32.mrb[0].mxu0
    %v3615 = vadd.f32 %v3176, %v3614
    %3616 = vmatprep.mubr.f32.mxu0 0.0
    %v3617 = vand.u32 %v2996, 4294901760
    %3618 = vmatmul.mubr.f32.gmra.mrb[0].mxu0 %v3617
    %v3619 = vpop.f32.mrb[0].mxu0
    %v3620 = vadd.f32 %v3185, %v3619
    %v3621 = vpop.f32.mrb[0].mxu0
    %v3622 = vadd.f32 %v3187, %v3621
    %3623 = vmatprep.mubr.f32.mxu0 0.0
    %v3624 = vand.u32 %v2999, 4294901760
    %3625 = vmatmul.mubr.f32.gmra.mrb[0].mxu0 %v3624
    %v3626 = vpop.f32.mrb[0].mxu0
    %v3627 = vadd.f32 %v3196, %v3626
    %v3628 = vpop.f32.mrb[0].mxu0
    %v3629 = vadd.f32 %v3198, %v3628
    %3630 = vmatprep.mubr.f32.mxu0 0.0
    %v3631 = vand.u32 %v3002, 4294901760
    %3632 = vmatmul.mubr.f32.gmra.mrb[0].mxu0 %v3631
    %v3633 = vpop.f32.mrb[0].mxu0
    %v3634 = vadd.f32 %v3207, %v3633
    %v3635 = vpop.f32.mrb[0].mxu0
    %v3636 = vadd.f32 %v3209, %v3635
    %3637 = vmatprep.mubr.f32.mxu0 0.0
    %v3638 = vand.u32 %v3005, 4294901760
    %3639 = vmatmul.mubr.f32.gmra.mrb[0].mxu0 %v3638
    %v3640 = vpop.f32.mrb[0].mxu0
    %v3641 = vadd.f32 %v3218, %v3640
    %v3642 = vpop.f32.mrb[0].mxu0
    %v3643 = vadd.f32 %v3220, %v3642
    %3644 = vmatprep.mubr.f32.mxu0 0.0
    %v3645 = vand.u32 %v3008, 4294901760
    %3646 = vmatmul.mubr.f32.gmra.mrb[0].mxu0 %v3645
    %v3647 = vpop.f32.mrb[0].mxu0
    %v3648 = vadd.f32 %v3229, %v3647
    %v3649 = vpop.f32.mrb[0].mxu0
    %v3650 = vadd.f32 %v3231, %v3649
    %3651 = vmatprep.mubr.f32.mxu0 0.0
    %v3652 = vand.u32 %v3011, 4294901760
    %3653 = vmatmul.mubr.f32.gmra.mrb[0].mxu0 %v3652
    %v3654 = vpop.f32.mrb[0].mxu0
    %v3655 = vadd.f32 %v3240, %v3654
    %v3656 = vpop.f32.mrb[0].mxu0
    %v3657 = vadd.f32 %v3242, %v3656
    %3658 = vmatprep.mubr.f32.mxu0 0.0
    %v3659 = vand.u32 %v3014, 4294901760
    %3660 = vmatmul.mubr.f32.gmra.mrb[0].mxu0 %v3659
    %v3661 = vpop.f32.mrb[0].mxu0
    %v3662 = vadd.f32 %v3251, %v3661
    %v3663 = vpop.f32.mrb[0].mxu0
    %v3664 = vadd.f32 %v3253, %v3663
    %3665 = vmatprep.mubr.f32.mxu0 0.0
    %v3666 = vand.u32 %v3017, 4294901760
    %3667 = vmatmul.mubr.f32.gmra.mrb[0].mxu0 %v3666
    %v3668 = vpop.f32.mrb[0].mxu0
    %v3669 = vadd.f32 %v3262, %v3668
    %v3670 = vpop.f32.mrb[0].mxu0
    %v3671 = vadd.f32 %v3264, %v3670
    %3672 = vmatprep.mubr.f32.mxu0 0.0
    %v3673 = vand.u32 %v3020, 4294901760
    %3674 = vmatmul.mubr.f32.gmra.mrb[0].mxu0 %v3673
    %v3675 = vpop.f32.mrb[0].mxu0
    %v3676 = vadd.f32 %v3273, %v3675
    %v3677 = vpop.f32.mrb[0].mxu0
    %v3678 = vadd.f32 %v3275, %v3677
    %3679 = vmatprep.mubr.f32.mxu0 0.0
    %v3680 = vand.u32 %v3023, 4294901760
    %3681 = vmatmul.mubr.f32.gmra.mrb[0].mxu0 %v3680
    %v3682 = vpop.f32.mrb[0].mxu0
    %v3683 = vadd.f32 %v3284, %v3682
    %v3684 = vpop.f32.mrb[0].mxu0
    %v3685 = vadd.f32 %v3286, %v3684
    %3686 = vmatprep.mubr.f32.mxu0 0.0
    %v3687 = vand.u32 %v3026, 4294901760
    %3688 = vmatmul.mubr.f32.gmra.mrb[0].mxu0 %v3687
    %v3689 = vpop.f32.mrb[0].mxu0
    %v3690 = vadd.f32 %v3295, %v3689
    %v3691 = vpop.f32.mrb[0].mxu0
    %v3692 = vadd.f32 %v3297, %v3691
    %3693 = vmatprep.mubr.f32.mxu0 0.0
    %v3694 = vand.u32 %v3029, 4294901760
    %3695 = vmatmul.mubr.f32.gmra.mrb[0].mxu0 %v3694
    %v3696 = vpop.f32.mrb[0].mxu0
    %v3697 = vadd.f32 %v3306, %v3696
    %v3698 = vpop.f32.mrb[0].mxu0
    %v3699 = vadd.f32 %v3308, %v3698
    %3700 = vmatprep.mubr.f32.mxu0 0.0
    %v3701 = vand.u32 %v3032, 4294901760
    %3702 = vmatmul.mubr.f32.gmra.mrb[0].mxu0 %v3701
    %v3703 = vpop.f32.mrb[0].mxu0
    %v3704 = vadd.f32 %v3317, %v3703
    %v3705 = vpop.f32.mrb[0].mxu0
    %v3706 = vadd.f32 %v3319, %v3705
    %3707 = vmatprep.mubr.f32.mxu0 0.0
    %v3708 = vand.u32 %v3035, 4294901760
    %3709 = vmatmul.mubr.f32.gmra.mrb[0].mxu0 %v3708
    %v3710 = vpop.f32.mrb[0].mxu0
    %v3711 = vadd.f32 %v3328, %v3710
    %v3712 = vpop.f32.mrb[0].mxu0
    %v3713 = vadd.f32 %v3330, %v3712
    %3714 = vmatprep.mubr.f32.mxu0 0.0
    %v3715 = vand.u32 %v3038, 4294901760
    %3716 = vmatmul.mubr.f32.gmra.mrb[0].mxu0 %v3715
    %v3717 = vpop.f32.mrb[0].mxu0
    %v3718 = vadd.f32 %v3339, %v3717
    %v3719 = vpop.f32.mrb[0].mxu0
    %v3720 = vadd.f32 %v3341, %v3719
    %3721 = vmatprep.mubr.f32.mxu0 0.0
    %v3722 = vand.u32 %v3041, 4294901760
    %3723 = vmatmul.mubr.f32.gmra.mrb[0].mxu0 %v3722
    %v3724 = vpop.f32.mrb[0].mxu0
    %v3725 = vadd.f32 %v3350, %v3724
    %v3726 = vpop.f32.mrb[0].mxu0
    %v3727 = vadd.f32 %v3352, %v3726
    %3728 = vmatprep.mubr.f32.mxu0 0.0
    %v3729 = vand.u32 %v3044, 4294901760
    %3730 = vmatmul.mubr.f32.gmra.mrb[0].mxu0 %v3729
    %v3731 = vpop.f32.mrb[0].mxu0
    %v3732 = vadd.f32 %v3361, %v3731
    %v3733 = vpop.f32.mrb[0].mxu0
    %v3734 = vadd.f32 %v3363, %v3733
    %3735 = vmatprep.mubr.f32.mxu0 0.0
    %v3736 = vand.u32 %v3047, 4294901760
    %3737 = vmatmul.mubr.f32.gmra.mrb[0].mxu0 %v3736
    %v3738 = vpop.f32.mrb[0].mxu0
    %v3739 = vadd.f32 %v3372, %v3738
    %v3740 = vpop.f32.mrb[0].mxu0
    %v3741 = vadd.f32 %v3374, %v3740
    %3742 = vmatprep.mubr.f32.mxu0 0.0
    %v3743 = vand.u32 %v3050, 4294901760
    %3744 = vmatmul.mubr.f32.gmra.mrb[0].mxu0 %v3743
    %v3745 = vpop.f32.mrb[0].mxu0
    %v3746 = vadd.f32 %v3383, %v3745
    %v3747 = vpop.f32.mrb[0].mxu0
    %v3748 = vadd.f32 %v3385, %v3747
    %3749 = vmatprep.mubr.f32.mxu0 0.0
    %v3750 = vand.u32 %v3053, 4294901760
    %3751 = vmatmul.mubr.f32.gmra.mrb[0].mxu0 %v3750
    %v3752 = vpop.f32.mrb[0].mxu0
    %v3753 = vadd.f32 %v3394, %v3752
    %v3754 = vpop.f32.mrb[0].mxu0
    %v3755 = vadd.f32 %v3396, %v3754
    %3756 = vmatprep.mubr.f32.mxu0 0.0
    %v3757 = vand.u32 %v3056, 4294901760
    %3758 = vmatmul.mubr.f32.gmra.mrb[0].mxu0 %v3757
    %v3759 = vpop.f32.mrb[0].mxu0
    %v3760 = vadd.f32 %v3405, %v3759
    %v3761 = vpop.f32.mrb[0].mxu0
    %v3762 = vadd.f32 %v3407, %v3761
    %3763 = vmatprep.mubr.f32.mxu0 0.0
    %v3764 = vand.u32 %v3059, 4294901760
    %3765 = vmatmul.mubr.f32.gmra.mrb[0].mxu0 %v3764
    %v3766 = vpop.f32.mrb[0].mxu0
    %v3767 = vadd.f32 %v3416, %v3766
    %v3768 = vpop.f32.mrb[0].mxu0
    %v3769 = vadd.f32 %v3418, %v3768
    %3770 = vmatprep.mubr.f32.mxu0 0.0
    %v3771 = vand.u32 %v3062, 4294901760
    %3772 = vmatmul.mubr.f32.gmra.mrb[0].mxu0 %v3771
    %v3773 = vpop.f32.mrb[0].mxu0
    %v3774 = vadd.f32 %v3427, %v3773
    %v3775 = vpop.f32.mrb[0].mxu0
    %v3776 = vadd.f32 %v3429, %v3775
    %3777 = vmatprep.mubr.f32.mxu0 0.0
    %v3778 = vand.u32 %v3065, 4294901760
    %3779 = vmatmul.mubr.f32.gmra.mrb[0].mxu0 %v3778
    %v3780 = vpop.f32.mrb[0].mxu0
    %v3781 = vadd.f32 %v3438, %v3780
    %v3782 = vpop.f32.mrb[0].mxu0
    %v3783 = vadd.f32 %v3440, %v3782
    %3784 = vmatprep.mubr.f32.mxu0 0.0
    %v3785 = vand.u32 %v3068, 4294901760
    %3786 = vmatmul.mubr.f32.gmra.mrb[0].mxu0 %v3785
    %v3787 = vpop.f32.mrb[0].mxu0
    %v3788 = vadd.f32 %v3449, %v3787
    %v3789 = vpop.f32.mrb[0].mxu0
    %v3790 = vadd.f32 %v3451, %v3789
    %3791 = vmatprep.mubr.f32.mxu0 0.0
    %v3792 = vand.u32 %v3071, 4294901760
    %3793 = vmatmul.mubr.f32.gmra.mrb[0].mxu0 %v3792
    %v3794 = vpop.f32.mrb[0].mxu0
    %v3795 = vadd.f32 %v3460, %v3794
    %v3796 = vpop.f32.mrb[0].mxu0
    %v3797 = vadd.f32 %v3462, %v3796
    %3798 = vmatprep.mubr.f32.mxu0 0.0
    %v3799 = vand.u32 %v3074, 4294901760
    %3800 = vmatmul.mubr.f32.gmra.mrb[0].mxu0 %v3799
    %v3801 = vpop.f32.mrb[0].mxu0
    %v3802 = vadd.f32 %v3471, %v3801
    %v3803 = vpop.f32.mrb[0].mxu0
    %v3804 = vadd.f32 %v3473, %v3803
    %3805 = vmatprep.mubr.f32.mxu0 0.0
    %v3806 = vand.u32 %v3077, 4294901760
    %3807 = vmatmul.mubr.f32.gmra.mrb[0].mxu0 %v3806
    %v3808 = vpop.f32.mrb[0].mxu0
    %v3809 = vadd.f32 %v3482, %v3808
    %v3810 = vpop.f32.mrb[0].mxu0
    %v3811 = vadd.f32 %v3484, %v3810
    %3812 = vmatprep.mubr.f32.mxu0 0.0
    %v3813 = vand.u32 %v3080, 4294901760
    %3814 = vmatmul.mubr.f32.gmra.mrb[0].mxu0 %v3813
    %v3815 = vpop.f32.mrb[0].mxu0
    %v3816 = vadd.f32 %v3493, %v3815
    %v3817 = vpop.f32.mrb[0].mxu0
    %v3818 = vadd.f32 %v3495, %v3817
    %3819 = vmatprep.mubr.f32.mxu0 0.0
    %v3820 = vand.u32 %v3083, 4294901760
    %3821 = vmatmul.mubr.f32.gmra.mrb[0].mxu0 %v3820
    %v3822 = vpop.f32.mrb[0].mxu0
    %v3823 = vadd.f32 %v3504, %v3822
    %v3824 = vpop.f32.mrb[0].mxu0
    %v3825 = vadd.f32 %v3506, %v3824
    %3826 = vdwg.mxu0
    %v3827 = vand.u32 %v2920, 4294901760
    %v3828 = vsub.f32 %v2920, %v3827
    %3829 = vmatprep.subr.mxu0 %v3828
    %v3830 = vand.u32 %v2919, 4294901760
    %v3831 = vsub.f32 %v2919, %v3830
    %3832 = vmatpush1.msra.mxu0 %v3831
    %v3833 = vand.u32 %v2922, 4294901760
    %v3834 = vsub.f32 %v2922, %v3833
    %3835 = vmatprep.subr.mxu0 %v3834
    %v3836 = vand.u32 %v2921, 4294901760
    %v3837 = vsub.f32 %v2921, %v3836
    %3838 = vmatpush1.msra.mxu0 %v3837
    %v3839 = vand.u32 %v2924, 4294901760
    %v3840 = vsub.f32 %v2924, %v3839
    %3841 = vmatprep.subr.mxu0 %v3840
    %v3842 = vand.u32 %v2923, 4294901760
    %v3843 = vsub.f32 %v2923, %v3842
    %3844 = vmatpush1.msra.mxu0 %v3843
    %3845 = vmatprep.subr.mxu0 0.0
    %3846 = vmatpush1.msra.mxu0 0.0
    %3847 = vmatprep.subr.mxu0 0.0
    %3848 = vmatpush1.msra.mxu0 0.0
    %3849 = vmatprep.subr.mxu0 0.0
    %3850 = vmatpush1.msra.mxu0 0.0
    %3851 = vmatprep.subr.mxu0 0.0
    %3852 = vmatpush1.msra.mxu0 0.0
    %3853 = vmatprep.subr.mxu0 0.0
    %3854 = vmatpush1.msra.mxu0 0.0
    %3855 = vmatprep.subr.mxu0 0.0
    %3856 = vmatpush1.msra.mxu0 0.0
    %3857 = vmatprep.subr.mxu0 0.0
    %3858 = vmatpush1.msra.mxu0 0.0
    %3859 = vmatprep.subr.mxu0 0.0
    %3860 = vmatpush1.msra.mxu0 0.0
    %3861 = vmatprep.subr.mxu0 0.0
    %3862 = vmatpush1.msra.mxu0 0.0
    %3863 = vmatprep.subr.mxu0 0.0
    %3864 = vmatpush1.msra.mxu0 0.0
    %3865 = vmatprep.subr.mxu0 0.0
    %3866 = vmatpush1.msra.mxu0 0.0
    %3867 = vmatprep.subr.mxu0 0.0
    %3868 = vmatpush1.msra.mxu0 0.0
    %3869 = vmatprep.subr.mxu0 0.0
    %3870 = vmatpush1.msra.mxu0 0.0
    %3871 = vmatprep.subr.mxu0 0.0
    %3872 = vmatpush1.msra.mxu0 0.0
    %3873 = vmatprep.subr.mxu0 0.0
    %3874 = vmatpush1.msra.mxu0 0.0
    %3875 = vmatprep.subr.mxu0 0.0
    %3876 = vmatpush1.msra.mxu0 0.0
    %3877 = vmatprep.subr.mxu0 0.0
    %3878 = vmatpush1.msra.mxu0 0.0
    %3879 = vmatprep.subr.mxu0 0.0
    %3880 = vmatpush1.msra.mxu0 0.0
    %3881 = vmatprep.subr.mxu0 0.0
    %3882 = vmatpush1.msra.mxu0 0.0
    %3883 = vmatprep.subr.mxu0 0.0
    %3884 = vmatpush1.msra.mxu0 0.0
    %3885 = vmatprep.subr.mxu0 0.0
    %3886 = vmatpush1.msra.mxu0 0.0
    %3887 = vmatprep.subr.mxu0 0.0
    %3888 = vmatpush1.msra.mxu0 0.0
    %3889 = vmatprep.subr.mxu0 0.0
    %3890 = vmatpush1.msra.mxu0 0.0
    %3891 = vmatprep.subr.mxu0 0.0
    %3892 = vmatpush1.msra.mxu0 0.0
    %3893 = vmatprep.subr.mxu0 0.0
    %3894 = vmatpush1.msra.mxu0 0.0
    %3895 = vmatprep.subr.mxu0 0.0
    %3896 = vmatpush1.msra.mxu0 0.0
    %3897 = vmatprep.subr.mxu0 0.0
    %3898 = vmatpush1.msra.mxu0 0.0
    %3899 = vmatprep.subr.mxu0 0.0
    %3900 = vmatpush1.msra.mxu0 0.0
    %3901 = vmatprep.subr.mxu0 0.0
    %3902 = vmatpush1.msra.mxu0 0.0
    %3903 = vmatprep.mubr.f32.mxu0 0.0
    %v3904 = vand.u32 %v2990, 4294901760
    %v3905 = vsub.f32 %v2990, %v3904
    %3906 = vmatmul.mubr.f32.gmra.mrb[0].mxu0 %v3905
    %v3907 = vpop.f32.mrb[0].mxu0
    %v3908 = vadd.f32 %v3606, %v3907
    %v3909 = vpop.f32.mrb[0].mxu0
    %v3910 = vadd.f32 %v3608, %v3909
    %3911 = vmatprep.mubr.f32.mxu0 0.0
    %v3912 = vand.u32 %v2993, 4294901760
    %v3913 = vsub.f32 %v2993, %v3912
    %3914 = vmatmul.mubr.f32.gmra.mrb[0].mxu0 %v3913
    %v3915 = vpop.f32.mrb[0].mxu0
    %v3916 = vadd.f32 %v3613, %v3915
    %v3917 = vpop.f32.mrb[0].mxu0
    %v3918 = vadd.f32 %v3615, %v3917
    %3919 = vmatprep.mubr.f32.mxu0 0.0
    %v3920 = vand.u32 %v2996, 4294901760
    %v3921 = vsub.f32 %v2996, %v3920
    %3922 = vmatmul.mubr.f32.gmra.mrb[0].mxu0 %v3921
    %v3923 = vpop.f32.mrb[0].mxu0
    %v3924 = vadd.f32 %v3620, %v3923
    %v3925 = vpop.f32.mrb[0].mxu0
    %v3926 = vadd.f32 %v3622, %v3925
    %3927 = vmatprep.mubr.f32.mxu0 0.0
    %v3928 = vand.u32 %v2999, 4294901760
    %v3929 = vsub.f32 %v2999, %v3928
    %3930 = vmatmul.mubr.f32.gmra.mrb[0].mxu0 %v3929
    %v3931 = vpop.f32.mrb[0].mxu0
    %v3932 = vadd.f32 %v3627, %v3931
    %v3933 = vpop.f32.mrb[0].mxu0
    %v3934 = vadd.f32 %v3629, %v3933
    %3935 = vmatprep.mubr.f32.mxu0 0.0
    %v3936 = vand.u32 %v3002, 4294901760
    %v3937 = vsub.f32 %v3002, %v3936
    %3938 = vmatmul.mubr.f32.gmra.mrb[0].mxu0 %v3937
    %v3939 = vpop.f32.mrb[0].mxu0
    %v3940 = vadd.f32 %v3634, %v3939
    %v3941 = vpop.f32.mrb[0].mxu0
    %v3942 = vadd.f32 %v3636, %v3941
    %3943 = vmatprep.mubr.f32.mxu0 0.0
    %v3944 = vand.u32 %v3005, 4294901760
    %v3945 = vsub.f32 %v3005, %v3944
    %3946 = vmatmul.mubr.f32.gmra.mrb[0].mxu0 %v3945
    %v3947 = vpop.f32.mrb[0].mxu0
    %v3948 = vadd.f32 %v3641, %v3947
    %v3949 = vpop.f32.mrb[0].mxu0
    %v3950 = vadd.f32 %v3643, %v3949
    %3951 = vmatprep.mubr.f32.mxu0 0.0
    %v3952 = vand.u32 %v3008, 4294901760
    %v3953 = vsub.f32 %v3008, %v3952
    %3954 = vmatmul.mubr.f32.gmra.mrb[0].mxu0 %v3953
    %v3955 = vpop.f32.mrb[0].mxu0
    %v3956 = vadd.f32 %v3648, %v3955
    %v3957 = vpop.f32.mrb[0].mxu0
    %v3958 = vadd.f32 %v3650, %v3957
    %3959 = vmatprep.mubr.f32.mxu0 0.0
    %v3960 = vand.u32 %v3011, 4294901760
    %v3961 = vsub.f32 %v3011, %v3960
    %3962 = vmatmul.mubr.f32.gmra.mrb[0].mxu0 %v3961
    %v3963 = vpop.f32.mrb[0].mxu0
    %v3964 = vadd.f32 %v3655, %v3963
    %v3965 = vpop.f32.mrb[0].mxu0
    %v3966 = vadd.f32 %v3657, %v3965
    %3967 = vmatprep.mubr.f32.mxu0 0.0
    %v3968 = vand.u32 %v3014, 4294901760
    %v3969 = vsub.f32 %v3014, %v3968
    %3970 = vmatmul.mubr.f32.gmra.mrb[0].mxu0 %v3969
    %v3971 = vpop.f32.mrb[0].mxu0
    %v3972 = vadd.f32 %v3662, %v3971
    %v3973 = vpop.f32.mrb[0].mxu0
    %v3974 = vadd.f32 %v3664, %v3973
    %3975 = vmatprep.mubr.f32.mxu0 0.0
    %v3976 = vand.u32 %v3017, 4294901760
    %v3977 = vsub.f32 %v3017, %v3976
    %3978 = vmatmul.mubr.f32.gmra.mrb[0].mxu0 %v3977
    %v3979 = vpop.f32.mrb[0].mxu0
    %v3980 = vadd.f32 %v3669, %v3979
    %v3981 = vpop.f32.mrb[0].mxu0
    %v3982 = vadd.f32 %v3671, %v3981
    %3983 = vmatprep.mubr.f32.mxu0 0.0
    %v3984 = vand.u32 %v3020, 4294901760
    %v3985 = vsub.f32 %v3020, %v3984
    %3986 = vmatmul.mubr.f32.gmra.mrb[0].mxu0 %v3985
    %v3987 = vpop.f32.mrb[0].mxu0
    %v3988 = vadd.f32 %v3676, %v3987
    %v3989 = vpop.f32.mrb[0].mxu0
    %v3990 = vadd.f32 %v3678, %v3989
    %3991 = vmatprep.mubr.f32.mxu0 0.0
    %v3992 = vand.u32 %v3023, 4294901760
    %v3993 = vsub.f32 %v3023, %v3992
    %3994 = vmatmul.mubr.f32.gmra.mrb[0].mxu0 %v3993
    %v3995 = vpop.f32.mrb[0].mxu0
    %v3996 = vadd.f32 %v3683, %v3995
    %v3997 = vpop.f32.mrb[0].mxu0
    %v3998 = vadd.f32 %v3685, %v3997
    %3999 = vmatprep.mubr.f32.mxu0 0.0
    %v4000 = vand.u32 %v3026, 4294901760
    %v4001 = vsub.f32 %v3026, %v4000
    %4002 = vmatmul.mubr.f32.gmra.mrb[0].mxu0 %v4001
    %v4003 = vpop.f32.mrb[0].mxu0
    %v4004 = vadd.f32 %v3690, %v4003
    %v4005 = vpop.f32.mrb[0].mxu0
    %v4006 = vadd.f32 %v3692, %v4005
    %4007 = vmatprep.mubr.f32.mxu0 0.0
    %v4008 = vand.u32 %v3029, 4294901760
    %v4009 = vsub.f32 %v3029, %v4008
    %4010 = vmatmul.mubr.f32.gmra.mrb[0].mxu0 %v4009
    %v4011 = vpop.f32.mrb[0].mxu0
    %v4012 = vadd.f32 %v3697, %v4011
    %v4013 = vpop.f32.mrb[0].mxu0
    %v4014 = vadd.f32 %v3699, %v4013
    %4015 = vmatprep.mubr.f32.mxu0 0.0
    %v4016 = vand.u32 %v3032, 4294901760
    %v4017 = vsub.f32 %v3032, %v4016
    %4018 = vmatmul.mubr.f32.gmra.mrb[0].mxu0 %v4017
    %v4019 = vpop.f32.mrb[0].mxu0
    %v4020 = vadd.f32 %v3704, %v4019
    %v4021 = vpop.f32.mrb[0].mxu0
    %v4022 = vadd.f32 %v3706, %v4021
    %4023 = vmatprep.mubr.f32.mxu0 0.0
    %v4024 = vand.u32 %v3035, 4294901760
    %v4025 = vsub.f32 %v3035, %v4024
    %4026 = vmatmul.mubr.f32.gmra.mrb[0].mxu0 %v4025
    %v4027 = vpop.f32.mrb[0].mxu0
    %v4028 = vadd.f32 %v3711, %v4027
    %v4029 = vpop.f32.mrb[0].mxu0
    %v4030 = vadd.f32 %v3713, %v4029
    %4031 = vmatprep.mubr.f32.mxu0 0.0
    %v4032 = vand.u32 %v3038, 4294901760
    %v4033 = vsub.f32 %v3038, %v4032
    %4034 = vmatmul.mubr.f32.gmra.mrb[0].mxu0 %v4033
    %v4035 = vpop.f32.mrb[0].mxu0
    %v4036 = vadd.f32 %v3718, %v4035
    %v4037 = vpop.f32.mrb[0].mxu0
    %v4038 = vadd.f32 %v3720, %v4037
    %4039 = vmatprep.mubr.f32.mxu0 0.0
    %v4040 = vand.u32 %v3041, 4294901760
    %v4041 = vsub.f32 %v3041, %v4040
    %4042 = vmatmul.mubr.f32.gmra.mrb[0].mxu0 %v4041
    %v4043 = vpop.f32.mrb[0].mxu0
    %v4044 = vadd.f32 %v3725, %v4043
    %v4045 = vpop.f32.mrb[0].mxu0
    %v4046 = vadd.f32 %v3727, %v4045
    %4047 = vmatprep.mubr.f32.mxu0 0.0
    %v4048 = vand.u32 %v3044, 4294901760
    %v4049 = vsub.f32 %v3044, %v4048
    %4050 = vmatmul.mubr.f32.gmra.mrb[0].mxu0 %v4049
    %v4051 = vpop.f32.mrb[0].mxu0
    %v4052 = vadd.f32 %v3732, %v4051
    %v4053 = vpop.f32.mrb[0].mxu0
    %v4054 = vadd.f32 %v3734, %v4053
    %4055 = vmatprep.mubr.f32.mxu0 0.0
    %v4056 = vand.u32 %v3047, 4294901760
    %v4057 = vsub.f32 %v3047, %v4056
    %4058 = vmatmul.mubr.f32.gmra.mrb[0].mxu0 %v4057
    %v4059 = vpop.f32.mrb[0].mxu0
    %v4060 = vadd.f32 %v3739, %v4059
    %v4061 = vpop.f32.mrb[0].mxu0
    %v4062 = vadd.f32 %v3741, %v4061
    %4063 = vmatprep.mubr.f32.mxu0 0.0
    %v4064 = vand.u32 %v3050, 4294901760
    %v4065 = vsub.f32 %v3050, %v4064
    %4066 = vmatmul.mubr.f32.gmra.mrb[0].mxu0 %v4065
    %v4067 = vpop.f32.mrb[0].mxu0
    %v4068 = vadd.f32 %v3746, %v4067
    %v4069 = vpop.f32.mrb[0].mxu0
    %v4070 = vadd.f32 %v3748, %v4069
    %4071 = vmatprep.mubr.f32.mxu0 0.0
    %v4072 = vand.u32 %v3053, 4294901760
    %v4073 = vsub.f32 %v3053, %v4072
    %4074 = vmatmul.mubr.f32.gmra.mrb[0].mxu0 %v4073
    %v4075 = vpop.f32.mrb[0].mxu0
    %v4076 = vadd.f32 %v3753, %v4075
    %v4077 = vpop.f32.mrb[0].mxu0
    %v4078 = vadd.f32 %v3755, %v4077
    %4079 = vmatprep.mubr.f32.mxu0 0.0
    %v4080 = vand.u32 %v3056, 4294901760
    %v4081 = vsub.f32 %v3056, %v4080
    %4082 = vmatmul.mubr.f32.gmra.mrb[0].mxu0 %v4081
    %v4083 = vpop.f32.mrb[0].mxu0
    %v4084 = vadd.f32 %v3760, %v4083
    %v4085 = vpop.f32.mrb[0].mxu0
    %v4086 = vadd.f32 %v3762, %v4085
    %4087 = vmatprep.mubr.f32.mxu0 0.0
    %v4088 = vand.u32 %v3059, 4294901760
    %v4089 = vsub.f32 %v3059, %v4088
    %4090 = vmatmul.mubr.f32.gmra.mrb[0].mxu0 %v4089
    %v4091 = vpop.f32.mrb[0].mxu0
    %v4092 = vadd.f32 %v3767, %v4091
    %v4093 = vpop.f32.mrb[0].mxu0
    %v4094 = vadd.f32 %v3769, %v4093
    %4095 = vmatprep.mubr.f32.mxu0 0.0
    %v4096 = vand.u32 %v3062, 4294901760
    %v4097 = vsub.f32 %v3062, %v4096
    %4098 = vmatmul.mubr.f32.gmra.mrb[0].mxu0 %v4097
    %v4099 = vpop.f32.mrb[0].mxu0
    %v4100 = vadd.f32 %v3774, %v4099
    %v4101 = vpop.f32.mrb[0].mxu0
    %v4102 = vadd.f32 %v3776, %v4101
    %4103 = vmatprep.mubr.f32.mxu0 0.0
    %v4104 = vand.u32 %v3065, 4294901760
    %v4105 = vsub.f32 %v3065, %v4104
    %4106 = vmatmul.mubr.f32.gmra.mrb[0].mxu0 %v4105
    %v4107 = vpop.f32.mrb[0].mxu0
    %v4108 = vadd.f32 %v3781, %v4107
    %v4109 = vpop.f32.mrb[0].mxu0
    %v4110 = vadd.f32 %v3783, %v4109
    %4111 = vmatprep.mubr.f32.mxu0 0.0
    %v4112 = vand.u32 %v3068, 4294901760
    %v4113 = vsub.f32 %v3068, %v4112
    %4114 = vmatmul.mubr.f32.gmra.mrb[0].mxu0 %v4113
    %v4115 = vpop.f32.mrb[0].mxu0
    %v4116 = vadd.f32 %v3788, %v4115
    %v4117 = vpop.f32.mrb[0].mxu0
    %v4118 = vadd.f32 %v3790, %v4117
    %4119 = vmatprep.mubr.f32.mxu0 0.0
    %v4120 = vand.u32 %v3071, 4294901760
    %v4121 = vsub.f32 %v3071, %v4120
    %4122 = vmatmul.mubr.f32.gmra.mrb[0].mxu0 %v4121
    %v4123 = vpop.f32.mrb[0].mxu0
    %v4124 = vadd.f32 %v3795, %v4123
    %v4125 = vpop.f32.mrb[0].mxu0
    %v4126 = vadd.f32 %v3797, %v4125
    %4127 = vmatprep.mubr.f32.mxu0 0.0
    %v4128 = vand.u32 %v3074, 4294901760
    %v4129 = vsub.f32 %v3074, %v4128
    %4130 = vmatmul.mubr.f32.gmra.mrb[0].mxu0 %v4129
    %v4131 = vpop.f32.mrb[0].mxu0
    %v4132 = vadd.f32 %v3802, %v4131
    %v4133 = vpop.f32.mrb[0].mxu0
    %v4134 = vadd.f32 %v3804, %v4133
    %4135 = vmatprep.mubr.f32.mxu0 0.0
    %v4136 = vand.u32 %v3077, 4294901760
    %v4137 = vsub.f32 %v3077, %v4136
    %4138 = vmatmul.mubr.f32.gmra.mrb[0].mxu0 %v4137
    %v4139 = vpop.f32.mrb[0].mxu0
    %v4140 = vadd.f32 %v3809, %v4139
    %v4141 = vpop.f32.mrb[0].mxu0
    %v4142 = vadd.f32 %v3811, %v4141
    %4143 = vmatprep.mubr.f32.mxu0 0.0
    %v4144 = vand.u32 %v3080, 4294901760
    %v4145 = vsub.f32 %v3080, %v4144
    %4146 = vmatmul.mubr.f32.gmra.mrb[0].mxu0 %v4145
    %v4147 = vpop.f32.mrb[0].mxu0
    %v4148 = vadd.f32 %v3816, %v4147
    %v4149 = vpop.f32.mrb[0].mxu0
    %v4150 = vadd.f32 %v3818, %v4149
    %4151 = vmatprep.mubr.f32.mxu0 0.0
    %v4152 = vand.u32 %v3083, 4294901760
    %v4153 = vsub.f32 %v3083, %v4152
    %4154 = vmatmul.mubr.f32.gmra.mrb[0].mxu0 %v4153
    %v4155 = vpop.f32.mrb[0].mxu0
    %v4156 = vadd.f32 %v3823, %v4155
    %v4157 = vpop.f32.mrb[0].mxu0
    %v4158 = vadd.f32 %v3825, %v4157
    %4159 = vdwg.mxu0
    %v4160 = vand.u32 %v2920, 4294901760
    %4161 = vmatprep.subr.mxu0 %v4160
    %v4162 = vand.u32 %v2919, 4294901760
    %4163 = vmatpush1.msra.mxu0 %v4162
    %v4164 = vand.u32 %v2922, 4294901760
    %4165 = vmatprep.subr.mxu0 %v4164
    %v4166 = vand.u32 %v2921, 4294901760
    %4167 = vmatpush1.msra.mxu0 %v4166
    %v4168 = vand.u32 %v2924, 4294901760
    %4169 = vmatprep.subr.mxu0 %v4168
    %v4170 = vand.u32 %v2923, 4294901760
    %4171 = vmatpush1.msra.mxu0 %v4170
    %4172 = vmatprep.subr.mxu0 0.0
    %4173 = vmatpush1.msra.mxu0 0.0
    %4174 = vmatprep.subr.mxu0 0.0
    %4175 = vmatpush1.msra.mxu0 0.0
    %4176 = vmatprep.subr.mxu0 0.0
    %4177 = vmatpush1.msra.mxu0 0.0
    %4178 = vmatprep.subr.mxu0 0.0
    %4179 = vmatpush1.msra.mxu0 0.0
    %4180 = vmatprep.subr.mxu0 0.0
    %4181 = vmatpush1.msra.mxu0 0.0
    %4182 = vmatprep.subr.mxu0 0.0
    %4183 = vmatpush1.msra.mxu0 0.0
    %4184 = vmatprep.subr.mxu0 0.0
    %4185 = vmatpush1.msra.mxu0 0.0
    %4186 = vmatprep.subr.mxu0 0.0
    %4187 = vmatpush1.msra.mxu0 0.0
    %4188 = vmatprep.subr.mxu0 0.0
    %4189 = vmatpush1.msra.mxu0 0.0
    %4190 = vmatprep.subr.mxu0 0.0
    %4191 = vmatpush1.msra.mxu0 0.0
    %4192 = vmatprep.subr.mxu0 0.0
    %4193 = vmatpush1.msra.mxu0 0.0
    %4194 = vmatprep.subr.mxu0 0.0
    %4195 = vmatpush1.msra.mxu0 0.0
    %4196 = vmatprep.subr.mxu0 0.0
    %4197 = vmatpush1.msra.mxu0 0.0
    %4198 = vmatprep.subr.mxu0 0.0
    %4199 = vmatpush1.msra.mxu0 0.0
    %4200 = vmatprep.subr.mxu0 0.0
    %4201 = vmatpush1.msra.mxu0 0.0
    %4202 = vmatprep.subr.mxu0 0.0
    %4203 = vmatpush1.msra.mxu0 0.0
    %4204 = vmatprep.subr.mxu0 0.0
    %4205 = vmatpush1.msra.mxu0 0.0
    %4206 = vmatprep.subr.mxu0 0.0
    %4207 = vmatpush1.msra.mxu0 0.0
    %4208 = vmatprep.subr.mxu0 0.0
    %4209 = vmatpush1.msra.mxu0 0.0
    %4210 = vmatprep.subr.mxu0 0.0
    %4211 = vmatpush1.msra.mxu0 0.0
    %4212 = vmatprep.subr.mxu0 0.0
    %4213 = vmatpush1.msra.mxu0 0.0
    %4214 = vmatprep.subr.mxu0 0.0
    %4215 = vmatpush1.msra.mxu0 0.0
    %4216 = vmatprep.subr.mxu0 0.0
    %4217 = vmatpush1.msra.mxu0 0.0
    %4218 = vmatprep.subr.mxu0 0.0
    %4219 = vmatpush1.msra.mxu0 0.0
    %4220 = vmatprep.subr.mxu0 0.0
    %4221 = vmatpush1.msra.mxu0 0.0
    %4222 = vmatprep.subr.mxu0 0.0
    %4223 = vmatpush1.msra.mxu0 0.0
    %4224 = vmatprep.subr.mxu0 0.0
    %4225 = vmatpush1.msra.mxu0 0.0
    %4226 = vmatprep.subr.mxu0 0.0
    %4227 = vmatpush1.msra.mxu0 0.0
    %4228 = vmatprep.subr.mxu0 0.0
    %4229 = vmatpush1.msra.mxu0 0.0
    %4230 = vmatprep.mubr.f32.mxu0 0.0
    %v4231 = vand.u32 %v2990, 4294901760
    %v4232 = vsub.f32 %v2990, %v4231
    %v4233 = vand.u32 %v4232, 4294901760
    %4234 = vmatmul.mubr.f32.gmra.mrb[0].mxu0 %v4233
    %v4235 = vpop.f32.mrb[0].mxu0
    %v4236 = vadd.f32 %v3908, %v4235
    %v4237 = vpop.f32.mrb[0].mxu0
    %v4238 = vadd.f32 %v3910, %v4237
    %4239 = vmatprep.mubr.f32.mxu0 0.0
    %v4240 = vand.u32 %v2993, 4294901760
    %v4241 = vsub.f32 %v2993, %v4240
    %v4242 = vand.u32 %v4241, 4294901760
    %4243 = vmatmul.mubr.f32.gmra.mrb[0].mxu0 %v4242
    %v4244 = vpop.f32.mrb[0].mxu0
    %v4245 = vadd.f32 %v3916, %v4244
    %v4246 = vpop.f32.mrb[0].mxu0
    %v4247 = vadd.f32 %v3918, %v4246
    %4248 = vmatprep.mubr.f32.mxu0 0.0
    %v4249 = vand.u32 %v2996, 4294901760
    %v4250 = vsub.f32 %v2996, %v4249
    %v4251 = vand.u32 %v4250, 4294901760
    %4252 = vmatmul.mubr.f32.gmra.mrb[0].mxu0 %v4251
    %v4253 = vpop.f32.mrb[0].mxu0
    %v4254 = vadd.f32 %v3924, %v4253
    %v4255 = vpop.f32.mrb[0].mxu0
    %v4256 = vadd.f32 %v3926, %v4255
    %4257 = vmatprep.mubr.f32.mxu0 0.0
    %v4258 = vand.u32 %v2999, 4294901760
    %v4259 = vsub.f32 %v2999, %v4258
    %v4260 = vand.u32 %v4259, 4294901760
    %4261 = vmatmul.mubr.f32.gmra.mrb[0].mxu0 %v4260
    %v4262 = vpop.f32.mrb[0].mxu0
    %v4263 = vadd.f32 %v3932, %v4262
    %v4264 = vpop.f32.mrb[0].mxu0
    %v4265 = vadd.f32 %v3934, %v4264
    %4266 = vmatprep.mubr.f32.mxu0 0.0
    %v4267 = vand.u32 %v3002, 4294901760
    %v4268 = vsub.f32 %v3002, %v4267
    %v4269 = vand.u32 %v4268, 4294901760
    %4270 = vmatmul.mubr.f32.gmra.mrb[0].mxu0 %v4269
    %v4271 = vpop.f32.mrb[0].mxu0
    %v4272 = vadd.f32 %v3940, %v4271
    %v4273 = vpop.f32.mrb[0].mxu0
    %v4274 = vadd.f32 %v3942, %v4273
    %4275 = vmatprep.mubr.f32.mxu0 0.0
    %v4276 = vand.u32 %v3005, 4294901760
    %v4277 = vsub.f32 %v3005, %v4276
    %v4278 = vand.u32 %v4277, 4294901760
    %4279 = vmatmul.mubr.f32.gmra.mrb[0].mxu0 %v4278
    %v4280 = vpop.f32.mrb[0].mxu0
    %v4281 = vadd.f32 %v3948, %v4280
    %v4282 = vpop.f32.mrb[0].mxu0
    %v4283 = vadd.f32 %v3950, %v4282
    %4284 = vmatprep.mubr.f32.mxu0 0.0
    %v4285 = vand.u32 %v3008, 4294901760
    %v4286 = vsub.f32 %v3008, %v4285
    %v4287 = vand.u32 %v4286, 4294901760
    %4288 = vmatmul.mubr.f32.gmra.mrb[0].mxu0 %v4287
    %v4289 = vpop.f32.mrb[0].mxu0
    %v4290 = vadd.f32 %v3956, %v4289
    %v4291 = vpop.f32.mrb[0].mxu0
    %v4292 = vadd.f32 %v3958, %v4291
    %4293 = vmatprep.mubr.f32.mxu0 0.0
    %v4294 = vand.u32 %v3011, 4294901760
    %v4295 = vsub.f32 %v3011, %v4294
    %v4296 = vand.u32 %v4295, 4294901760
    %4297 = vmatmul.mubr.f32.gmra.mrb[0].mxu0 %v4296
    %v4298 = vpop.f32.mrb[0].mxu0
    %v4299 = vadd.f32 %v3964, %v4298
    %v4300 = vpop.f32.mrb[0].mxu0
    %v4301 = vadd.f32 %v3966, %v4300
    %4302 = vmatprep.mubr.f32.mxu0 0.0
    %v4303 = vand.u32 %v3014, 4294901760
    %v4304 = vsub.f32 %v3014, %v4303
    %v4305 = vand.u32 %v4304, 4294901760
    %4306 = vmatmul.mubr.f32.gmra.mrb[0].mxu0 %v4305
    %v4307 = vpop.f32.mrb[0].mxu0
    %v4308 = vadd.f32 %v3972, %v4307
    %v4309 = vpop.f32.mrb[0].mxu0
    %v4310 = vadd.f32 %v3974, %v4309
    %4311 = vmatprep.mubr.f32.mxu0 0.0
    %v4312 = vand.u32 %v3017, 4294901760
    %v4313 = vsub.f32 %v3017, %v4312
    %v4314 = vand.u32 %v4313, 4294901760
    %4315 = vmatmul.mubr.f32.gmra.mrb[0].mxu0 %v4314
    %v4316 = vpop.f32.mrb[0].mxu0
    %v4317 = vadd.f32 %v3980, %v4316
    %v4318 = vpop.f32.mrb[0].mxu0
    %v4319 = vadd.f32 %v3982, %v4318
    %4320 = vmatprep.mubr.f32.mxu0 0.0
    %v4321 = vand.u32 %v3020, 4294901760
    %v4322 = vsub.f32 %v3020, %v4321
    %v4323 = vand.u32 %v4322, 4294901760
    %4324 = vmatmul.mubr.f32.gmra.mrb[0].mxu0 %v4323
    %v4325 = vpop.f32.mrb[0].mxu0
    %v4326 = vadd.f32 %v3988, %v4325
    %v4327 = vpop.f32.mrb[0].mxu0
    %v4328 = vadd.f32 %v3990, %v4327
    %4329 = vmatprep.mubr.f32.mxu0 0.0
    %v4330 = vand.u32 %v3023, 4294901760
    %v4331 = vsub.f32 %v3023, %v4330
    %v4332 = vand.u32 %v4331, 4294901760
    %4333 = vmatmul.mubr.f32.gmra.mrb[0].mxu0 %v4332
    %v4334 = vpop.f32.mrb[0].mxu0
    %v4335 = vadd.f32 %v3996, %v4334
    %v4336 = vpop.f32.mrb[0].mxu0
    %v4337 = vadd.f32 %v3998, %v4336
    %4338 = vmatprep.mubr.f32.mxu0 0.0
    %v4339 = vand.u32 %v3026, 4294901760
    %v4340 = vsub.f32 %v3026, %v4339
    %v4341 = vand.u32 %v4340, 4294901760
    %4342 = vmatmul.mubr.f32.gmra.mrb[0].mxu0 %v4341
    %v4343 = vpop.f32.mrb[0].mxu0
    %v4344 = vadd.f32 %v4004, %v4343
    %v4345 = vpop.f32.mrb[0].mxu0
    %v4346 = vadd.f32 %v4006, %v4345
    %4347 = vmatprep.mubr.f32.mxu0 0.0
    %v4348 = vand.u32 %v3029, 4294901760
    %v4349 = vsub.f32 %v3029, %v4348
    %v4350 = vand.u32 %v4349, 4294901760
    %4351 = vmatmul.mubr.f32.gmra.mrb[0].mxu0 %v4350
    %v4352 = vpop.f32.mrb[0].mxu0
    %v4353 = vadd.f32 %v4012, %v4352
    %v4354 = vpop.f32.mrb[0].mxu0
    %v4355 = vadd.f32 %v4014, %v4354
    %4356 = vmatprep.mubr.f32.mxu0 0.0
    %v4357 = vand.u32 %v3032, 4294901760
    %v4358 = vsub.f32 %v3032, %v4357
    %v4359 = vand.u32 %v4358, 4294901760
    %4360 = vmatmul.mubr.f32.gmra.mrb[0].mxu0 %v4359
    %v4361 = vpop.f32.mrb[0].mxu0
    %v4362 = vadd.f32 %v4020, %v4361
    %v4363 = vpop.f32.mrb[0].mxu0
    %v4364 = vadd.f32 %v4022, %v4363
    %4365 = vmatprep.mubr.f32.mxu0 0.0
    %v4366 = vand.u32 %v3035, 4294901760
    %v4367 = vsub.f32 %v3035, %v4366
    %v4368 = vand.u32 %v4367, 4294901760
    %4369 = vmatmul.mubr.f32.gmra.mrb[0].mxu0 %v4368
    %v4370 = vpop.f32.mrb[0].mxu0
    %v4371 = vadd.f32 %v4028, %v4370
    %v4372 = vpop.f32.mrb[0].mxu0
    %v4373 = vadd.f32 %v4030, %v4372
    %4374 = vmatprep.mubr.f32.mxu0 0.0
    %v4375 = vand.u32 %v3038, 4294901760
    %v4376 = vsub.f32 %v3038, %v4375
    %v4377 = vand.u32 %v4376, 4294901760
    %4378 = vmatmul.mubr.f32.gmra.mrb[0].mxu0 %v4377
    %v4379 = vpop.f32.mrb[0].mxu0
    %v4380 = vadd.f32 %v4036, %v4379
    %v4381 = vpop.f32.mrb[0].mxu0
    %v4382 = vadd.f32 %v4038, %v4381
    %4383 = vmatprep.mubr.f32.mxu0 0.0
    %v4384 = vand.u32 %v3041, 4294901760
    %v4385 = vsub.f32 %v3041, %v4384
    %v4386 = vand.u32 %v4385, 4294901760
    %4387 = vmatmul.mubr.f32.gmra.mrb[0].mxu0 %v4386
    %v4388 = vpop.f32.mrb[0].mxu0
    %v4389 = vadd.f32 %v4044, %v4388
    %v4390 = vpop.f32.mrb[0].mxu0
    %v4391 = vadd.f32 %v4046, %v4390
    %4392 = vmatprep.mubr.f32.mxu0 0.0
    %v4393 = vand.u32 %v3044, 4294901760
    %v4394 = vsub.f32 %v3044, %v4393
    %v4395 = vand.u32 %v4394, 4294901760
    %4396 = vmatmul.mubr.f32.gmra.mrb[0].mxu0 %v4395
    %v4397 = vpop.f32.mrb[0].mxu0
    %v4398 = vadd.f32 %v4052, %v4397
    %v4399 = vpop.f32.mrb[0].mxu0
    %v4400 = vadd.f32 %v4054, %v4399
    %4401 = vmatprep.mubr.f32.mxu0 0.0
    %v4402 = vand.u32 %v3047, 4294901760
    %v4403 = vsub.f32 %v3047, %v4402
    %v4404 = vand.u32 %v4403, 4294901760
    %4405 = vmatmul.mubr.f32.gmra.mrb[0].mxu0 %v4404
    %v4406 = vpop.f32.mrb[0].mxu0
    %v4407 = vadd.f32 %v4060, %v4406
    %v4408 = vpop.f32.mrb[0].mxu0
    %v4409 = vadd.f32 %v4062, %v4408
    %4410 = vmatprep.mubr.f32.mxu0 0.0
    %v4411 = vand.u32 %v3050, 4294901760
    %v4412 = vsub.f32 %v3050, %v4411
    %v4413 = vand.u32 %v4412, 4294901760
    %4414 = vmatmul.mubr.f32.gmra.mrb[0].mxu0 %v4413
    %v4415 = vpop.f32.mrb[0].mxu0
    %v4416 = vadd.f32 %v4068, %v4415
    %v4417 = vpop.f32.mrb[0].mxu0
    %v4418 = vadd.f32 %v4070, %v4417
    %4419 = vmatprep.mubr.f32.mxu0 0.0
    %v4420 = vand.u32 %v3053, 4294901760
    %v4421 = vsub.f32 %v3053, %v4420
    %v4422 = vand.u32 %v4421, 4294901760
    %4423 = vmatmul.mubr.f32.gmra.mrb[0].mxu0 %v4422
    %v4424 = vpop.f32.mrb[0].mxu0
    %v4425 = vadd.f32 %v4076, %v4424
    %v4426 = vpop.f32.mrb[0].mxu0
    %v4427 = vadd.f32 %v4078, %v4426
    %4428 = vmatprep.mubr.f32.mxu0 0.0
    %v4429 = vand.u32 %v3056, 4294901760
    %v4430 = vsub.f32 %v3056, %v4429
    %v4431 = vand.u32 %v4430, 4294901760
    %4432 = vmatmul.mubr.f32.gmra.mrb[0].mxu0 %v4431
    %v4433 = vpop.f32.mrb[0].mxu0
    %v4434 = vadd.f32 %v4084, %v4433
    %v4435 = vpop.f32.mrb[0].mxu0
    %v4436 = vadd.f32 %v4086, %v4435
    %4437 = vmatprep.mubr.f32.mxu0 0.0
    %v4438 = vand.u32 %v3059, 4294901760
    %v4439 = vsub.f32 %v3059, %v4438
    %v4440 = vand.u32 %v4439, 4294901760
    %4441 = vmatmul.mubr.f32.gmra.mrb[0].mxu0 %v4440
    %v4442 = vpop.f32.mrb[0].mxu0
    %v4443 = vadd.f32 %v4092, %v4442
    %v4444 = vpop.f32.mrb[0].mxu0
    %v4445 = vadd.f32 %v4094, %v4444
    %4446 = vmatprep.mubr.f32.mxu0 0.0
    %v4447 = vand.u32 %v3062, 4294901760
    %v4448 = vsub.f32 %v3062, %v4447
    %v4449 = vand.u32 %v4448, 4294901760
    %4450 = vmatmul.mubr.f32.gmra.mrb[0].mxu0 %v4449
    %v4451 = vpop.f32.mrb[0].mxu0
    %v4452 = vadd.f32 %v4100, %v4451
    %v4453 = vpop.f32.mrb[0].mxu0
    %v4454 = vadd.f32 %v4102, %v4453
    %4455 = vmatprep.mubr.f32.mxu0 0.0
    %v4456 = vand.u32 %v3065, 4294901760
    %v4457 = vsub.f32 %v3065, %v4456
    %v4458 = vand.u32 %v4457, 4294901760
    %4459 = vmatmul.mubr.f32.gmra.mrb[0].mxu0 %v4458
    %v4460 = vpop.f32.mrb[0].mxu0
    %v4461 = vadd.f32 %v4108, %v4460
    %v4462 = vpop.f32.mrb[0].mxu0
    %v4463 = vadd.f32 %v4110, %v4462
    %4464 = vmatprep.mubr.f32.mxu0 0.0
    %v4465 = vand.u32 %v3068, 4294901760
    %v4466 = vsub.f32 %v3068, %v4465
    %v4467 = vand.u32 %v4466, 4294901760
    %4468 = vmatmul.mubr.f32.gmra.mrb[0].mxu0 %v4467
    %v4469 = vpop.f32.mrb[0].mxu0
    %v4470 = vadd.f32 %v4116, %v4469
    %v4471 = vpop.f32.mrb[0].mxu0
    %v4472 = vadd.f32 %v4118, %v4471
    %4473 = vmatprep.mubr.f32.mxu0 0.0
    %v4474 = vand.u32 %v3071, 4294901760
    %v4475 = vsub.f32 %v3071, %v4474
    %v4476 = vand.u32 %v4475, 4294901760
    %4477 = vmatmul.mubr.f32.gmra.mrb[0].mxu0 %v4476
    %v4478 = vpop.f32.mrb[0].mxu0
    %v4479 = vadd.f32 %v4124, %v4478
    %v4480 = vpop.f32.mrb[0].mxu0
    %v4481 = vadd.f32 %v4126, %v4480
    %4482 = vmatprep.mubr.f32.mxu0 0.0
    %v4483 = vand.u32 %v3074, 4294901760
    %v4484 = vsub.f32 %v3074, %v4483
    %v4485 = vand.u32 %v4484, 4294901760
    %4486 = vmatmul.mubr.f32.gmra.mrb[0].mxu0 %v4485
    %v4487 = vpop.f32.mrb[0].mxu0
    %v4488 = vadd.f32 %v4132, %v4487
    %v4489 = vpop.f32.mrb[0].mxu0
    %v4490 = vadd.f32 %v4134, %v4489
    %4491 = vmatprep.mubr.f32.mxu0 0.0
    %v4492 = vand.u32 %v3077, 4294901760
    %v4493 = vsub.f32 %v3077, %v4492
    %v4494 = vand.u32 %v4493, 4294901760
    %4495 = vmatmul.mubr.f32.gmra.mrb[0].mxu0 %v4494
    %v4496 = vpop.f32.mrb[0].mxu0
    %v4497 = vadd.f32 %v4140, %v4496
    %v4498 = vpop.f32.mrb[0].mxu0
    %v4499 = vadd.f32 %v4142, %v4498
    %4500 = vmatprep.mubr.f32.mxu0 0.0
    %v4501 = vand.u32 %v3080, 4294901760
    %v4502 = vsub.f32 %v3080, %v4501
    %v4503 = vand.u32 %v4502, 4294901760
    %4504 = vmatmul.mubr.f32.gmra.mrb[0].mxu0 %v4503
    %v4505 = vpop.f32.mrb[0].mxu0
    %v4506 = vadd.f32 %v4148, %v4505
    %v4507 = vpop.f32.mrb[0].mxu0
    %v4508 = vadd.f32 %v4150, %v4507
    %4509 = vmatprep.mubr.f32.mxu0 0.0
    %v4510 = vand.u32 %v3083, 4294901760
    %v4511 = vsub.f32 %v3083, %v4510
    %v4512 = vand.u32 %v4511, 4294901760
    %4513 = vmatmul.mubr.f32.gmra.mrb[0].mxu0 %v4512
    %v4514 = vpop.f32.mrb[0].mxu0
    %v4515 = vadd.f32 %v4156, %v4514
    %v4516 = vpop.f32.mrb[0].mxu0
    %v4517 = vadd.f32 %v4158, %v4516
    %4518 = vdwg.mxu0
    %v4519 = vand.u32 %v2920, 4294901760
    %v4520 = vsub.f32 %v2920, %v4519
    %v4521 = vand.u32 %v4520, 4294901760
    %4522 = vmatprep.subr.mxu0 %v4521
    %v4523 = vand.u32 %v2919, 4294901760
    %v4524 = vsub.f32 %v2919, %v4523
    %v4525 = vand.u32 %v4524, 4294901760
    %4526 = vmatpush1.msra.mxu0 %v4525
    %v4527 = vand.u32 %v2922, 4294901760
    %v4528 = vsub.f32 %v2922, %v4527
    %v4529 = vand.u32 %v4528, 4294901760
    %4530 = vmatprep.subr.mxu0 %v4529
    %v4531 = vand.u32 %v2921, 4294901760
    %v4532 = vsub.f32 %v2921, %v4531
    %v4533 = vand.u32 %v4532, 4294901760
    %4534 = vmatpush1.msra.mxu0 %v4533
    %v4535 = vand.u32 %v2924, 4294901760
    %v4536 = vsub.f32 %v2924, %v4535
    %v4537 = vand.u32 %v4536, 4294901760
    %4538 = vmatprep.subr.mxu0 %v4537
    %v4539 = vand.u32 %v2923, 4294901760
    %v4540 = vsub.f32 %v2923, %v4539
    %v4541 = vand.u32 %v4540, 4294901760
    %4542 = vmatpush1.msra.mxu0 %v4541
    %4543 = vmatprep.subr.mxu0 0.0
    %4544 = vmatpush1.msra.mxu0 0.0
    %4545 = vmatprep.subr.mxu0 0.0
    %4546 = vmatpush1.msra.mxu0 0.0
    %4547 = vmatprep.subr.mxu0 0.0
    %4548 = vmatpush1.msra.mxu0 0.0
    %4549 = vmatprep.subr.mxu0 0.0
    %4550 = vmatpush1.msra.mxu0 0.0
    %4551 = vmatprep.subr.mxu0 0.0
    %4552 = vmatpush1.msra.mxu0 0.0
    %4553 = vmatprep.subr.mxu0 0.0
    %4554 = vmatpush1.msra.mxu0 0.0
    %4555 = vmatprep.subr.mxu0 0.0
    %4556 = vmatpush1.msra.mxu0 0.0
    %4557 = vmatprep.subr.mxu0 0.0
    %4558 = vmatpush1.msra.mxu0 0.0
    %4559 = vmatprep.subr.mxu0 0.0
    %4560 = vmatpush1.msra.mxu0 0.0
    %4561 = vmatprep.subr.mxu0 0.0
    %4562 = vmatpush1.msra.mxu0 0.0
    %4563 = vmatprep.subr.mxu0 0.0
    %4564 = vmatpush1.msra.mxu0 0.0
    %4565 = vmatprep.subr.mxu0 0.0
    %4566 = vmatpush1.msra.mxu0 0.0
    %4567 = vmatprep.subr.mxu0 0.0
    %4568 = vmatpush1.msra.mxu0 0.0
    %4569 = vmatprep.subr.mxu0 0.0
    %4570 = vmatpush1.msra.mxu0 0.0
    %4571 = vmatprep.subr.mxu0 0.0
    %4572 = vmatpush1.msra.mxu0 0.0
    %4573 = vmatprep.subr.mxu0 0.0
    %4574 = vmatpush1.msra.mxu0 0.0
    %4575 = vmatprep.subr.mxu0 0.0
    %4576 = vmatpush1.msra.mxu0 0.0
    %4577 = vmatprep.subr.mxu0 0.0
    %4578 = vmatpush1.msra.mxu0 0.0
    %4579 = vmatprep.subr.mxu0 0.0
    %4580 = vmatpush1.msra.mxu0 0.0
    %4581 = vmatprep.subr.mxu0 0.0
    %4582 = vmatpush1.msra.mxu0 0.0
    %4583 = vmatprep.subr.mxu0 0.0
    %4584 = vmatpush1.msra.mxu0 0.0
    %4585 = vmatprep.subr.mxu0 0.0
    %4586 = vmatpush1.msra.mxu0 0.0
    %4587 = vmatprep.subr.mxu0 0.0
    %4588 = vmatpush1.msra.mxu0 0.0
    %4589 = vmatprep.subr.mxu0 0.0
    %4590 = vmatpush1.msra.mxu0 0.0
    %4591 = vmatprep.subr.mxu0 0.0
    %4592 = vmatpush1.msra.mxu0 0.0
    %4593 = vmatprep.subr.mxu0 0.0
    %4594 = vmatpush1.msra.mxu0 0.0
    %4595 = vmatprep.subr.mxu0 0.0
    %4596 = vmatpush1.msra.mxu0 0.0
    %4597 = vmatprep.subr.mxu0 0.0
    %4598 = vmatpush1.msra.mxu0 0.0
    %4599 = vmatprep.subr.mxu0 0.0
    %4600 = vmatpush1.msra.mxu0 0.0
    %4601 = vmatprep.mubr.f32.mxu0 0.0
    %v4602 = vand.u32 %v2990, 4294901760
    %4603 = vmatmul.mubr.f32.gmra.mrb[0].mxu0 %v4602
    %v4604 = vpop.f32.mrb[0].mxu0
    %v4605 = vadd.f32 %v4236, %v4604
    %v4606 = vpop.f32.mrb[0].mxu0
    %v4607 = vadd.f32 %v4238, %v4606
    %4608 = vmatprep.mubr.f32.mxu0 0.0
    %v4609 = vand.u32 %v2993, 4294901760
    %4610 = vmatmul.mubr.f32.gmra.mrb[0].mxu0 %v4609
    %v4611 = vpop.f32.mrb[0].mxu0
    %v4612 = vadd.f32 %v4245, %v4611
    %v4613 = vpop.f32.mrb[0].mxu0
    %v4614 = vadd.f32 %v4247, %v4613
    %4615 = vmatprep.mubr.f32.mxu0 0.0
    %v4616 = vand.u32 %v2996, 4294901760
    %4617 = vmatmul.mubr.f32.gmra.mrb[0].mxu0 %v4616
    %v4618 = vpop.f32.mrb[0].mxu0
    %v4619 = vadd.f32 %v4254, %v4618
    %v4620 = vpop.f32.mrb[0].mxu0
    %v4621 = vadd.f32 %v4256, %v4620
    %4622 = vmatprep.mubr.f32.mxu0 0.0
    %v4623 = vand.u32 %v2999, 4294901760
    %4624 = vmatmul.mubr.f32.gmra.mrb[0].mxu0 %v4623
    %v4625 = vpop.f32.mrb[0].mxu0
    %v4626 = vadd.f32 %v4263, %v4625
    %v4627 = vpop.f32.mrb[0].mxu0
    %v4628 = vadd.f32 %v4265, %v4627
    %4629 = vmatprep.mubr.f32.mxu0 0.0
    %v4630 = vand.u32 %v3002, 4294901760
    %4631 = vmatmul.mubr.f32.gmra.mrb[0].mxu0 %v4630
    %v4632 = vpop.f32.mrb[0].mxu0
    %v4633 = vadd.f32 %v4272, %v4632
    %v4634 = vpop.f32.mrb[0].mxu0
    %v4635 = vadd.f32 %v4274, %v4634
    %4636 = vmatprep.mubr.f32.mxu0 0.0
    %v4637 = vand.u32 %v3005, 4294901760
    %4638 = vmatmul.mubr.f32.gmra.mrb[0].mxu0 %v4637
    %v4639 = vpop.f32.mrb[0].mxu0
    %v4640 = vadd.f32 %v4281, %v4639
    %v4641 = vpop.f32.mrb[0].mxu0
    %v4642 = vadd.f32 %v4283, %v4641
    %4643 = vmatprep.mubr.f32.mxu0 0.0
    %v4644 = vand.u32 %v3008, 4294901760
    %4645 = vmatmul.mubr.f32.gmra.mrb[0].mxu0 %v4644
    %v4646 = vpop.f32.mrb[0].mxu0
    %v4647 = vadd.f32 %v4290, %v4646
    %v4648 = vpop.f32.mrb[0].mxu0
    %v4649 = vadd.f32 %v4292, %v4648
    %4650 = vmatprep.mubr.f32.mxu0 0.0
    %v4651 = vand.u32 %v3011, 4294901760
    %4652 = vmatmul.mubr.f32.gmra.mrb[0].mxu0 %v4651
    %v4653 = vpop.f32.mrb[0].mxu0
    %v4654 = vadd.f32 %v4299, %v4653
    %v4655 = vpop.f32.mrb[0].mxu0
    %v4656 = vadd.f32 %v4301, %v4655
    %4657 = vmatprep.mubr.f32.mxu0 0.0
    %v4658 = vand.u32 %v3014, 4294901760
    %4659 = vmatmul.mubr.f32.gmra.mrb[0].mxu0 %v4658
    %v4660 = vpop.f32.mrb[0].mxu0
    %v4661 = vadd.f32 %v4308, %v4660
    %v4662 = vpop.f32.mrb[0].mxu0
    %v4663 = vadd.f32 %v4310, %v4662
    %4664 = vmatprep.mubr.f32.mxu0 0.0
    %v4665 = vand.u32 %v3017, 4294901760
    %4666 = vmatmul.mubr.f32.gmra.mrb[0].mxu0 %v4665
    %v4667 = vpop.f32.mrb[0].mxu0
    %v4668 = vadd.f32 %v4317, %v4667
    %v4669 = vpop.f32.mrb[0].mxu0
    %v4670 = vadd.f32 %v4319, %v4669
    %4671 = vmatprep.mubr.f32.mxu0 0.0
    %v4672 = vand.u32 %v3020, 4294901760
    %4673 = vmatmul.mubr.f32.gmra.mrb[0].mxu0 %v4672
    %v4674 = vpop.f32.mrb[0].mxu0
    %v4675 = vadd.f32 %v4326, %v4674
    %v4676 = vpop.f32.mrb[0].mxu0
    %v4677 = vadd.f32 %v4328, %v4676
    %4678 = vmatprep.mubr.f32.mxu0 0.0
    %v4679 = vand.u32 %v3023, 4294901760
    %4680 = vmatmul.mubr.f32.gmra.mrb[0].mxu0 %v4679
    %v4681 = vpop.f32.mrb[0].mxu0
    %v4682 = vadd.f32 %v4335, %v4681
    %v4683 = vpop.f32.mrb[0].mxu0
    %v4684 = vadd.f32 %v4337, %v4683
    %4685 = vmatprep.mubr.f32.mxu0 0.0
    %v4686 = vand.u32 %v3026, 4294901760
    %4687 = vmatmul.mubr.f32.gmra.mrb[0].mxu0 %v4686
    %v4688 = vpop.f32.mrb[0].mxu0
    %v4689 = vadd.f32 %v4344, %v4688
    %v4690 = vpop.f32.mrb[0].mxu0
    %v4691 = vadd.f32 %v4346, %v4690
    %4692 = vmatprep.mubr.f32.mxu0 0.0
    %v4693 = vand.u32 %v3029, 4294901760
    %4694 = vmatmul.mubr.f32.gmra.mrb[0].mxu0 %v4693
    %v4695 = vpop.f32.mrb[0].mxu0
    %v4696 = vadd.f32 %v4353, %v4695
    %v4697 = vpop.f32.mrb[0].mxu0
    %v4698 = vadd.f32 %v4355, %v4697
    %4699 = vmatprep.mubr.f32.mxu0 0.0
    %v4700 = vand.u32 %v3032, 4294901760
    %4701 = vmatmul.mubr.f32.gmra.mrb[0].mxu0 %v4700
    %v4702 = vpop.f32.mrb[0].mxu0
    %v4703 = vadd.f32 %v4362, %v4702
    %v4704 = vpop.f32.mrb[0].mxu0
    %v4705 = vadd.f32 %v4364, %v4704
    %4706 = vmatprep.mubr.f32.mxu0 0.0
    %v4707 = vand.u32 %v3035, 4294901760
    %4708 = vmatmul.mubr.f32.gmra.mrb[0].mxu0 %v4707
    %v4709 = vpop.f32.mrb[0].mxu0
    %v4710 = vadd.f32 %v4371, %v4709
    %v4711 = vpop.f32.mrb[0].mxu0
    %v4712 = vadd.f32 %v4373, %v4711
    %4713 = vmatprep.mubr.f32.mxu0 0.0
    %v4714 = vand.u32 %v3038, 4294901760
    %4715 = vmatmul.mubr.f32.gmra.mrb[0].mxu0 %v4714
    %v4716 = vpop.f32.mrb[0].mxu0
    %v4717 = vadd.f32 %v4380, %v4716
    %v4718 = vpop.f32.mrb[0].mxu0
    %v4719 = vadd.f32 %v4382, %v4718
    %4720 = vmatprep.mubr.f32.mxu0 0.0
    %v4721 = vand.u32 %v3041, 4294901760
    %4722 = vmatmul.mubr.f32.gmra.mrb[0].mxu0 %v4721
    %v4723 = vpop.f32.mrb[0].mxu0
    %v4724 = vadd.f32 %v4389, %v4723
    %v4725 = vpop.f32.mrb[0].mxu0
    %v4726 = vadd.f32 %v4391, %v4725
    %4727 = vmatprep.mubr.f32.mxu0 0.0
    %v4728 = vand.u32 %v3044, 4294901760
    %4729 = vmatmul.mubr.f32.gmra.mrb[0].mxu0 %v4728
    %v4730 = vpop.f32.mrb[0].mxu0
    %v4731 = vadd.f32 %v4398, %v4730
    %v4732 = vpop.f32.mrb[0].mxu0
    %v4733 = vadd.f32 %v4400, %v4732
    %4734 = vmatprep.mubr.f32.mxu0 0.0
    %v4735 = vand.u32 %v3047, 4294901760
    %4736 = vmatmul.mubr.f32.gmra.mrb[0].mxu0 %v4735
    %v4737 = vpop.f32.mrb[0].mxu0
    %v4738 = vadd.f32 %v4407, %v4737
    %v4739 = vpop.f32.mrb[0].mxu0
    %v4740 = vadd.f32 %v4409, %v4739
    %4741 = vmatprep.mubr.f32.mxu0 0.0
    %v4742 = vand.u32 %v3050, 4294901760
    %4743 = vmatmul.mubr.f32.gmra.mrb[0].mxu0 %v4742
    %v4744 = vpop.f32.mrb[0].mxu0
    %v4745 = vadd.f32 %v4416, %v4744
    %v4746 = vpop.f32.mrb[0].mxu0
    %v4747 = vadd.f32 %v4418, %v4746
    %4748 = vmatprep.mubr.f32.mxu0 0.0
    %v4749 = vand.u32 %v3053, 4294901760
    %4750 = vmatmul.mubr.f32.gmra.mrb[0].mxu0 %v4749
    %v4751 = vpop.f32.mrb[0].mxu0
    %v4752 = vadd.f32 %v4425, %v4751
    %v4753 = vpop.f32.mrb[0].mxu0
    %v4754 = vadd.f32 %v4427, %v4753
    %4755 = vmatprep.mubr.f32.mxu0 0.0
    %v4756 = vand.u32 %v3056, 4294901760
    %4757 = vmatmul.mubr.f32.gmra.mrb[0].mxu0 %v4756
    %v4758 = vpop.f32.mrb[0].mxu0
    %v4759 = vadd.f32 %v4434, %v4758
    %v4760 = vpop.f32.mrb[0].mxu0
    %v4761 = vadd.f32 %v4436, %v4760
    %4762 = vmatprep.mubr.f32.mxu0 0.0
    %v4763 = vand.u32 %v3059, 4294901760
    %4764 = vmatmul.mubr.f32.gmra.mrb[0].mxu0 %v4763
    %v4765 = vpop.f32.mrb[0].mxu0
    %v4766 = vadd.f32 %v4443, %v4765
    %v4767 = vpop.f32.mrb[0].mxu0
    %v4768 = vadd.f32 %v4445, %v4767
    %4769 = vmatprep.mubr.f32.mxu0 0.0
    %v4770 = vand.u32 %v3062, 4294901760
    %4771 = vmatmul.mubr.f32.gmra.mrb[0].mxu0 %v4770
    %v4772 = vpop.f32.mrb[0].mxu0
    %v4773 = vadd.f32 %v4452, %v4772
    %v4774 = vpop.f32.mrb[0].mxu0
    %v4775 = vadd.f32 %v4454, %v4774
    %4776 = vmatprep.mubr.f32.mxu0 0.0
    %v4777 = vand.u32 %v3065, 4294901760
    %4778 = vmatmul.mubr.f32.gmra.mrb[0].mxu0 %v4777
    %v4779 = vpop.f32.mrb[0].mxu0
    %v4780 = vadd.f32 %v4461, %v4779
    %v4781 = vpop.f32.mrb[0].mxu0
    %v4782 = vadd.f32 %v4463, %v4781
    %4783 = vmatprep.mubr.f32.mxu0 0.0
    %v4784 = vand.u32 %v3068, 4294901760
    %4785 = vmatmul.mubr.f32.gmra.mrb[0].mxu0 %v4784
    %v4786 = vpop.f32.mrb[0].mxu0
    %v4787 = vadd.f32 %v4470, %v4786
    %v4788 = vpop.f32.mrb[0].mxu0
    %v4789 = vadd.f32 %v4472, %v4788
    %4790 = vmatprep.mubr.f32.mxu0 0.0
    %v4791 = vand.u32 %v3071, 4294901760
    %4792 = vmatmul.mubr.f32.gmra.mrb[0].mxu0 %v4791
    %v4793 = vpop.f32.mrb[0].mxu0
    %v4794 = vadd.f32 %v4479, %v4793
    %v4795 = vpop.f32.mrb[0].mxu0
    %v4796 = vadd.f32 %v4481, %v4795
    %4797 = vmatprep.mubr.f32.mxu0 0.0
    %v4798 = vand.u32 %v3074, 4294901760
    %4799 = vmatmul.mubr.f32.gmra.mrb[0].mxu0 %v4798
    %v4800 = vpop.f32.mrb[0].mxu0
    %v4801 = vadd.f32 %v4488, %v4800
    %v4802 = vpop.f32.mrb[0].mxu0
    %v4803 = vadd.f32 %v4490, %v4802
    %4804 = vmatprep.mubr.f32.mxu0 0.0
    %v4805 = vand.u32 %v3077, 4294901760
    %4806 = vmatmul.mubr.f32.gmra.mrb[0].mxu0 %v4805
    %v4807 = vpop.f32.mrb[0].mxu0
    %v4808 = vadd.f32 %v4497, %v4807
    %v4809 = vpop.f32.mrb[0].mxu0
    %v4810 = vadd.f32 %v4499, %v4809
    %4811 = vmatprep.mubr.f32.mxu0 0.0
    %v4812 = vand.u32 %v3080, 4294901760
    %4813 = vmatmul.mubr.f32.gmra.mrb[0].mxu0 %v4812
    %v4814 = vpop.f32.mrb[0].mxu0
    %v4815 = vadd.f32 %v4506, %v4814
    %v4816 = vpop.f32.mrb[0].mxu0
    %v4817 = vadd.f32 %v4508, %v4816
    %4818 = vmatprep.mubr.f32.mxu0 0.0
    %v4819 = vand.u32 %v3083, 4294901760
    %4820 = vmatmul.mubr.f32.gmra.mrb[0].mxu0 %v4819
    %v4821 = vpop.f32.mrb[0].mxu0
    %v4822 = vadd.f32 %v4515, %v4821
    %v4823 = vpop.f32.mrb[0].mxu0
    %v4824 = vadd.f32 %v4517, %v4823
    %4825 = vdwg.mxu0
    %v4826 = vand.u32 %v2920, 4294901760
    %4827 = vmatprep.subr.mxu0 %v4826
    %v4828 = vand.u32 %v2919, 4294901760
    %4829 = vmatpush1.msra.mxu0 %v4828
    %v4830 = vand.u32 %v2922, 4294901760
    %4831 = vmatprep.subr.mxu0 %v4830
    %v4832 = vand.u32 %v2921, 4294901760
    %4833 = vmatpush1.msra.mxu0 %v4832
    %v4834 = vand.u32 %v2924, 4294901760
    %4835 = vmatprep.subr.mxu0 %v4834
    %v4836 = vand.u32 %v2923, 4294901760
    %4837 = vmatpush1.msra.mxu0 %v4836
    %4838 = vmatprep.subr.mxu0 0.0
    %4839 = vmatpush1.msra.mxu0 0.0
    %4840 = vmatprep.subr.mxu0 0.0
    %4841 = vmatpush1.msra.mxu0 0.0
    %4842 = vmatprep.subr.mxu0 0.0
    %4843 = vmatpush1.msra.mxu0 0.0
    %4844 = vmatprep.subr.mxu0 0.0
    %4845 = vmatpush1.msra.mxu0 0.0
    %4846 = vmatprep.subr.mxu0 0.0
    %4847 = vmatpush1.msra.mxu0 0.0
    %4848 = vmatprep.subr.mxu0 0.0
    %4849 = vmatpush1.msra.mxu0 0.0
    %4850 = vmatprep.subr.mxu0 0.0
    %4851 = vmatpush1.msra.mxu0 0.0
    %4852 = vmatprep.subr.mxu0 0.0
    %4853 = vmatpush1.msra.mxu0 0.0
    %4854 = vmatprep.subr.mxu0 0.0
    %4855 = vmatpush1.msra.mxu0 0.0
    %4856 = vmatprep.subr.mxu0 0.0
    %4857 = vmatpush1.msra.mxu0 0.0
    %4858 = vmatprep.subr.mxu0 0.0
    %4859 = vmatpush1.msra.mxu0 0.0
    %4860 = vmatprep.subr.mxu0 0.0
    %4861 = vmatpush1.msra.mxu0 0.0
    %4862 = vmatprep.subr.mxu0 0.0
    %4863 = vmatpush1.msra.mxu0 0.0
    %4864 = vmatprep.subr.mxu0 0.0
    %4865 = vmatpush1.msra.mxu0 0.0
    %4866 = vmatprep.subr.mxu0 0.0
    %4867 = vmatpush1.msra.mxu0 0.0
    %4868 = vmatprep.subr.mxu0 0.0
    %4869 = vmatpush1.msra.mxu0 0.0
    %4870 = vmatprep.subr.mxu0 0.0
    %4871 = vmatpush1.msra.mxu0 0.0
    %4872 = vmatprep.subr.mxu0 0.0
    %4873 = vmatpush1.msra.mxu0 0.0
    %4874 = vmatprep.subr.mxu0 0.0
    %4875 = vmatpush1.msra.mxu0 0.0
    %4876 = vmatprep.subr.mxu0 0.0
    %4877 = vmatpush1.msra.mxu0 0.0
    %4878 = vmatprep.subr.mxu0 0.0
    %4879 = vmatpush1.msra.mxu0 0.0
    %4880 = vmatprep.subr.mxu0 0.0
    %4881 = vmatpush1.msra.mxu0 0.0
    %4882 = vmatprep.subr.mxu0 0.0
    %4883 = vmatpush1.msra.mxu0 0.0
    %4884 = vmatprep.subr.mxu0 0.0
    %4885 = vmatpush1.msra.mxu0 0.0
    %4886 = vmatprep.subr.mxu0 0.0
    %4887 = vmatpush1.msra.mxu0 0.0
    %4888 = vmatprep.subr.mxu0 0.0
    %4889 = vmatpush1.msra.mxu0 0.0
    %4890 = vmatprep.subr.mxu0 0.0
    %4891 = vmatpush1.msra.mxu0 0.0
    %4892 = vmatprep.subr.mxu0 0.0
    %4893 = vmatpush1.msra.mxu0 0.0
    %4894 = vmatprep.subr.mxu0 0.0
    %4895 = vmatpush1.msra.mxu0 0.0
    %4896 = vmatprep.mubr.f32.mxu0 0.0
    %v4897 = vand.u32 %v2990, 4294901760
    %4898 = vmatmul.mubr.f32.gmra.mrb[0].mxu0 %v4897
    %v4899 = vpop.f32.mrb[0].mxu0
    %v4900 = vadd.f32 %v4605, %v4899
    %v4901 = vpop.f32.mrb[0].mxu0
    %v4902 = vadd.f32 %v4607, %v4901
    %4903 = vmatprep.mubr.f32.mxu0 0.0
    %v4904 = vand.u32 %v2993, 4294901760
    %4905 = vmatmul.mubr.f32.gmra.mrb[0].mxu0 %v4904
    %v4906 = vpop.f32.mrb[0].mxu0
    %v4907 = vadd.f32 %v4612, %v4906
    %v4908 = vpop.f32.mrb[0].mxu0
    %v4909 = vadd.f32 %v4614, %v4908
    %4910 = vmatprep.mubr.f32.mxu0 0.0
    %v4911 = vand.u32 %v2996, 4294901760
    %4912 = vmatmul.mubr.f32.gmra.mrb[0].mxu0 %v4911
    %v4913 = vpop.f32.mrb[0].mxu0
    %v4914 = vadd.f32 %v4619, %v4913
    %v4915 = vpop.f32.mrb[0].mxu0
    %v4916 = vadd.f32 %v4621, %v4915
    %4917 = vmatprep.mubr.f32.mxu0 0.0
    %v4918 = vand.u32 %v2999, 4294901760
    %4919 = vmatmul.mubr.f32.gmra.mrb[0].mxu0 %v4918
    %v4920 = vpop.f32.mrb[0].mxu0
    %v4921 = vadd.f32 %v4626, %v4920
    %v4922 = vpop.f32.mrb[0].mxu0
    %v4923 = vadd.f32 %v4628, %v4922
    %4924 = vmatprep.mubr.f32.mxu0 0.0
    %v4925 = vand.u32 %v3002, 4294901760
    %4926 = vmatmul.mubr.f32.gmra.mrb[0].mxu0 %v4925
    %v4927 = vpop.f32.mrb[0].mxu0
    %v4928 = vadd.f32 %v4633, %v4927
    %v4929 = vpop.f32.mrb[0].mxu0
    %v4930 = vadd.f32 %v4635, %v4929
    %4931 = vmatprep.mubr.f32.mxu0 0.0
    %v4932 = vand.u32 %v3005, 4294901760
    %4933 = vmatmul.mubr.f32.gmra.mrb[0].mxu0 %v4932
    %v4934 = vpop.f32.mrb[0].mxu0
    %v4935 = vadd.f32 %v4640, %v4934
    %v4936 = vpop.f32.mrb[0].mxu0
    %v4937 = vadd.f32 %v4642, %v4936
    %4938 = vmatprep.mubr.f32.mxu0 0.0
    %v4939 = vand.u32 %v3008, 4294901760
    %4940 = vmatmul.mubr.f32.gmra.mrb[0].mxu0 %v4939
    %v4941 = vpop.f32.mrb[0].mxu0
    %v4942 = vadd.f32 %v4647, %v4941
    %v4943 = vpop.f32.mrb[0].mxu0
    %v4944 = vadd.f32 %v4649, %v4943
    %4945 = vmatprep.mubr.f32.mxu0 0.0
    %v4946 = vand.u32 %v3011, 4294901760
    %4947 = vmatmul.mubr.f32.gmra.mrb[0].mxu0 %v4946
    %v4948 = vpop.f32.mrb[0].mxu0
    %v4949 = vadd.f32 %v4654, %v4948
    %v4950 = vpop.f32.mrb[0].mxu0
    %v4951 = vadd.f32 %v4656, %v4950
    %4952 = vmatprep.mubr.f32.mxu0 0.0
    %v4953 = vand.u32 %v3014, 4294901760
    %4954 = vmatmul.mubr.f32.gmra.mrb[0].mxu0 %v4953
    %v4955 = vpop.f32.mrb[0].mxu0
    %v4956 = vadd.f32 %v4661, %v4955
    %v4957 = vpop.f32.mrb[0].mxu0
    %v4958 = vadd.f32 %v4663, %v4957
    %4959 = vmatprep.mubr.f32.mxu0 0.0
    %v4960 = vand.u32 %v3017, 4294901760
    %4961 = vmatmul.mubr.f32.gmra.mrb[0].mxu0 %v4960
    %v4962 = vpop.f32.mrb[0].mxu0
    %v4963 = vadd.f32 %v4668, %v4962
    %v4964 = vpop.f32.mrb[0].mxu0
    %v4965 = vadd.f32 %v4670, %v4964
    %4966 = vmatprep.mubr.f32.mxu0 0.0
    %v4967 = vand.u32 %v3020, 4294901760
    %4968 = vmatmul.mubr.f32.gmra.mrb[0].mxu0 %v4967
    %v4969 = vpop.f32.mrb[0].mxu0
    %v4970 = vadd.f32 %v4675, %v4969
    %v4971 = vpop.f32.mrb[0].mxu0
    %v4972 = vadd.f32 %v4677, %v4971
    %4973 = vmatprep.mubr.f32.mxu0 0.0
    %v4974 = vand.u32 %v3023, 4294901760
    %4975 = vmatmul.mubr.f32.gmra.mrb[0].mxu0 %v4974
    %v4976 = vpop.f32.mrb[0].mxu0
    %v4977 = vadd.f32 %v4682, %v4976
    %v4978 = vpop.f32.mrb[0].mxu0
    %v4979 = vadd.f32 %v4684, %v4978
    %4980 = vmatprep.mubr.f32.mxu0 0.0
    %v4981 = vand.u32 %v3026, 4294901760
    %4982 = vmatmul.mubr.f32.gmra.mrb[0].mxu0 %v4981
    %v4983 = vpop.f32.mrb[0].mxu0
    %v4984 = vadd.f32 %v4689, %v4983
    %v4985 = vpop.f32.mrb[0].mxu0
    %v4986 = vadd.f32 %v4691, %v4985
    %4987 = vmatprep.mubr.f32.mxu0 0.0
    %v4988 = vand.u32 %v3029, 4294901760
    %4989 = vmatmul.mubr.f32.gmra.mrb[0].mxu0 %v4988
    %v4990 = vpop.f32.mrb[0].mxu0
    %v4991 = vadd.f32 %v4696, %v4990
    %v4992 = vpop.f32.mrb[0].mxu0
    %v4993 = vadd.f32 %v4698, %v4992
    %4994 = vmatprep.mubr.f32.mxu0 0.0
    %v4995 = vand.u32 %v3032, 4294901760
    %4996 = vmatmul.mubr.f32.gmra.mrb[0].mxu0 %v4995
    %v4997 = vpop.f32.mrb[0].mxu0
    %v4998 = vadd.f32 %v4703, %v4997
    %v4999 = vpop.f32.mrb[0].mxu0
    %v5000 = vadd.f32 %v4705, %v4999
    %5001 = vmatprep.mubr.f32.mxu0 0.0
    %v5002 = vand.u32 %v3035, 4294901760
    %5003 = vmatmul.mubr.f32.gmra.mrb[0].mxu0 %v5002
    %v5004 = vpop.f32.mrb[0].mxu0
    %v5005 = vadd.f32 %v4710, %v5004
    %v5006 = vpop.f32.mrb[0].mxu0
    %v5007 = vadd.f32 %v4712, %v5006
    %5008 = vmatprep.mubr.f32.mxu0 0.0
    %v5009 = vand.u32 %v3038, 4294901760
    %5010 = vmatmul.mubr.f32.gmra.mrb[0].mxu0 %v5009
    %v5011 = vpop.f32.mrb[0].mxu0
    %v5012 = vadd.f32 %v4717, %v5011
    %v5013 = vpop.f32.mrb[0].mxu0
    %v5014 = vadd.f32 %v4719, %v5013
    %5015 = vmatprep.mubr.f32.mxu0 0.0
    %v5016 = vand.u32 %v3041, 4294901760
    %5017 = vmatmul.mubr.f32.gmra.mrb[0].mxu0 %v5016
    %v5018 = vpop.f32.mrb[0].mxu0
    %v5019 = vadd.f32 %v4724, %v5018
    %v5020 = vpop.f32.mrb[0].mxu0
    %v5021 = vadd.f32 %v4726, %v5020
    %5022 = vmatprep.mubr.f32.mxu0 0.0
    %v5023 = vand.u32 %v3044, 4294901760
    %5024 = vmatmul.mubr.f32.gmra.mrb[0].mxu0 %v5023
    %v5025 = vpop.f32.mrb[0].mxu0
    %v5026 = vadd.f32 %v4731, %v5025
    %v5027 = vpop.f32.mrb[0].mxu0
    %v5028 = vadd.f32 %v4733, %v5027
    %5029 = vmatprep.mubr.f32.mxu0 0.0
    %v5030 = vand.u32 %v3047, 4294901760
    %5031 = vmatmul.mubr.f32.gmra.mrb[0].mxu0 %v5030
    %v5032 = vpop.f32.mrb[0].mxu0
    %v5033 = vadd.f32 %v4738, %v5032
    %v5034 = vpop.f32.mrb[0].mxu0
    %v5035 = vadd.f32 %v4740, %v5034
    %5036 = vmatprep.mubr.f32.mxu0 0.0
    %v5037 = vand.u32 %v3050, 4294901760
    %5038 = vmatmul.mubr.f32.gmra.mrb[0].mxu0 %v5037
    %v5039 = vpop.f32.mrb[0].mxu0
    %v5040 = vadd.f32 %v4745, %v5039
    %v5041 = vpop.f32.mrb[0].mxu0
    %v5042 = vadd.f32 %v4747, %v5041
    %5043 = vmatprep.mubr.f32.mxu0 0.0
    %v5044 = vand.u32 %v3053, 4294901760
    %5045 = vmatmul.mubr.f32.gmra.mrb[0].mxu0 %v5044
    %v5046 = vpop.f32.mrb[0].mxu0
    %v5047 = vadd.f32 %v4752, %v5046
    %v5048 = vpop.f32.mrb[0].mxu0
    %v5049 = vadd.f32 %v4754, %v5048
    %5050 = vmatprep.mubr.f32.mxu0 0.0
    %v5051 = vand.u32 %v3056, 4294901760
    %5052 = vmatmul.mubr.f32.gmra.mrb[0].mxu0 %v5051
    %v5053 = vpop.f32.mrb[0].mxu0
    %v5054 = vadd.f32 %v4759, %v5053
    %v5055 = vpop.f32.mrb[0].mxu0
    %v5056 = vadd.f32 %v4761, %v5055
    %5057 = vmatprep.mubr.f32.mxu0 0.0
    %v5058 = vand.u32 %v3059, 4294901760
    %5059 = vmatmul.mubr.f32.gmra.mrb[0].mxu0 %v5058
    %v5060 = vpop.f32.mrb[0].mxu0
    %v5061 = vadd.f32 %v4766, %v5060
    %v5062 = vpop.f32.mrb[0].mxu0
    %v5063 = vadd.f32 %v4768, %v5062
    %5064 = vmatprep.mubr.f32.mxu0 0.0
    %v5065 = vand.u32 %v3062, 4294901760
    %5066 = vmatmul.mubr.f32.gmra.mrb[0].mxu0 %v5065
    %v5067 = vpop.f32.mrb[0].mxu0
    %v5068 = vadd.f32 %v4773, %v5067
    %v5069 = vpop.f32.mrb[0].mxu0
    %v5070 = vadd.f32 %v4775, %v5069
    %5071 = vmatprep.mubr.f32.mxu0 0.0
    %v5072 = vand.u32 %v3065, 4294901760
    %5073 = vmatmul.mubr.f32.gmra.mrb[0].mxu0 %v5072
    %v5074 = vpop.f32.mrb[0].mxu0
    %v5075 = vadd.f32 %v4780, %v5074
    %v5076 = vpop.f32.mrb[0].mxu0
    %v5077 = vadd.f32 %v4782, %v5076
    %5078 = vmatprep.mubr.f32.mxu0 0.0
    %v5079 = vand.u32 %v3068, 4294901760
    %5080 = vmatmul.mubr.f32.gmra.mrb[0].mxu0 %v5079
    %v5081 = vpop.f32.mrb[0].mxu0
    %v5082 = vadd.f32 %v4787, %v5081
    %v5083 = vpop.f32.mrb[0].mxu0
    %v5084 = vadd.f32 %v4789, %v5083
    %5085 = vmatprep.mubr.f32.mxu0 0.0
    %v5086 = vand.u32 %v3071, 4294901760
    %5087 = vmatmul.mubr.f32.gmra.mrb[0].mxu0 %v5086
    %v5088 = vpop.f32.mrb[0].mxu0
    %v5089 = vadd.f32 %v4794, %v5088
    %v5090 = vpop.f32.mrb[0].mxu0
    %v5091 = vadd.f32 %v4796, %v5090
    %5092 = vmatprep.mubr.f32.mxu0 0.0
    %v5093 = vand.u32 %v3074, 4294901760
    %5094 = vmatmul.mubr.f32.gmra.mrb[0].mxu0 %v5093
    %v5095 = vpop.f32.mrb[0].mxu0
    %v5096 = vadd.f32 %v4801, %v5095
    %v5097 = vpop.f32.mrb[0].mxu0
    %v5098 = vadd.f32 %v4803, %v5097
    %5099 = vmatprep.mubr.f32.mxu0 0.0
    %v5100 = vand.u32 %v3077, 4294901760
    %5101 = vmatmul.mubr.f32.gmra.mrb[0].mxu0 %v5100
    %v5102 = vpop.f32.mrb[0].mxu0
    %v5103 = vadd.f32 %v4808, %v5102
    %v5104 = vpop.f32.mrb[0].mxu0
    %v5105 = vadd.f32 %v4810, %v5104
    %5106 = vmatprep.mubr.f32.mxu0 0.0
    %v5107 = vand.u32 %v3080, 4294901760
    %5108 = vmatmul.mubr.f32.gmra.mrb[0].mxu0 %v5107
    %v5109 = vpop.f32.mrb[0].mxu0
    %v5110 = vadd.f32 %v4815, %v5109
    %v5111 = vpop.f32.mrb[0].mxu0
    %v5112 = vadd.f32 %v4817, %v5111
    %5113 = vmatprep.mubr.f32.mxu0 0.0
    %v5114 = vand.u32 %v3083, 4294901760
    %5115 = vmatmul.mubr.f32.gmra.mrb[0].mxu0 %v5114
    %v5116 = vpop.f32.mrb[0].mxu0
    %v5117 = vadd.f32 %v4822, %v5116
    %v5118 = vpop.f32.mrb[0].mxu0
    %v5119 = vadd.f32 %v4824, %v5118
    %5120 = vdwg.mxu0
    %v5121 = vmul.f32 %v4902, 1.442695
    %v5122 = vpow.pop %v5121
    %v5123 = vmul.f32 %v4909, 1.442695
    %v5124 = vpow.pop %v5123
    %v5125 = vmul.f32 %v4916, 1.442695
    %v5126 = vpow.pop %v5125
    %v5127 = vmul.f32 %v4923, 1.442695
    %v5128 = vpow.pop %v5127
    %v5129 = vmul.f32 %v4930, 1.442695
    %v5130 = vpow.pop %v5129
    %v5131 = vmul.f32 %v4937, 1.442695
    %v5132 = vpow.pop %v5131
    %v5133 = vmul.f32 %v4944, 1.442695
    %v5134 = vpow.pop %v5133
    %v5135 = vmul.f32 %v4951, 1.442695
    %v5136 = vpow.pop %v5135
    %v5137 = vmul.f32 %v4958, 1.442695
    %v5138 = vpow.pop %v5137
    %v5139 = vmul.f32 %v4965, 1.442695
    %v5140 = vpow.pop %v5139
    %v5141 = vmul.f32 %v4972, 1.442695
    %v5142 = vpow.pop %v5141
    %v5143 = vmul.f32 %v4979, 1.442695
    %v5144 = vpow.pop %v5143
    %v5145 = vmul.f32 %v4986, 1.442695
    %v5146 = vpow.pop %v5145
    %v5147 = vmul.f32 %v4993, 1.442695
    %v5148 = vpow.pop %v5147
    %v5149 = vmul.f32 %v5000, 1.442695
    %v5150 = vpow.pop %v5149
    %v5151 = vmul.f32 %v5007, 1.442695
    %v5152 = vpow.pop %v5151
    %v5153 = vmul.f32 %v5014, 1.442695
    %v5154 = vpow.pop %v5153
    %v5155 = vmul.f32 %v5021, 1.442695
    %v5156 = vpow.pop %v5155
    %v5157 = vmul.f32 %v5028, 1.442695
    %v5158 = vpow.pop %v5157
    %v5159 = vmul.f32 %v5035, 1.442695
    %v5160 = vpow.pop %v5159
    %v5161 = vmul.f32 %v5042, 1.442695
    %v5162 = vpow.pop %v5161
    %v5163 = vmul.f32 %v5049, 1.442695
    %v5164 = vpow.pop %v5163
    %v5165 = vmul.f32 %v5056, 1.442695
    %v5166 = vpow.pop %v5165
    %v5167 = vmul.f32 %v5063, 1.442695
    %v5168 = vpow.pop %v5167
    %v5169 = vmul.f32 %v5070, 1.442695
    %v5170 = vpow.pop %v5169
    %v5171 = vmul.f32 %v5077, 1.442695
    %v5172 = vpow.pop %v5171
    %v5173 = vmul.f32 %v5084, 1.442695
    %v5174 = vpow.pop %v5173
    %v5175 = vmul.f32 %v5091, 1.442695
    %v5176 = vpow.pop %v5175
    %v5177 = vmul.f32 %v5098, 1.442695
    %v5178 = vpow.pop %v5177
    %v5179 = vmul.f32 %v5105, 1.442695
    %v5180 = vpow.pop %v5179
    %v5181 = vmul.f32 %v5112, 1.442695
    %v5182 = vpow.pop %v5181
    %v5183 = vmul.f32 %v5119, 1.442695
    %v5184 = vpow.pop %v5183
    %v5185 = vmul.f32 %v5122, %v4900
    %v5186 = vmul.f32 %v5124, %v4907
    %v5187 = vmul.f32 %v5126, %v4914
    %v5188 = vmul.f32 %v5128, %v4921
    %v5189 = vmul.f32 %v5130, %v4928
    %v5190 = vmul.f32 %v5132, %v4935
    %v5191 = vmul.f32 %v5134, %v4942
    %v5192 = vmul.f32 %v5136, %v4949
    %v5193 = vmul.f32 %v5138, %v4956
    %v5194 = vmul.f32 %v5140, %v4963
    %v5195 = vmul.f32 %v5142, %v4970
    %v5196 = vmul.f32 %v5144, %v4977
    %v5197 = vmul.f32 %v5146, %v4984
    %v5198 = vmul.f32 %v5148, %v4991
    %v5199 = vmul.f32 %v5150, %v4998
    %v5200 = vmul.f32 %v5152, %v5005
    %v5201 = vmul.f32 %v5154, %v5012
    %v5202 = vmul.f32 %v5156, %v5019
    %v5203 = vmul.f32 %v5158, %v5026
    %v5204 = vmul.f32 %v5160, %v5033
    %v5205 = vmul.f32 %v5162, %v5040
    %v5206 = vmul.f32 %v5164, %v5047
    %v5207 = vmul.f32 %v5166, %v5054
    %v5208 = vmul.f32 %v5168, %v5061
    %v5209 = vmul.f32 %v5170, %v5068
    %v5210 = vmul.f32 %v5172, %v5075
    %v5211 = vmul.f32 %v5174, %v5082
    %v5212 = vmul.f32 %v5176, %v5089
    %v5213 = vmul.f32 %v5178, %v5096
    %v5214 = vmul.f32 %v5180, %v5103
    %v5215 = vmul.f32 %v5182, %v5110
    %v5216 = vmul.f32 %v5184, %v5117
    %5217 = vst [vmem:[#allocation7 + $0x100] sm:$0xff] %v5185
    %5218 = vst [vmem:[#allocation7 + $0x108] sm:$0xff] %v5186
    %5219 = vst [vmem:[#allocation7 + $0x110] sm:$0xff] %v5187
    %5220 = vst [vmem:[#allocation7 + $0x118] sm:$0xff] %v5188
    %5221 = vst [vmem:[#allocation7 + $0x120] sm:$0xff] %v5189
    %5222 = vst [vmem:[#allocation7 + $0x128] sm:$0xff] %v5190
    %5223 = vst [vmem:[#allocation7 + $0x130] sm:$0xff] %v5191
    %5224 = vst [vmem:[#allocation7 + $0x138] sm:$0xff] %v5192
    %5225 = vst [vmem:[#allocation7 + $0x140] sm:$0xff] %v5193
    %5226 = vst [vmem:[#allocation7 + $0x148] sm:$0xff] %v5194
    %5227 = vst [vmem:[#allocation7 + $0x150] sm:$0xff] %v5195
    %5228 = vst [vmem:[#allocation7 + $0x158] sm:$0xff] %v5196
    %5229 = vst [vmem:[#allocation7 + $0x160] sm:$0xff] %v5197
    %5230 = vst [vmem:[#allocation7 + $0x168] sm:$0xff] %v5198
    %5231 = vst [vmem:[#allocation7 + $0x170] sm:$0xff] %v5199
    %5232 = vst [vmem:[#allocation7 + $0x178] sm:$0xff] %v5200
    %5233 = vst [vmem:[#allocation7 + $0x180] sm:$0xff] %v5201
    %5234 = vst [vmem:[#allocation7 + $0x188] sm:$0xff] %v5202
    %5235 = vst [vmem:[#allocation7 + $0x190] sm:$0xff] %v5203
    %5236 = vst [vmem:[#allocation7 + $0x198] sm:$0xff] %v5204
    %5237 = vst [vmem:[#allocation7 + $0x1a0] sm:$0xff] %v5205
    %5238 = vst [vmem:[#allocation7 + $0x1a8] sm:$0xff] %v5206
    %5239 = vst [vmem:[#allocation7 + $0x1b0] sm:$0xff] %v5207
    %5240 = vst [vmem:[#allocation7 + $0x1b8] sm:$0xff] %v5208
    %5241 = vst [vmem:[#allocation7 + $0x1c0] sm:$0xff] %v5209
    %5242 = vst [vmem:[#allocation7 + $0x1c8] sm:$0xff] %v5210
    %5243 = vst [vmem:[#allocation7 + $0x1d0] sm:$0xff] %v5211
    %5244 = vst [vmem:[#allocation7 + $0x1d8] sm:$0xff] %v5212
    %5245 = vst [vmem:[#allocation7 + $0x1e0] sm:$0xff] %v5213
    %5246 = vst [vmem:[#allocation7 + $0x1e8] sm:$0xff] %v5214
    %5247 = vst [vmem:[#allocation7 + $0x1f0] sm:$0xff] %v5215
    %5248 = vst [vmem:[#allocation7 + $0x1f8] sm:$0xff] %v5216
    %s5249 = scalar_lea.vmem [#allocation2], 16
    %v5250 = vld [vmem:[%s5249] ss:$4 sm:$0x3]
    %s5251 = scalar_lea.vmem [#allocation2], 17
    %v5252 = vld [vmem:[%s5251] ss:$4 sm:$0x3]
    %s5253 = scalar_lea.vmem [#allocation2], 18
    %v5254 = vld [vmem:[%s5253] ss:$4 sm:$0x3]
    %v5255 = vmul.f32 %v5250, %v5250
    %v5256 = vmul.f32 %v5252, %v5252
    %v5257 = vadd.f32 %v5255, %v5256
    %v5258 = vmul.f32 %v5254, %v5254
    %v5259 = vadd.f32 %v5257, %v5258
    %v5260 = vrsqrt.pop %v5259
    %v5261 = vmul.f32 %v5259, %v5260
    %vm5262 = vcmp.eq.f32.partialorder %v5259, inf
    %v5263 = vsel %vm5262, %v5259, %v5261
    %vm5264 = vcmp.eq.f32.partialorder %v5259, 0.0
    %v5265 = vand.u32 %v5259, 2147483648
    %v5266 = vsel %vm5264, %v5265, %v5263
    %v5267 = vadd.f32 %v5266, 1e-08
    %v5268 = vrcp.pop %v5267
    %v5269 = vmul.f32 1.0, %v5268
    %v5270 = vmul.f32 %v5250, %v5269
    %v5271 = vmul.f32 %v5252, %v5269
    %v5272 = vmul.f32 %v5254, %v5269
    %v5273 = vmul.f32 %v5270, %v5270
    %v5274 = vmul.f32 %v5271, %v5271
    %v5275 = vmul.f32 %v5272, %v5272
    %v5276 = vadd.f32 %v5273, %v5275
    %v5277 = vmul.f32 %v5270, %v5272
    %v5278 = vmul.f32 %v5270, %v5271
    %v5279 = vmul.f32 %v5276, 0.5
    %v5280 = vsub.f32 %v5274, %v5279
    %v5281 = vmul.f32 %v5271, %v5272
    %v5282 = vsub.f32 %v5275, %v5273
    %v5283 = vmul.f32 %v5275, 3.0
    %v5284 = vsub.f32 %v5283, %v5273
    %v5285 = vmul.f32 %v5270, %v5284
    %v5286 = vmul.f32 %v5278, %v5272
    %v5287 = vmul.f32 %v5274, 4.0
    %v5288 = vsub.f32 %v5287, %v5276
    %v5289 = vmul.f32 %v5270, %v5288
    %v5290 = vmul.f32 %v5274, 2.0
    %v5291 = vmul.f32 %v5276, 3.0
    %v5292 = vsub.f32 %v5290, %v5291
    %v5293 = vmul.f32 %v5271, %v5292
    %v5294 = vmul.f32 %v5272, %v5288
    %v5295 = vmul.f32 %v5271, %v5282
    %v5296 = vmul.f32 %v5273, 3.0
    %v5297 = vsub.f32 %v5275, %v5296
    %v5298 = vmul.f32 %v5272, %v5297
    %v5299 = vmul.f32 %v5267, %v5267
    %v5300 = vlog2.pop %v5267
    %v5301 = vmul.f32 %v5300, 0.6931472
    %v5303 = vlaneseq
    %v5304 = vshrl.u32 %v5303, 7
    %v5305 = vsub.s32 0, %v5304
    %v5306 = vrot.slane %v5270, %v5305
    %v5307 = vlaneseq
    %v5308 = vshrl.u32 %v5307, 7
    %v5309 = vsub.s32 1, %v5308
    %v5310 = vrot.slane %v5270, %v5309
    %v5314 = vlaneseq
    %v5315 = vshrl.u32 %v5314, 7
    %v5316 = vsub.s32 0, %v5315
    %v5317 = vrot.slane %v5271, %v5316
    %v5318 = vlaneseq
    %v5319 = vshrl.u32 %v5318, 7
    %v5320 = vsub.s32 1, %v5319
    %v5321 = vrot.slane %v5271, %v5320
    %v5325 = vlaneseq
    %v5326 = vshrl.u32 %v5325, 7
    %v5327 = vsub.s32 0, %v5326
    %v5328 = vrot.slane %v5272, %v5327
    %v5329 = vlaneseq
    %v5330 = vshrl.u32 %v5329, 7
    %v5331 = vsub.s32 1, %v5330
    %v5332 = vrot.slane %v5272, %v5331
    %v5336 = vlaneseq
    %v5337 = vshrl.u32 %v5336, 7
    %v5338 = vsub.s32 0, %v5337
    %v5339 = vrot.slane %v5277, %v5338
    %v5340 = vlaneseq
    %v5341 = vshrl.u32 %v5340, 7
    %v5342 = vsub.s32 1, %v5341
    %v5343 = vrot.slane %v5277, %v5342
    %v5347 = vlaneseq
    %v5348 = vshrl.u32 %v5347, 7
    %v5349 = vsub.s32 0, %v5348
    %v5350 = vrot.slane %v5278, %v5349
    %v5351 = vlaneseq
    %v5352 = vshrl.u32 %v5351, 7
    %v5353 = vsub.s32 1, %v5352
    %v5354 = vrot.slane %v5278, %v5353
    %v5358 = vlaneseq
    %v5359 = vshrl.u32 %v5358, 7
    %v5360 = vsub.s32 0, %v5359
    %v5361 = vrot.slane %v5280, %v5360
    %v5362 = vlaneseq
    %v5363 = vshrl.u32 %v5362, 7
    %v5364 = vsub.s32 1, %v5363
    %v5365 = vrot.slane %v5280, %v5364
    %v5369 = vlaneseq
    %v5370 = vshrl.u32 %v5369, 7
    %v5371 = vsub.s32 0, %v5370
    %v5372 = vrot.slane %v5281, %v5371
    %v5373 = vlaneseq
    %v5374 = vshrl.u32 %v5373, 7
    %v5375 = vsub.s32 1, %v5374
    %v5376 = vrot.slane %v5281, %v5375
    %v5380 = vlaneseq
    %v5381 = vshrl.u32 %v5380, 7
    %v5382 = vsub.s32 0, %v5381
    %v5383 = vrot.slane %v5282, %v5382
    %v5384 = vlaneseq
    %v5385 = vshrl.u32 %v5384, 7
    %v5386 = vsub.s32 1, %v5385
    %v5387 = vrot.slane %v5282, %v5386
    %v5391 = vlaneseq
    %v5392 = vshrl.u32 %v5391, 7
    %v5393 = vsub.s32 0, %v5392
    %v5394 = vrot.slane %v5285, %v5393
    %v5395 = vlaneseq
    %v5396 = vshrl.u32 %v5395, 7
    %v5397 = vsub.s32 1, %v5396
    %v5398 = vrot.slane %v5285, %v5397
    %v5402 = vlaneseq
    %v5403 = vshrl.u32 %v5402, 7
    %v5404 = vsub.s32 0, %v5403
    %v5405 = vrot.slane %v5286, %v5404
    %v5406 = vlaneseq
    %v5407 = vshrl.u32 %v5406, 7
    %v5408 = vsub.s32 1, %v5407
    %v5409 = vrot.slane %v5286, %v5408
    %v5413 = vlaneseq
    %v5414 = vshrl.u32 %v5413, 7
    %v5415 = vsub.s32 0, %v5414
    %v5416 = vrot.slane %v5289, %v5415
    %v5417 = vlaneseq
    %v5418 = vshrl.u32 %v5417, 7
    %v5419 = vsub.s32 1, %v5418
    %v5420 = vrot.slane %v5289, %v5419
    %v5424 = vlaneseq
    %v5425 = vshrl.u32 %v5424, 7
    %v5426 = vsub.s32 0, %v5425
    %v5427 = vrot.slane %v5293, %v5426
    %v5428 = vlaneseq
    %v5429 = vshrl.u32 %v5428, 7
    %v5430 = vsub.s32 1, %v5429
    %v5431 = vrot.slane %v5293, %v5430
    %v5435 = vlaneseq
    %v5436 = vshrl.u32 %v5435, 7
    %v5437 = vsub.s32 0, %v5436
    %v5438 = vrot.slane %v5294, %v5437
    %v5439 = vlaneseq
    %v5440 = vshrl.u32 %v5439, 7
    %v5441 = vsub.s32 1, %v5440
    %v5442 = vrot.slane %v5294, %v5441
    %v5446 = vlaneseq
    %v5447 = vshrl.u32 %v5446, 7
    %v5448 = vsub.s32 0, %v5447
    %v5449 = vrot.slane %v5295, %v5448
    %v5450 = vlaneseq
    %v5451 = vshrl.u32 %v5450, 7
    %v5452 = vsub.s32 1, %v5451
    %v5453 = vrot.slane %v5295, %v5452
    %v5457 = vlaneseq
    %v5458 = vshrl.u32 %v5457, 7
    %v5459 = vsub.s32 0, %v5458
    %v5460 = vrot.slane %v5298, %v5459
    %v5461 = vlaneseq
    %v5462 = vshrl.u32 %v5461, 7
    %v5463 = vsub.s32 1, %v5462
    %v5464 = vrot.slane %v5298, %v5463
    %v5467 = vsel %vm255, 1.0, %v5306
    %v5468 = vsel %vm255, 1.0, %v5310
    %v5469 = vsel %vm258, %v5467, %v5317
    %v5470 = vsel %vm258, %v5468, %v5321
    %v5471 = vsel %vm261, %v5469, %v5328
    %v5472 = vsel %vm261, %v5470, %v5332
    %v5473 = vsel %vm264, %v5471, %v5339
    %v5474 = vsel %vm264, %v5472, %v5343
    %v5475 = vsel %vm267, %v5473, %v5350
    %v5476 = vsel %vm267, %v5474, %v5354
    %v5477 = vsel %vm270, %v5475, %v5361
    %v5478 = vsel %vm270, %v5476, %v5365
    %v5479 = vsel %vm273, %v5477, %v5372
    %v5480 = vsel %vm273, %v5478, %v5376
    %v5481 = vsel %vm255, %v5383, %v5394
    %v5482 = vsel %vm255, %v5387, %v5398
    %v5483 = vsel %vm258, %v5481, %v5405
    %v5484 = vsel %vm258, %v5482, %v5409
    %v5485 = vsel %vm261, %v5483, %v5416
    %v5486 = vsel %vm261, %v5484, %v5420
    %v5487 = vsel %vm264, %v5485, %v5427
    %v5488 = vsel %vm264, %v5486, %v5431
    %v5489 = vsel %vm267, %v5487, %v5438
    %v5490 = vsel %vm267, %v5488, %v5442
    %v5491 = vsel %vm270, %v5489, %v5449
    %v5492 = vsel %vm270, %v5490, %v5453
    %v5493 = vsel %vm273, %v5491, %v5460
    %v5494 = vsel %vm273, %v5492, %v5464
    %v5496 = vlaneseq
    %v5497 = vshrl.u32 %v5496, 7
    %v5498 = vsub.s32 0, %v5497
    %v5499 = vrot.slane %v5299, %v5498
    %v5500 = vlaneseq
    %v5501 = vshrl.u32 %v5500, 7
    %v5502 = vsub.s32 1, %v5501
    %v5503 = vrot.slane %v5299, %v5502
    %v5507 = vlaneseq
    %v5508 = vshrl.u32 %v5507, 7
    %v5509 = vsub.s32 0, %v5508
    %v5510 = vrot.slane %v5301, %v5509
    %v5511 = vlaneseq
    %v5512 = vshrl.u32 %v5511, 7
    %v5513 = vsub.s32 1, %v5512
    %v5514 = vrot.slane %v5301, %v5513
    %v5517 = vsel %vm255, %v5499, %v5510
    %v5518 = vsel %vm255, %v5503, %v5514
    %v5519 = vsel %vm258, %v5517, 0.0
    %v5520 = vsel %vm258, %v5518, 0.0
    %v5521 = vld [vmem:[#allocation5] sm:$0xff]
    %v5522 = vld [vmem:[#allocation5 + $0x8] sm:$0xff]
    %v5523 = vld [vmem:[#allocation5 + $0x10] sm:$0xff]
    %v5524 = vld [vmem:[#allocation5 + $0x18] sm:$0xff]
    %v5525 = vld [vmem:[#allocation5 + $0x20] sm:$0xff]
    %v5526 = vld [vmem:[#allocation5 + $0x28] sm:$0xff]
    %5527 = vxpose.xlu0.b32.start [1/16] %v5479, 128
    %5528 = vxpose.xlu0.b32.cont [2/16] %v5493, 128
    %5529 = vxpose.xlu0.b32.cont [3/16] %v5519, 128
    %5530 = vxpose.xlu0.b32.cont [4/16] 0.0, 128
    %5531 = vxpose.xlu0.b32.cont [5/16] 0.0, 128
    %5532 = vxpose.xlu0.b32.cont [6/16] 0.0, 128
    %5533 = vxpose.xlu0.b32.cont [7/16] 0.0, 128
    %5534 = vxpose.xlu0.b32.cont [8/16] 0.0, 128
    %5535 = vxpose.xlu0.b32.cont [9/16] 0.0, 128
    %5536 = vxpose.xlu0.b32.cont [10/16] 0.0, 128
    %5537 = vxpose.xlu0.b32.cont [11/16] 0.0, 128
    %5538 = vxpose.xlu0.b32.cont [12/16] 0.0, 128
    %5539 = vxpose.xlu0.b32.cont [13/16] 0.0, 128
    %5540 = vxpose.xlu0.b32.cont [14/16] 0.0, 128
    %5541 = vxpose.xlu0.b32.cont [15/16] 0.0, 128
    %5542 = vxpose.xlu0.b32.end [16/16] 0.0, 128
    %v5543 = vpop.trf.xlu0
    %v5544 = vpop.trf.xlu0
    %v5545 = vpop.trf.xlu0
    %v5546 = vpop.trf.xlu0
    %v5547 = vpop.trf.xlu0
    %v5548 = vpop.trf.xlu0
    %v5549 = vpop.trf.xlu0
    %v5550 = vpop.trf.xlu0
    %v5551 = vpop.trf.xlu0
    %v5552 = vpop.trf.xlu0
    %v5553 = vpop.trf.xlu0
    %v5554 = vpop.trf.xlu0
    %v5555 = vpop.trf.xlu0
    %v5556 = vpop.trf.xlu0
    %v5557 = vpop.trf.xlu0
    %v5558 = vpop.trf.xlu0
    %5559 = vxpose.xlu0.b32.start [1/16] %v5480, 128
    %5560 = vxpose.xlu0.b32.cont [2/16] %v5494, 128
    %5561 = vxpose.xlu0.b32.cont [3/16] %v5520, 128
    %5562 = vxpose.xlu0.b32.cont [4/16] 0.0, 128
    %5563 = vxpose.xlu0.b32.cont [5/16] 0.0, 128
    %5564 = vxpose.xlu0.b32.cont [6/16] 0.0, 128
    %5565 = vxpose.xlu0.b32.cont [7/16] 0.0, 128
    %5566 = vxpose.xlu0.b32.cont [8/16] 0.0, 128
    %5567 = vxpose.xlu0.b32.cont [9/16] 0.0, 128
    %5568 = vxpose.xlu0.b32.cont [10/16] 0.0, 128
    %5569 = vxpose.xlu0.b32.cont [11/16] 0.0, 128
    %5570 = vxpose.xlu0.b32.cont [12/16] 0.0, 128
    %5571 = vxpose.xlu0.b32.cont [13/16] 0.0, 128
    %5572 = vxpose.xlu0.b32.cont [14/16] 0.0, 128
    %5573 = vxpose.xlu0.b32.cont [15/16] 0.0, 128
    %5574 = vxpose.xlu0.b32.end [16/16] 0.0, 128
    %v5575 = vpop.trf.xlu0
    %v5576 = vpop.trf.xlu0
    %v5577 = vpop.trf.xlu0
    %v5578 = vpop.trf.xlu0
    %v5579 = vpop.trf.xlu0
    %v5580 = vpop.trf.xlu0
    %v5581 = vpop.trf.xlu0
    %v5582 = vpop.trf.xlu0
    %v5583 = vpop.trf.xlu0
    %v5584 = vpop.trf.xlu0
    %v5585 = vpop.trf.xlu0
    %v5586 = vpop.trf.xlu0
    %v5587 = vpop.trf.xlu0
    %v5588 = vpop.trf.xlu0
    %v5589 = vpop.trf.xlu0
    %v5590 = vpop.trf.xlu0
    %v5592 = vsel %vm386, %v5543, 0
    %v5595 = vsel %vm386, %v5544, 0
    %v5598 = vsel %vm386, %v5545, 0
    %v5601 = vsel %vm386, %v5546, 0
    %v5604 = vsel %vm386, %v5547, 0
    %v5607 = vsel %vm386, %v5548, 0
    %v5610 = vsel %vm386, %v5549, 0
    %v5613 = vsel %vm386, %v5550, 0
    %v5616 = vsel %vm386, %v5551, 0
    %v5619 = vsel %vm386, %v5552, 0
    %v5622 = vsel %vm386, %v5553, 0
    %v5625 = vsel %vm386, %v5554, 0
    %v5628 = vsel %vm386, %v5555, 0
    %v5631 = vsel %vm386, %v5556, 0
    %v5634 = vsel %vm386, %v5557, 0
    %v5637 = vsel %vm386, %v5558, 0
    %v5640 = vsel %vm386, %v5575, 0
    %v5643 = vsel %vm386, %v5576, 0
    %v5646 = vsel %vm386, %v5577, 0
    %v5649 = vsel %vm386, %v5578, 0
    %v5652 = vsel %vm386, %v5579, 0
    %v5655 = vsel %vm386, %v5580, 0
    %v5658 = vsel %vm386, %v5581, 0
    %v5661 = vsel %vm386, %v5582, 0
    %v5664 = vsel %vm386, %v5583, 0
    %v5667 = vsel %vm386, %v5584, 0
    %v5670 = vsel %vm386, %v5585, 0
    %v5673 = vsel %vm386, %v5586, 0
    %v5676 = vsel %vm386, %v5587, 0
    %v5679 = vsel %vm386, %v5588, 0
    %v5682 = vsel %vm386, %v5589, 0
    %v5685 = vsel %vm386, %v5590, 0
    %v5687 = vand.u32 %v5522, 4294901760
    %5688 = vmatprep.subr.mxu0 %v5687
    %v5689 = vand.u32 %v5521, 4294901760
    %5690 = vmatpush1.msra.mxu0 %v5689
    %v5691 = vand.u32 %v5524, 4294901760
    %5692 = vmatprep.subr.mxu0 %v5691
    %v5693 = vand.u32 %v5523, 4294901760
    %5694 = vmatpush1.msra.mxu0 %v5693
    %v5695 = vand.u32 %v5526, 4294901760
    %5696 = vmatprep.subr.mxu0 %v5695
    %v5697 = vand.u32 %v5525, 4294901760
    %5698 = vmatpush1.msra.mxu0 %v5697
    %5699 = vmatprep.subr.mxu0 0.0
    %5700 = vmatpush1.msra.mxu0 0.0
    %5701 = vmatprep.subr.mxu0 0.0
    %5702 = vmatpush1.msra.mxu0 0.0
    %5703 = vmatprep.subr.mxu0 0.0
    %5704 = vmatpush1.msra.mxu0 0.0
    %5705 = vmatprep.subr.mxu0 0.0
    %5706 = vmatpush1.msra.mxu0 0.0
    %5707 = vmatprep.subr.mxu0 0.0
    %5708 = vmatpush1.msra.mxu0 0.0
    %5709 = vmatprep.subr.mxu0 0.0
    %5710 = vmatpush1.msra.mxu0 0.0
    %5711 = vmatprep.subr.mxu0 0.0
    %5712 = vmatpush1.msra.mxu0 0.0
    %5713 = vmatprep.subr.mxu0 0.0
    %5714 = vmatpush1.msra.mxu0 0.0
    %5715 = vmatprep.subr.mxu0 0.0
    %5716 = vmatpush1.msra.mxu0 0.0
    %5717 = vmatprep.subr.mxu0 0.0
    %5718 = vmatpush1.msra.mxu0 0.0
    %5719 = vmatprep.subr.mxu0 0.0
    %5720 = vmatpush1.msra.mxu0 0.0
    %5721 = vmatprep.subr.mxu0 0.0
    %5722 = vmatpush1.msra.mxu0 0.0
    %5723 = vmatprep.subr.mxu0 0.0
    %5724 = vmatpush1.msra.mxu0 0.0
    %5725 = vmatprep.subr.mxu0 0.0
    %5726 = vmatpush1.msra.mxu0 0.0
    %5727 = vmatprep.subr.mxu0 0.0
    %5728 = vmatpush1.msra.mxu0 0.0
    %5729 = vmatprep.subr.mxu0 0.0
    %5730 = vmatpush1.msra.mxu0 0.0
    %5731 = vmatprep.subr.mxu0 0.0
    %5732 = vmatpush1.msra.mxu0 0.0
    %5733 = vmatprep.subr.mxu0 0.0
    %5734 = vmatpush1.msra.mxu0 0.0
    %5735 = vmatprep.subr.mxu0 0.0
    %5736 = vmatpush1.msra.mxu0 0.0
    %5737 = vmatprep.subr.mxu0 0.0
    %5738 = vmatpush1.msra.mxu0 0.0
    %5739 = vmatprep.subr.mxu0 0.0
    %5740 = vmatpush1.msra.mxu0 0.0
    %5741 = vmatprep.subr.mxu0 0.0
    %5742 = vmatpush1.msra.mxu0 0.0
    %5743 = vmatprep.subr.mxu0 0.0
    %5744 = vmatpush1.msra.mxu0 0.0
    %5745 = vmatprep.subr.mxu0 0.0
    %5746 = vmatpush1.msra.mxu0 0.0
    %5747 = vmatprep.subr.mxu0 0.0
    %5748 = vmatpush1.msra.mxu0 0.0
    %5749 = vmatprep.subr.mxu0 0.0
    %5750 = vmatpush1.msra.mxu0 0.0
    %5751 = vmatprep.subr.mxu0 0.0
    %5752 = vmatpush1.msra.mxu0 0.0
    %5753 = vmatprep.subr.mxu0 0.0
    %5754 = vmatpush1.msra.mxu0 0.0
    %5755 = vmatprep.subr.mxu0 0.0
    %5756 = vmatpush1.msra.mxu0 0.0
    %5757 = vmatprep.mubr.f32.mxu0 0.0
    %v5758 = vand.u32 %v5592, 4294901760
    %v5759 = vsub.f32 %v5592, %v5758
    %v5760 = vand.u32 %v5759, 4294901760
    %v5761 = vsub.f32 %v5759, %v5760
    %v5762 = vand.u32 %v5761, 4294901760
    %5763 = vmatmul.mubr.f32.gmra.mrb[0].mxu0 %v5762
    %v5764 = vpop.f32.mrb[0].mxu0
    %v5765 = vadd.f32 0.0, %v5764
    %v5766 = vpop.f32.mrb[0].mxu0
    %v5767 = vadd.f32 0.0, %v5766
    %5768 = vmatprep.mubr.f32.mxu0 0.0
    %v5769 = vand.u32 %v5595, 4294901760
    %v5770 = vsub.f32 %v5595, %v5769
    %v5771 = vand.u32 %v5770, 4294901760
    %v5772 = vsub.f32 %v5770, %v5771
    %v5773 = vand.u32 %v5772, 4294901760
    %5774 = vmatmul.mubr.f32.gmra.mrb[0].mxu0 %v5773
    %v5775 = vpop.f32.mrb[0].mxu0
    %v5776 = vadd.f32 0.0, %v5775
    %v5777 = vpop.f32.mrb[0].mxu0
    %v5778 = vadd.f32 0.0, %v5777
    %5779 = vmatprep.mubr.f32.mxu0 0.0
    %v5780 = vand.u32 %v5598, 4294901760
    %v5781 = vsub.f32 %v5598, %v5780
    %v5782 = vand.u32 %v5781, 4294901760
    %v5783 = vsub.f32 %v5781, %v5782
    %v5784 = vand.u32 %v5783, 4294901760
    %5785 = vmatmul.mubr.f32.gmra.mrb[0].mxu0 %v5784
    %v5786 = vpop.f32.mrb[0].mxu0
    %v5787 = vadd.f32 0.0, %v5786
    %v5788 = vpop.f32.mrb[0].mxu0
    %v5789 = vadd.f32 0.0, %v5788
    %5790 = vmatprep.mubr.f32.mxu0 0.0
    %v5791 = vand.u32 %v5601, 4294901760
    %v5792 = vsub.f32 %v5601, %v5791
    %v5793 = vand.u32 %v5792, 4294901760
    %v5794 = vsub.f32 %v5792, %v5793
    %v5795 = vand.u32 %v5794, 4294901760
    %5796 = vmatmul.mubr.f32.gmra.mrb[0].mxu0 %v5795
    %v5797 = vpop.f32.mrb[0].mxu0
    %v5798 = vadd.f32 0.0, %v5797
    %v5799 = vpop.f32.mrb[0].mxu0
    %v5800 = vadd.f32 0.0, %v5799
    %5801 = vmatprep.mubr.f32.mxu0 0.0
    %v5802 = vand.u32 %v5604, 4294901760
    %v5803 = vsub.f32 %v5604, %v5802
    %v5804 = vand.u32 %v5803, 4294901760
    %v5805 = vsub.f32 %v5803, %v5804
    %v5806 = vand.u32 %v5805, 4294901760
    %5807 = vmatmul.mubr.f32.gmra.mrb[0].mxu0 %v5806
    %v5808 = vpop.f32.mrb[0].mxu0
    %v5809 = vadd.f32 0.0, %v5808
    %v5810 = vpop.f32.mrb[0].mxu0
    %v5811 = vadd.f32 0.0, %v5810
    %5812 = vmatprep.mubr.f32.mxu0 0.0
    %v5813 = vand.u32 %v5607, 4294901760
    %v5814 = vsub.f32 %v5607, %v5813
    %v5815 = vand.u32 %v5814, 4294901760
    %v5816 = vsub.f32 %v5814, %v5815
    %v5817 = vand.u32 %v5816, 4294901760
    %5818 = vmatmul.mubr.f32.gmra.mrb[0].mxu0 %v5817
    %v5819 = vpop.f32.mrb[0].mxu0
    %v5820 = vadd.f32 0.0, %v5819
    %v5821 = vpop.f32.mrb[0].mxu0
    %v5822 = vadd.f32 0.0, %v5821
    %5823 = vmatprep.mubr.f32.mxu0 0.0
    %v5824 = vand.u32 %v5610, 4294901760
    %v5825 = vsub.f32 %v5610, %v5824
    %v5826 = vand.u32 %v5825, 4294901760
    %v5827 = vsub.f32 %v5825, %v5826
    %v5828 = vand.u32 %v5827, 4294901760
    %5829 = vmatmul.mubr.f32.gmra.mrb[0].mxu0 %v5828
    %v5830 = vpop.f32.mrb[0].mxu0
    %v5831 = vadd.f32 0.0, %v5830
    %v5832 = vpop.f32.mrb[0].mxu0
    %v5833 = vadd.f32 0.0, %v5832
    %5834 = vmatprep.mubr.f32.mxu0 0.0
    %v5835 = vand.u32 %v5613, 4294901760
    %v5836 = vsub.f32 %v5613, %v5835
    %v5837 = vand.u32 %v5836, 4294901760
    %v5838 = vsub.f32 %v5836, %v5837
    %v5839 = vand.u32 %v5838, 4294901760
    %5840 = vmatmul.mubr.f32.gmra.mrb[0].mxu0 %v5839
    %v5841 = vpop.f32.mrb[0].mxu0
    %v5842 = vadd.f32 0.0, %v5841
    %v5843 = vpop.f32.mrb[0].mxu0
    %v5844 = vadd.f32 0.0, %v5843
    %5845 = vmatprep.mubr.f32.mxu0 0.0
    %v5846 = vand.u32 %v5616, 4294901760
    %v5847 = vsub.f32 %v5616, %v5846
    %v5848 = vand.u32 %v5847, 4294901760
    %v5849 = vsub.f32 %v5847, %v5848
    %v5850 = vand.u32 %v5849, 4294901760
    %5851 = vmatmul.mubr.f32.gmra.mrb[0].mxu0 %v5850
    %v5852 = vpop.f32.mrb[0].mxu0
    %v5853 = vadd.f32 0.0, %v5852
    %v5854 = vpop.f32.mrb[0].mxu0
    %v5855 = vadd.f32 0.0, %v5854
    %5856 = vmatprep.mubr.f32.mxu0 0.0
    %v5857 = vand.u32 %v5619, 4294901760
    %v5858 = vsub.f32 %v5619, %v5857
    %v5859 = vand.u32 %v5858, 4294901760
    %v5860 = vsub.f32 %v5858, %v5859
    %v5861 = vand.u32 %v5860, 4294901760
    %5862 = vmatmul.mubr.f32.gmra.mrb[0].mxu0 %v5861
    %v5863 = vpop.f32.mrb[0].mxu0
    %v5864 = vadd.f32 0.0, %v5863
    %v5865 = vpop.f32.mrb[0].mxu0
    %v5866 = vadd.f32 0.0, %v5865
    %5867 = vmatprep.mubr.f32.mxu0 0.0
    %v5868 = vand.u32 %v5622, 4294901760
    %v5869 = vsub.f32 %v5622, %v5868
    %v5870 = vand.u32 %v5869, 4294901760
    %v5871 = vsub.f32 %v5869, %v5870
    %v5872 = vand.u32 %v5871, 4294901760
    %5873 = vmatmul.mubr.f32.gmra.mrb[0].mxu0 %v5872
    %v5874 = vpop.f32.mrb[0].mxu0
    %v5875 = vadd.f32 0.0, %v5874
    %v5876 = vpop.f32.mrb[0].mxu0
    %v5877 = vadd.f32 0.0, %v5876
    %5878 = vmatprep.mubr.f32.mxu0 0.0
    %v5879 = vand.u32 %v5625, 4294901760
    %v5880 = vsub.f32 %v5625, %v5879
    %v5881 = vand.u32 %v5880, 4294901760
    %v5882 = vsub.f32 %v5880, %v5881
    %v5883 = vand.u32 %v5882, 4294901760
    %5884 = vmatmul.mubr.f32.gmra.mrb[0].mxu0 %v5883
    %v5885 = vpop.f32.mrb[0].mxu0
    %v5886 = vadd.f32 0.0, %v5885
    %v5887 = vpop.f32.mrb[0].mxu0
    %v5888 = vadd.f32 0.0, %v5887
    %5889 = vmatprep.mubr.f32.mxu0 0.0
    %v5890 = vand.u32 %v5628, 4294901760
    %v5891 = vsub.f32 %v5628, %v5890
    %v5892 = vand.u32 %v5891, 4294901760
    %v5893 = vsub.f32 %v5891, %v5892
    %v5894 = vand.u32 %v5893, 4294901760
    %5895 = vmatmul.mubr.f32.gmra.mrb[0].mxu0 %v5894
    %v5896 = vpop.f32.mrb[0].mxu0
    %v5897 = vadd.f32 0.0, %v5896
    %v5898 = vpop.f32.mrb[0].mxu0
    %v5899 = vadd.f32 0.0, %v5898
    %5900 = vmatprep.mubr.f32.mxu0 0.0
    %v5901 = vand.u32 %v5631, 4294901760
    %v5902 = vsub.f32 %v5631, %v5901
    %v5903 = vand.u32 %v5902, 4294901760
    %v5904 = vsub.f32 %v5902, %v5903
    %v5905 = vand.u32 %v5904, 4294901760
    %5906 = vmatmul.mubr.f32.gmra.mrb[0].mxu0 %v5905
    %v5907 = vpop.f32.mrb[0].mxu0
    %v5908 = vadd.f32 0.0, %v5907
    %v5909 = vpop.f32.mrb[0].mxu0
    %v5910 = vadd.f32 0.0, %v5909
    %5911 = vmatprep.mubr.f32.mxu0 0.0
    %v5912 = vand.u32 %v5634, 4294901760
    %v5913 = vsub.f32 %v5634, %v5912
    %v5914 = vand.u32 %v5913, 4294901760
    %v5915 = vsub.f32 %v5913, %v5914
    %v5916 = vand.u32 %v5915, 4294901760
    %5917 = vmatmul.mubr.f32.gmra.mrb[0].mxu0 %v5916
    %v5918 = vpop.f32.mrb[0].mxu0
    %v5919 = vadd.f32 0.0, %v5918
    %v5920 = vpop.f32.mrb[0].mxu0
    %v5921 = vadd.f32 0.0, %v5920
    %5922 = vmatprep.mubr.f32.mxu0 0.0
    %v5923 = vand.u32 %v5637, 4294901760
    %v5924 = vsub.f32 %v5637, %v5923
    %v5925 = vand.u32 %v5924, 4294901760
    %v5926 = vsub.f32 %v5924, %v5925
    %v5927 = vand.u32 %v5926, 4294901760
    %5928 = vmatmul.mubr.f32.gmra.mrb[0].mxu0 %v5927
    %v5929 = vpop.f32.mrb[0].mxu0
    %v5930 = vadd.f32 0.0, %v5929
    %v5931 = vpop.f32.mrb[0].mxu0
    %v5932 = vadd.f32 0.0, %v5931
    %5933 = vmatprep.mubr.f32.mxu0 0.0
    %v5934 = vand.u32 %v5640, 4294901760
    %v5935 = vsub.f32 %v5640, %v5934
    %v5936 = vand.u32 %v5935, 4294901760
    %v5937 = vsub.f32 %v5935, %v5936
    %v5938 = vand.u32 %v5937, 4294901760
    %5939 = vmatmul.mubr.f32.gmra.mrb[0].mxu0 %v5938
    %v5940 = vpop.f32.mrb[0].mxu0
    %v5941 = vadd.f32 0.0, %v5940
    %v5942 = vpop.f32.mrb[0].mxu0
    %v5943 = vadd.f32 0.0, %v5942
    %5944 = vmatprep.mubr.f32.mxu0 0.0
    %v5945 = vand.u32 %v5643, 4294901760
    %v5946 = vsub.f32 %v5643, %v5945
    %v5947 = vand.u32 %v5946, 4294901760
    %v5948 = vsub.f32 %v5946, %v5947
    %v5949 = vand.u32 %v5948, 4294901760
    %5950 = vmatmul.mubr.f32.gmra.mrb[0].mxu0 %v5949
    %v5951 = vpop.f32.mrb[0].mxu0
    %v5952 = vadd.f32 0.0, %v5951
    %v5953 = vpop.f32.mrb[0].mxu0
    %v5954 = vadd.f32 0.0, %v5953
    %5955 = vmatprep.mubr.f32.mxu0 0.0
    %v5956 = vand.u32 %v5646, 4294901760
    %v5957 = vsub.f32 %v5646, %v5956
    %v5958 = vand.u32 %v5957, 4294901760
    %v5959 = vsub.f32 %v5957, %v5958
    %v5960 = vand.u32 %v5959, 4294901760
    %5961 = vmatmul.mubr.f32.gmra.mrb[0].mxu0 %v5960
    %v5962 = vpop.f32.mrb[0].mxu0
    %v5963 = vadd.f32 0.0, %v5962
    %v5964 = vpop.f32.mrb[0].mxu0
    %v5965 = vadd.f32 0.0, %v5964
    %5966 = vmatprep.mubr.f32.mxu0 0.0
    %v5967 = vand.u32 %v5649, 4294901760
    %v5968 = vsub.f32 %v5649, %v5967
    %v5969 = vand.u32 %v5968, 4294901760
    %v5970 = vsub.f32 %v5968, %v5969
    %v5971 = vand.u32 %v5970, 4294901760
    %5972 = vmatmul.mubr.f32.gmra.mrb[0].mxu0 %v5971
    %v5973 = vpop.f32.mrb[0].mxu0
    %v5974 = vadd.f32 0.0, %v5973
    %v5975 = vpop.f32.mrb[0].mxu0
    %v5976 = vadd.f32 0.0, %v5975
    %5977 = vmatprep.mubr.f32.mxu0 0.0
    %v5978 = vand.u32 %v5652, 4294901760
    %v5979 = vsub.f32 %v5652, %v5978
    %v5980 = vand.u32 %v5979, 4294901760
    %v5981 = vsub.f32 %v5979, %v5980
    %v5982 = vand.u32 %v5981, 4294901760
    %5983 = vmatmul.mubr.f32.gmra.mrb[0].mxu0 %v5982
    %v5984 = vpop.f32.mrb[0].mxu0
    %v5985 = vadd.f32 0.0, %v5984
    %v5986 = vpop.f32.mrb[0].mxu0
    %v5987 = vadd.f32 0.0, %v5986
    %5988 = vmatprep.mubr.f32.mxu0 0.0
    %v5989 = vand.u32 %v5655, 4294901760
    %v5990 = vsub.f32 %v5655, %v5989
    %v5991 = vand.u32 %v5990, 4294901760
    %v5992 = vsub.f32 %v5990, %v5991
    %v5993 = vand.u32 %v5992, 4294901760
    %5994 = vmatmul.mubr.f32.gmra.mrb[0].mxu0 %v5993
    %v5995 = vpop.f32.mrb[0].mxu0
    %v5996 = vadd.f32 0.0, %v5995
    %v5997 = vpop.f32.mrb[0].mxu0
    %v5998 = vadd.f32 0.0, %v5997
    %5999 = vmatprep.mubr.f32.mxu0 0.0
    %v6000 = vand.u32 %v5658, 4294901760
    %v6001 = vsub.f32 %v5658, %v6000
    %v6002 = vand.u32 %v6001, 4294901760
    %v6003 = vsub.f32 %v6001, %v6002
    %v6004 = vand.u32 %v6003, 4294901760
    %6005 = vmatmul.mubr.f32.gmra.mrb[0].mxu0 %v6004
    %v6006 = vpop.f32.mrb[0].mxu0
    %v6007 = vadd.f32 0.0, %v6006
    %v6008 = vpop.f32.mrb[0].mxu0
    %v6009 = vadd.f32 0.0, %v6008
    %6010 = vmatprep.mubr.f32.mxu0 0.0
    %v6011 = vand.u32 %v5661, 4294901760
    %v6012 = vsub.f32 %v5661, %v6011
    %v6013 = vand.u32 %v6012, 4294901760
    %v6014 = vsub.f32 %v6012, %v6013
    %v6015 = vand.u32 %v6014, 4294901760
    %6016 = vmatmul.mubr.f32.gmra.mrb[0].mxu0 %v6015
    %v6017 = vpop.f32.mrb[0].mxu0
    %v6018 = vadd.f32 0.0, %v6017
    %v6019 = vpop.f32.mrb[0].mxu0
    %v6020 = vadd.f32 0.0, %v6019
    %6021 = vmatprep.mubr.f32.mxu0 0.0
    %v6022 = vand.u32 %v5664, 4294901760
    %v6023 = vsub.f32 %v5664, %v6022
    %v6024 = vand.u32 %v6023, 4294901760
    %v6025 = vsub.f32 %v6023, %v6024
    %v6026 = vand.u32 %v6025, 4294901760
    %6027 = vmatmul.mubr.f32.gmra.mrb[0].mxu0 %v6026
    %v6028 = vpop.f32.mrb[0].mxu0
    %v6029 = vadd.f32 0.0, %v6028
    %v6030 = vpop.f32.mrb[0].mxu0
    %v6031 = vadd.f32 0.0, %v6030
    %6032 = vmatprep.mubr.f32.mxu0 0.0
    %v6033 = vand.u32 %v5667, 4294901760
    %v6034 = vsub.f32 %v5667, %v6033
    %v6035 = vand.u32 %v6034, 4294901760
    %v6036 = vsub.f32 %v6034, %v6035
    %v6037 = vand.u32 %v6036, 4294901760
    %6038 = vmatmul.mubr.f32.gmra.mrb[0].mxu0 %v6037
    %v6039 = vpop.f32.mrb[0].mxu0
    %v6040 = vadd.f32 0.0, %v6039
    %v6041 = vpop.f32.mrb[0].mxu0
    %v6042 = vadd.f32 0.0, %v6041
    %6043 = vmatprep.mubr.f32.mxu0 0.0
    %v6044 = vand.u32 %v5670, 4294901760
    %v6045 = vsub.f32 %v5670, %v6044
    %v6046 = vand.u32 %v6045, 4294901760
    %v6047 = vsub.f32 %v6045, %v6046
    %v6048 = vand.u32 %v6047, 4294901760
    %6049 = vmatmul.mubr.f32.gmra.mrb[0].mxu0 %v6048
    %v6050 = vpop.f32.mrb[0].mxu0
    %v6051 = vadd.f32 0.0, %v6050
    %v6052 = vpop.f32.mrb[0].mxu0
    %v6053 = vadd.f32 0.0, %v6052
    %6054 = vmatprep.mubr.f32.mxu0 0.0
    %v6055 = vand.u32 %v5673, 4294901760
    %v6056 = vsub.f32 %v5673, %v6055
    %v6057 = vand.u32 %v6056, 4294901760
    %v6058 = vsub.f32 %v6056, %v6057
    %v6059 = vand.u32 %v6058, 4294901760
    %6060 = vmatmul.mubr.f32.gmra.mrb[0].mxu0 %v6059
    %v6061 = vpop.f32.mrb[0].mxu0
    %v6062 = vadd.f32 0.0, %v6061
    %v6063 = vpop.f32.mrb[0].mxu0
    %v6064 = vadd.f32 0.0, %v6063
    %6065 = vmatprep.mubr.f32.mxu0 0.0
    %v6066 = vand.u32 %v5676, 4294901760
    %v6067 = vsub.f32 %v5676, %v6066
    %v6068 = vand.u32 %v6067, 4294901760
    %v6069 = vsub.f32 %v6067, %v6068
    %v6070 = vand.u32 %v6069, 4294901760
    %6071 = vmatmul.mubr.f32.gmra.mrb[0].mxu0 %v6070
    %v6072 = vpop.f32.mrb[0].mxu0
    %v6073 = vadd.f32 0.0, %v6072
    %v6074 = vpop.f32.mrb[0].mxu0
    %v6075 = vadd.f32 0.0, %v6074
    %6076 = vmatprep.mubr.f32.mxu0 0.0
    %v6077 = vand.u32 %v5679, 4294901760
    %v6078 = vsub.f32 %v5679, %v6077
    %v6079 = vand.u32 %v6078, 4294901760
    %v6080 = vsub.f32 %v6078, %v6079
    %v6081 = vand.u32 %v6080, 4294901760
    %6082 = vmatmul.mubr.f32.gmra.mrb[0].mxu0 %v6081
    %v6083 = vpop.f32.mrb[0].mxu0
    %v6084 = vadd.f32 0.0, %v6083
    %v6085 = vpop.f32.mrb[0].mxu0
    %v6086 = vadd.f32 0.0, %v6085
    %6087 = vmatprep.mubr.f32.mxu0 0.0
    %v6088 = vand.u32 %v5682, 4294901760
    %v6089 = vsub.f32 %v5682, %v6088
    %v6090 = vand.u32 %v6089, 4294901760
    %v6091 = vsub.f32 %v6089, %v6090
    %v6092 = vand.u32 %v6091, 4294901760
    %6093 = vmatmul.mubr.f32.gmra.mrb[0].mxu0 %v6092
    %v6094 = vpop.f32.mrb[0].mxu0
    %v6095 = vadd.f32 0.0, %v6094
    %v6096 = vpop.f32.mrb[0].mxu0
    %v6097 = vadd.f32 0.0, %v6096
    %6098 = vmatprep.mubr.f32.mxu0 0.0
    %v6099 = vand.u32 %v5685, 4294901760
    %v6100 = vsub.f32 %v5685, %v6099
    %v6101 = vand.u32 %v6100, 4294901760
    %v6102 = vsub.f32 %v6100, %v6101
    %v6103 = vand.u32 %v6102, 4294901760
    %6104 = vmatmul.mubr.f32.gmra.mrb[0].mxu0 %v6103
    %v6105 = vpop.f32.mrb[0].mxu0
    %v6106 = vadd.f32 0.0, %v6105
    %v6107 = vpop.f32.mrb[0].mxu0
    %v6108 = vadd.f32 0.0, %v6107
    %6109 = vdwg.mxu0
    %v6110 = vand.u32 %v5522, 4294901760
    %v6111 = vsub.f32 %v5522, %v6110
    %v6112 = vand.u32 %v6111, 4294901760
    %v6113 = vsub.f32 %v6111, %v6112
    %v6114 = vand.u32 %v6113, 4294901760
    %6115 = vmatprep.subr.mxu0 %v6114
    %v6116 = vand.u32 %v5521, 4294901760
    %v6117 = vsub.f32 %v5521, %v6116
    %v6118 = vand.u32 %v6117, 4294901760
    %v6119 = vsub.f32 %v6117, %v6118
    %v6120 = vand.u32 %v6119, 4294901760
    %6121 = vmatpush1.msra.mxu0 %v6120
    %v6122 = vand.u32 %v5524, 4294901760
    %v6123 = vsub.f32 %v5524, %v6122
    %v6124 = vand.u32 %v6123, 4294901760
    %v6125 = vsub.f32 %v6123, %v6124
    %v6126 = vand.u32 %v6125, 4294901760
    %6127 = vmatprep.subr.mxu0 %v6126
    %v6128 = vand.u32 %v5523, 4294901760
    %v6129 = vsub.f32 %v5523, %v6128
    %v6130 = vand.u32 %v6129, 4294901760
    %v6131 = vsub.f32 %v6129, %v6130
    %v6132 = vand.u32 %v6131, 4294901760
    %6133 = vmatpush1.msra.mxu0 %v6132
    %v6134 = vand.u32 %v5526, 4294901760
    %v6135 = vsub.f32 %v5526, %v6134
    %v6136 = vand.u32 %v6135, 4294901760
    %v6137 = vsub.f32 %v6135, %v6136
    %v6138 = vand.u32 %v6137, 4294901760
    %6139 = vmatprep.subr.mxu0 %v6138
    %v6140 = vand.u32 %v5525, 4294901760
    %v6141 = vsub.f32 %v5525, %v6140
    %v6142 = vand.u32 %v6141, 4294901760
    %v6143 = vsub.f32 %v6141, %v6142
    %v6144 = vand.u32 %v6143, 4294901760
    %6145 = vmatpush1.msra.mxu0 %v6144
    %6146 = vmatprep.subr.mxu0 0.0
    %6147 = vmatpush1.msra.mxu0 0.0
    %6148 = vmatprep.subr.mxu0 0.0
    %6149 = vmatpush1.msra.mxu0 0.0
    %6150 = vmatprep.subr.mxu0 0.0
    %6151 = vmatpush1.msra.mxu0 0.0
    %6152 = vmatprep.subr.mxu0 0.0
    %6153 = vmatpush1.msra.mxu0 0.0
    %6154 = vmatprep.subr.mxu0 0.0
    %6155 = vmatpush1.msra.mxu0 0.0
    %6156 = vmatprep.subr.mxu0 0.0
    %6157 = vmatpush1.msra.mxu0 0.0
    %6158 = vmatprep.subr.mxu0 0.0
    %6159 = vmatpush1.msra.mxu0 0.0
    %6160 = vmatprep.subr.mxu0 0.0
    %6161 = vmatpush1.msra.mxu0 0.0
    %6162 = vmatprep.subr.mxu0 0.0
    %6163 = vmatpush1.msra.mxu0 0.0
    %6164 = vmatprep.subr.mxu0 0.0
    %6165 = vmatpush1.msra.mxu0 0.0
    %6166 = vmatprep.subr.mxu0 0.0
    %6167 = vmatpush1.msra.mxu0 0.0
    %6168 = vmatprep.subr.mxu0 0.0
    %6169 = vmatpush1.msra.mxu0 0.0
    %6170 = vmatprep.subr.mxu0 0.0
    %6171 = vmatpush1.msra.mxu0 0.0
    %6172 = vmatprep.subr.mxu0 0.0
    %6173 = vmatpush1.msra.mxu0 0.0
    %6174 = vmatprep.subr.mxu0 0.0
    %6175 = vmatpush1.msra.mxu0 0.0
    %6176 = vmatprep.subr.mxu0 0.0
    %6177 = vmatpush1.msra.mxu0 0.0
    %6178 = vmatprep.subr.mxu0 0.0
    %6179 = vmatpush1.msra.mxu0 0.0
    %6180 = vmatprep.subr.mxu0 0.0
    %6181 = vmatpush1.msra.mxu0 0.0
    %6182 = vmatprep.subr.mxu0 0.0
    %6183 = vmatpush1.msra.mxu0 0.0
    %6184 = vmatprep.subr.mxu0 0.0
    %6185 = vmatpush1.msra.mxu0 0.0
    %6186 = vmatprep.subr.mxu0 0.0
    %6187 = vmatpush1.msra.mxu0 0.0
    %6188 = vmatprep.subr.mxu0 0.0
    %6189 = vmatpush1.msra.mxu0 0.0
    %6190 = vmatprep.subr.mxu0 0.0
    %6191 = vmatpush1.msra.mxu0 0.0
    %6192 = vmatprep.subr.mxu0 0.0
    %6193 = vmatpush1.msra.mxu0 0.0
    %6194 = vmatprep.subr.mxu0 0.0
    %6195 = vmatpush1.msra.mxu0 0.0
    %6196 = vmatprep.subr.mxu0 0.0
    %6197 = vmatpush1.msra.mxu0 0.0
    %6198 = vmatprep.subr.mxu0 0.0
    %6199 = vmatpush1.msra.mxu0 0.0
    %6200 = vmatprep.subr.mxu0 0.0
    %6201 = vmatpush1.msra.mxu0 0.0
    %6202 = vmatprep.subr.mxu0 0.0
    %6203 = vmatpush1.msra.mxu0 0.0
    %6204 = vmatprep.mubr.f32.mxu0 0.0
    %v6205 = vand.u32 %v5592, 4294901760
    %6206 = vmatmul.mubr.f32.gmra.mrb[0].mxu0 %v6205
    %v6207 = vpop.f32.mrb[0].mxu0
    %v6208 = vadd.f32 %v5765, %v6207
    %v6209 = vpop.f32.mrb[0].mxu0
    %v6210 = vadd.f32 %v5767, %v6209
    %6211 = vmatprep.mubr.f32.mxu0 0.0
    %v6212 = vand.u32 %v5595, 4294901760
    %6213 = vmatmul.mubr.f32.gmra.mrb[0].mxu0 %v6212
    %v6214 = vpop.f32.mrb[0].mxu0
    %v6215 = vadd.f32 %v5776, %v6214
    %v6216 = vpop.f32.mrb[0].mxu0
    %v6217 = vadd.f32 %v5778, %v6216
    %6218 = vmatprep.mubr.f32.mxu0 0.0
    %v6219 = vand.u32 %v5598, 4294901760
    %6220 = vmatmul.mubr.f32.gmra.mrb[0].mxu0 %v6219
    %v6221 = vpop.f32.mrb[0].mxu0
    %v6222 = vadd.f32 %v5787, %v6221
    %v6223 = vpop.f32.mrb[0].mxu0
    %v6224 = vadd.f32 %v5789, %v6223
    %6225 = vmatprep.mubr.f32.mxu0 0.0
    %v6226 = vand.u32 %v5601, 4294901760
    %6227 = vmatmul.mubr.f32.gmra.mrb[0].mxu0 %v6226
    %v6228 = vpop.f32.mrb[0].mxu0
    %v6229 = vadd.f32 %v5798, %v6228
    %v6230 = vpop.f32.mrb[0].mxu0
    %v6231 = vadd.f32 %v5800, %v6230
    %6232 = vmatprep.mubr.f32.mxu0 0.0
    %v6233 = vand.u32 %v5604, 4294901760
    %6234 = vmatmul.mubr.f32.gmra.mrb[0].mxu0 %v6233
    %v6235 = vpop.f32.mrb[0].mxu0
    %v6236 = vadd.f32 %v5809, %v6235
    %v6237 = vpop.f32.mrb[0].mxu0
    %v6238 = vadd.f32 %v5811, %v6237
    %6239 = vmatprep.mubr.f32.mxu0 0.0
    %v6240 = vand.u32 %v5607, 4294901760
    %6241 = vmatmul.mubr.f32.gmra.mrb[0].mxu0 %v6240
    %v6242 = vpop.f32.mrb[0].mxu0
    %v6243 = vadd.f32 %v5820, %v6242
    %v6244 = vpop.f32.mrb[0].mxu0
    %v6245 = vadd.f32 %v5822, %v6244
    %6246 = vmatprep.mubr.f32.mxu0 0.0
    %v6247 = vand.u32 %v5610, 4294901760
    %6248 = vmatmul.mubr.f32.gmra.mrb[0].mxu0 %v6247
    %v6249 = vpop.f32.mrb[0].mxu0
    %v6250 = vadd.f32 %v5831, %v6249
    %v6251 = vpop.f32.mrb[0].mxu0
    %v6252 = vadd.f32 %v5833, %v6251
    %6253 = vmatprep.mubr.f32.mxu0 0.0
    %v6254 = vand.u32 %v5613, 4294901760
    %6255 = vmatmul.mubr.f32.gmra.mrb[0].mxu0 %v6254
    %v6256 = vpop.f32.mrb[0].mxu0
    %v6257 = vadd.f32 %v5842, %v6256
    %v6258 = vpop.f32.mrb[0].mxu0
    %v6259 = vadd.f32 %v5844, %v6258
    %6260 = vmatprep.mubr.f32.mxu0 0.0
    %v6261 = vand.u32 %v5616, 4294901760
    %6262 = vmatmul.mubr.f32.gmra.mrb[0].mxu0 %v6261
    %v6263 = vpop.f32.mrb[0].mxu0
    %v6264 = vadd.f32 %v5853, %v6263
    %v6265 = vpop.f32.mrb[0].mxu0
    %v6266 = vadd.f32 %v5855, %v6265
    %6267 = vmatprep.mubr.f32.mxu0 0.0
    %v6268 = vand.u32 %v5619, 4294901760
    %6269 = vmatmul.mubr.f32.gmra.mrb[0].mxu0 %v6268
    %v6270 = vpop.f32.mrb[0].mxu0
    %v6271 = vadd.f32 %v5864, %v6270
    %v6272 = vpop.f32.mrb[0].mxu0
    %v6273 = vadd.f32 %v5866, %v6272
    %6274 = vmatprep.mubr.f32.mxu0 0.0
    %v6275 = vand.u32 %v5622, 4294901760
    %6276 = vmatmul.mubr.f32.gmra.mrb[0].mxu0 %v6275
    %v6277 = vpop.f32.mrb[0].mxu0
    %v6278 = vadd.f32 %v5875, %v6277
    %v6279 = vpop.f32.mrb[0].mxu0
    %v6280 = vadd.f32 %v5877, %v6279
    %6281 = vmatprep.mubr.f32.mxu0 0.0
    %v6282 = vand.u32 %v5625, 4294901760
    %6283 = vmatmul.mubr.f32.gmra.mrb[0].mxu0 %v6282
    %v6284 = vpop.f32.mrb[0].mxu0
    %v6285 = vadd.f32 %v5886, %v6284
    %v6286 = vpop.f32.mrb[0].mxu0
    %v6287 = vadd.f32 %v5888, %v6286
    %6288 = vmatprep.mubr.f32.mxu0 0.0
    %v6289 = vand.u32 %v5628, 4294901760
    %6290 = vmatmul.mubr.f32.gmra.mrb[0].mxu0 %v6289
    %v6291 = vpop.f32.mrb[0].mxu0
    %v6292 = vadd.f32 %v5897, %v6291
    %v6293 = vpop.f32.mrb[0].mxu0
    %v6294 = vadd.f32 %v5899, %v6293
    %6295 = vmatprep.mubr.f32.mxu0 0.0
    %v6296 = vand.u32 %v5631, 4294901760
    %6297 = vmatmul.mubr.f32.gmra.mrb[0].mxu0 %v6296
    %v6298 = vpop.f32.mrb[0].mxu0
    %v6299 = vadd.f32 %v5908, %v6298
    %v6300 = vpop.f32.mrb[0].mxu0
    %v6301 = vadd.f32 %v5910, %v6300
    %6302 = vmatprep.mubr.f32.mxu0 0.0
    %v6303 = vand.u32 %v5634, 4294901760
    %6304 = vmatmul.mubr.f32.gmra.mrb[0].mxu0 %v6303
    %v6305 = vpop.f32.mrb[0].mxu0
    %v6306 = vadd.f32 %v5919, %v6305
    %v6307 = vpop.f32.mrb[0].mxu0
    %v6308 = vadd.f32 %v5921, %v6307
    %6309 = vmatprep.mubr.f32.mxu0 0.0
    %v6310 = vand.u32 %v5637, 4294901760
    %6311 = vmatmul.mubr.f32.gmra.mrb[0].mxu0 %v6310
    %v6312 = vpop.f32.mrb[0].mxu0
    %v6313 = vadd.f32 %v5930, %v6312
    %v6314 = vpop.f32.mrb[0].mxu0
    %v6315 = vadd.f32 %v5932, %v6314
    %6316 = vmatprep.mubr.f32.mxu0 0.0
    %v6317 = vand.u32 %v5640, 4294901760
    %6318 = vmatmul.mubr.f32.gmra.mrb[0].mxu0 %v6317
    %v6319 = vpop.f32.mrb[0].mxu0
    %v6320 = vadd.f32 %v5941, %v6319
    %v6321 = vpop.f32.mrb[0].mxu0
    %v6322 = vadd.f32 %v5943, %v6321
    %6323 = vmatprep.mubr.f32.mxu0 0.0
    %v6324 = vand.u32 %v5643, 4294901760
    %6325 = vmatmul.mubr.f32.gmra.mrb[0].mxu0 %v6324
    %v6326 = vpop.f32.mrb[0].mxu0
    %v6327 = vadd.f32 %v5952, %v6326
    %v6328 = vpop.f32.mrb[0].mxu0
    %v6329 = vadd.f32 %v5954, %v6328
    %6330 = vmatprep.mubr.f32.mxu0 0.0
    %v6331 = vand.u32 %v5646, 4294901760
    %6332 = vmatmul.mubr.f32.gmra.mrb[0].mxu0 %v6331
    %v6333 = vpop.f32.mrb[0].mxu0
    %v6334 = vadd.f32 %v5963, %v6333
    %v6335 = vpop.f32.mrb[0].mxu0
    %v6336 = vadd.f32 %v5965, %v6335
    %6337 = vmatprep.mubr.f32.mxu0 0.0
    %v6338 = vand.u32 %v5649, 4294901760
    %6339 = vmatmul.mubr.f32.gmra.mrb[0].mxu0 %v6338
    %v6340 = vpop.f32.mrb[0].mxu0
    %v6341 = vadd.f32 %v5974, %v6340
    %v6342 = vpop.f32.mrb[0].mxu0
    %v6343 = vadd.f32 %v5976, %v6342
    %6344 = vmatprep.mubr.f32.mxu0 0.0
    %v6345 = vand.u32 %v5652, 4294901760
    %6346 = vmatmul.mubr.f32.gmra.mrb[0].mxu0 %v6345
    %v6347 = vpop.f32.mrb[0].mxu0
    %v6348 = vadd.f32 %v5985, %v6347
    %v6349 = vpop.f32.mrb[0].mxu0
    %v6350 = vadd.f32 %v5987, %v6349
    %6351 = vmatprep.mubr.f32.mxu0 0.0
    %v6352 = vand.u32 %v5655, 4294901760
    %6353 = vmatmul.mubr.f32.gmra.mrb[0].mxu0 %v6352
    %v6354 = vpop.f32.mrb[0].mxu0
    %v6355 = vadd.f32 %v5996, %v6354
    %v6356 = vpop.f32.mrb[0].mxu0
    %v6357 = vadd.f32 %v5998, %v6356
    %6358 = vmatprep.mubr.f32.mxu0 0.0
    %v6359 = vand.u32 %v5658, 4294901760
    %6360 = vmatmul.mubr.f32.gmra.mrb[0].mxu0 %v6359
    %v6361 = vpop.f32.mrb[0].mxu0
    %v6362 = vadd.f32 %v6007, %v6361
    %v6363 = vpop.f32.mrb[0].mxu0
    %v6364 = vadd.f32 %v6009, %v6363
    %6365 = vmatprep.mubr.f32.mxu0 0.0
    %v6366 = vand.u32 %v5661, 4294901760
    %6367 = vmatmul.mubr.f32.gmra.mrb[0].mxu0 %v6366
    %v6368 = vpop.f32.mrb[0].mxu0
    %v6369 = vadd.f32 %v6018, %v6368
    %v6370 = vpop.f32.mrb[0].mxu0
    %v6371 = vadd.f32 %v6020, %v6370
    %6372 = vmatprep.mubr.f32.mxu0 0.0
    %v6373 = vand.u32 %v5664, 4294901760
    %6374 = vmatmul.mubr.f32.gmra.mrb[0].mxu0 %v6373
    %v6375 = vpop.f32.mrb[0].mxu0
    %v6376 = vadd.f32 %v6029, %v6375
    %v6377 = vpop.f32.mrb[0].mxu0
    %v6378 = vadd.f32 %v6031, %v6377
    %6379 = vmatprep.mubr.f32.mxu0 0.0
    %v6380 = vand.u32 %v5667, 4294901760
    %6381 = vmatmul.mubr.f32.gmra.mrb[0].mxu0 %v6380
    %v6382 = vpop.f32.mrb[0].mxu0
    %v6383 = vadd.f32 %v6040, %v6382
    %v6384 = vpop.f32.mrb[0].mxu0
    %v6385 = vadd.f32 %v6042, %v6384
    %6386 = vmatprep.mubr.f32.mxu0 0.0
    %v6387 = vand.u32 %v5670, 4294901760
    %6388 = vmatmul.mubr.f32.gmra.mrb[0].mxu0 %v6387
    %v6389 = vpop.f32.mrb[0].mxu0
    %v6390 = vadd.f32 %v6051, %v6389
    %v6391 = vpop.f32.mrb[0].mxu0
    %v6392 = vadd.f32 %v6053, %v6391
    %6393 = vmatprep.mubr.f32.mxu0 0.0
    %v6394 = vand.u32 %v5673, 4294901760
    %6395 = vmatmul.mubr.f32.gmra.mrb[0].mxu0 %v6394
    %v6396 = vpop.f32.mrb[0].mxu0
    %v6397 = vadd.f32 %v6062, %v6396
    %v6398 = vpop.f32.mrb[0].mxu0
    %v6399 = vadd.f32 %v6064, %v6398
    %6400 = vmatprep.mubr.f32.mxu0 0.0
    %v6401 = vand.u32 %v5676, 4294901760
    %6402 = vmatmul.mubr.f32.gmra.mrb[0].mxu0 %v6401
    %v6403 = vpop.f32.mrb[0].mxu0
    %v6404 = vadd.f32 %v6073, %v6403
    %v6405 = vpop.f32.mrb[0].mxu0
    %v6406 = vadd.f32 %v6075, %v6405
    %6407 = vmatprep.mubr.f32.mxu0 0.0
    %v6408 = vand.u32 %v5679, 4294901760
    %6409 = vmatmul.mubr.f32.gmra.mrb[0].mxu0 %v6408
    %v6410 = vpop.f32.mrb[0].mxu0
    %v6411 = vadd.f32 %v6084, %v6410
    %v6412 = vpop.f32.mrb[0].mxu0
    %v6413 = vadd.f32 %v6086, %v6412
    %6414 = vmatprep.mubr.f32.mxu0 0.0
    %v6415 = vand.u32 %v5682, 4294901760
    %6416 = vmatmul.mubr.f32.gmra.mrb[0].mxu0 %v6415
    %v6417 = vpop.f32.mrb[0].mxu0
    %v6418 = vadd.f32 %v6095, %v6417
    %v6419 = vpop.f32.mrb[0].mxu0
    %v6420 = vadd.f32 %v6097, %v6419
    %6421 = vmatprep.mubr.f32.mxu0 0.0
    %v6422 = vand.u32 %v5685, 4294901760
    %6423 = vmatmul.mubr.f32.gmra.mrb[0].mxu0 %v6422
    %v6424 = vpop.f32.mrb[0].mxu0
    %v6425 = vadd.f32 %v6106, %v6424
    %v6426 = vpop.f32.mrb[0].mxu0
    %v6427 = vadd.f32 %v6108, %v6426
    %6428 = vdwg.mxu0
    %v6429 = vand.u32 %v5522, 4294901760
    %v6430 = vsub.f32 %v5522, %v6429
    %6431 = vmatprep.subr.mxu0 %v6430
    %v6432 = vand.u32 %v5521, 4294901760
    %v6433 = vsub.f32 %v5521, %v6432
    %6434 = vmatpush1.msra.mxu0 %v6433
    %v6435 = vand.u32 %v5524, 4294901760
    %v6436 = vsub.f32 %v5524, %v6435
    %6437 = vmatprep.subr.mxu0 %v6436
    %v6438 = vand.u32 %v5523, 4294901760
    %v6439 = vsub.f32 %v5523, %v6438
    %6440 = vmatpush1.msra.mxu0 %v6439
    %v6441 = vand.u32 %v5526, 4294901760
    %v6442 = vsub.f32 %v5526, %v6441
    %6443 = vmatprep.subr.mxu0 %v6442
    %v6444 = vand.u32 %v5525, 4294901760
    %v6445 = vsub.f32 %v5525, %v6444
    %6446 = vmatpush1.msra.mxu0 %v6445
    %6447 = vmatprep.subr.mxu0 0.0
    %6448 = vmatpush1.msra.mxu0 0.0
    %6449 = vmatprep.subr.mxu0 0.0
    %6450 = vmatpush1.msra.mxu0 0.0
    %6451 = vmatprep.subr.mxu0 0.0
    %6452 = vmatpush1.msra.mxu0 0.0
    %6453 = vmatprep.subr.mxu0 0.0
    %6454 = vmatpush1.msra.mxu0 0.0
    %6455 = vmatprep.subr.mxu0 0.0
    %6456 = vmatpush1.msra.mxu0 0.0
    %6457 = vmatprep.subr.mxu0 0.0
    %6458 = vmatpush1.msra.mxu0 0.0
    %6459 = vmatprep.subr.mxu0 0.0
    %6460 = vmatpush1.msra.mxu0 0.0
    %6461 = vmatprep.subr.mxu0 0.0
    %6462 = vmatpush1.msra.mxu0 0.0
    %6463 = vmatprep.subr.mxu0 0.0
    %6464 = vmatpush1.msra.mxu0 0.0
    %6465 = vmatprep.subr.mxu0 0.0
    %6466 = vmatpush1.msra.mxu0 0.0
    %6467 = vmatprep.subr.mxu0 0.0
    %6468 = vmatpush1.msra.mxu0 0.0
    %6469 = vmatprep.subr.mxu0 0.0
    %6470 = vmatpush1.msra.mxu0 0.0
    %6471 = vmatprep.subr.mxu0 0.0
    %6472 = vmatpush1.msra.mxu0 0.0
    %6473 = vmatprep.subr.mxu0 0.0
    %6474 = vmatpush1.msra.mxu0 0.0
    %6475 = vmatprep.subr.mxu0 0.0
    %6476 = vmatpush1.msra.mxu0 0.0
    %6477 = vmatprep.subr.mxu0 0.0
    %6478 = vmatpush1.msra.mxu0 0.0
    %6479 = vmatprep.subr.mxu0 0.0
    %6480 = vmatpush1.msra.mxu0 0.0
    %6481 = vmatprep.subr.mxu0 0.0
    %6482 = vmatpush1.msra.mxu0 0.0
    %6483 = vmatprep.subr.mxu0 0.0
    %6484 = vmatpush1.msra.mxu0 0.0
    %6485 = vmatprep.subr.mxu0 0.0
    %6486 = vmatpush1.msra.mxu0 0.0
    %6487 = vmatprep.subr.mxu0 0.0
    %6488 = vmatpush1.msra.mxu0 0.0
    %6489 = vmatprep.subr.mxu0 0.0
    %6490 = vmatpush1.msra.mxu0 0.0
    %6491 = vmatprep.subr.mxu0 0.0
    %6492 = vmatpush1.msra.mxu0 0.0
    %6493 = vmatprep.subr.mxu0 0.0
    %6494 = vmatpush1.msra.mxu0 0.0
    %6495 = vmatprep.subr.mxu0 0.0
    %6496 = vmatpush1.msra.mxu0 0.0
    %6497 = vmatprep.subr.mxu0 0.0
    %6498 = vmatpush1.msra.mxu0 0.0
    %6499 = vmatprep.subr.mxu0 0.0
    %6500 = vmatpush1.msra.mxu0 0.0
    %6501 = vmatprep.subr.mxu0 0.0
    %6502 = vmatpush1.msra.mxu0 0.0
    %6503 = vmatprep.subr.mxu0 0.0
    %6504 = vmatpush1.msra.mxu0 0.0
    %6505 = vmatprep.mubr.f32.mxu0 0.0
    %v6506 = vand.u32 %v5592, 4294901760
    %v6507 = vsub.f32 %v5592, %v6506
    %6508 = vmatmul.mubr.f32.gmra.mrb[0].mxu0 %v6507
    %v6509 = vpop.f32.mrb[0].mxu0
    %v6510 = vadd.f32 %v6208, %v6509
    %v6511 = vpop.f32.mrb[0].mxu0
    %v6512 = vadd.f32 %v6210, %v6511
    %6513 = vmatprep.mubr.f32.mxu0 0.0
    %v6514 = vand.u32 %v5595, 4294901760
    %v6515 = vsub.f32 %v5595, %v6514
    %6516 = vmatmul.mubr.f32.gmra.mrb[0].mxu0 %v6515
    %v6517 = vpop.f32.mrb[0].mxu0
    %v6518 = vadd.f32 %v6215, %v6517
    %v6519 = vpop.f32.mrb[0].mxu0
    %v6520 = vadd.f32 %v6217, %v6519
    %6521 = vmatprep.mubr.f32.mxu0 0.0
    %v6522 = vand.u32 %v5598, 4294901760
    %v6523 = vsub.f32 %v5598, %v6522
    %6524 = vmatmul.mubr.f32.gmra.mrb[0].mxu0 %v6523
    %v6525 = vpop.f32.mrb[0].mxu0
    %v6526 = vadd.f32 %v6222, %v6525
    %v6527 = vpop.f32.mrb[0].mxu0
    %v6528 = vadd.f32 %v6224, %v6527
    %6529 = vmatprep.mubr.f32.mxu0 0.0
    %v6530 = vand.u32 %v5601, 4294901760
    %v6531 = vsub.f32 %v5601, %v6530
    %6532 = vmatmul.mubr.f32.gmra.mrb[0].mxu0 %v6531
    %v6533 = vpop.f32.mrb[0].mxu0
    %v6534 = vadd.f32 %v6229, %v6533
    %v6535 = vpop.f32.mrb[0].mxu0
    %v6536 = vadd.f32 %v6231, %v6535
    %6537 = vmatprep.mubr.f32.mxu0 0.0
    %v6538 = vand.u32 %v5604, 4294901760
    %v6539 = vsub.f32 %v5604, %v6538
    %6540 = vmatmul.mubr.f32.gmra.mrb[0].mxu0 %v6539
    %v6541 = vpop.f32.mrb[0].mxu0
    %v6542 = vadd.f32 %v6236, %v6541
    %v6543 = vpop.f32.mrb[0].mxu0
    %v6544 = vadd.f32 %v6238, %v6543
    %6545 = vmatprep.mubr.f32.mxu0 0.0
    %v6546 = vand.u32 %v5607, 4294901760
    %v6547 = vsub.f32 %v5607, %v6546
    %6548 = vmatmul.mubr.f32.gmra.mrb[0].mxu0 %v6547
    %v6549 = vpop.f32.mrb[0].mxu0
    %v6550 = vadd.f32 %v6243, %v6549
    %v6551 = vpop.f32.mrb[0].mxu0
    %v6552 = vadd.f32 %v6245, %v6551
    %6553 = vmatprep.mubr.f32.mxu0 0.0
    %v6554 = vand.u32 %v5610, 4294901760
    %v6555 = vsub.f32 %v5610, %v6554
    %6556 = vmatmul.mubr.f32.gmra.mrb[0].mxu0 %v6555
    %v6557 = vpop.f32.mrb[0].mxu0
    %v6558 = vadd.f32 %v6250, %v6557
    %v6559 = vpop.f32.mrb[0].mxu0
    %v6560 = vadd.f32 %v6252, %v6559
    %6561 = vmatprep.mubr.f32.mxu0 0.0
    %v6562 = vand.u32 %v5613, 4294901760
    %v6563 = vsub.f32 %v5613, %v6562
    %6564 = vmatmul.mubr.f32.gmra.mrb[0].mxu0 %v6563
    %v6565 = vpop.f32.mrb[0].mxu0
    %v6566 = vadd.f32 %v6257, %v6565
    %v6567 = vpop.f32.mrb[0].mxu0
    %v6568 = vadd.f32 %v6259, %v6567
    %6569 = vmatprep.mubr.f32.mxu0 0.0
    %v6570 = vand.u32 %v5616, 4294901760
    %v6571 = vsub.f32 %v5616, %v6570
    %6572 = vmatmul.mubr.f32.gmra.mrb[0].mxu0 %v6571
    %v6573 = vpop.f32.mrb[0].mxu0
    %v6574 = vadd.f32 %v6264, %v6573
    %v6575 = vpop.f32.mrb[0].mxu0
    %v6576 = vadd.f32 %v6266, %v6575
    %6577 = vmatprep.mubr.f32.mxu0 0.0
    %v6578 = vand.u32 %v5619, 4294901760
    %v6579 = vsub.f32 %v5619, %v6578
    %6580 = vmatmul.mubr.f32.gmra.mrb[0].mxu0 %v6579
    %v6581 = vpop.f32.mrb[0].mxu0
    %v6582 = vadd.f32 %v6271, %v6581
    %v6583 = vpop.f32.mrb[0].mxu0
    %v6584 = vadd.f32 %v6273, %v6583
    %6585 = vmatprep.mubr.f32.mxu0 0.0
    %v6586 = vand.u32 %v5622, 4294901760
    %v6587 = vsub.f32 %v5622, %v6586
    %6588 = vmatmul.mubr.f32.gmra.mrb[0].mxu0 %v6587
    %v6589 = vpop.f32.mrb[0].mxu0
    %v6590 = vadd.f32 %v6278, %v6589
    %v6591 = vpop.f32.mrb[0].mxu0
    %v6592 = vadd.f32 %v6280, %v6591
    %6593 = vmatprep.mubr.f32.mxu0 0.0
    %v6594 = vand.u32 %v5625, 4294901760
    %v6595 = vsub.f32 %v5625, %v6594
    %6596 = vmatmul.mubr.f32.gmra.mrb[0].mxu0 %v6595
    %v6597 = vpop.f32.mrb[0].mxu0
    %v6598 = vadd.f32 %v6285, %v6597
    %v6599 = vpop.f32.mrb[0].mxu0
    %v6600 = vadd.f32 %v6287, %v6599
    %6601 = vmatprep.mubr.f32.mxu0 0.0
    %v6602 = vand.u32 %v5628, 4294901760
    %v6603 = vsub.f32 %v5628, %v6602
    %6604 = vmatmul.mubr.f32.gmra.mrb[0].mxu0 %v6603
    %v6605 = vpop.f32.mrb[0].mxu0
    %v6606 = vadd.f32 %v6292, %v6605
    %v6607 = vpop.f32.mrb[0].mxu0
    %v6608 = vadd.f32 %v6294, %v6607
    %6609 = vmatprep.mubr.f32.mxu0 0.0
    %v6610 = vand.u32 %v5631, 4294901760
    %v6611 = vsub.f32 %v5631, %v6610
    %6612 = vmatmul.mubr.f32.gmra.mrb[0].mxu0 %v6611
    %v6613 = vpop.f32.mrb[0].mxu0
    %v6614 = vadd.f32 %v6299, %v6613
    %v6615 = vpop.f32.mrb[0].mxu0
    %v6616 = vadd.f32 %v6301, %v6615
    %6617 = vmatprep.mubr.f32.mxu0 0.0
    %v6618 = vand.u32 %v5634, 4294901760
    %v6619 = vsub.f32 %v5634, %v6618
    %6620 = vmatmul.mubr.f32.gmra.mrb[0].mxu0 %v6619
    %v6621 = vpop.f32.mrb[0].mxu0
    %v6622 = vadd.f32 %v6306, %v6621
    %v6623 = vpop.f32.mrb[0].mxu0
    %v6624 = vadd.f32 %v6308, %v6623
    %6625 = vmatprep.mubr.f32.mxu0 0.0
    %v6626 = vand.u32 %v5637, 4294901760
    %v6627 = vsub.f32 %v5637, %v6626
    %6628 = vmatmul.mubr.f32.gmra.mrb[0].mxu0 %v6627
    %v6629 = vpop.f32.mrb[0].mxu0
    %v6630 = vadd.f32 %v6313, %v6629
    %v6631 = vpop.f32.mrb[0].mxu0
    %v6632 = vadd.f32 %v6315, %v6631
    %6633 = vmatprep.mubr.f32.mxu0 0.0
    %v6634 = vand.u32 %v5640, 4294901760
    %v6635 = vsub.f32 %v5640, %v6634
    %6636 = vmatmul.mubr.f32.gmra.mrb[0].mxu0 %v6635
    %v6637 = vpop.f32.mrb[0].mxu0
    %v6638 = vadd.f32 %v6320, %v6637
    %v6639 = vpop.f32.mrb[0].mxu0
    %v6640 = vadd.f32 %v6322, %v6639
    %6641 = vmatprep.mubr.f32.mxu0 0.0
    %v6642 = vand.u32 %v5643, 4294901760
    %v6643 = vsub.f32 %v5643, %v6642
    %6644 = vmatmul.mubr.f32.gmra.mrb[0].mxu0 %v6643
    %v6645 = vpop.f32.mrb[0].mxu0
    %v6646 = vadd.f32 %v6327, %v6645
    %v6647 = vpop.f32.mrb[0].mxu0
    %v6648 = vadd.f32 %v6329, %v6647
    %6649 = vmatprep.mubr.f32.mxu0 0.0
    %v6650 = vand.u32 %v5646, 4294901760
    %v6651 = vsub.f32 %v5646, %v6650
    %6652 = vmatmul.mubr.f32.gmra.mrb[0].mxu0 %v6651
    %v6653 = vpop.f32.mrb[0].mxu0
    %v6654 = vadd.f32 %v6334, %v6653
    %v6655 = vpop.f32.mrb[0].mxu0
    %v6656 = vadd.f32 %v6336, %v6655
    %6657 = vmatprep.mubr.f32.mxu0 0.0
    %v6658 = vand.u32 %v5649, 4294901760
    %v6659 = vsub.f32 %v5649, %v6658
    %6660 = vmatmul.mubr.f32.gmra.mrb[0].mxu0 %v6659
    %v6661 = vpop.f32.mrb[0].mxu0
    %v6662 = vadd.f32 %v6341, %v6661
    %v6663 = vpop.f32.mrb[0].mxu0
    %v6664 = vadd.f32 %v6343, %v6663
    %6665 = vmatprep.mubr.f32.mxu0 0.0
    %v6666 = vand.u32 %v5652, 4294901760
    %v6667 = vsub.f32 %v5652, %v6666
    %6668 = vmatmul.mubr.f32.gmra.mrb[0].mxu0 %v6667
    %v6669 = vpop.f32.mrb[0].mxu0
    %v6670 = vadd.f32 %v6348, %v6669
    %v6671 = vpop.f32.mrb[0].mxu0
    %v6672 = vadd.f32 %v6350, %v6671
    %6673 = vmatprep.mubr.f32.mxu0 0.0
    %v6674 = vand.u32 %v5655, 4294901760
    %v6675 = vsub.f32 %v5655, %v6674
    %6676 = vmatmul.mubr.f32.gmra.mrb[0].mxu0 %v6675
    %v6677 = vpop.f32.mrb[0].mxu0
    %v6678 = vadd.f32 %v6355, %v6677
    %v6679 = vpop.f32.mrb[0].mxu0
    %v6680 = vadd.f32 %v6357, %v6679
    %6681 = vmatprep.mubr.f32.mxu0 0.0
    %v6682 = vand.u32 %v5658, 4294901760
    %v6683 = vsub.f32 %v5658, %v6682
    %6684 = vmatmul.mubr.f32.gmra.mrb[0].mxu0 %v6683
    %v6685 = vpop.f32.mrb[0].mxu0
    %v6686 = vadd.f32 %v6362, %v6685
    %v6687 = vpop.f32.mrb[0].mxu0
    %v6688 = vadd.f32 %v6364, %v6687
    %6689 = vmatprep.mubr.f32.mxu0 0.0
    %v6690 = vand.u32 %v5661, 4294901760
    %v6691 = vsub.f32 %v5661, %v6690
    %6692 = vmatmul.mubr.f32.gmra.mrb[0].mxu0 %v6691
    %v6693 = vpop.f32.mrb[0].mxu0
    %v6694 = vadd.f32 %v6369, %v6693
    %v6695 = vpop.f32.mrb[0].mxu0
    %v6696 = vadd.f32 %v6371, %v6695
    %6697 = vmatprep.mubr.f32.mxu0 0.0
    %v6698 = vand.u32 %v5664, 4294901760
    %v6699 = vsub.f32 %v5664, %v6698
    %6700 = vmatmul.mubr.f32.gmra.mrb[0].mxu0 %v6699
    %v6701 = vpop.f32.mrb[0].mxu0
    %v6702 = vadd.f32 %v6376, %v6701
    %v6703 = vpop.f32.mrb[0].mxu0
    %v6704 = vadd.f32 %v6378, %v6703
    %6705 = vmatprep.mubr.f32.mxu0 0.0
    %v6706 = vand.u32 %v5667, 4294901760
    %v6707 = vsub.f32 %v5667, %v6706
    %6708 = vmatmul.mubr.f32.gmra.mrb[0].mxu0 %v6707
    %v6709 = vpop.f32.mrb[0].mxu0
    %v6710 = vadd.f32 %v6383, %v6709
    %v6711 = vpop.f32.mrb[0].mxu0
    %v6712 = vadd.f32 %v6385, %v6711
    %6713 = vmatprep.mubr.f32.mxu0 0.0
    %v6714 = vand.u32 %v5670, 4294901760
    %v6715 = vsub.f32 %v5670, %v6714
    %6716 = vmatmul.mubr.f32.gmra.mrb[0].mxu0 %v6715
    %v6717 = vpop.f32.mrb[0].mxu0
    %v6718 = vadd.f32 %v6390, %v6717
    %v6719 = vpop.f32.mrb[0].mxu0
    %v6720 = vadd.f32 %v6392, %v6719
    %6721 = vmatprep.mubr.f32.mxu0 0.0
    %v6722 = vand.u32 %v5673, 4294901760
    %v6723 = vsub.f32 %v5673, %v6722
    %6724 = vmatmul.mubr.f32.gmra.mrb[0].mxu0 %v6723
    %v6725 = vpop.f32.mrb[0].mxu0
    %v6726 = vadd.f32 %v6397, %v6725
    %v6727 = vpop.f32.mrb[0].mxu0
    %v6728 = vadd.f32 %v6399, %v6727
    %6729 = vmatprep.mubr.f32.mxu0 0.0
    %v6730 = vand.u32 %v5676, 4294901760
    %v6731 = vsub.f32 %v5676, %v6730
    %6732 = vmatmul.mubr.f32.gmra.mrb[0].mxu0 %v6731
    %v6733 = vpop.f32.mrb[0].mxu0
    %v6734 = vadd.f32 %v6404, %v6733
    %v6735 = vpop.f32.mrb[0].mxu0
    %v6736 = vadd.f32 %v6406, %v6735
    %6737 = vmatprep.mubr.f32.mxu0 0.0
    %v6738 = vand.u32 %v5679, 4294901760
    %v6739 = vsub.f32 %v5679, %v6738
    %6740 = vmatmul.mubr.f32.gmra.mrb[0].mxu0 %v6739
    %v6741 = vpop.f32.mrb[0].mxu0
    %v6742 = vadd.f32 %v6411, %v6741
    %v6743 = vpop.f32.mrb[0].mxu0
    %v6744 = vadd.f32 %v6413, %v6743
    %6745 = vmatprep.mubr.f32.mxu0 0.0
    %v6746 = vand.u32 %v5682, 4294901760
    %v6747 = vsub.f32 %v5682, %v6746
    %6748 = vmatmul.mubr.f32.gmra.mrb[0].mxu0 %v6747
    %v6749 = vpop.f32.mrb[0].mxu0
    %v6750 = vadd.f32 %v6418, %v6749
    %v6751 = vpop.f32.mrb[0].mxu0
    %v6752 = vadd.f32 %v6420, %v6751
    %6753 = vmatprep.mubr.f32.mxu0 0.0
    %v6754 = vand.u32 %v5685, 4294901760
    %v6755 = vsub.f32 %v5685, %v6754
    %6756 = vmatmul.mubr.f32.gmra.mrb[0].mxu0 %v6755
    %v6757 = vpop.f32.mrb[0].mxu0
    %v6758 = vadd.f32 %v6425, %v6757
    %v6759 = vpop.f32.mrb[0].mxu0
    %v6760 = vadd.f32 %v6427, %v6759
    %6761 = vdwg.mxu0
    %v6762 = vand.u32 %v5522, 4294901760
    %6763 = vmatprep.subr.mxu0 %v6762
    %v6764 = vand.u32 %v5521, 4294901760
    %6765 = vmatpush1.msra.mxu0 %v6764
    %v6766 = vand.u32 %v5524, 4294901760
    %6767 = vmatprep.subr.mxu0 %v6766
    %v6768 = vand.u32 %v5523, 4294901760
    %6769 = vmatpush1.msra.mxu0 %v6768
    %v6770 = vand.u32 %v5526, 4294901760
    %6771 = vmatprep.subr.mxu0 %v6770
    %v6772 = vand.u32 %v5525, 4294901760
    %6773 = vmatpush1.msra.mxu0 %v6772
    %6774 = vmatprep.subr.mxu0 0.0
    %6775 = vmatpush1.msra.mxu0 0.0
    %6776 = vmatprep.subr.mxu0 0.0
    %6777 = vmatpush1.msra.mxu0 0.0
    %6778 = vmatprep.subr.mxu0 0.0
    %6779 = vmatpush1.msra.mxu0 0.0
    %6780 = vmatprep.subr.mxu0 0.0
    %6781 = vmatpush1.msra.mxu0 0.0
    %6782 = vmatprep.subr.mxu0 0.0
    %6783 = vmatpush1.msra.mxu0 0.0
    %6784 = vmatprep.subr.mxu0 0.0
    %6785 = vmatpush1.msra.mxu0 0.0
    %6786 = vmatprep.subr.mxu0 0.0
    %6787 = vmatpush1.msra.mxu0 0.0
    %6788 = vmatprep.subr.mxu0 0.0
    %6789 = vmatpush1.msra.mxu0 0.0
    %6790 = vmatprep.subr.mxu0 0.0
    %6791 = vmatpush1.msra.mxu0 0.0
    %6792 = vmatprep.subr.mxu0 0.0
    %6793 = vmatpush1.msra.mxu0 0.0
    %6794 = vmatprep.subr.mxu0 0.0
    %6795 = vmatpush1.msra.mxu0 0.0
    %6796 = vmatprep.subr.mxu0 0.0
    %6797 = vmatpush1.msra.mxu0 0.0
    %6798 = vmatprep.subr.mxu0 0.0
    %6799 = vmatpush1.msra.mxu0 0.0
    %6800 = vmatprep.subr.mxu0 0.0
    %6801 = vmatpush1.msra.mxu0 0.0
    %6802 = vmatprep.subr.mxu0 0.0
    %6803 = vmatpush1.msra.mxu0 0.0
    %6804 = vmatprep.subr.mxu0 0.0
    %6805 = vmatpush1.msra.mxu0 0.0
    %6806 = vmatprep.subr.mxu0 0.0
    %6807 = vmatpush1.msra.mxu0 0.0
    %6808 = vmatprep.subr.mxu0 0.0
    %6809 = vmatpush1.msra.mxu0 0.0
    %6810 = vmatprep.subr.mxu0 0.0
    %6811 = vmatpush1.msra.mxu0 0.0
    %6812 = vmatprep.subr.mxu0 0.0
    %6813 = vmatpush1.msra.mxu0 0.0
    %6814 = vmatprep.subr.mxu0 0.0
    %6815 = vmatpush1.msra.mxu0 0.0
    %6816 = vmatprep.subr.mxu0 0.0
    %6817 = vmatpush1.msra.mxu0 0.0
    %6818 = vmatprep.subr.mxu0 0.0
    %6819 = vmatpush1.msra.mxu0 0.0
    %6820 = vmatprep.subr.mxu0 0.0
    %6821 = vmatpush1.msra.mxu0 0.0
    %6822 = vmatprep.subr.mxu0 0.0
    %6823 = vmatpush1.msra.mxu0 0.0
    %6824 = vmatprep.subr.mxu0 0.0
    %6825 = vmatpush1.msra.mxu0 0.0
    %6826 = vmatprep.subr.mxu0 0.0
    %6827 = vmatpush1.msra.mxu0 0.0
    %6828 = vmatprep.subr.mxu0 0.0
    %6829 = vmatpush1.msra.mxu0 0.0
    %6830 = vmatprep.subr.mxu0 0.0
    %6831 = vmatpush1.msra.mxu0 0.0
    %6832 = vmatprep.mubr.f32.mxu0 0.0
    %v6833 = vand.u32 %v5592, 4294901760
    %v6834 = vsub.f32 %v5592, %v6833
    %v6835 = vand.u32 %v6834, 4294901760
    %6836 = vmatmul.mubr.f32.gmra.mrb[0].mxu0 %v6835
    %v6837 = vpop.f32.mrb[0].mxu0
    %v6838 = vadd.f32 %v6510, %v6837
    %v6839 = vpop.f32.mrb[0].mxu0
    %v6840 = vadd.f32 %v6512, %v6839
    %6841 = vmatprep.mubr.f32.mxu0 0.0
    %v6842 = vand.u32 %v5595, 4294901760
    %v6843 = vsub.f32 %v5595, %v6842
    %v6844 = vand.u32 %v6843, 4294901760
    %6845 = vmatmul.mubr.f32.gmra.mrb[0].mxu0 %v6844
    %v6846 = vpop.f32.mrb[0].mxu0
    %v6847 = vadd.f32 %v6518, %v6846
    %v6848 = vpop.f32.mrb[0].mxu0
    %v6849 = vadd.f32 %v6520, %v6848
    %6850 = vmatprep.mubr.f32.mxu0 0.0
    %v6851 = vand.u32 %v5598, 4294901760
    %v6852 = vsub.f32 %v5598, %v6851
    %v6853 = vand.u32 %v6852, 4294901760
    %6854 = vmatmul.mubr.f32.gmra.mrb[0].mxu0 %v6853
    %v6855 = vpop.f32.mrb[0].mxu0
    %v6856 = vadd.f32 %v6526, %v6855
    %v6857 = vpop.f32.mrb[0].mxu0
    %v6858 = vadd.f32 %v6528, %v6857
    %6859 = vmatprep.mubr.f32.mxu0 0.0
    %v6860 = vand.u32 %v5601, 4294901760
    %v6861 = vsub.f32 %v5601, %v6860
    %v6862 = vand.u32 %v6861, 4294901760
    %6863 = vmatmul.mubr.f32.gmra.mrb[0].mxu0 %v6862
    %v6864 = vpop.f32.mrb[0].mxu0
    %v6865 = vadd.f32 %v6534, %v6864
    %v6866 = vpop.f32.mrb[0].mxu0
    %v6867 = vadd.f32 %v6536, %v6866
    %6868 = vmatprep.mubr.f32.mxu0 0.0
    %v6869 = vand.u32 %v5604, 4294901760
    %v6870 = vsub.f32 %v5604, %v6869
    %v6871 = vand.u32 %v6870, 4294901760
    %6872 = vmatmul.mubr.f32.gmra.mrb[0].mxu0 %v6871
    %v6873 = vpop.f32.mrb[0].mxu0
    %v6874 = vadd.f32 %v6542, %v6873
    %v6875 = vpop.f32.mrb[0].mxu0
    %v6876 = vadd.f32 %v6544, %v6875
    %6877 = vmatprep.mubr.f32.mxu0 0.0
    %v6878 = vand.u32 %v5607, 4294901760
    %v6879 = vsub.f32 %v5607, %v6878
    %v6880 = vand.u32 %v6879, 4294901760
    %6881 = vmatmul.mubr.f32.gmra.mrb[0].mxu0 %v6880
    %v6882 = vpop.f32.mrb[0].mxu0
    %v6883 = vadd.f32 %v6550, %v6882
    %v6884 = vpop.f32.mrb[0].mxu0
    %v6885 = vadd.f32 %v6552, %v6884
    %6886 = vmatprep.mubr.f32.mxu0 0.0
    %v6887 = vand.u32 %v5610, 4294901760
    %v6888 = vsub.f32 %v5610, %v6887
    %v6889 = vand.u32 %v6888, 4294901760
    %6890 = vmatmul.mubr.f32.gmra.mrb[0].mxu0 %v6889
    %v6891 = vpop.f32.mrb[0].mxu0
    %v6892 = vadd.f32 %v6558, %v6891
    %v6893 = vpop.f32.mrb[0].mxu0
    %v6894 = vadd.f32 %v6560, %v6893
    %6895 = vmatprep.mubr.f32.mxu0 0.0
    %v6896 = vand.u32 %v5613, 4294901760
    %v6897 = vsub.f32 %v5613, %v6896
    %v6898 = vand.u32 %v6897, 4294901760
    %6899 = vmatmul.mubr.f32.gmra.mrb[0].mxu0 %v6898
    %v6900 = vpop.f32.mrb[0].mxu0
    %v6901 = vadd.f32 %v6566, %v6900
    %v6902 = vpop.f32.mrb[0].mxu0
    %v6903 = vadd.f32 %v6568, %v6902
    %6904 = vmatprep.mubr.f32.mxu0 0.0
    %v6905 = vand.u32 %v5616, 4294901760
    %v6906 = vsub.f32 %v5616, %v6905
    %v6907 = vand.u32 %v6906, 4294901760
    %6908 = vmatmul.mubr.f32.gmra.mrb[0].mxu0 %v6907
    %v6909 = vpop.f32.mrb[0].mxu0
    %v6910 = vadd.f32 %v6574, %v6909
    %v6911 = vpop.f32.mrb[0].mxu0
    %v6912 = vadd.f32 %v6576, %v6911
    %6913 = vmatprep.mubr.f32.mxu0 0.0
    %v6914 = vand.u32 %v5619, 4294901760
    %v6915 = vsub.f32 %v5619, %v6914
    %v6916 = vand.u32 %v6915, 4294901760
    %6917 = vmatmul.mubr.f32.gmra.mrb[0].mxu0 %v6916
    %v6918 = vpop.f32.mrb[0].mxu0
    %v6919 = vadd.f32 %v6582, %v6918
    %v6920 = vpop.f32.mrb[0].mxu0
    %v6921 = vadd.f32 %v6584, %v6920
    %6922 = vmatprep.mubr.f32.mxu0 0.0
    %v6923 = vand.u32 %v5622, 4294901760
    %v6924 = vsub.f32 %v5622, %v6923
    %v6925 = vand.u32 %v6924, 4294901760
    %6926 = vmatmul.mubr.f32.gmra.mrb[0].mxu0 %v6925
    %v6927 = vpop.f32.mrb[0].mxu0
    %v6928 = vadd.f32 %v6590, %v6927
    %v6929 = vpop.f32.mrb[0].mxu0
    %v6930 = vadd.f32 %v6592, %v6929
    %6931 = vmatprep.mubr.f32.mxu0 0.0
    %v6932 = vand.u32 %v5625, 4294901760
    %v6933 = vsub.f32 %v5625, %v6932
    %v6934 = vand.u32 %v6933, 4294901760
    %6935 = vmatmul.mubr.f32.gmra.mrb[0].mxu0 %v6934
    %v6936 = vpop.f32.mrb[0].mxu0
    %v6937 = vadd.f32 %v6598, %v6936
    %v6938 = vpop.f32.mrb[0].mxu0
    %v6939 = vadd.f32 %v6600, %v6938
    %6940 = vmatprep.mubr.f32.mxu0 0.0
    %v6941 = vand.u32 %v5628, 4294901760
    %v6942 = vsub.f32 %v5628, %v6941
    %v6943 = vand.u32 %v6942, 4294901760
    %6944 = vmatmul.mubr.f32.gmra.mrb[0].mxu0 %v6943
    %v6945 = vpop.f32.mrb[0].mxu0
    %v6946 = vadd.f32 %v6606, %v6945
    %v6947 = vpop.f32.mrb[0].mxu0
    %v6948 = vadd.f32 %v6608, %v6947
    %6949 = vmatprep.mubr.f32.mxu0 0.0
    %v6950 = vand.u32 %v5631, 4294901760
    %v6951 = vsub.f32 %v5631, %v6950
    %v6952 = vand.u32 %v6951, 4294901760
    %6953 = vmatmul.mubr.f32.gmra.mrb[0].mxu0 %v6952
    %v6954 = vpop.f32.mrb[0].mxu0
    %v6955 = vadd.f32 %v6614, %v6954
    %v6956 = vpop.f32.mrb[0].mxu0
    %v6957 = vadd.f32 %v6616, %v6956
    %6958 = vmatprep.mubr.f32.mxu0 0.0
    %v6959 = vand.u32 %v5634, 4294901760
    %v6960 = vsub.f32 %v5634, %v6959
    %v6961 = vand.u32 %v6960, 4294901760
    %6962 = vmatmul.mubr.f32.gmra.mrb[0].mxu0 %v6961
    %v6963 = vpop.f32.mrb[0].mxu0
    %v6964 = vadd.f32 %v6622, %v6963
    %v6965 = vpop.f32.mrb[0].mxu0
    %v6966 = vadd.f32 %v6624, %v6965
    %6967 = vmatprep.mubr.f32.mxu0 0.0
    %v6968 = vand.u32 %v5637, 4294901760
    %v6969 = vsub.f32 %v5637, %v6968
    %v6970 = vand.u32 %v6969, 4294901760
    %6971 = vmatmul.mubr.f32.gmra.mrb[0].mxu0 %v6970
    %v6972 = vpop.f32.mrb[0].mxu0
    %v6973 = vadd.f32 %v6630, %v6972
    %v6974 = vpop.f32.mrb[0].mxu0
    %v6975 = vadd.f32 %v6632, %v6974
    %6976 = vmatprep.mubr.f32.mxu0 0.0
    %v6977 = vand.u32 %v5640, 4294901760
    %v6978 = vsub.f32 %v5640, %v6977
    %v6979 = vand.u32 %v6978, 4294901760
    %6980 = vmatmul.mubr.f32.gmra.mrb[0].mxu0 %v6979
    %v6981 = vpop.f32.mrb[0].mxu0
    %v6982 = vadd.f32 %v6638, %v6981
    %v6983 = vpop.f32.mrb[0].mxu0
    %v6984 = vadd.f32 %v6640, %v6983
    %6985 = vmatprep.mubr.f32.mxu0 0.0
    %v6986 = vand.u32 %v5643, 4294901760
    %v6987 = vsub.f32 %v5643, %v6986
    %v6988 = vand.u32 %v6987, 4294901760
    %6989 = vmatmul.mubr.f32.gmra.mrb[0].mxu0 %v6988
    %v6990 = vpop.f32.mrb[0].mxu0
    %v6991 = vadd.f32 %v6646, %v6990
    %v6992 = vpop.f32.mrb[0].mxu0
    %v6993 = vadd.f32 %v6648, %v6992
    %6994 = vmatprep.mubr.f32.mxu0 0.0
    %v6995 = vand.u32 %v5646, 4294901760
    %v6996 = vsub.f32 %v5646, %v6995
    %v6997 = vand.u32 %v6996, 4294901760
    %6998 = vmatmul.mubr.f32.gmra.mrb[0].mxu0 %v6997
    %v6999 = vpop.f32.mrb[0].mxu0
    %v7000 = vadd.f32 %v6654, %v6999
    %v7001 = vpop.f32.mrb[0].mxu0
    %v7002 = vadd.f32 %v6656, %v7001
    %7003 = vmatprep.mubr.f32.mxu0 0.0
    %v7004 = vand.u32 %v5649, 4294901760
    %v7005 = vsub.f32 %v5649, %v7004
    %v7006 = vand.u32 %v7005, 4294901760
    %7007 = vmatmul.mubr.f32.gmra.mrb[0].mxu0 %v7006
    %v7008 = vpop.f32.mrb[0].mxu0
    %v7009 = vadd.f32 %v6662, %v7008
    %v7010 = vpop.f32.mrb[0].mxu0
    %v7011 = vadd.f32 %v6664, %v7010
    %7012 = vmatprep.mubr.f32.mxu0 0.0
    %v7013 = vand.u32 %v5652, 4294901760
    %v7014 = vsub.f32 %v5652, %v7013
    %v7015 = vand.u32 %v7014, 4294901760
    %7016 = vmatmul.mubr.f32.gmra.mrb[0].mxu0 %v7015
    %v7017 = vpop.f32.mrb[0].mxu0
    %v7018 = vadd.f32 %v6670, %v7017
    %v7019 = vpop.f32.mrb[0].mxu0
    %v7020 = vadd.f32 %v6672, %v7019
    %7021 = vmatprep.mubr.f32.mxu0 0.0
    %v7022 = vand.u32 %v5655, 4294901760
    %v7023 = vsub.f32 %v5655, %v7022
    %v7024 = vand.u32 %v7023, 4294901760
    %7025 = vmatmul.mubr.f32.gmra.mrb[0].mxu0 %v7024
    %v7026 = vpop.f32.mrb[0].mxu0
    %v7027 = vadd.f32 %v6678, %v7026
    %v7028 = vpop.f32.mrb[0].mxu0
    %v7029 = vadd.f32 %v6680, %v7028
    %7030 = vmatprep.mubr.f32.mxu0 0.0
    %v7031 = vand.u32 %v5658, 4294901760
    %v7032 = vsub.f32 %v5658, %v7031
    %v7033 = vand.u32 %v7032, 4294901760
    %7034 = vmatmul.mubr.f32.gmra.mrb[0].mxu0 %v7033
    %v7035 = vpop.f32.mrb[0].mxu0
    %v7036 = vadd.f32 %v6686, %v7035
    %v7037 = vpop.f32.mrb[0].mxu0
    %v7038 = vadd.f32 %v6688, %v7037
    %7039 = vmatprep.mubr.f32.mxu0 0.0
    %v7040 = vand.u32 %v5661, 4294901760
    %v7041 = vsub.f32 %v5661, %v7040
    %v7042 = vand.u32 %v7041, 4294901760
    %7043 = vmatmul.mubr.f32.gmra.mrb[0].mxu0 %v7042
    %v7044 = vpop.f32.mrb[0].mxu0
    %v7045 = vadd.f32 %v6694, %v7044
    %v7046 = vpop.f32.mrb[0].mxu0
    %v7047 = vadd.f32 %v6696, %v7046
    %7048 = vmatprep.mubr.f32.mxu0 0.0
    %v7049 = vand.u32 %v5664, 4294901760
    %v7050 = vsub.f32 %v5664, %v7049
    %v7051 = vand.u32 %v7050, 4294901760
    %7052 = vmatmul.mubr.f32.gmra.mrb[0].mxu0 %v7051
    %v7053 = vpop.f32.mrb[0].mxu0
    %v7054 = vadd.f32 %v6702, %v7053
    %v7055 = vpop.f32.mrb[0].mxu0
    %v7056 = vadd.f32 %v6704, %v7055
    %7057 = vmatprep.mubr.f32.mxu0 0.0
    %v7058 = vand.u32 %v5667, 4294901760
    %v7059 = vsub.f32 %v5667, %v7058
    %v7060 = vand.u32 %v7059, 4294901760
    %7061 = vmatmul.mubr.f32.gmra.mrb[0].mxu0 %v7060
    %v7062 = vpop.f32.mrb[0].mxu0
    %v7063 = vadd.f32 %v6710, %v7062
    %v7064 = vpop.f32.mrb[0].mxu0
    %v7065 = vadd.f32 %v6712, %v7064
    %7066 = vmatprep.mubr.f32.mxu0 0.0
    %v7067 = vand.u32 %v5670, 4294901760
    %v7068 = vsub.f32 %v5670, %v7067
    %v7069 = vand.u32 %v7068, 4294901760
    %7070 = vmatmul.mubr.f32.gmra.mrb[0].mxu0 %v7069
    %v7071 = vpop.f32.mrb[0].mxu0
    %v7072 = vadd.f32 %v6718, %v7071
    %v7073 = vpop.f32.mrb[0].mxu0
    %v7074 = vadd.f32 %v6720, %v7073
    %7075 = vmatprep.mubr.f32.mxu0 0.0
    %v7076 = vand.u32 %v5673, 4294901760
    %v7077 = vsub.f32 %v5673, %v7076
    %v7078 = vand.u32 %v7077, 4294901760
    %7079 = vmatmul.mubr.f32.gmra.mrb[0].mxu0 %v7078
    %v7080 = vpop.f32.mrb[0].mxu0
    %v7081 = vadd.f32 %v6726, %v7080
    %v7082 = vpop.f32.mrb[0].mxu0
    %v7083 = vadd.f32 %v6728, %v7082
    %7084 = vmatprep.mubr.f32.mxu0 0.0
    %v7085 = vand.u32 %v5676, 4294901760
    %v7086 = vsub.f32 %v5676, %v7085
    %v7087 = vand.u32 %v7086, 4294901760
    %7088 = vmatmul.mubr.f32.gmra.mrb[0].mxu0 %v7087
    %v7089 = vpop.f32.mrb[0].mxu0
    %v7090 = vadd.f32 %v6734, %v7089
    %v7091 = vpop.f32.mrb[0].mxu0
    %v7092 = vadd.f32 %v6736, %v7091
    %7093 = vmatprep.mubr.f32.mxu0 0.0
    %v7094 = vand.u32 %v5679, 4294901760
    %v7095 = vsub.f32 %v5679, %v7094
    %v7096 = vand.u32 %v7095, 4294901760
    %7097 = vmatmul.mubr.f32.gmra.mrb[0].mxu0 %v7096
    %v7098 = vpop.f32.mrb[0].mxu0
    %v7099 = vadd.f32 %v6742, %v7098
    %v7100 = vpop.f32.mrb[0].mxu0
    %v7101 = vadd.f32 %v6744, %v7100
    %7102 = vmatprep.mubr.f32.mxu0 0.0
    %v7103 = vand.u32 %v5682, 4294901760
    %v7104 = vsub.f32 %v5682, %v7103
    %v7105 = vand.u32 %v7104, 4294901760
    %7106 = vmatmul.mubr.f32.gmra.mrb[0].mxu0 %v7105
    %v7107 = vpop.f32.mrb[0].mxu0
    %v7108 = vadd.f32 %v6750, %v7107
    %v7109 = vpop.f32.mrb[0].mxu0
    %v7110 = vadd.f32 %v6752, %v7109
    %7111 = vmatprep.mubr.f32.mxu0 0.0
    %v7112 = vand.u32 %v5685, 4294901760
    %v7113 = vsub.f32 %v5685, %v7112
    %v7114 = vand.u32 %v7113, 4294901760
    %7115 = vmatmul.mubr.f32.gmra.mrb[0].mxu0 %v7114
    %v7116 = vpop.f32.mrb[0].mxu0
    %v7117 = vadd.f32 %v6758, %v7116
    %v7118 = vpop.f32.mrb[0].mxu0
    %v7119 = vadd.f32 %v6760, %v7118
    %7120 = vdwg.mxu0
    %v7121 = vand.u32 %v5522, 4294901760
    %v7122 = vsub.f32 %v5522, %v7121
    %v7123 = vand.u32 %v7122, 4294901760
    %7124 = vmatprep.subr.mxu0 %v7123
    %v7125 = vand.u32 %v5521, 4294901760
    %v7126 = vsub.f32 %v5521, %v7125
    %v7127 = vand.u32 %v7126, 4294901760
    %7128 = vmatpush1.msra.mxu0 %v7127
    %v7129 = vand.u32 %v5524, 4294901760
    %v7130 = vsub.f32 %v5524, %v7129
    %v7131 = vand.u32 %v7130, 4294901760
    %7132 = vmatprep.subr.mxu0 %v7131
    %v7133 = vand.u32 %v5523, 4294901760
    %v7134 = vsub.f32 %v5523, %v7133
    %v7135 = vand.u32 %v7134, 4294901760
    %7136 = vmatpush1.msra.mxu0 %v7135
    %v7137 = vand.u32 %v5526, 4294901760
    %v7138 = vsub.f32 %v5526, %v7137
    %v7139 = vand.u32 %v7138, 4294901760
    %7140 = vmatprep.subr.mxu0 %v7139
    %v7141 = vand.u32 %v5525, 4294901760
    %v7142 = vsub.f32 %v5525, %v7141
    %v7143 = vand.u32 %v7142, 4294901760
    %7144 = vmatpush1.msra.mxu0 %v7143
    %7145 = vmatprep.subr.mxu0 0.0
    %7146 = vmatpush1.msra.mxu0 0.0
    %7147 = vmatprep.subr.mxu0 0.0
    %7148 = vmatpush1.msra.mxu0 0.0
    %7149 = vmatprep.subr.mxu0 0.0
    %7150 = vmatpush1.msra.mxu0 0.0
    %7151 = vmatprep.subr.mxu0 0.0
    %7152 = vmatpush1.msra.mxu0 0.0
    %7153 = vmatprep.subr.mxu0 0.0
    %7154 = vmatpush1.msra.mxu0 0.0
    %7155 = vmatprep.subr.mxu0 0.0
    %7156 = vmatpush1.msra.mxu0 0.0
    %7157 = vmatprep.subr.mxu0 0.0
    %7158 = vmatpush1.msra.mxu0 0.0
    %7159 = vmatprep.subr.mxu0 0.0
    %7160 = vmatpush1.msra.mxu0 0.0
    %7161 = vmatprep.subr.mxu0 0.0
    %7162 = vmatpush1.msra.mxu0 0.0
    %7163 = vmatprep.subr.mxu0 0.0
    %7164 = vmatpush1.msra.mxu0 0.0
    %7165 = vmatprep.subr.mxu0 0.0
    %7166 = vmatpush1.msra.mxu0 0.0
    %7167 = vmatprep.subr.mxu0 0.0
    %7168 = vmatpush1.msra.mxu0 0.0
    %7169 = vmatprep.subr.mxu0 0.0
    %7170 = vmatpush1.msra.mxu0 0.0
    %7171 = vmatprep.subr.mxu0 0.0
    %7172 = vmatpush1.msra.mxu0 0.0
    %7173 = vmatprep.subr.mxu0 0.0
    %7174 = vmatpush1.msra.mxu0 0.0
    %7175 = vmatprep.subr.mxu0 0.0
    %7176 = vmatpush1.msra.mxu0 0.0
    %7177 = vmatprep.subr.mxu0 0.0
    %7178 = vmatpush1.msra.mxu0 0.0
    %7179 = vmatprep.subr.mxu0 0.0
    %7180 = vmatpush1.msra.mxu0 0.0
    %7181 = vmatprep.subr.mxu0 0.0
    %7182 = vmatpush1.msra.mxu0 0.0
    %7183 = vmatprep.subr.mxu0 0.0
    %7184 = vmatpush1.msra.mxu0 0.0
    %7185 = vmatprep.subr.mxu0 0.0
    %7186 = vmatpush1.msra.mxu0 0.0
    %7187 = vmatprep.subr.mxu0 0.0
    %7188 = vmatpush1.msra.mxu0 0.0
    %7189 = vmatprep.subr.mxu0 0.0
    %7190 = vmatpush1.msra.mxu0 0.0
    %7191 = vmatprep.subr.mxu0 0.0
    %7192 = vmatpush1.msra.mxu0 0.0
    %7193 = vmatprep.subr.mxu0 0.0
    %7194 = vmatpush1.msra.mxu0 0.0
    %7195 = vmatprep.subr.mxu0 0.0
    %7196 = vmatpush1.msra.mxu0 0.0
    %7197 = vmatprep.subr.mxu0 0.0
    %7198 = vmatpush1.msra.mxu0 0.0
    %7199 = vmatprep.subr.mxu0 0.0
    %7200 = vmatpush1.msra.mxu0 0.0
    %7201 = vmatprep.subr.mxu0 0.0
    %7202 = vmatpush1.msra.mxu0 0.0
    %7203 = vmatprep.mubr.f32.mxu0 0.0
    %v7204 = vand.u32 %v5592, 4294901760
    %7205 = vmatmul.mubr.f32.gmra.mrb[0].mxu0 %v7204
    %v7206 = vpop.f32.mrb[0].mxu0
    %v7207 = vadd.f32 %v6838, %v7206
    %v7208 = vpop.f32.mrb[0].mxu0
    %v7209 = vadd.f32 %v6840, %v7208
    %7210 = vmatprep.mubr.f32.mxu0 0.0
    %v7211 = vand.u32 %v5595, 4294901760
    %7212 = vmatmul.mubr.f32.gmra.mrb[0].mxu0 %v7211
    %v7213 = vpop.f32.mrb[0].mxu0
    %v7214 = vadd.f32 %v6847, %v7213
    %v7215 = vpop.f32.mrb[0].mxu0
    %v7216 = vadd.f32 %v6849, %v7215
    %7217 = vmatprep.mubr.f32.mxu0 0.0
    %v7218 = vand.u32 %v5598, 4294901760
    %7219 = vmatmul.mubr.f32.gmra.mrb[0].mxu0 %v7218
    %v7220 = vpop.f32.mrb[0].mxu0
    %v7221 = vadd.f32 %v6856, %v7220
    %v7222 = vpop.f32.mrb[0].mxu0
    %v7223 = vadd.f32 %v6858, %v7222
    %7224 = vmatprep.mubr.f32.mxu0 0.0
    %v7225 = vand.u32 %v5601, 4294901760
    %7226 = vmatmul.mubr.f32.gmra.mrb[0].mxu0 %v7225
    %v7227 = vpop.f32.mrb[0].mxu0
    %v7228 = vadd.f32 %v6865, %v7227
    %v7229 = vpop.f32.mrb[0].mxu0
    %v7230 = vadd.f32 %v6867, %v7229
    %7231 = vmatprep.mubr.f32.mxu0 0.0
    %v7232 = vand.u32 %v5604, 4294901760
    %7233 = vmatmul.mubr.f32.gmra.mrb[0].mxu0 %v7232
    %v7234 = vpop.f32.mrb[0].mxu0
    %v7235 = vadd.f32 %v6874, %v7234
    %v7236 = vpop.f32.mrb[0].mxu0
    %v7237 = vadd.f32 %v6876, %v7236
    %7238 = vmatprep.mubr.f32.mxu0 0.0
    %v7239 = vand.u32 %v5607, 4294901760
    %7240 = vmatmul.mubr.f32.gmra.mrb[0].mxu0 %v7239
    %v7241 = vpop.f32.mrb[0].mxu0
    %v7242 = vadd.f32 %v6883, %v7241
    %v7243 = vpop.f32.mrb[0].mxu0
    %v7244 = vadd.f32 %v6885, %v7243
    %7245 = vmatprep.mubr.f32.mxu0 0.0
    %v7246 = vand.u32 %v5610, 4294901760
    %7247 = vmatmul.mubr.f32.gmra.mrb[0].mxu0 %v7246
    %v7248 = vpop.f32.mrb[0].mxu0
    %v7249 = vadd.f32 %v6892, %v7248
    %v7250 = vpop.f32.mrb[0].mxu0
    %v7251 = vadd.f32 %v6894, %v7250
    %7252 = vmatprep.mubr.f32.mxu0 0.0
    %v7253 = vand.u32 %v5613, 4294901760
    %7254 = vmatmul.mubr.f32.gmra.mrb[0].mxu0 %v7253
    %v7255 = vpop.f32.mrb[0].mxu0
    %v7256 = vadd.f32 %v6901, %v7255
    %v7257 = vpop.f32.mrb[0].mxu0
    %v7258 = vadd.f32 %v6903, %v7257
    %7259 = vmatprep.mubr.f32.mxu0 0.0
    %v7260 = vand.u32 %v5616, 4294901760
    %7261 = vmatmul.mubr.f32.gmra.mrb[0].mxu0 %v7260
    %v7262 = vpop.f32.mrb[0].mxu0
    %v7263 = vadd.f32 %v6910, %v7262
    %v7264 = vpop.f32.mrb[0].mxu0
    %v7265 = vadd.f32 %v6912, %v7264
    %7266 = vmatprep.mubr.f32.mxu0 0.0
    %v7267 = vand.u32 %v5619, 4294901760
    %7268 = vmatmul.mubr.f32.gmra.mrb[0].mxu0 %v7267
    %v7269 = vpop.f32.mrb[0].mxu0
    %v7270 = vadd.f32 %v6919, %v7269
    %v7271 = vpop.f32.mrb[0].mxu0
    %v7272 = vadd.f32 %v6921, %v7271
    %7273 = vmatprep.mubr.f32.mxu0 0.0
    %v7274 = vand.u32 %v5622, 4294901760
    %7275 = vmatmul.mubr.f32.gmra.mrb[0].mxu0 %v7274
    %v7276 = vpop.f32.mrb[0].mxu0
    %v7277 = vadd.f32 %v6928, %v7276
    %v7278 = vpop.f32.mrb[0].mxu0
    %v7279 = vadd.f32 %v6930, %v7278
    %7280 = vmatprep.mubr.f32.mxu0 0.0
    %v7281 = vand.u32 %v5625, 4294901760
    %7282 = vmatmul.mubr.f32.gmra.mrb[0].mxu0 %v7281
    %v7283 = vpop.f32.mrb[0].mxu0
    %v7284 = vadd.f32 %v6937, %v7283
    %v7285 = vpop.f32.mrb[0].mxu0
    %v7286 = vadd.f32 %v6939, %v7285
    %7287 = vmatprep.mubr.f32.mxu0 0.0
    %v7288 = vand.u32 %v5628, 4294901760
    %7289 = vmatmul.mubr.f32.gmra.mrb[0].mxu0 %v7288
    %v7290 = vpop.f32.mrb[0].mxu0
    %v7291 = vadd.f32 %v6946, %v7290
    %v7292 = vpop.f32.mrb[0].mxu0
    %v7293 = vadd.f32 %v6948, %v7292
    %7294 = vmatprep.mubr.f32.mxu0 0.0
    %v7295 = vand.u32 %v5631, 4294901760
    %7296 = vmatmul.mubr.f32.gmra.mrb[0].mxu0 %v7295
    %v7297 = vpop.f32.mrb[0].mxu0
    %v7298 = vadd.f32 %v6955, %v7297
    %v7299 = vpop.f32.mrb[0].mxu0
    %v7300 = vadd.f32 %v6957, %v7299
    %7301 = vmatprep.mubr.f32.mxu0 0.0
    %v7302 = vand.u32 %v5634, 4294901760
    %7303 = vmatmul.mubr.f32.gmra.mrb[0].mxu0 %v7302
    %v7304 = vpop.f32.mrb[0].mxu0
    %v7305 = vadd.f32 %v6964, %v7304
    %v7306 = vpop.f32.mrb[0].mxu0
    %v7307 = vadd.f32 %v6966, %v7306
    %7308 = vmatprep.mubr.f32.mxu0 0.0
    %v7309 = vand.u32 %v5637, 4294901760
    %7310 = vmatmul.mubr.f32.gmra.mrb[0].mxu0 %v7309
    %v7311 = vpop.f32.mrb[0].mxu0
    %v7312 = vadd.f32 %v6973, %v7311
    %v7313 = vpop.f32.mrb[0].mxu0
    %v7314 = vadd.f32 %v6975, %v7313
    %7315 = vmatprep.mubr.f32.mxu0 0.0
    %v7316 = vand.u32 %v5640, 4294901760
    %7317 = vmatmul.mubr.f32.gmra.mrb[0].mxu0 %v7316
    %v7318 = vpop.f32.mrb[0].mxu0
    %v7319 = vadd.f32 %v6982, %v7318
    %v7320 = vpop.f32.mrb[0].mxu0
    %v7321 = vadd.f32 %v6984, %v7320
    %7322 = vmatprep.mubr.f32.mxu0 0.0
    %v7323 = vand.u32 %v5643, 4294901760
    %7324 = vmatmul.mubr.f32.gmra.mrb[0].mxu0 %v7323
    %v7325 = vpop.f32.mrb[0].mxu0
    %v7326 = vadd.f32 %v6991, %v7325
    %v7327 = vpop.f32.mrb[0].mxu0
    %v7328 = vadd.f32 %v6993, %v7327
    %7329 = vmatprep.mubr.f32.mxu0 0.0
    %v7330 = vand.u32 %v5646, 4294901760
    %7331 = vmatmul.mubr.f32.gmra.mrb[0].mxu0 %v7330
    %v7332 = vpop.f32.mrb[0].mxu0
    %v7333 = vadd.f32 %v7000, %v7332
    %v7334 = vpop.f32.mrb[0].mxu0
    %v7335 = vadd.f32 %v7002, %v7334
    %7336 = vmatprep.mubr.f32.mxu0 0.0
    %v7337 = vand.u32 %v5649, 4294901760
    %7338 = vmatmul.mubr.f32.gmra.mrb[0].mxu0 %v7337
    %v7339 = vpop.f32.mrb[0].mxu0
    %v7340 = vadd.f32 %v7009, %v7339
    %v7341 = vpop.f32.mrb[0].mxu0
    %v7342 = vadd.f32 %v7011, %v7341
    %7343 = vmatprep.mubr.f32.mxu0 0.0
    %v7344 = vand.u32 %v5652, 4294901760
    %7345 = vmatmul.mubr.f32.gmra.mrb[0].mxu0 %v7344
    %v7346 = vpop.f32.mrb[0].mxu0
    %v7347 = vadd.f32 %v7018, %v7346
    %v7348 = vpop.f32.mrb[0].mxu0
    %v7349 = vadd.f32 %v7020, %v7348
    %7350 = vmatprep.mubr.f32.mxu0 0.0
    %v7351 = vand.u32 %v5655, 4294901760
    %7352 = vmatmul.mubr.f32.gmra.mrb[0].mxu0 %v7351
    %v7353 = vpop.f32.mrb[0].mxu0
    %v7354 = vadd.f32 %v7027, %v7353
    %v7355 = vpop.f32.mrb[0].mxu0
    %v7356 = vadd.f32 %v7029, %v7355
    %7357 = vmatprep.mubr.f32.mxu0 0.0
    %v7358 = vand.u32 %v5658, 4294901760
    %7359 = vmatmul.mubr.f32.gmra.mrb[0].mxu0 %v7358
    %v7360 = vpop.f32.mrb[0].mxu0
    %v7361 = vadd.f32 %v7036, %v7360
    %v7362 = vpop.f32.mrb[0].mxu0
    %v7363 = vadd.f32 %v7038, %v7362
    %7364 = vmatprep.mubr.f32.mxu0 0.0
    %v7365 = vand.u32 %v5661, 4294901760
    %7366 = vmatmul.mubr.f32.gmra.mrb[0].mxu0 %v7365
    %v7367 = vpop.f32.mrb[0].mxu0
    %v7368 = vadd.f32 %v7045, %v7367
    %v7369 = vpop.f32.mrb[0].mxu0
    %v7370 = vadd.f32 %v7047, %v7369
    %7371 = vmatprep.mubr.f32.mxu0 0.0
    %v7372 = vand.u32 %v5664, 4294901760
    %7373 = vmatmul.mubr.f32.gmra.mrb[0].mxu0 %v7372
    %v7374 = vpop.f32.mrb[0].mxu0
    %v7375 = vadd.f32 %v7054, %v7374
    %v7376 = vpop.f32.mrb[0].mxu0
    %v7377 = vadd.f32 %v7056, %v7376
    %7378 = vmatprep.mubr.f32.mxu0 0.0
    %v7379 = vand.u32 %v5667, 4294901760
    %7380 = vmatmul.mubr.f32.gmra.mrb[0].mxu0 %v7379
    %v7381 = vpop.f32.mrb[0].mxu0
    %v7382 = vadd.f32 %v7063, %v7381
    %v7383 = vpop.f32.mrb[0].mxu0
    %v7384 = vadd.f32 %v7065, %v7383
    %7385 = vmatprep.mubr.f32.mxu0 0.0
    %v7386 = vand.u32 %v5670, 4294901760
    %7387 = vmatmul.mubr.f32.gmra.mrb[0].mxu0 %v7386
    %v7388 = vpop.f32.mrb[0].mxu0
    %v7389 = vadd.f32 %v7072, %v7388
    %v7390 = vpop.f32.mrb[0].mxu0
    %v7391 = vadd.f32 %v7074, %v7390
    %7392 = vmatprep.mubr.f32.mxu0 0.0
    %v7393 = vand.u32 %v5673, 4294901760
    %7394 = vmatmul.mubr.f32.gmra.mrb[0].mxu0 %v7393
    %v7395 = vpop.f32.mrb[0].mxu0
    %v7396 = vadd.f32 %v7081, %v7395
    %v7397 = vpop.f32.mrb[0].mxu0
    %v7398 = vadd.f32 %v7083, %v7397
    %7399 = vmatprep.mubr.f32.mxu0 0.0
    %v7400 = vand.u32 %v5676, 4294901760
    %7401 = vmatmul.mubr.f32.gmra.mrb[0].mxu0 %v7400
    %v7402 = vpop.f32.mrb[0].mxu0
    %v7403 = vadd.f32 %v7090, %v7402
    %v7404 = vpop.f32.mrb[0].mxu0
    %v7405 = vadd.f32 %v7092, %v7404
    %7406 = vmatprep.mubr.f32.mxu0 0.0
    %v7407 = vand.u32 %v5679, 4294901760
    %7408 = vmatmul.mubr.f32.gmra.mrb[0].mxu0 %v7407
    %v7409 = vpop.f32.mrb[0].mxu0
    %v7410 = vadd.f32 %v7099, %v7409
    %v7411 = vpop.f32.mrb[0].mxu0
    %v7412 = vadd.f32 %v7101, %v7411
    %7413 = vmatprep.mubr.f32.mxu0 0.0
    %v7414 = vand.u32 %v5682, 4294901760
    %7415 = vmatmul.mubr.f32.gmra.mrb[0].mxu0 %v7414
    %v7416 = vpop.f32.mrb[0].mxu0
    %v7417 = vadd.f32 %v7108, %v7416
    %v7418 = vpop.f32.mrb[0].mxu0
    %v7419 = vadd.f32 %v7110, %v7418
    %7420 = vmatprep.mubr.f32.mxu0 0.0
    %v7421 = vand.u32 %v5685, 4294901760
    %7422 = vmatmul.mubr.f32.gmra.mrb[0].mxu0 %v7421
    %v7423 = vpop.f32.mrb[0].mxu0
    %v7424 = vadd.f32 %v7117, %v7423
    %v7425 = vpop.f32.mrb[0].mxu0
    %v7426 = vadd.f32 %v7119, %v7425
    %7427 = vdwg.mxu0
    %v7428 = vand.u32 %v5522, 4294901760
    %7429 = vmatprep.subr.mxu0 %v7428
    %v7430 = vand.u32 %v5521, 4294901760
    %7431 = vmatpush1.msra.mxu0 %v7430
    %v7432 = vand.u32 %v5524, 4294901760
    %7433 = vmatprep.subr.mxu0 %v7432
    %v7434 = vand.u32 %v5523, 4294901760
    %7435 = vmatpush1.msra.mxu0 %v7434
    %v7436 = vand.u32 %v5526, 4294901760
    %7437 = vmatprep.subr.mxu0 %v7436
    %v7438 = vand.u32 %v5525, 4294901760
    %7439 = vmatpush1.msra.mxu0 %v7438
    %7440 = vmatprep.subr.mxu0 0.0
    %7441 = vmatpush1.msra.mxu0 0.0
    %7442 = vmatprep.subr.mxu0 0.0
    %7443 = vmatpush1.msra.mxu0 0.0
    %7444 = vmatprep.subr.mxu0 0.0
    %7445 = vmatpush1.msra.mxu0 0.0
    %7446 = vmatprep.subr.mxu0 0.0
    %7447 = vmatpush1.msra.mxu0 0.0
    %7448 = vmatprep.subr.mxu0 0.0
    %7449 = vmatpush1.msra.mxu0 0.0
    %7450 = vmatprep.subr.mxu0 0.0
    %7451 = vmatpush1.msra.mxu0 0.0
    %7452 = vmatprep.subr.mxu0 0.0
    %7453 = vmatpush1.msra.mxu0 0.0
    %7454 = vmatprep.subr.mxu0 0.0
    %7455 = vmatpush1.msra.mxu0 0.0
    %7456 = vmatprep.subr.mxu0 0.0
    %7457 = vmatpush1.msra.mxu0 0.0
    %7458 = vmatprep.subr.mxu0 0.0
    %7459 = vmatpush1.msra.mxu0 0.0
    %7460 = vmatprep.subr.mxu0 0.0
    %7461 = vmatpush1.msra.mxu0 0.0
    %7462 = vmatprep.subr.mxu0 0.0
    %7463 = vmatpush1.msra.mxu0 0.0
    %7464 = vmatprep.subr.mxu0 0.0
    %7465 = vmatpush1.msra.mxu0 0.0
    %7466 = vmatprep.subr.mxu0 0.0
    %7467 = vmatpush1.msra.mxu0 0.0
    %7468 = vmatprep.subr.mxu0 0.0
    %7469 = vmatpush1.msra.mxu0 0.0
    %7470 = vmatprep.subr.mxu0 0.0
    %7471 = vmatpush1.msra.mxu0 0.0
    %7472 = vmatprep.subr.mxu0 0.0
    %7473 = vmatpush1.msra.mxu0 0.0
    %7474 = vmatprep.subr.mxu0 0.0
    %7475 = vmatpush1.msra.mxu0 0.0
    %7476 = vmatprep.subr.mxu0 0.0
    %7477 = vmatpush1.msra.mxu0 0.0
    %7478 = vmatprep.subr.mxu0 0.0
    %7479 = vmatpush1.msra.mxu0 0.0
    %7480 = vmatprep.subr.mxu0 0.0
    %7481 = vmatpush1.msra.mxu0 0.0
    %7482 = vmatprep.subr.mxu0 0.0
    %7483 = vmatpush1.msra.mxu0 0.0
    %7484 = vmatprep.subr.mxu0 0.0
    %7485 = vmatpush1.msra.mxu0 0.0
    %7486 = vmatprep.subr.mxu0 0.0
    %7487 = vmatpush1.msra.mxu0 0.0
    %7488 = vmatprep.subr.mxu0 0.0
    %7489 = vmatpush1.msra.mxu0 0.0
    %7490 = vmatprep.subr.mxu0 0.0
    %7491 = vmatpush1.msra.mxu0 0.0
    %7492 = vmatprep.subr.mxu0 0.0
    %7493 = vmatpush1.msra.mxu0 0.0
    %7494 = vmatprep.subr.mxu0 0.0
    %7495 = vmatpush1.msra.mxu0 0.0
    %7496 = vmatprep.subr.mxu0 0.0
    %7497 = vmatpush1.msra.mxu0 0.0
    %7498 = vmatprep.mubr.f32.mxu0 0.0
    %v7499 = vand.u32 %v5592, 4294901760
    %7500 = vmatmul.mubr.f32.gmra.mrb[0].mxu0 %v7499
    %v7501 = vpop.f32.mrb[0].mxu0
    %v7502 = vadd.f32 %v7207, %v7501
    %v7503 = vpop.f32.mrb[0].mxu0
    %v7504 = vadd.f32 %v7209, %v7503
    %7505 = vmatprep.mubr.f32.mxu0 0.0
    %v7506 = vand.u32 %v5595, 4294901760
    %7507 = vmatmul.mubr.f32.gmra.mrb[0].mxu0 %v7506
    %v7508 = vpop.f32.mrb[0].mxu0
    %v7509 = vadd.f32 %v7214, %v7508
    %v7510 = vpop.f32.mrb[0].mxu0
    %v7511 = vadd.f32 %v7216, %v7510
    %7512 = vmatprep.mubr.f32.mxu0 0.0
    %v7513 = vand.u32 %v5598, 4294901760
    %7514 = vmatmul.mubr.f32.gmra.mrb[0].mxu0 %v7513
    %v7515 = vpop.f32.mrb[0].mxu0
    %v7516 = vadd.f32 %v7221, %v7515
    %v7517 = vpop.f32.mrb[0].mxu0
    %v7518 = vadd.f32 %v7223, %v7517
    %7519 = vmatprep.mubr.f32.mxu0 0.0
    %v7520 = vand.u32 %v5601, 4294901760
    %7521 = vmatmul.mubr.f32.gmra.mrb[0].mxu0 %v7520
    %v7522 = vpop.f32.mrb[0].mxu0
    %v7523 = vadd.f32 %v7228, %v7522
    %v7524 = vpop.f32.mrb[0].mxu0
    %v7525 = vadd.f32 %v7230, %v7524
    %7526 = vmatprep.mubr.f32.mxu0 0.0
    %v7527 = vand.u32 %v5604, 4294901760
    %7528 = vmatmul.mubr.f32.gmra.mrb[0].mxu0 %v7527
    %v7529 = vpop.f32.mrb[0].mxu0
    %v7530 = vadd.f32 %v7235, %v7529
    %v7531 = vpop.f32.mrb[0].mxu0
    %v7532 = vadd.f32 %v7237, %v7531
    %7533 = vmatprep.mubr.f32.mxu0 0.0
    %v7534 = vand.u32 %v5607, 4294901760
    %7535 = vmatmul.mubr.f32.gmra.mrb[0].mxu0 %v7534
    %v7536 = vpop.f32.mrb[0].mxu0
    %v7537 = vadd.f32 %v7242, %v7536
    %v7538 = vpop.f32.mrb[0].mxu0
    %v7539 = vadd.f32 %v7244, %v7538
    %7540 = vmatprep.mubr.f32.mxu0 0.0
    %v7541 = vand.u32 %v5610, 4294901760
    %7542 = vmatmul.mubr.f32.gmra.mrb[0].mxu0 %v7541
    %v7543 = vpop.f32.mrb[0].mxu0
    %v7544 = vadd.f32 %v7249, %v7543
    %v7545 = vpop.f32.mrb[0].mxu0
    %v7546 = vadd.f32 %v7251, %v7545
    %7547 = vmatprep.mubr.f32.mxu0 0.0
    %v7548 = vand.u32 %v5613, 4294901760
    %7549 = vmatmul.mubr.f32.gmra.mrb[0].mxu0 %v7548
    %v7550 = vpop.f32.mrb[0].mxu0
    %v7551 = vadd.f32 %v7256, %v7550
    %v7552 = vpop.f32.mrb[0].mxu0
    %v7553 = vadd.f32 %v7258, %v7552
    %7554 = vmatprep.mubr.f32.mxu0 0.0
    %v7555 = vand.u32 %v5616, 4294901760
    %7556 = vmatmul.mubr.f32.gmra.mrb[0].mxu0 %v7555
    %v7557 = vpop.f32.mrb[0].mxu0
    %v7558 = vadd.f32 %v7263, %v7557
    %v7559 = vpop.f32.mrb[0].mxu0
    %v7560 = vadd.f32 %v7265, %v7559
    %7561 = vmatprep.mubr.f32.mxu0 0.0
    %v7562 = vand.u32 %v5619, 4294901760
    %7563 = vmatmul.mubr.f32.gmra.mrb[0].mxu0 %v7562
    %v7564 = vpop.f32.mrb[0].mxu0
    %v7565 = vadd.f32 %v7270, %v7564
    %v7566 = vpop.f32.mrb[0].mxu0
    %v7567 = vadd.f32 %v7272, %v7566
    %7568 = vmatprep.mubr.f32.mxu0 0.0
    %v7569 = vand.u32 %v5622, 4294901760
    %7570 = vmatmul.mubr.f32.gmra.mrb[0].mxu0 %v7569
    %v7571 = vpop.f32.mrb[0].mxu0
    %v7572 = vadd.f32 %v7277, %v7571
    %v7573 = vpop.f32.mrb[0].mxu0
    %v7574 = vadd.f32 %v7279, %v7573
    %7575 = vmatprep.mubr.f32.mxu0 0.0
    %v7576 = vand.u32 %v5625, 4294901760
    %7577 = vmatmul.mubr.f32.gmra.mrb[0].mxu0 %v7576
    %v7578 = vpop.f32.mrb[0].mxu0
    %v7579 = vadd.f32 %v7284, %v7578
    %v7580 = vpop.f32.mrb[0].mxu0
    %v7581 = vadd.f32 %v7286, %v7580
    %7582 = vmatprep.mubr.f32.mxu0 0.0
    %v7583 = vand.u32 %v5628, 4294901760
    %7584 = vmatmul.mubr.f32.gmra.mrb[0].mxu0 %v7583
    %v7585 = vpop.f32.mrb[0].mxu0
    %v7586 = vadd.f32 %v7291, %v7585
    %v7587 = vpop.f32.mrb[0].mxu0
    %v7588 = vadd.f32 %v7293, %v7587
    %7589 = vmatprep.mubr.f32.mxu0 0.0
    %v7590 = vand.u32 %v5631, 4294901760
    %7591 = vmatmul.mubr.f32.gmra.mrb[0].mxu0 %v7590
    %v7592 = vpop.f32.mrb[0].mxu0
    %v7593 = vadd.f32 %v7298, %v7592
    %v7594 = vpop.f32.mrb[0].mxu0
    %v7595 = vadd.f32 %v7300, %v7594
    %7596 = vmatprep.mubr.f32.mxu0 0.0
    %v7597 = vand.u32 %v5634, 4294901760
    %7598 = vmatmul.mubr.f32.gmra.mrb[0].mxu0 %v7597
    %v7599 = vpop.f32.mrb[0].mxu0
    %v7600 = vadd.f32 %v7305, %v7599
    %v7601 = vpop.f32.mrb[0].mxu0
    %v7602 = vadd.f32 %v7307, %v7601
    %7603 = vmatprep.mubr.f32.mxu0 0.0
    %v7604 = vand.u32 %v5637, 4294901760
    %7605 = vmatmul.mubr.f32.gmra.mrb[0].mxu0 %v7604
    %v7606 = vpop.f32.mrb[0].mxu0
    %v7607 = vadd.f32 %v7312, %v7606
    %v7608 = vpop.f32.mrb[0].mxu0
    %v7609 = vadd.f32 %v7314, %v7608
    %7610 = vmatprep.mubr.f32.mxu0 0.0
    %v7611 = vand.u32 %v5640, 4294901760
    %7612 = vmatmul.mubr.f32.gmra.mrb[0].mxu0 %v7611
    %v7613 = vpop.f32.mrb[0].mxu0
    %v7614 = vadd.f32 %v7319, %v7613
    %v7615 = vpop.f32.mrb[0].mxu0
    %v7616 = vadd.f32 %v7321, %v7615
    %7617 = vmatprep.mubr.f32.mxu0 0.0
    %v7618 = vand.u32 %v5643, 4294901760
    %7619 = vmatmul.mubr.f32.gmra.mrb[0].mxu0 %v7618
    %v7620 = vpop.f32.mrb[0].mxu0
    %v7621 = vadd.f32 %v7326, %v7620
    %v7622 = vpop.f32.mrb[0].mxu0
    %v7623 = vadd.f32 %v7328, %v7622
    %7624 = vmatprep.mubr.f32.mxu0 0.0
    %v7625 = vand.u32 %v5646, 4294901760
    %7626 = vmatmul.mubr.f32.gmra.mrb[0].mxu0 %v7625
    %v7627 = vpop.f32.mrb[0].mxu0
    %v7628 = vadd.f32 %v7333, %v7627
    %v7629 = vpop.f32.mrb[0].mxu0
    %v7630 = vadd.f32 %v7335, %v7629
    %7631 = vmatprep.mubr.f32.mxu0 0.0
    %v7632 = vand.u32 %v5649, 4294901760
    %7633 = vmatmul.mubr.f32.gmra.mrb[0].mxu0 %v7632
    %v7634 = vpop.f32.mrb[0].mxu0
    %v7635 = vadd.f32 %v7340, %v7634
    %v7636 = vpop.f32.mrb[0].mxu0
    %v7637 = vadd.f32 %v7342, %v7636
    %7638 = vmatprep.mubr.f32.mxu0 0.0
    %v7639 = vand.u32 %v5652, 4294901760
    %7640 = vmatmul.mubr.f32.gmra.mrb[0].mxu0 %v7639
    %v7641 = vpop.f32.mrb[0].mxu0
    %v7642 = vadd.f32 %v7347, %v7641
    %v7643 = vpop.f32.mrb[0].mxu0
    %v7644 = vadd.f32 %v7349, %v7643
    %7645 = vmatprep.mubr.f32.mxu0 0.0
    %v7646 = vand.u32 %v5655, 4294901760
    %7647 = vmatmul.mubr.f32.gmra.mrb[0].mxu0 %v7646
    %v7648 = vpop.f32.mrb[0].mxu0
    %v7649 = vadd.f32 %v7354, %v7648
    %v7650 = vpop.f32.mrb[0].mxu0
    %v7651 = vadd.f32 %v7356, %v7650
    %7652 = vmatprep.mubr.f32.mxu0 0.0
    %v7653 = vand.u32 %v5658, 4294901760
    %7654 = vmatmul.mubr.f32.gmra.mrb[0].mxu0 %v7653
    %v7655 = vpop.f32.mrb[0].mxu0
    %v7656 = vadd.f32 %v7361, %v7655
    %v7657 = vpop.f32.mrb[0].mxu0
    %v7658 = vadd.f32 %v7363, %v7657
    %7659 = vmatprep.mubr.f32.mxu0 0.0
    %v7660 = vand.u32 %v5661, 4294901760
    %7661 = vmatmul.mubr.f32.gmra.mrb[0].mxu0 %v7660
    %v7662 = vpop.f32.mrb[0].mxu0
    %v7663 = vadd.f32 %v7368, %v7662
    %v7664 = vpop.f32.mrb[0].mxu0
    %v7665 = vadd.f32 %v7370, %v7664
    %7666 = vmatprep.mubr.f32.mxu0 0.0
    %v7667 = vand.u32 %v5664, 4294901760
    %7668 = vmatmul.mubr.f32.gmra.mrb[0].mxu0 %v7667
    %v7669 = vpop.f32.mrb[0].mxu0
    %v7670 = vadd.f32 %v7375, %v7669
    %v7671 = vpop.f32.mrb[0].mxu0
    %v7672 = vadd.f32 %v7377, %v7671
    %7673 = vmatprep.mubr.f32.mxu0 0.0
    %v7674 = vand.u32 %v5667, 4294901760
    %7675 = vmatmul.mubr.f32.gmra.mrb[0].mxu0 %v7674
    %v7676 = vpop.f32.mrb[0].mxu0
    %v7677 = vadd.f32 %v7382, %v7676
    %v7678 = vpop.f32.mrb[0].mxu0
    %v7679 = vadd.f32 %v7384, %v7678
    %7680 = vmatprep.mubr.f32.mxu0 0.0
    %v7681 = vand.u32 %v5670, 4294901760
    %7682 = vmatmul.mubr.f32.gmra.mrb[0].mxu0 %v7681
    %v7683 = vpop.f32.mrb[0].mxu0
    %v7684 = vadd.f32 %v7389, %v7683
    %v7685 = vpop.f32.mrb[0].mxu0
    %v7686 = vadd.f32 %v7391, %v7685
    %7687 = vmatprep.mubr.f32.mxu0 0.0
    %v7688 = vand.u32 %v5673, 4294901760
    %7689 = vmatmul.mubr.f32.gmra.mrb[0].mxu0 %v7688
    %v7690 = vpop.f32.mrb[0].mxu0
    %v7691 = vadd.f32 %v7396, %v7690
    %v7692 = vpop.f32.mrb[0].mxu0
    %v7693 = vadd.f32 %v7398, %v7692
    %7694 = vmatprep.mubr.f32.mxu0 0.0
    %v7695 = vand.u32 %v5676, 4294901760
    %7696 = vmatmul.mubr.f32.gmra.mrb[0].mxu0 %v7695
    %v7697 = vpop.f32.mrb[0].mxu0
    %v7698 = vadd.f32 %v7403, %v7697
    %v7699 = vpop.f32.mrb[0].mxu0
    %v7700 = vadd.f32 %v7405, %v7699
    %7701 = vmatprep.mubr.f32.mxu0 0.0
    %v7702 = vand.u32 %v5679, 4294901760
    %7703 = vmatmul.mubr.f32.gmra.mrb[0].mxu0 %v7702
    %v7704 = vpop.f32.mrb[0].mxu0
    %v7705 = vadd.f32 %v7410, %v7704
    %v7706 = vpop.f32.mrb[0].mxu0
    %v7707 = vadd.f32 %v7412, %v7706
    %7708 = vmatprep.mubr.f32.mxu0 0.0
    %v7709 = vand.u32 %v5682, 4294901760
    %7710 = vmatmul.mubr.f32.gmra.mrb[0].mxu0 %v7709
    %v7711 = vpop.f32.mrb[0].mxu0
    %v7712 = vadd.f32 %v7417, %v7711
    %v7713 = vpop.f32.mrb[0].mxu0
    %v7714 = vadd.f32 %v7419, %v7713
    %7715 = vmatprep.mubr.f32.mxu0 0.0
    %v7716 = vand.u32 %v5685, 4294901760
    %7717 = vmatmul.mubr.f32.gmra.mrb[0].mxu0 %v7716
    %v7718 = vpop.f32.mrb[0].mxu0
    %v7719 = vadd.f32 %v7424, %v7718
    %v7720 = vpop.f32.mrb[0].mxu0
    %v7721 = vadd.f32 %v7426, %v7720
    %7722 = vdwg.mxu0
    %v7723 = vmul.f32 %v7504, 1.442695
    %v7724 = vpow.pop %v7723
    %v7725 = vmul.f32 %v7511, 1.442695
    %v7726 = vpow.pop %v7725
    %v7727 = vmul.f32 %v7518, 1.442695
    %v7728 = vpow.pop %v7727
    %v7729 = vmul.f32 %v7525, 1.442695
    %v7730 = vpow.pop %v7729
    %v7731 = vmul.f32 %v7532, 1.442695
    %v7732 = vpow.pop %v7731
    %v7733 = vmul.f32 %v7539, 1.442695
    %v7734 = vpow.pop %v7733
    %v7735 = vmul.f32 %v7546, 1.442695
    %v7736 = vpow.pop %v7735
    %v7737 = vmul.f32 %v7553, 1.442695
    %v7738 = vpow.pop %v7737
    %v7739 = vmul.f32 %v7560, 1.442695
    %v7740 = vpow.pop %v7739
    %v7741 = vmul.f32 %v7567, 1.442695
    %v7742 = vpow.pop %v7741
    %v7743 = vmul.f32 %v7574, 1.442695
    %v7744 = vpow.pop %v7743
    %v7745 = vmul.f32 %v7581, 1.442695
    %v7746 = vpow.pop %v7745
    %v7747 = vmul.f32 %v7588, 1.442695
    %v7748 = vpow.pop %v7747
    %v7749 = vmul.f32 %v7595, 1.442695
    %v7750 = vpow.pop %v7749
    %v7751 = vmul.f32 %v7602, 1.442695
    %v7752 = vpow.pop %v7751
    %v7753 = vmul.f32 %v7609, 1.442695
    %v7754 = vpow.pop %v7753
    %v7755 = vmul.f32 %v7616, 1.442695
    %v7756 = vpow.pop %v7755
    %v7757 = vmul.f32 %v7623, 1.442695
    %v7758 = vpow.pop %v7757
    %v7759 = vmul.f32 %v7630, 1.442695
    %v7760 = vpow.pop %v7759
    %v7761 = vmul.f32 %v7637, 1.442695
    %v7762 = vpow.pop %v7761
    %v7763 = vmul.f32 %v7644, 1.442695
    %v7764 = vpow.pop %v7763
    %v7765 = vmul.f32 %v7651, 1.442695
    %v7766 = vpow.pop %v7765
    %v7767 = vmul.f32 %v7658, 1.442695
    %v7768 = vpow.pop %v7767
    %v7769 = vmul.f32 %v7665, 1.442695
    %v7770 = vpow.pop %v7769
    %v7771 = vmul.f32 %v7672, 1.442695
    %v7772 = vpow.pop %v7771
    %v7773 = vmul.f32 %v7679, 1.442695
    %v7774 = vpow.pop %v7773
    %v7775 = vmul.f32 %v7686, 1.442695
    %v7776 = vpow.pop %v7775
    %v7777 = vmul.f32 %v7693, 1.442695
    %v7778 = vpow.pop %v7777
    %v7779 = vmul.f32 %v7700, 1.442695
    %v7780 = vpow.pop %v7779
    %v7781 = vmul.f32 %v7707, 1.442695
    %v7782 = vpow.pop %v7781
    %v7783 = vmul.f32 %v7714, 1.442695
    %v7784 = vpow.pop %v7783
    %v7785 = vmul.f32 %v7721, 1.442695
    %v7786 = vpow.pop %v7785
    %v7787 = vmul.f32 %v7724, %v7502
    %v7788 = vmul.f32 %v7726, %v7509
    %v7789 = vmul.f32 %v7728, %v7516
    %v7790 = vmul.f32 %v7730, %v7523
    %v7791 = vmul.f32 %v7732, %v7530
    %v7792 = vmul.f32 %v7734, %v7537
    %v7793 = vmul.f32 %v7736, %v7544
    %v7794 = vmul.f32 %v7738, %v7551
    %v7795 = vmul.f32 %v7740, %v7558
    %v7796 = vmul.f32 %v7742, %v7565
    %v7797 = vmul.f32 %v7744, %v7572
    %v7798 = vmul.f32 %v7746, %v7579
    %v7799 = vmul.f32 %v7748, %v7586
    %v7800 = vmul.f32 %v7750, %v7593
    %v7801 = vmul.f32 %v7752, %v7600
    %v7802 = vmul.f32 %v7754, %v7607
    %v7803 = vmul.f32 %v7756, %v7614
    %v7804 = vmul.f32 %v7758, %v7621
    %v7805 = vmul.f32 %v7760, %v7628
    %v7806 = vmul.f32 %v7762, %v7635
    %v7807 = vmul.f32 %v7764, %v7642
    %v7808 = vmul.f32 %v7766, %v7649
    %v7809 = vmul.f32 %v7768, %v7656
    %v7810 = vmul.f32 %v7770, %v7663
    %v7811 = vmul.f32 %v7772, %v7670
    %v7812 = vmul.f32 %v7774, %v7677
    %v7813 = vmul.f32 %v7776, %v7684
    %v7814 = vmul.f32 %v7778, %v7691
    %v7815 = vmul.f32 %v7780, %v7698
    %v7816 = vmul.f32 %v7782, %v7705
    %v7817 = vmul.f32 %v7784, %v7712
    %v7818 = vmul.f32 %v7786, %v7719
    %7819 = vst [vmem:[#allocation7 + $0x200] sm:$0xff] %v7787
    %7820 = vst [vmem:[#allocation7 + $0x208] sm:$0xff] %v7788
    %7821 = vst [vmem:[#allocation7 + $0x210] sm:$0xff] %v7789
    %7822 = vst [vmem:[#allocation7 + $0x218] sm:$0xff] %v7790
    %7823 = vst [vmem:[#allocation7 + $0x220] sm:$0xff] %v7791
    %7824 = vst [vmem:[#allocation7 + $0x228] sm:$0xff] %v7792
    %7825 = vst [vmem:[#allocation7 + $0x230] sm:$0xff] %v7793
    %7826 = vst [vmem:[#allocation7 + $0x238] sm:$0xff] %v7794
    %7827 = vst [vmem:[#allocation7 + $0x240] sm:$0xff] %v7795
    %7828 = vst [vmem:[#allocation7 + $0x248] sm:$0xff] %v7796
    %7829 = vst [vmem:[#allocation7 + $0x250] sm:$0xff] %v7797
    %7830 = vst [vmem:[#allocation7 + $0x258] sm:$0xff] %v7798
    %7831 = vst [vmem:[#allocation7 + $0x260] sm:$0xff] %v7799
    %7832 = vst [vmem:[#allocation7 + $0x268] sm:$0xff] %v7800
    %7833 = vst [vmem:[#allocation7 + $0x270] sm:$0xff] %v7801
    %7834 = vst [vmem:[#allocation7 + $0x278] sm:$0xff] %v7802
    %7835 = vst [vmem:[#allocation7 + $0x280] sm:$0xff] %v7803
    %7836 = vst [vmem:[#allocation7 + $0x288] sm:$0xff] %v7804
    %7837 = vst [vmem:[#allocation7 + $0x290] sm:$0xff] %v7805
    %7838 = vst [vmem:[#allocation7 + $0x298] sm:$0xff] %v7806
    %7839 = vst [vmem:[#allocation7 + $0x2a0] sm:$0xff] %v7807
    %7840 = vst [vmem:[#allocation7 + $0x2a8] sm:$0xff] %v7808
    %7841 = vst [vmem:[#allocation7 + $0x2b0] sm:$0xff] %v7809
    %7842 = vst [vmem:[#allocation7 + $0x2b8] sm:$0xff] %v7810
    %7843 = vst [vmem:[#allocation7 + $0x2c0] sm:$0xff] %v7811
    %7844 = vst [vmem:[#allocation7 + $0x2c8] sm:$0xff] %v7812
    %7845 = vst [vmem:[#allocation7 + $0x2d0] sm:$0xff] %v7813
    %7846 = vst [vmem:[#allocation7 + $0x2d8] sm:$0xff] %v7814
    %7847 = vst [vmem:[#allocation7 + $0x2e0] sm:$0xff] %v7815
    %7848 = vst [vmem:[#allocation7 + $0x2e8] sm:$0xff] %v7816
    %7849 = vst [vmem:[#allocation7 + $0x2f0] sm:$0xff] %v7817
    %7850 = vst [vmem:[#allocation7 + $0x2f8] sm:$0xff] %v7818
    // Predicated region
    $region18: #{tpu_custom_call.1} parent=1 // pred_check
      _
    $region19: #{tpu_custom_call.1} parent=1 // pred_check_branch
      %7852 = sbr.rel (0) target = $region21
    $region20: #{tpu_custom_call.1} parent=1 // pred_region
      %s7854 = ssub.s32 12288, 12288
      %7855 = vsyncadd [#allocation4], %s7854
      %s7856 = sshll.u32 [#allocation7], 4
      %s7857 = int_to_ptr.vmem [resolvable:$true] %s7856
      %7862 = dma.vmem_to_hbm [thread:$0]  %s7857, 12288, %s2, [#allocation4], 128, 128, 8
    $region21: #{tpu_custom_call.1} parent=1 // pred_fallthru
      _
    // Predicated region
    $region22: #{tpu_custom_call.1} parent=1 // pred_check
      _
    $region23: #{tpu_custom_call.1} parent=1 // pred_check_branch
      %7864 = sbr.rel (0) target = $region25
    $region24: #{tpu_custom_call.1} parent=1 // pred_region
      %7865 = dma.done [#allocation4], 12288
    $region25: #{tpu_custom_call.1} parent=1 // pred_fallthru
      _
    %7866 = vsyncpa [#allocation3], 1
    %7867 = vsyncpa [#allocation6], 1
    %7868 = vsyncpa [#allocation4], 1

</llo_original>
